<compile_context>
chip_gen: v6e
topology: v6e:2x2x1
jax: 0.10.0
libtpu: 0.0.40
codegen_flags: <defaults>
</compile_context>

<pallas_src>
import jax
import jax.numpy as jnp
from jax.experimental import pallas as pl
from jax.experimental.pallas import tpu as pltpu

# ----- module hyper-parameters (from convlayer_maskv3.__init__) -------------
K_SIZE = 3
PAD = 1
STRIDE = 1
DILATION = 1

# GaussActivationv2(1.1, 2.0, 1.0, 1.0)  (clamps are no-ops at these values)
GAUSS_A = 1.1
GAUSS_MU = 2.0
GAUSS_SIGMA1 = 1.0
GAUSS_SIGMA2 = 1.0

# MaskUpdate(0.8)
MASK_ALPHA = 0.8
MASK_EPS = 1e-6


def _conv_mask_kernel(x_ref, w_ref, b_ref, upd_ref, act_ref):
    """One (batch, row-block) step.

    x_ref:   (C, Hp, Wp)  padded input image (VMEM, resident across row blocks)
    w_ref:   (nOut*C*9,)  conv weights, flattened (SMEM scalars, OIHW order)
    b_ref:   (nOut,)      bias (SMEM)
    upd_ref: (nOut, TH, W) mask_update output block (NCHW layout)
    act_ref: (nOut, TH, W) maskActiv   output block (NCHW layout)
    """
    C = x_ref.shape[0]
    nOut, TH, W = upd_ref.shape

    # first output row of this row-block (in padded-image row coordinates the
    # 3x3 window for output row r starts at padded row r).
    row0 = pl.multiple_of(pl.program_id(1) * TH, TH)

    for o in range(nOut):
        acc = jnp.zeros((TH, W), jnp.float32)
        for c in range(C):
            for kh in range(K_SIZE):
                # full-width row slab once per (c, kh); kw shifts are cheap value slices.
                slab = x_ref[c, pl.ds(row0 + kh, TH), :]          # (TH, Wp)
                for kw in range(K_SIZE):
                    w_s = w_ref[((o * C + c) * K_SIZE + kh) * K_SIZE + kw]
                    acc = acc + w_s * slab[:, kw:kw + W]
        feat = acc + b_ref[o]

        # --- GaussActivationv2 (branchless) ---
        d = feat - GAUSS_MU
        d2 = d * d
        if GAUSS_SIGMA1 == GAUSS_SIGMA2:
            e1 = jnp.exp(-GAUSS_SIGMA1 * d2)
            e2 = e1                                  # single exp feeds both branches
        else:  # pragma: no cover - not hit at the module's init values
            e1 = jnp.exp(-GAUSS_SIGMA1 * d2)
            e2 = jnp.exp(-GAUSS_SIGMA2 * d2)
        act = jnp.where(feat < GAUSS_MU,
                        GAUSS_A * e1,
                        1.0 + (GAUSS_A - 1.0) * e2)

        # --- MaskUpdate: pow(relu(feat) + 1e-6, alpha) == exp(alpha*log(.)) ---
        base = jnp.maximum(feat, 0.0) + MASK_EPS
        upd = jnp.exp(MASK_ALPHA * jnp.log(base))

        upd_ref[o, :, :] = upd.astype(upd_ref.dtype)
        act_ref[o, :, :] = act.astype(act_ref.dtype)


def _choose_row_tile(H, W):
    """Pick a row-block height: whole image if small, else a multiple-of-8 divisor of H
    keeping TH*W around a few thousand lane elements (register/VMEM friendly)."""
    if H * W <= 4096:
        return H
    best = None
    for th in range(8, H + 1, 8):
        if H % th == 0 and th * W <= 4096:
            best = th
    return best if best is not None else H


def convlayer_maskv3_forward(mask, weight, bias):
    """mask: (N, nIn, H, W) f32.  weight: (nOut, nIn, 3, 3).  bias: (nOut,).
    Returns (mask_update, maskActiv), each (N, nOut, H, W) — same order as PyTorch."""
    N, C, H, W = mask.shape
    nOut = weight.shape[0]
    Hp, Wp = H + 2 * PAD, W + 2 * PAD

    # Only host-side prep: spatial zero padding of the input (required by conv semantics).
    xp = jnp.pad(mask.astype(jnp.float32),
                 ((0, 0), (0, 0), (PAD, PAD), (PAD, PAD)))          # (N, C, Hp, Wp)
    w_flat = weight.astype(jnp.float32).reshape(-1)                 # (nOut*C*9,) OIHW order
    b_flat = bias.astype(jnp.float32).reshape(-1)                   # (nOut,)

    TH = _choose_row_tile(H, W)
    R = H // TH
    grid = (N, R)

    out_shape = (jax.ShapeDtypeStruct((N, nOut, H, W), jnp.float32),
                 jax.ShapeDtypeStruct((N, nOut, H, W), jnp.float32))

    mask_update, mask_activ = pl.pallas_call(
        _conv_mask_kernel,
        out_shape=out_shape,
        grid=grid,
        in_specs=[
            # full padded image for batch n; index map ignores the row axis so the block
            # stays resident in VMEM across all row blocks of the same image.
            pl.BlockSpec((None, C, Hp, Wp), lambda n, r: (n, 0, 0, 0)),
            pl.BlockSpec(memory_space=pltpu.MemorySpace.SMEM),   # weights (scalars)
            pl.BlockSpec(memory_space=pltpu.MemorySpace.SMEM),   # bias    (scalars)
        ],
        out_specs=[
            pl.BlockSpec((None, nOut, TH, W), lambda n, r: (n, 0, r, 0)),
            pl.BlockSpec((None, nOut, TH, W), lambda n, r: (n, 0, r, 0)),
        ],
        compiler_params=pltpu.CompilerParams(
            dimension_semantics=("parallel", "arbitrary"),
            vmem_limit_bytes=32 * 1024 * 1024),
    )(xp, w_flat, b_flat)

    return mask_update, mask_activ


if __name__ == "__main__":
    # small shapes consistent with the module: batch=2, nIn=4, nOut=8, 16x16
    N, nIn, nOut, H, W = 2, 4, 8, 16, 16

    key = jax.random.PRNGKey(0)
    k_x, k_w, k_b = jax.random.split(key, 3)

    x = jax.random.normal(k_x, (N, nIn, H, W), dtype=jnp.float32) + 1.0
    # deterministic Conv2d-style param init (kaiming-uniform-ish bound, fixed seed)
    fan_in = nIn * K_SIZE * K_SIZE
    bound = 1.0 / (fan_in ** 0.5)
    weight = jax.random.uniform(k_w, (nOut, nIn, K_SIZE, K_SIZE),
                                minval=-bound, maxval=bound, dtype=jnp.float32)
    bias = jax.random.uniform(k_b, (nOut,), minval=-bound, maxval=bound,
                              dtype=jnp.float32)

    mask_update, mask_activ = convlayer_maskv3_forward(x, weight, bias)
    jax.block_until_ready((mask_update, mask_activ))

    # lightweight correctness check against a pure-JAX reference
    feat_ref = jax.lax.conv_general_dilated(
        x, weight, window_strides=(1, 1), padding=((PAD, PAD), (PAD, PAD)),
        dimension_numbers=("NCHW", "OIHW", "NCHW")) + bias.reshape(1, nOut, 1, 1)
    d2 = (feat_ref - GAUSS_MU) ** 2
    activ_ref = jnp.where(feat_ref < GAUSS_MU,
                          GAUSS_A * jnp.exp(-GAUSS_SIGMA1 * d2),
                          1.0 + (GAUSS_A - 1.0) * jnp.exp(-GAUSS_SIGMA2 * d2))
    upd_ref = jnp.power(jnp.maximum(feat_ref, 0.0) + MASK_EPS, MASK_ALPHA)
    assert jnp.allclose(mask_activ, activ_ref, atol=1e-4, rtol=1e-4)
    assert jnp.allclose(mask_update, upd_ref, atol=1e-4, rtol=1e-4)

    print("KERNEL_OK")
</pallas_src>

<mosaic_0001>
module attributes {stable_mosaic.version = 11 : i64} {
  func.func @_conv_mask_kernel(%arg0: i32, %arg1: i32, %arg2: memref<1x4x18x18xf32, #tpu.memory_space<vmem>>, %arg3: memref<288xf32, #tpu.memory_space<smem>>, %arg4: memref<8xf32, #tpu.memory_space<smem>>, %arg5: memref<1x8x16x16xf32, #tpu.memory_space<vmem>>, %arg6: memref<1x8x16x16xf32, #tpu.memory_space<vmem>>) attributes {dimension_semantics = [#tpu.dimension_semantics<parallel>, #tpu.dimension_semantics<arbitrary>], iteration_bounds = array<i64: 2, 1>, scalar_prefetch = 0 : i64, scratch_operands = 0 : i64, tpu.core_type = #tpu.core_type<tc>, window_params = [{transform_indices = @transform_0, window_bounds = array<i64: 1, 4, 18, 18>}, {transform_indices = @transform_1, window_bounds = array<i64: 288>}, {transform_indices = @transform_2, window_bounds = array<i64: 8>}, {transform_indices = @transform_3, window_bounds = array<i64: 1, 8, 16, 16>}, {transform_indices = @transform_4, window_bounds = array<i64: 1, 8, 16, 16>}]} {
    %c16_i32 = arith.constant 16 : i32
    %0 = arith.muli %arg1, %c16_i32 : i32
    %1 = tpu.assume_multiple %0, 16 : i32
    %cst = arith.constant 0.000000e+00 : f32
    %2 = vector.broadcast %cst : f32 to vector<16x16xf32>
    %c0_i32 = arith.constant 0 : i32
    %3 = arith.addi %1, %c0_i32 : i32
    %c0 = arith.constant 0 : index
    %c0_0 = arith.constant 0 : index
    %4 = arith.index_cast %3 : i32 to index
    %c0_1 = arith.constant 0 : index
    %5 = vector.load %arg2[%c0, %c0_0, %4, %c0_1] : memref<1x4x18x18xf32, #tpu.memory_space<vmem>>, vector<1x1x16x18xf32>
    %6 = vector.shape_cast %5 : vector<1x1x16x18xf32> to vector<16x18xf32>
    %c0_2 = arith.constant 0 : index
    %7 = memref.load %arg3[%c0_2] : memref<288xf32, #tpu.memory_space<smem>>
    %8 = vector.extract_strided_slice %6 {offsets = [0, 0], sizes = [16, 16], strides = [1, 1]} : vector<16x18xf32> to vector<16x16xf32>
    %9 = vector.broadcast %7 : f32 to vector<16x16xf32>
    %10 = arith.mulf %9, %8 : vector<16x16xf32>
    %11 = arith.addf %2, %10 : vector<16x16xf32>
    %c1 = arith.constant 1 : index
    %12 = memref.load %arg3[%c1] : memref<288xf32, #tpu.memory_space<smem>>
    %13 = vector.extract_strided_slice %6 {offsets = [0, 1], sizes = [16, 16], strides = [1, 1]} : vector<16x18xf32> to vector<16x16xf32>
    %14 = vector.broadcast %12 : f32 to vector<16x16xf32>
    %15 = arith.mulf %14, %13 : vector<16x16xf32>
    %16 = arith.addf %11, %15 : vector<16x16xf32>
    %c2 = arith.constant 2 : index
    %17 = memref.load %arg3[%c2] : memref<288xf32, #tpu.memory_space<smem>>
    %18 = vector.extract_strided_slice %6 {offsets = [0, 2], sizes = [16, 16], strides = [1, 1]} : vector<16x18xf32> to vector<16x16xf32>
    %19 = vector.broadcast %17 : f32 to vector<16x16xf32>
    %20 = arith.mulf %19, %18 : vector<16x16xf32>
    %21 = arith.addf %16, %20 : vector<16x16xf32>
    %c1_i32 = arith.constant 1 : i32
    %22 = arith.addi %1, %c1_i32 : i32
    %c0_3 = arith.constant 0 : index
    %c0_4 = arith.constant 0 : index
    %23 = arith.index_cast %22 : i32 to index
    %c0_5 = arith.constant 0 : index
    %24 = vector.load %arg2[%c0_3, %c0_4, %23, %c0_5] : memref<1x4x18x18xf32, #tpu.memory_space<vmem>>, vector<1x1x16x18xf32>
    %25 = vector.shape_cast %24 : vector<1x1x16x18xf32> to vector<16x18xf32>
    %c3 = arith.constant 3 : index
    %26 = memref.load %arg3[%c3] : memref<288xf32, #tpu.memory_space<smem>>
    %27 = vector.extract_strided_slice %25 {offsets = [0, 0], sizes = [16, 16], strides = [1, 1]} : vector<16x18xf32> to vector<16x16xf32>
    %28 = vector.broadcast %26 : f32 to vector<16x16xf32>
    %29 = arith.mulf %28, %27 : vector<16x16xf32>
    %30 = arith.addf %21, %29 : vector<16x16xf32>
    %c4 = arith.constant 4 : index
    %31 = memref.load %arg3[%c4] : memref<288xf32, #tpu.memory_space<smem>>
    %32 = vector.extract_strided_slice %25 {offsets = [0, 1], sizes = [16, 16], strides = [1, 1]} : vector<16x18xf32> to vector<16x16xf32>
    %33 = vector.broadcast %31 : f32 to vector<16x16xf32>
    %34 = arith.mulf %33, %32 : vector<16x16xf32>
    %35 = arith.addf %30, %34 : vector<16x16xf32>
    %c5 = arith.constant 5 : index
    %36 = memref.load %arg3[%c5] : memref<288xf32, #tpu.memory_space<smem>>
    %37 = vector.extract_strided_slice %25 {offsets = [0, 2], sizes = [16, 16], strides = [1, 1]} : vector<16x18xf32> to vector<16x16xf32>
    %38 = vector.broadcast %36 : f32 to vector<16x16xf32>
    %39 = arith.mulf %38, %37 : vector<16x16xf32>
    %40 = arith.addf %35, %39 : vector<16x16xf32>
    %c2_i32 = arith.constant 2 : i32
    %41 = arith.addi %1, %c2_i32 : i32
    %c0_6 = arith.constant 0 : index
    %c0_7 = arith.constant 0 : index
    %42 = arith.index_cast %41 : i32 to index
    %c0_8 = arith.constant 0 : index
    %43 = vector.load %arg2[%c0_6, %c0_7, %42, %c0_8] : memref<1x4x18x18xf32, #tpu.memory_space<vmem>>, vector<1x1x16x18xf32>
    %44 = vector.shape_cast %43 : vector<1x1x16x18xf32> to vector<16x18xf32>
    %c6 = arith.constant 6 : index
    %45 = memref.load %arg3[%c6] : memref<288xf32, #tpu.memory_space<smem>>
    %46 = vector.extract_strided_slice %44 {offsets = [0, 0], sizes = [16, 16], strides = [1, 1]} : vector<16x18xf32> to vector<16x16xf32>
    %47 = vector.broadcast %45 : f32 to vector<16x16xf32>
    %48 = arith.mulf %47, %46 : vector<16x16xf32>
    %49 = arith.addf %40, %48 : vector<16x16xf32>
    %c7 = arith.constant 7 : index
    %50 = memref.load %arg3[%c7] : memref<288xf32, #tpu.memory_space<smem>>
    %51 = vector.extract_strided_slice %44 {offsets = [0, 1], sizes = [16, 16], strides = [1, 1]} : vector<16x18xf32> to vector<16x16xf32>
    %52 = vector.broadcast %50 : f32 to vector<16x16xf32>
    %53 = arith.mulf %52, %51 : vector<16x16xf32>
    %54 = arith.addf %49, %53 : vector<16x16xf32>
    %c8 = arith.constant 8 : index
    %55 = memref.load %arg3[%c8] : memref<288xf32, #tpu.memory_space<smem>>
    %56 = vector.extract_strided_slice %44 {offsets = [0, 2], sizes = [16, 16], strides = [1, 1]} : vector<16x18xf32> to vector<16x16xf32>
    %57 = vector.broadcast %55 : f32 to vector<16x16xf32>
    %58 = arith.mulf %57, %56 : vector<16x16xf32>
    %59 = arith.addf %54, %58 : vector<16x16xf32>
    %c0_i32_9 = arith.constant 0 : i32
    %60 = arith.addi %1, %c0_i32_9 : i32
    %c0_10 = arith.constant 0 : index
    %c1_11 = arith.constant 1 : index
    %61 = arith.index_cast %60 : i32 to index
    %c0_12 = arith.constant 0 : index
    %62 = vector.load %arg2[%c0_10, %c1_11, %61, %c0_12] : memref<1x4x18x18xf32, #tpu.memory_space<vmem>>, vector<1x1x16x18xf32>
    %63 = vector.shape_cast %62 : vector<1x1x16x18xf32> to vector<16x18xf32>
    %c9 = arith.constant 9 : index
    %64 = memref.load %arg3[%c9] : memref<288xf32, #tpu.memory_space<smem>>
    %65 = vector.extract_strided_slice %63 {offsets = [0, 0], sizes = [16, 16], strides = [1, 1]} : vector<16x18xf32> to vector<16x16xf32>
    %66 = vector.broadcast %64 : f32 to vector<16x16xf32>
    %67 = arith.mulf %66, %65 : vector<16x16xf32>
    %68 = arith.addf %59, %67 : vector<16x16xf32>
    %c10 = arith.constant 10 : index
    %69 = memref.load %arg3[%c10] : memref<288xf32, #tpu.memory_space<smem>>
    %70 = vector.extract_strided_slice %63 {offsets = [0, 1], sizes = [16, 16], strides = [1, 1]} : vector<16x18xf32> to vector<16x16xf32>
    %71 = vector.broadcast %69 : f32 to vector<16x16xf32>
    %72 = arith.mulf %71, %70 : vector<16x16xf32>
    %73 = arith.addf %68, %72 : vector<16x16xf32>
    %c11 = arith.constant 11 : index
    %74 = memref.load %arg3[%c11] : memref<288xf32, #tpu.memory_space<smem>>
    %75 = vector.extract_strided_slice %63 {offsets = [0, 2], sizes = [16, 16], strides = [1, 1]} : vector<16x18xf32> to vector<16x16xf32>
    %76 = vector.broadcast %74 : f32 to vector<16x16xf32>
    %77 = arith.mulf %76, %75 : vector<16x16xf32>
    %78 = arith.addf %73, %77 : vector<16x16xf32>
    %c1_i32_13 = arith.constant 1 : i32
    %79 = arith.addi %1, %c1_i32_13 : i32
    %c0_14 = arith.constant 0 : index
    %c1_15 = arith.constant 1 : index
    %80 = arith.index_cast %79 : i32 to index
    %c0_16 = arith.constant 0 : index
    %81 = vector.load %arg2[%c0_14, %c1_15, %80, %c0_16] : memref<1x4x18x18xf32, #tpu.memory_space<vmem>>, vector<1x1x16x18xf32>
    %82 = vector.shape_cast %81 : vector<1x1x16x18xf32> to vector<16x18xf32>
    %c12 = arith.constant 12 : index
    %83 = memref.load %arg3[%c12] : memref<288xf32, #tpu.memory_space<smem>>
    %84 = vector.extract_strided_slice %82 {offsets = [0, 0], sizes = [16, 16], strides = [1, 1]} : vector<16x18xf32> to vector<16x16xf32>
    %85 = vector.broadcast %83 : f32 to vector<16x16xf32>
    %86 = arith.mulf %85, %84 : vector<16x16xf32>
    %87 = arith.addf %78, %86 : vector<16x16xf32>
    %c13 = arith.constant 13 : index
    %88 = memref.load %arg3[%c13] : memref<288xf32, #tpu.memory_space<smem>>
    %89 = vector.extract_strided_slice %82 {offsets = [0, 1], sizes = [16, 16], strides = [1, 1]} : vector<16x18xf32> to vector<16x16xf32>
    %90 = vector.broadcast %88 : f32 to vector<16x16xf32>
    %91 = arith.mulf %90, %89 : vector<16x16xf32>
    %92 = arith.addf %87, %91 : vector<16x16xf32>
    %c14 = arith.constant 14 : index
    %93 = memref.load %arg3[%c14] : memref<288xf32, #tpu.memory_space<smem>>
    %94 = vector.extract_strided_slice %82 {offsets = [0, 2], sizes = [16, 16], strides = [1, 1]} : vector<16x18xf32> to vector<16x16xf32>
    %95 = vector.broadcast %93 : f32 to vector<16x16xf32>
    %96 = arith.mulf %95, %94 : vector<16x16xf32>
    %97 = arith.addf %92, %96 : vector<16x16xf32>
    %c2_i32_17 = arith.constant 2 : i32
    %98 = arith.addi %1, %c2_i32_17 : i32
    %c0_18 = arith.constant 0 : index
    %c1_19 = arith.constant 1 : index
    %99 = arith.index_cast %98 : i32 to index
    %c0_20 = arith.constant 0 : index
    %100 = vector.load %arg2[%c0_18, %c1_19, %99, %c0_20] : memref<1x4x18x18xf32, #tpu.memory_space<vmem>>, vector<1x1x16x18xf32>
    %101 = vector.shape_cast %100 : vector<1x1x16x18xf32> to vector<16x18xf32>
    %c15 = arith.constant 15 : index
    %102 = memref.load %arg3[%c15] : memref<288xf32, #tpu.memory_space<smem>>
    %103 = vector.extract_strided_slice %101 {offsets = [0, 0], sizes = [16, 16], strides = [1, 1]} : vector<16x18xf32> to vector<16x16xf32>
    %104 = vector.broadcast %102 : f32 to vector<16x16xf32>
    %105 = arith.mulf %104, %103 : vector<16x16xf32>
    %106 = arith.addf %97, %105 : vector<16x16xf32>
    %c16 = arith.constant 16 : index
    %107 = memref.load %arg3[%c16] : memref<288xf32, #tpu.memory_space<smem>>
    %108 = vector.extract_strided_slice %101 {offsets = [0, 1], sizes = [16, 16], strides = [1, 1]} : vector<16x18xf32> to vector<16x16xf32>
    %109 = vector.broadcast %107 : f32 to vector<16x16xf32>
    %110 = arith.mulf %109, %108 : vector<16x16xf32>
    %111 = arith.addf %106, %110 : vector<16x16xf32>
    %c17 = arith.constant 17 : index
    %112 = memref.load %arg3[%c17] : memref<288xf32, #tpu.memory_space<smem>>
    %113 = vector.extract_strided_slice %101 {offsets = [0, 2], sizes = [16, 16], strides = [1, 1]} : vector<16x18xf32> to vector<16x16xf32>
    %114 = vector.broadcast %112 : f32 to vector<16x16xf32>
    %115 = arith.mulf %114, %113 : vector<16x16xf32>
    %116 = arith.addf %111, %115 : vector<16x16xf32>
    %c0_i32_21 = arith.constant 0 : i32
    %117 = arith.addi %1, %c0_i32_21 : i32
    %c0_22 = arith.constant 0 : index
    %c2_23 = arith.constant 2 : index
    %118 = arith.index_cast %117 : i32 to index
    %c0_24 = arith.constant 0 : index
    %119 = vector.load %arg2[%c0_22, %c2_23, %118, %c0_24] : memref<1x4x18x18xf32, #tpu.memory_space<vmem>>, vector<1x1x16x18xf32>
    %120 = vector.shape_cast %119 : vector<1x1x16x18xf32> to vector<16x18xf32>
    %c18 = arith.constant 18 : index
    %121 = memref.load %arg3[%c18] : memref<288xf32, #tpu.memory_space<smem>>
    %122 = vector.extract_strided_slice %120 {offsets = [0, 0], sizes = [16, 16], strides = [1, 1]} : vector<16x18xf32> to vector<16x16xf32>
    %123 = vector.broadcast %121 : f32 to vector<16x16xf32>
    %124 = arith.mulf %123, %122 : vector<16x16xf32>
    %125 = arith.addf %116, %124 : vector<16x16xf32>
    %c19 = arith.constant 19 : index
    %126 = memref.load %arg3[%c19] : memref<288xf32, #tpu.memory_space<smem>>
    %127 = vector.extract_strided_slice %120 {offsets = [0, 1], sizes = [16, 16], strides = [1, 1]} : vector<16x18xf32> to vector<16x16xf32>
    %128 = vector.broadcast %126 : f32 to vector<16x16xf32>
    %129 = arith.mulf %128, %127 : vector<16x16xf32>
    %130 = arith.addf %125, %129 : vector<16x16xf32>
    %c20 = arith.constant 20 : index
    %131 = memref.load %arg3[%c20] : memref<288xf32, #tpu.memory_space<smem>>
    %132 = vector.extract_strided_slice %120 {offsets = [0, 2], sizes = [16, 16], strides = [1, 1]} : vector<16x18xf32> to vector<16x16xf32>
    %133 = vector.broadcast %131 : f32 to vector<16x16xf32>
    %134 = arith.mulf %133, %132 : vector<16x16xf32>
    %135 = arith.addf %130, %134 : vector<16x16xf32>
    %c1_i32_25 = arith.constant 1 : i32
    %136 = arith.addi %1, %c1_i32_25 : i32
    %c0_26 = arith.constant 0 : index
    %c2_27 = arith.constant 2 : index
    %137 = arith.index_cast %136 : i32 to index
    %c0_28 = arith.constant 0 : index
    %138 = vector.load %arg2[%c0_26, %c2_27, %137, %c0_28] : memref<1x4x18x18xf32, #tpu.memory_space<vmem>>, vector<1x1x16x18xf32>
    %139 = vector.shape_cast %138 : vector<1x1x16x18xf32> to vector<16x18xf32>
    %c21 = arith.constant 21 : index
    %140 = memref.load %arg3[%c21] : memref<288xf32, #tpu.memory_space<smem>>
    %141 = vector.extract_strided_slice %139 {offsets = [0, 0], sizes = [16, 16], strides = [1, 1]} : vector<16x18xf32> to vector<16x16xf32>
    %142 = vector.broadcast %140 : f32 to vector<16x16xf32>
    %143 = arith.mulf %142, %141 : vector<16x16xf32>
    %144 = arith.addf %135, %143 : vector<16x16xf32>
    %c22 = arith.constant 22 : index
    %145 = memref.load %arg3[%c22] : memref<288xf32, #tpu.memory_space<smem>>
    %146 = vector.extract_strided_slice %139 {offsets = [0, 1], sizes = [16, 16], strides = [1, 1]} : vector<16x18xf32> to vector<16x16xf32>
    %147 = vector.broadcast %145 : f32 to vector<16x16xf32>
    %148 = arith.mulf %147, %146 : vector<16x16xf32>
    %149 = arith.addf %144, %148 : vector<16x16xf32>
    %c23 = arith.constant 23 : index
    %150 = memref.load %arg3[%c23] : memref<288xf32, #tpu.memory_space<smem>>
    %151 = vector.extract_strided_slice %139 {offsets = [0, 2], sizes = [16, 16], strides = [1, 1]} : vector<16x18xf32> to vector<16x16xf32>
    %152 = vector.broadcast %150 : f32 to vector<16x16xf32>
    %153 = arith.mulf %152, %151 : vector<16x16xf32>
    %154 = arith.addf %149, %153 : vector<16x16xf32>
    %c2_i32_29 = arith.constant 2 : i32
    %155 = arith.addi %1, %c2_i32_29 : i32
    %c0_30 = arith.constant 0 : index
    %c2_31 = arith.constant 2 : index
    %156 = arith.index_cast %155 : i32 to index
    %c0_32 = arith.constant 0 : index
    %157 = vector.load %arg2[%c0_30, %c2_31, %156, %c0_32] : memref<1x4x18x18xf32, #tpu.memory_space<vmem>>, vector<1x1x16x18xf32>
    %158 = vector.shape_cast %157 : vector<1x1x16x18xf32> to vector<16x18xf32>
    %c24 = arith.constant 24 : index
    %159 = memref.load %arg3[%c24] : memref<288xf32, #tpu.memory_space<smem>>
    %160 = vector.extract_strided_slice %158 {offsets = [0, 0], sizes = [16, 16], strides = [1, 1]} : vector<16x18xf32> to vector<16x16xf32>
    %161 = vector.broadcast %159 : f32 to vector<16x16xf32>
    %162 = arith.mulf %161, %160 : vector<16x16xf32>
    %163 = arith.addf %154, %162 : vector<16x16xf32>
    %c25 = arith.constant 25 : index
    %164 = memref.load %arg3[%c25] : memref<288xf32, #tpu.memory_space<smem>>
    %165 = vector.extract_strided_slice %158 {offsets = [0, 1], sizes = [16, 16], strides = [1, 1]} : vector<16x18xf32> to vector<16x16xf32>
    %166 = vector.broadcast %164 : f32 to vector<16x16xf32>
    %167 = arith.mulf %166, %165 : vector<16x16xf32>
    %168 = arith.addf %163, %167 : vector<16x16xf32>
    %c26 = arith.constant 26 : index
    %169 = memref.load %arg3[%c26] : memref<288xf32, #tpu.memory_space<smem>>
    %170 = vector.extract_strided_slice %158 {offsets = [0, 2], sizes = [16, 16], strides = [1, 1]} : vector<16x18xf32> to vector<16x16xf32>
    %171 = vector.broadcast %169 : f32 to vector<16x16xf32>
    %172 = arith.mulf %171, %170 : vector<16x16xf32>
    %173 = arith.addf %168, %172 : vector<16x16xf32>
    %c0_i32_33 = arith.constant 0 : i32
    %174 = arith.addi %1, %c0_i32_33 : i32
    %c0_34 = arith.constant 0 : index
    %c3_35 = arith.constant 3 : index
    %175 = arith.index_cast %174 : i32 to index
    %c0_36 = arith.constant 0 : index
    %176 = vector.load %arg2[%c0_34, %c3_35, %175, %c0_36] : memref<1x4x18x18xf32, #tpu.memory_space<vmem>>, vector<1x1x16x18xf32>
    %177 = vector.shape_cast %176 : vector<1x1x16x18xf32> to vector<16x18xf32>
    %c27 = arith.constant 27 : index
    %178 = memref.load %arg3[%c27] : memref<288xf32, #tpu.memory_space<smem>>
    %179 = vector.extract_strided_slice %177 {offsets = [0, 0], sizes = [16, 16], strides = [1, 1]} : vector<16x18xf32> to vector<16x16xf32>
    %180 = vector.broadcast %178 : f32 to vector<16x16xf32>
    %181 = arith.mulf %180, %179 : vector<16x16xf32>
    %182 = arith.addf %173, %181 : vector<16x16xf32>
    %c28 = arith.constant 28 : index
    %183 = memref.load %arg3[%c28] : memref<288xf32, #tpu.memory_space<smem>>
    %184 = vector.extract_strided_slice %177 {offsets = [0, 1], sizes = [16, 16], strides = [1, 1]} : vector<16x18xf32> to vector<16x16xf32>
    %185 = vector.broadcast %183 : f32 to vector<16x16xf32>
    %186 = arith.mulf %185, %184 : vector<16x16xf32>
    %187 = arith.addf %182, %186 : vector<16x16xf32>
    %c29 = arith.constant 29 : index
    %188 = memref.load %arg3[%c29] : memref<288xf32, #tpu.memory_space<smem>>
    %189 = vector.extract_strided_slice %177 {offsets = [0, 2], sizes = [16, 16], strides = [1, 1]} : vector<16x18xf32> to vector<16x16xf32>
    %190 = vector.broadcast %188 : f32 to vector<16x16xf32>
    %191 = arith.mulf %190, %189 : vector<16x16xf32>
    %192 = arith.addf %187, %191 : vector<16x16xf32>
    %c1_i32_37 = arith.constant 1 : i32
    %193 = arith.addi %1, %c1_i32_37 : i32
    %c0_38 = arith.constant 0 : index
    %c3_39 = arith.constant 3 : index
    %194 = arith.index_cast %193 : i32 to index
    %c0_40 = arith.constant 0 : index
    %195 = vector.load %arg2[%c0_38, %c3_39, %194, %c0_40] : memref<1x4x18x18xf32, #tpu.memory_space<vmem>>, vector<1x1x16x18xf32>
    %196 = vector.shape_cast %195 : vector<1x1x16x18xf32> to vector<16x18xf32>
    %c30 = arith.constant 30 : index
    %197 = memref.load %arg3[%c30] : memref<288xf32, #tpu.memory_space<smem>>
    %198 = vector.extract_strided_slice %196 {offsets = [0, 0], sizes = [16, 16], strides = [1, 1]} : vector<16x18xf32> to vector<16x16xf32>
    %199 = vector.broadcast %197 : f32 to vector<16x16xf32>
    %200 = arith.mulf %199, %198 : vector<16x16xf32>
    %201 = arith.addf %192, %200 : vector<16x16xf32>
    %c31 = arith.constant 31 : index
    %202 = memref.load %arg3[%c31] : memref<288xf32, #tpu.memory_space<smem>>
    %203 = vector.extract_strided_slice %196 {offsets = [0, 1], sizes = [16, 16], strides = [1, 1]} : vector<16x18xf32> to vector<16x16xf32>
    %204 = vector.broadcast %202 : f32 to vector<16x16xf32>
    %205 = arith.mulf %204, %203 : vector<16x16xf32>
    %206 = arith.addf %201, %205 : vector<16x16xf32>
    %c32 = arith.constant 32 : index
    %207 = memref.load %arg3[%c32] : memref<288xf32, #tpu.memory_space<smem>>
    %208 = vector.extract_strided_slice %196 {offsets = [0, 2], sizes = [16, 16], strides = [1, 1]} : vector<16x18xf32> to vector<16x16xf32>
    %209 = vector.broadcast %207 : f32 to vector<16x16xf32>
    %210 = arith.mulf %209, %208 : vector<16x16xf32>
    %211 = arith.addf %206, %210 : vector<16x16xf32>
    %c2_i32_41 = arith.constant 2 : i32
    %212 = arith.addi %1, %c2_i32_41 : i32
    %c0_42 = arith.constant 0 : index
    %c3_43 = arith.constant 3 : index
    %213 = arith.index_cast %212 : i32 to index
    %c0_44 = arith.constant 0 : index
    %214 = vector.load %arg2[%c0_42, %c3_43, %213, %c0_44] : memref<1x4x18x18xf32, #tpu.memory_space<vmem>>, vector<1x1x16x18xf32>
    %215 = vector.shape_cast %214 : vector<1x1x16x18xf32> to vector<16x18xf32>
    %c33 = arith.constant 33 : index
    %216 = memref.load %arg3[%c33] : memref<288xf32, #tpu.memory_space<smem>>
    %217 = vector.extract_strided_slice %215 {offsets = [0, 0], sizes = [16, 16], strides = [1, 1]} : vector<16x18xf32> to vector<16x16xf32>
    %218 = vector.broadcast %216 : f32 to vector<16x16xf32>
    %219 = arith.mulf %218, %217 : vector<16x16xf32>
    %220 = arith.addf %211, %219 : vector<16x16xf32>
    %c34 = arith.constant 34 : index
    %221 = memref.load %arg3[%c34] : memref<288xf32, #tpu.memory_space<smem>>
    %222 = vector.extract_strided_slice %215 {offsets = [0, 1], sizes = [16, 16], strides = [1, 1]} : vector<16x18xf32> to vector<16x16xf32>
    %223 = vector.broadcast %221 : f32 to vector<16x16xf32>
    %224 = arith.mulf %223, %222 : vector<16x16xf32>
    %225 = arith.addf %220, %224 : vector<16x16xf32>
    %c35 = arith.constant 35 : index
    %226 = memref.load %arg3[%c35] : memref<288xf32, #tpu.memory_space<smem>>
    %227 = vector.extract_strided_slice %215 {offsets = [0, 2], sizes = [16, 16], strides = [1, 1]} : vector<16x18xf32> to vector<16x16xf32>
    %228 = vector.broadcast %226 : f32 to vector<16x16xf32>
    %229 = arith.mulf %228, %227 : vector<16x16xf32>
    %230 = arith.addf %225, %229 : vector<16x16xf32>
    %c0_45 = arith.constant 0 : index
    %231 = memref.load %arg4[%c0_45] : memref<8xf32, #tpu.memory_space<smem>>
    %232 = vector.broadcast %231 : f32 to vector<16x16xf32>
    %233 = arith.addf %230, %232 : vector<16x16xf32>
    %cst_46 = arith.constant 2.000000e+00 : f32
    %234 = vector.broadcast %cst_46 : f32 to vector<16x16xf32>
    %235 = arith.subf %233, %234 : vector<16x16xf32>
    %236 = arith.mulf %235, %235 : vector<16x16xf32>
    %cst_47 = arith.constant -1.000000e+00 : f32
    %237 = vector.broadcast %cst_47 : f32 to vector<16x16xf32>
    %238 = arith.mulf %237, %236 : vector<16x16xf32>
    %239 = math.exp %238 : vector<16x16xf32>
    %cst_48 = arith.constant 2.000000e+00 : f32
    %240 = vector.broadcast %cst_48 : f32 to vector<16x16xf32>
    %241 = arith.cmpf olt, %233, %240 : vector<16x16xf32>
    %cst_49 = arith.constant 1.100000e+00 : f32
    %242 = vector.broadcast %cst_49 : f32 to vector<16x16xf32>
    %243 = arith.mulf %242, %239 : vector<16x16xf32>
    %cst_50 = arith.constant 1.000000e-01 : f32
    %244 = vector.broadcast %cst_50 : f32 to vector<16x16xf32>
    %245 = arith.mulf %244, %239 : vector<16x16xf32>
    %cst_51 = arith.constant 1.000000e+00 : f32
    %246 = vector.broadcast %cst_51 : f32 to vector<16x16xf32>
    %247 = arith.addf %246, %245 : vector<16x16xf32>
    %248 = arith.select %241, %243, %247 : vector<16x16xi1>, vector<16x16xf32>
    %cst_52 = arith.constant 0.000000e+00 : f32
    %249 = vector.broadcast %cst_52 : f32 to vector<16x16xf32>
    %250 = arith.maximumf %233, %249 : vector<16x16xf32>
    %cst_53 = arith.constant 9.99999997E-7 : f32
    %251 = vector.broadcast %cst_53 : f32 to vector<16x16xf32>
    %252 = arith.addf %250, %251 : vector<16x16xf32>
    %253 = math.log %252 : vector<16x16xf32>
    %cst_54 = arith.constant 8.000000e-01 : f32
    %254 = vector.broadcast %cst_54 : f32 to vector<16x16xf32>
    %255 = arith.mulf %254, %253 : vector<16x16xf32>
    %256 = math.exp %255 : vector<16x16xf32>
    %c0_55 = arith.constant 0 : index
    %c0_56 = arith.constant 0 : index
    %c0_57 = arith.constant 0 : index
    %c0_58 = arith.constant 0 : index
    %257 = vector.load %arg5[%c0_55, %c0_56, %c0_57, %c0_58] : memref<1x8x16x16xf32, #tpu.memory_space<vmem>>, vector<1x1x16x16xf32>
    %258 = vector.shape_cast %257 : vector<1x1x16x16xf32> to vector<16x16xf32>
    %259 = vector.shape_cast %256 : vector<16x16xf32> to vector<1x1x16x16xf32>
    tpu.vector_store %arg5[%c0_55, %c0_56, %c0_57, %c0_58], %259 {strides = array<i32>} : memref<1x8x16x16xf32, #tpu.memory_space<vmem>>, vector<1x1x16x16xf32>,
    %c0_59 = arith.constant 0 : index
    %c0_60 = arith.constant 0 : index
    %c0_61 = arith.constant 0 : index
    %c0_62 = arith.constant 0 : index
    %260 = vector.load %arg6[%c0_59, %c0_60, %c0_61, %c0_62] : memref<1x8x16x16xf32, #tpu.memory_space<vmem>>, vector<1x1x16x16xf32>
    %261 = vector.shape_cast %260 : vector<1x1x16x16xf32> to vector<16x16xf32>
    %262 = vector.shape_cast %248 : vector<16x16xf32> to vector<1x1x16x16xf32>
    tpu.vector_store %arg6[%c0_59, %c0_60, %c0_61, %c0_62], %262 {strides = array<i32>} : memref<1x8x16x16xf32, #tpu.memory_space<vmem>>, vector<1x1x16x16xf32>,
    %cst_63 = arith.constant 0.000000e+00 : f32
    %263 = vector.broadcast %cst_63 : f32 to vector<16x16xf32>
    %c0_i32_64 = arith.constant 0 : i32
    %264 = arith.addi %1, %c0_i32_64 : i32
    %c0_65 = arith.constant 0 : index
    %c0_66 = arith.constant 0 : index
    %265 = arith.index_cast %264 : i32 to index
    %c0_67 = arith.constant 0 : index
    %266 = vector.load %arg2[%c0_65, %c0_66, %265, %c0_67] : memref<1x4x18x18xf32, #tpu.memory_space<vmem>>, vector<1x1x16x18xf32>
    %267 = vector.shape_cast %266 : vector<1x1x16x18xf32> to vector<16x18xf32>
    %c36 = arith.constant 36 : index
    %268 = memref.load %arg3[%c36] : memref<288xf32, #tpu.memory_space<smem>>
    %269 = vector.extract_strided_slice %267 {offsets = [0, 0], sizes = [16, 16], strides = [1, 1]} : vector<16x18xf32> to vector<16x16xf32>
    %270 = vector.broadcast %268 : f32 to vector<16x16xf32>
    %271 = arith.mulf %270, %269 : vector<16x16xf32>
    %272 = arith.addf %263, %271 : vector<16x16xf32>
    %c37 = arith.constant 37 : index
    %273 = memref.load %arg3[%c37] : memref<288xf32, #tpu.memory_space<smem>>
    %274 = vector.extract_strided_slice %267 {offsets = [0, 1], sizes = [16, 16], strides = [1, 1]} : vector<16x18xf32> to vector<16x16xf32>
    %275 = vector.broadcast %273 : f32 to vector<16x16xf32>
    %276 = arith.mulf %275, %274 : vector<16x16xf32>
    %277 = arith.addf %272, %276 : vector<16x16xf32>
    %c38 = arith.constant 38 : index
    %278 = memref.load %arg3[%c38] : memref<288xf32, #tpu.memory_space<smem>>
    %279 = vector.extract_strided_slice %267 {offsets = [0, 2], sizes = [16, 16], strides = [1, 1]} : vector<16x18xf32> to vector<16x16xf32>
    %280 = vector.broadcast %278 : f32 to vector<16x16xf32>
    %281 = arith.mulf %280, %279 : vector<16x16xf32>
    %282 = arith.addf %277, %281 : vector<16x16xf32>
    %c1_i32_68 = arith.constant 1 : i32
    %283 = arith.addi %1, %c1_i32_68 : i32
    %c0_69 = arith.constant 0 : index
    %c0_70 = arith.constant 0 : index
    %284 = arith.index_cast %283 : i32 to index
    %c0_71 = arith.constant 0 : index
    %285 = vector.load %arg2[%c0_69, %c0_70, %284, %c0_71] : memref<1x4x18x18xf32, #tpu.memory_space<vmem>>, vector<1x1x16x18xf32>
    %286 = vector.shape_cast %285 : vector<1x1x16x18xf32> to vector<16x18xf32>
    %c39 = arith.constant 39 : index
    %287 = memref.load %arg3[%c39] : memref<288xf32, #tpu.memory_space<smem>>
    %288 = vector.extract_strided_slice %286 {offsets = [0, 0], sizes = [16, 16], strides = [1, 1]} : vector<16x18xf32> to vector<16x16xf32>
    %289 = vector.broadcast %287 : f32 to vector<16x16xf32>
    %290 = arith.mulf %289, %288 : vector<16x16xf32>
    %291 = arith.addf %282, %290 : vector<16x16xf32>
    %c40 = arith.constant 40 : index
    %292 = memref.load %arg3[%c40] : memref<288xf32, #tpu.memory_space<smem>>
    %293 = vector.extract_strided_slice %286 {offsets = [0, 1], sizes = [16, 16], strides = [1, 1]} : vector<16x18xf32> to vector<16x16xf32>
    %294 = vector.broadcast %292 : f32 to vector<16x16xf32>
    %295 = arith.mulf %294, %293 : vector<16x16xf32>
    %296 = arith.addf %291, %295 : vector<16x16xf32>
    %c41 = arith.constant 41 : index
    %297 = memref.load %arg3[%c41] : memref<288xf32, #tpu.memory_space<smem>>
    %298 = vector.extract_strided_slice %286 {offsets = [0, 2], sizes = [16, 16], strides = [1, 1]} : vector<16x18xf32> to vector<16x16xf32>
    %299 = vector.broadcast %297 : f32 to vector<16x16xf32>
    %300 = arith.mulf %299, %298 : vector<16x16xf32>
    %301 = arith.addf %296, %300 : vector<16x16xf32>
    %c2_i32_72 = arith.constant 2 : i32
    %302 = arith.addi %1, %c2_i32_72 : i32
    %c0_73 = arith.constant 0 : index
    %c0_74 = arith.constant 0 : index
    %303 = arith.index_cast %302 : i32 to index
    %c0_75 = arith.constant 0 : index
    %304 = vector.load %arg2[%c0_73, %c0_74, %303, %c0_75] : memref<1x4x18x18xf32, #tpu.memory_space<vmem>>, vector<1x1x16x18xf32>
    %305 = vector.shape_cast %304 : vector<1x1x16x18xf32> to vector<16x18xf32>
    %c42 = arith.constant 42 : index
    %306 = memref.load %arg3[%c42] : memref<288xf32, #tpu.memory_space<smem>>
    %307 = vector.extract_strided_slice %305 {offsets = [0, 0], sizes = [16, 16], strides = [1, 1]} : vector<16x18xf32> to vector<16x16xf32>
    %308 = vector.broadcast %306 : f32 to vector<16x16xf32>
    %309 = arith.mulf %308, %307 : vector<16x16xf32>
    %310 = arith.addf %301, %309 : vector<16x16xf32>
    %c43 = arith.constant 43 : index
    %311 = memref.load %arg3[%c43] : memref<288xf32, #tpu.memory_space<smem>>
    %312 = vector.extract_strided_slice %305 {offsets = [0, 1], sizes = [16, 16], strides = [1, 1]} : vector<16x18xf32> to vector<16x16xf32>
    %313 = vector.broadcast %311 : f32 to vector<16x16xf32>
    %314 = arith.mulf %313, %312 : vector<16x16xf32>
    %315 = arith.addf %310, %314 : vector<16x16xf32>
    %c44 = arith.constant 44 : index
    %316 = memref.load %arg3[%c44] : memref<288xf32, #tpu.memory_space<smem>>
    %317 = vector.extract_strided_slice %305 {offsets = [0, 2], sizes = [16, 16], strides = [1, 1]} : vector<16x18xf32> to vector<16x16xf32>
    %318 = vector.broadcast %316 : f32 to vector<16x16xf32>
    %319 = arith.mulf %318, %317 : vector<16x16xf32>
    %320 = arith.addf %315, %319 : vector<16x16xf32>
    %c0_i32_76 = arith.constant 0 : i32
    %321 = arith.addi %1, %c0_i32_76 : i32
    %c0_77 = arith.constant 0 : index
    %c1_78 = arith.constant 1 : index
    %322 = arith.index_cast %321 : i32 to index
    %c0_79 = arith.constant 0 : index
    %323 = vector.load %arg2[%c0_77, %c1_78, %322, %c0_79] : memref<1x4x18x18xf32, #tpu.memory_space<vmem>>, vector<1x1x16x18xf32>
    %324 = vector.shape_cast %323 : vector<1x1x16x18xf32> to vector<16x18xf32>
    %c45 = arith.constant 45 : index
    %325 = memref.load %arg3[%c45] : memref<288xf32, #tpu.memory_space<smem>>
    %326 = vector.extract_strided_slice %324 {offsets = [0, 0], sizes = [16, 16], strides = [1, 1]} : vector<16x18xf32> to vector<16x16xf32>
    %327 = vector.broadcast %325 : f32 to vector<16x16xf32>
    %328 = arith.mulf %327, %326 : vector<16x16xf32>
    %329 = arith.addf %320, %328 : vector<16x16xf32>
    %c46 = arith.constant 46 : index
    %330 = memref.load %arg3[%c46] : memref<288xf32, #tpu.memory_space<smem>>
    %331 = vector.extract_strided_slice %324 {offsets = [0, 1], sizes = [16, 16], strides = [1, 1]} : vector<16x18xf32> to vector<16x16xf32>
    %332 = vector.broadcast %330 : f32 to vector<16x16xf32>
    %333 = arith.mulf %332, %331 : vector<16x16xf32>
    %334 = arith.addf %329, %333 : vector<16x16xf32>
    %c47 = arith.constant 47 : index
    %335 = memref.load %arg3[%c47] : memref<288xf32, #tpu.memory_space<smem>>
    %336 = vector.extract_strided_slice %324 {offsets = [0, 2], sizes = [16, 16], strides = [1, 1]} : vector<16x18xf32> to vector<16x16xf32>
    %337 = vector.broadcast %335 : f32 to vector<16x16xf32>
    %338 = arith.mulf %337, %336 : vector<16x16xf32>
    %339 = arith.addf %334, %338 : vector<16x16xf32>
    %c1_i32_80 = arith.constant 1 : i32
    %340 = arith.addi %1, %c1_i32_80 : i32
    %c0_81 = arith.constant 0 : index
    %c1_82 = arith.constant 1 : index
    %341 = arith.index_cast %340 : i32 to index
    %c0_83 = arith.constant 0 : index
    %342 = vector.load %arg2[%c0_81, %c1_82, %341, %c0_83] : memref<1x4x18x18xf32, #tpu.memory_space<vmem>>, vector<1x1x16x18xf32>
    %343 = vector.shape_cast %342 : vector<1x1x16x18xf32> to vector<16x18xf32>
    %c48 = arith.constant 48 : index
    %344 = memref.load %arg3[%c48] : memref<288xf32, #tpu.memory_space<smem>>
    %345 = vector.extract_strided_slice %343 {offsets = [0, 0], sizes = [16, 16], strides = [1, 1]} : vector<16x18xf32> to vector<16x16xf32>
    %346 = vector.broadcast %344 : f32 to vector<16x16xf32>
    %347 = arith.mulf %346, %345 : vector<16x16xf32>
    %348 = arith.addf %339, %347 : vector<16x16xf32>
    %c49 = arith.constant 49 : index
    %349 = memref.load %arg3[%c49] : memref<288xf32, #tpu.memory_space<smem>>
    %350 = vector.extract_strided_slice %343 {offsets = [0, 1], sizes = [16, 16], strides = [1, 1]} : vector<16x18xf32> to vector<16x16xf32>
    %351 = vector.broadcast %349 : f32 to vector<16x16xf32>
    %352 = arith.mulf %351, %350 : vector<16x16xf32>
    %353 = arith.addf %348, %352 : vector<16x16xf32>
    %c50 = arith.constant 50 : index
    %354 = memref.load %arg3[%c50] : memref<288xf32, #tpu.memory_space<smem>>
    %355 = vector.extract_strided_slice %343 {offsets = [0, 2], sizes = [16, 16], strides = [1, 1]} : vector<16x18xf32> to vector<16x16xf32>
    %356 = vector.broadcast %354 : f32 to vector<16x16xf32>
    %357 = arith.mulf %356, %355 : vector<16x16xf32>
    %358 = arith.addf %353, %357 : vector<16x16xf32>
    %c2_i32_84 = arith.constant 2 : i32
    %359 = arith.addi %1, %c2_i32_84 : i32
    %c0_85 = arith.constant 0 : index
    %c1_86 = arith.constant 1 : index
    %360 = arith.index_cast %359 : i32 to index
    %c0_87 = arith.constant 0 : index
    %361 = vector.load %arg2[%c0_85, %c1_86, %360, %c0_87] : memref<1x4x18x18xf32, #tpu.memory_space<vmem>>, vector<1x1x16x18xf32>
    %362 = vector.shape_cast %361 : vector<1x1x16x18xf32> to vector<16x18xf32>
    %c51 = arith.constant 51 : index
    %363 = memref.load %arg3[%c51] : memref<288xf32, #tpu.memory_space<smem>>
    %364 = vector.extract_strided_slice %362 {offsets = [0, 0], sizes = [16, 16], strides = [1, 1]} : vector<16x18xf32> to vector<16x16xf32>
    %365 = vector.broadcast %363 : f32 to vector<16x16xf32>
    %366 = arith.mulf %365, %364 : vector<16x16xf32>
    %367 = arith.addf %358, %366 : vector<16x16xf32>
    %c52 = arith.constant 52 : index
    %368 = memref.load %arg3[%c52] : memref<288xf32, #tpu.memory_space<smem>>
    %369 = vector.extract_strided_slice %362 {offsets = [0, 1], sizes = [16, 16], strides = [1, 1]} : vector<16x18xf32> to vector<16x16xf32>
    %370 = vector.broadcast %368 : f32 to vector<16x16xf32>
    %371 = arith.mulf %370, %369 : vector<16x16xf32>
    %372 = arith.addf %367, %371 : vector<16x16xf32>
    %c53 = arith.constant 53 : index
    %373 = memref.load %arg3[%c53] : memref<288xf32, #tpu.memory_space<smem>>
    %374 = vector.extract_strided_slice %362 {offsets = [0, 2], sizes = [16, 16], strides = [1, 1]} : vector<16x18xf32> to vector<16x16xf32>
    %375 = vector.broadcast %373 : f32 to vector<16x16xf32>
    %376 = arith.mulf %375, %374 : vector<16x16xf32>
    %377 = arith.addf %372, %376 : vector<16x16xf32>
    %c0_i32_88 = arith.constant 0 : i32
    %378 = arith.addi %1, %c0_i32_88 : i32
    %c0_89 = arith.constant 0 : index
    %c2_90 = arith.constant 2 : index
    %379 = arith.index_cast %378 : i32 to index
    %c0_91 = arith.constant 0 : index
    %380 = vector.load %arg2[%c0_89, %c2_90, %379, %c0_91] : memref<1x4x18x18xf32, #tpu.memory_space<vmem>>, vector<1x1x16x18xf32>
    %381 = vector.shape_cast %380 : vector<1x1x16x18xf32> to vector<16x18xf32>
    %c54 = arith.constant 54 : index
    %382 = memref.load %arg3[%c54] : memref<288xf32, #tpu.memory_space<smem>>
    %383 = vector.extract_strided_slice %381 {offsets = [0, 0], sizes = [16, 16], strides = [1, 1]} : vector<16x18xf32> to vector<16x16xf32>
    %384 = vector.broadcast %382 : f32 to vector<16x16xf32>
    %385 = arith.mulf %384, %383 : vector<16x16xf32>
    %386 = arith.addf %377, %385 : vector<16x16xf32>
    %c55 = arith.constant 55 : index
    %387 = memref.load %arg3[%c55] : memref<288xf32, #tpu.memory_space<smem>>
    %388 = vector.extract_strided_slice %381 {offsets = [0, 1], sizes = [16, 16], strides = [1, 1]} : vector<16x18xf32> to vector<16x16xf32>
    %389 = vector.broadcast %387 : f32 to vector<16x16xf32>
    %390 = arith.mulf %389, %388 : vector<16x16xf32>
    %391 = arith.addf %386, %390 : vector<16x16xf32>
    %c56 = arith.constant 56 : index
    %392 = memref.load %arg3[%c56] : memref<288xf32, #tpu.memory_space<smem>>
    %393 = vector.extract_strided_slice %381 {offsets = [0, 2], sizes = [16, 16], strides = [1, 1]} : vector<16x18xf32> to vector<16x16xf32>
    %394 = vector.broadcast %392 : f32 to vector<16x16xf32>
    %395 = arith.mulf %394, %393 : vector<16x16xf32>
    %396 = arith.addf %391, %395 : vector<16x16xf32>
    %c1_i32_92 = arith.constant 1 : i32
    %397 = arith.addi %1, %c1_i32_92 : i32
    %c0_93 = arith.constant 0 : index
    %c2_94 = arith.constant 2 : index
    %398 = arith.index_cast %397 : i32 to index
    %c0_95 = arith.constant 0 : index
    %399 = vector.load %arg2[%c0_93, %c2_94, %398, %c0_95] : memref<1x4x18x18xf32, #tpu.memory_space<vmem>>, vector<1x1x16x18xf32>
    %400 = vector.shape_cast %399 : vector<1x1x16x18xf32> to vector<16x18xf32>
    %c57 = arith.constant 57 : index
    %401 = memref.load %arg3[%c57] : memref<288xf32, #tpu.memory_space<smem>>
    %402 = vector.extract_strided_slice %400 {offsets = [0, 0], sizes = [16, 16], strides = [1, 1]} : vector<16x18xf32> to vector<16x16xf32>
    %403 = vector.broadcast %401 : f32 to vector<16x16xf32>
    %404 = arith.mulf %403, %402 : vector<16x16xf32>
    %405 = arith.addf %396, %404 : vector<16x16xf32>
    %c58 = arith.constant 58 : index
    %406 = memref.load %arg3[%c58] : memref<288xf32, #tpu.memory_space<smem>>
    %407 = vector.extract_strided_slice %400 {offsets = [0, 1], sizes = [16, 16], strides = [1, 1]} : vector<16x18xf32> to vector<16x16xf32>
    %408 = vector.broadcast %406 : f32 to vector<16x16xf32>
    %409 = arith.mulf %408, %407 : vector<16x16xf32>
    %410 = arith.addf %405, %409 : vector<16x16xf32>
    %c59 = arith.constant 59 : index
    %411 = memref.load %arg3[%c59] : memref<288xf32, #tpu.memory_space<smem>>
    %412 = vector.extract_strided_slice %400 {offsets = [0, 2], sizes = [16, 16], strides = [1, 1]} : vector<16x18xf32> to vector<16x16xf32>
    %413 = vector.broadcast %411 : f32 to vector<16x16xf32>
    %414 = arith.mulf %413, %412 : vector<16x16xf32>
    %415 = arith.addf %410, %414 : vector<16x16xf32>
    %c2_i32_96 = arith.constant 2 : i32
    %416 = arith.addi %1, %c2_i32_96 : i32
    %c0_97 = arith.constant 0 : index
    %c2_98 = arith.constant 2 : index
    %417 = arith.index_cast %416 : i32 to index
    %c0_99 = arith.constant 0 : index
    %418 = vector.load %arg2[%c0_97, %c2_98, %417, %c0_99] : memref<1x4x18x18xf32, #tpu.memory_space<vmem>>, vector<1x1x16x18xf32>
    %419 = vector.shape_cast %418 : vector<1x1x16x18xf32> to vector<16x18xf32>
    %c60 = arith.constant 60 : index
    %420 = memref.load %arg3[%c60] : memref<288xf32, #tpu.memory_space<smem>>
    %421 = vector.extract_strided_slice %419 {offsets = [0, 0], sizes = [16, 16], strides = [1, 1]} : vector<16x18xf32> to vector<16x16xf32>
    %422 = vector.broadcast %420 : f32 to vector<16x16xf32>
    %423 = arith.mulf %422, %421 : vector<16x16xf32>
    %424 = arith.addf %415, %423 : vector<16x16xf32>
    %c61 = arith.constant 61 : index
    %425 = memref.load %arg3[%c61] : memref<288xf32, #tpu.memory_space<smem>>
    %426 = vector.extract_strided_slice %419 {offsets = [0, 1], sizes = [16, 16], strides = [1, 1]} : vector<16x18xf32> to vector<16x16xf32>
    %427 = vector.broadcast %425 : f32 to vector<16x16xf32>
    %428 = arith.mulf %427, %426 : vector<16x16xf32>
    %429 = arith.addf %424, %428 : vector<16x16xf32>
    %c62 = arith.constant 62 : index
    %430 = memref.load %arg3[%c62] : memref<288xf32, #tpu.memory_space<smem>>
    %431 = vector.extract_strided_slice %419 {offsets = [0, 2], sizes = [16, 16], strides = [1, 1]} : vector<16x18xf32> to vector<16x16xf32>
    %432 = vector.broadcast %430 : f32 to vector<16x16xf32>
    %433 = arith.mulf %432, %431 : vector<16x16xf32>
    %434 = arith.addf %429, %433 : vector<16x16xf32>
    %c0_i32_100 = arith.constant 0 : i32
    %435 = arith.addi %1, %c0_i32_100 : i32
    %c0_101 = arith.constant 0 : index
    %c3_102 = arith.constant 3 : index
    %436 = arith.index_cast %435 : i32 to index
    %c0_103 = arith.constant 0 : index
    %437 = vector.load %arg2[%c0_101, %c3_102, %436, %c0_103] : memref<1x4x18x18xf32, #tpu.memory_space<vmem>>, vector<1x1x16x18xf32>
    %438 = vector.shape_cast %437 : vector<1x1x16x18xf32> to vector<16x18xf32>
    %c63 = arith.constant 63 : index
    %439 = memref.load %arg3[%c63] : memref<288xf32, #tpu.memory_space<smem>>
    %440 = vector.extract_strided_slice %438 {offsets = [0, 0], sizes = [16, 16], strides = [1, 1]} : vector<16x18xf32> to vector<16x16xf32>
    %441 = vector.broadcast %439 : f32 to vector<16x16xf32>
    %442 = arith.mulf %441, %440 : vector<16x16xf32>
    %443 = arith.addf %434, %442 : vector<16x16xf32>
    %c64 = arith.constant 64 : index
    %444 = memref.load %arg3[%c64] : memref<288xf32, #tpu.memory_space<smem>>
    %445 = vector.extract_strided_slice %438 {offsets = [0, 1], sizes = [16, 16], strides = [1, 1]} : vector<16x18xf32> to vector<16x16xf32>
    %446 = vector.broadcast %444 : f32 to vector<16x16xf32>
    %447 = arith.mulf %446, %445 : vector<16x16xf32>
    %448 = arith.addf %443, %447 : vector<16x16xf32>
    %c65 = arith.constant 65 : index
    %449 = memref.load %arg3[%c65] : memref<288xf32, #tpu.memory_space<smem>>
    %450 = vector.extract_strided_slice %438 {offsets = [0, 2], sizes = [16, 16], strides = [1, 1]} : vector<16x18xf32> to vector<16x16xf32>
    %451 = vector.broadcast %449 : f32 to vector<16x16xf32>
    %452 = arith.mulf %451, %450 : vector<16x16xf32>
    %453 = arith.addf %448, %452 : vector<16x16xf32>
    %c1_i32_104 = arith.constant 1 : i32
    %454 = arith.addi %1, %c1_i32_104 : i32
    %c0_105 = arith.constant 0 : index
    %c3_106 = arith.constant 3 : index
    %455 = arith.index_cast %454 : i32 to index
    %c0_107 = arith.constant 0 : index
    %456 = vector.load %arg2[%c0_105, %c3_106, %455, %c0_107] : memref<1x4x18x18xf32, #tpu.memory_space<vmem>>, vector<1x1x16x18xf32>
    %457 = vector.shape_cast %456 : vector<1x1x16x18xf32> to vector<16x18xf32>
    %c66 = arith.constant 66 : index
    %458 = memref.load %arg3[%c66] : memref<288xf32, #tpu.memory_space<smem>>
    %459 = vector.extract_strided_slice %457 {offsets = [0, 0], sizes = [16, 16], strides = [1, 1]} : vector<16x18xf32> to vector<16x16xf32>
    %460 = vector.broadcast %458 : f32 to vector<16x16xf32>
    %461 = arith.mulf %460, %459 : vector<16x16xf32>
    %462 = arith.addf %453, %461 : vector<16x16xf32>
    %c67 = arith.constant 67 : index
    %463 = memref.load %arg3[%c67] : memref<288xf32, #tpu.memory_space<smem>>
    %464 = vector.extract_strided_slice %457 {offsets = [0, 1], sizes = [16, 16], strides = [1, 1]} : vector<16x18xf32> to vector<16x16xf32>
    %465 = vector.broadcast %463 : f32 to vector<16x16xf32>
    %466 = arith.mulf %465, %464 : vector<16x16xf32>
    %467 = arith.addf %462, %466 : vector<16x16xf32>
    %c68 = arith.constant 68 : index
    %468 = memref.load %arg3[%c68] : memref<288xf32, #tpu.memory_space<smem>>
    %469 = vector.extract_strided_slice %457 {offsets = [0, 2], sizes = [16, 16], strides = [1, 1]} : vector<16x18xf32> to vector<16x16xf32>
    %470 = vector.broadcast %468 : f32 to vector<16x16xf32>
    %471 = arith.mulf %470, %469 : vector<16x16xf32>
    %472 = arith.addf %467, %471 : vector<16x16xf32>
    %c2_i32_108 = arith.constant 2 : i32
    %473 = arith.addi %1, %c2_i32_108 : i32
    %c0_109 = arith.constant 0 : index
    %c3_110 = arith.constant 3 : index
    %474 = arith.index_cast %473 : i32 to index
    %c0_111 = arith.constant 0 : index
    %475 = vector.load %arg2[%c0_109, %c3_110, %474, %c0_111] : memref<1x4x18x18xf32, #tpu.memory_space<vmem>>, vector<1x1x16x18xf32>
    %476 = vector.shape_cast %475 : vector<1x1x16x18xf32> to vector<16x18xf32>
    %c69 = arith.constant 69 : index
    %477 = memref.load %arg3[%c69] : memref<288xf32, #tpu.memory_space<smem>>
    %478 = vector.extract_strided_slice %476 {offsets = [0, 0], sizes = [16, 16], strides = [1, 1]} : vector<16x18xf32> to vector<16x16xf32>
    %479 = vector.broadcast %477 : f32 to vector<16x16xf32>
    %480 = arith.mulf %479, %478 : vector<16x16xf32>
    %481 = arith.addf %472, %480 : vector<16x16xf32>
    %c70 = arith.constant 70 : index
    %482 = memref.load %arg3[%c70] : memref<288xf32, #tpu.memory_space<smem>>
    %483 = vector.extract_strided_slice %476 {offsets = [0, 1], sizes = [16, 16], strides = [1, 1]} : vector<16x18xf32> to vector<16x16xf32>
    %484 = vector.broadcast %482 : f32 to vector<16x16xf32>
    %485 = arith.mulf %484, %483 : vector<16x16xf32>
    %486 = arith.addf %481, %485 : vector<16x16xf32>
    %c71 = arith.constant 71 : index
    %487 = memref.load %arg3[%c71] : memref<288xf32, #tpu.memory_space<smem>>
    %488 = vector.extract_strided_slice %476 {offsets = [0, 2], sizes = [16, 16], strides = [1, 1]} : vector<16x18xf32> to vector<16x16xf32>
    %489 = vector.broadcast %487 : f32 to vector<16x16xf32>
    %490 = arith.mulf %489, %488 : vector<16x16xf32>
    %491 = arith.addf %486, %490 : vector<16x16xf32>
    %c1_112 = arith.constant 1 : index
    %492 = memref.load %arg4[%c1_112] : memref<8xf32, #tpu.memory_space<smem>>
    %493 = vector.broadcast %492 : f32 to vector<16x16xf32>
    %494 = arith.addf %491, %493 : vector<16x16xf32>
    %cst_113 = arith.constant 2.000000e+00 : f32
    %495 = vector.broadcast %cst_113 : f32 to vector<16x16xf32>
    %496 = arith.subf %494, %495 : vector<16x16xf32>
    %497 = arith.mulf %496, %496 : vector<16x16xf32>
    %cst_114 = arith.constant -1.000000e+00 : f32
    %498 = vector.broadcast %cst_114 : f32 to vector<16x16xf32>
    %499 = arith.mulf %498, %497 : vector<16x16xf32>
    %500 = math.exp %499 : vector<16x16xf32>
    %cst_115 = arith.constant 2.000000e+00 : f32
    %501 = vector.broadcast %cst_115 : f32 to vector<16x16xf32>
    %502 = arith.cmpf olt, %494, %501 : vector<16x16xf32>
    %cst_116 = arith.constant 1.100000e+00 : f32
    %503 = vector.broadcast %cst_116 : f32 to vector<16x16xf32>
    %504 = arith.mulf %503, %500 : vector<16x16xf32>
    %cst_117 = arith.constant 1.000000e-01 : f32
    %505 = vector.broadcast %cst_117 : f32 to vector<16x16xf32>
    %506 = arith.mulf %505, %500 : vector<16x16xf32>
    %cst_118 = arith.constant 1.000000e+00 : f32
    %507 = vector.broadcast %cst_118 : f32 to vector<16x16xf32>
    %508 = arith.addf %507, %506 : vector<16x16xf32>
    %509 = arith.select %502, %504, %508 : vector<16x16xi1>, vector<16x16xf32>
    %cst_119 = arith.constant 0.000000e+00 : f32
    %510 = vector.broadcast %cst_119 : f32 to vector<16x16xf32>
    %511 = arith.maximumf %494, %510 : vector<16x16xf32>
    %cst_120 = arith.constant 9.99999997E-7 : f32
    %512 = vector.broadcast %cst_120 : f32 to vector<16x16xf32>
    %513 = arith.addf %511, %512 : vector<16x16xf32>
    %514 = math.log %513 : vector<16x16xf32>
    %cst_121 = arith.constant 8.000000e-01 : f32
    %515 = vector.broadcast %cst_121 : f32 to vector<16x16xf32>
    %516 = arith.mulf %515, %514 : vector<16x16xf32>
    %517 = math.exp %516 : vector<16x16xf32>
    %c0_122 = arith.constant 0 : index
    %c1_123 = arith.constant 1 : index
    %c0_124 = arith.constant 0 : index
    %c0_125 = arith.constant 0 : index
    %518 = vector.load %arg5[%c0_122, %c1_123, %c0_124, %c0_125] : memref<1x8x16x16xf32, #tpu.memory_space<vmem>>, vector<1x1x16x16xf32>
    %519 = vector.shape_cast %518 : vector<1x1x16x16xf32> to vector<16x16xf32>
    %520 = vector.shape_cast %517 : vector<16x16xf32> to vector<1x1x16x16xf32>
    tpu.vector_store %arg5[%c0_122, %c1_123, %c0_124, %c0_125], %520 {strides = array<i32>} : memref<1x8x16x16xf32, #tpu.memory_space<vmem>>, vector<1x1x16x16xf32>,
    %c0_126 = arith.constant 0 : index
    %c1_127 = arith.constant 1 : index
    %c0_128 = arith.constant 0 : index
    %c0_129 = arith.constant 0 : index
    %521 = vector.load %arg6[%c0_126, %c1_127, %c0_128, %c0_129] : memref<1x8x16x16xf32, #tpu.memory_space<vmem>>, vector<1x1x16x16xf32>
    %522 = vector.shape_cast %521 : vector<1x1x16x16xf32> to vector<16x16xf32>
    %523 = vector.shape_cast %509 : vector<16x16xf32> to vector<1x1x16x16xf32>
    tpu.vector_store %arg6[%c0_126, %c1_127, %c0_128, %c0_129], %523 {strides = array<i32>} : memref<1x8x16x16xf32, #tpu.memory_space<vmem>>, vector<1x1x16x16xf32>,
    %cst_130 = arith.constant 0.000000e+00 : f32
    %524 = vector.broadcast %cst_130 : f32 to vector<16x16xf32>
    %c0_i32_131 = arith.constant 0 : i32
    %525 = arith.addi %1, %c0_i32_131 : i32
    %c0_132 = arith.constant 0 : index
    %c0_133 = arith.constant 0 : index
    %526 = arith.index_cast %525 : i32 to index
    %c0_134 = arith.constant 0 : index
    %527 = vector.load %arg2[%c0_132, %c0_133, %526, %c0_134] : memref<1x4x18x18xf32, #tpu.memory_space<vmem>>, vector<1x1x16x18xf32>
    %528 = vector.shape_cast %527 : vector<1x1x16x18xf32> to vector<16x18xf32>
    %c72 = arith.constant 72 : index
    %529 = memref.load %arg3[%c72] : memref<288xf32, #tpu.memory_space<smem>>
    %530 = vector.extract_strided_slice %528 {offsets = [0, 0], sizes = [16, 16], strides = [1, 1]} : vector<16x18xf32> to vector<16x16xf32>
    %531 = vector.broadcast %529 : f32 to vector<16x16xf32>
    %532 = arith.mulf %531, %530 : vector<16x16xf32>
    %533 = arith.addf %524, %532 : vector<16x16xf32>
    %c73 = arith.constant 73 : index
    %534 = memref.load %arg3[%c73] : memref<288xf32, #tpu.memory_space<smem>>
    %535 = vector.extract_strided_slice %528 {offsets = [0, 1], sizes = [16, 16], strides = [1, 1]} : vector<16x18xf32> to vector<16x16xf32>
    %536 = vector.broadcast %534 : f32 to vector<16x16xf32>
    %537 = arith.mulf %536, %535 : vector<16x16xf32>
    %538 = arith.addf %533, %537 : vector<16x16xf32>
    %c74 = arith.constant 74 : index
    %539 = memref.load %arg3[%c74] : memref<288xf32, #tpu.memory_space<smem>>
    %540 = vector.extract_strided_slice %528 {offsets = [0, 2], sizes = [16, 16], strides = [1, 1]} : vector<16x18xf32> to vector<16x16xf32>
    %541 = vector.broadcast %539 : f32 to vector<16x16xf32>
    %542 = arith.mulf %541, %540 : vector<16x16xf32>
    %543 = arith.addf %538, %542 : vector<16x16xf32>
    %c1_i32_135 = arith.constant 1 : i32
    %544 = arith.addi %1, %c1_i32_135 : i32
    %c0_136 = arith.constant 0 : index
    %c0_137 = arith.constant 0 : index
    %545 = arith.index_cast %544 : i32 to index
    %c0_138 = arith.constant 0 : index
    %546 = vector.load %arg2[%c0_136, %c0_137, %545, %c0_138] : memref<1x4x18x18xf32, #tpu.memory_space<vmem>>, vector<1x1x16x18xf32>
    %547 = vector.shape_cast %546 : vector<1x1x16x18xf32> to vector<16x18xf32>
    %c75 = arith.constant 75 : index
    %548 = memref.load %arg3[%c75] : memref<288xf32, #tpu.memory_space<smem>>
    %549 = vector.extract_strided_slice %547 {offsets = [0, 0], sizes = [16, 16], strides = [1, 1]} : vector<16x18xf32> to vector<16x16xf32>
    %550 = vector.broadcast %548 : f32 to vector<16x16xf32>
    %551 = arith.mulf %550, %549 : vector<16x16xf32>
    %552 = arith.addf %543, %551 : vector<16x16xf32>
    %c76 = arith.constant 76 : index
    %553 = memref.load %arg3[%c76] : memref<288xf32, #tpu.memory_space<smem>>
    %554 = vector.extract_strided_slice %547 {offsets = [0, 1], sizes = [16, 16], strides = [1, 1]} : vector<16x18xf32> to vector<16x16xf32>
    %555 = vector.broadcast %553 : f32 to vector<16x16xf32>
    %556 = arith.mulf %555, %554 : vector<16x16xf32>
    %557 = arith.addf %552, %556 : vector<16x16xf32>
    %c77 = arith.constant 77 : index
    %558 = memref.load %arg3[%c77] : memref<288xf32, #tpu.memory_space<smem>>
    %559 = vector.extract_strided_slice %547 {offsets = [0, 2], sizes = [16, 16], strides = [1, 1]} : vector<16x18xf32> to vector<16x16xf32>
    %560 = vector.broadcast %558 : f32 to vector<16x16xf32>
    %561 = arith.mulf %560, %559 : vector<16x16xf32>
    %562 = arith.addf %557, %561 : vector<16x16xf32>
    %c2_i32_139 = arith.constant 2 : i32
    %563 = arith.addi %1, %c2_i32_139 : i32
    %c0_140 = arith.constant 0 : index
    %c0_141 = arith.constant 0 : index
    %564 = arith.index_cast %563 : i32 to index
    %c0_142 = arith.constant 0 : index
    %565 = vector.load %arg2[%c0_140, %c0_141, %564, %c0_142] : memref<1x4x18x18xf32, #tpu.memory_space<vmem>>, vector<1x1x16x18xf32>
    %566 = vector.shape_cast %565 : vector<1x1x16x18xf32> to vector<16x18xf32>
    %c78 = arith.constant 78 : index
    %567 = memref.load %arg3[%c78] : memref<288xf32, #tpu.memory_space<smem>>
    %568 = vector.extract_strided_slice %566 {offsets = [0, 0], sizes = [16, 16], strides = [1, 1]} : vector<16x18xf32> to vector<16x16xf32>
    %569 = vector.broadcast %567 : f32 to vector<16x16xf32>
    %570 = arith.mulf %569, %568 : vector<16x16xf32>
    %571 = arith.addf %562, %570 : vector<16x16xf32>
    %c79 = arith.constant 79 : index
    %572 = memref.load %arg3[%c79] : memref<288xf32, #tpu.memory_space<smem>>
    %573 = vector.extract_strided_slice %566 {offsets = [0, 1], sizes = [16, 16], strides = [1, 1]} : vector<16x18xf32> to vector<16x16xf32>
    %574 = vector.broadcast %572 : f32 to vector<16x16xf32>
    %575 = arith.mulf %574, %573 : vector<16x16xf32>
    %576 = arith.addf %571, %575 : vector<16x16xf32>
    %c80 = arith.constant 80 : index
    %577 = memref.load %arg3[%c80] : memref<288xf32, #tpu.memory_space<smem>>
    %578 = vector.extract_strided_slice %566 {offsets = [0, 2], sizes = [16, 16], strides = [1, 1]} : vector<16x18xf32> to vector<16x16xf32>
    %579 = vector.broadcast %577 : f32 to vector<16x16xf32>
    %580 = arith.mulf %579, %578 : vector<16x16xf32>
    %581 = arith.addf %576, %580 : vector<16x16xf32>
    %c0_i32_143 = arith.constant 0 : i32
    %582 = arith.addi %1, %c0_i32_143 : i32
    %c0_144 = arith.constant 0 : index
    %c1_145 = arith.constant 1 : index
    %583 = arith.index_cast %582 : i32 to index
    %c0_146 = arith.constant 0 : index
    %584 = vector.load %arg2[%c0_144, %c1_145, %583, %c0_146] : memref<1x4x18x18xf32, #tpu.memory_space<vmem>>, vector<1x1x16x18xf32>
    %585 = vector.shape_cast %584 : vector<1x1x16x18xf32> to vector<16x18xf32>
    %c81 = arith.constant 81 : index
    %586 = memref.load %arg3[%c81] : memref<288xf32, #tpu.memory_space<smem>>
    %587 = vector.extract_strided_slice %585 {offsets = [0, 0], sizes = [16, 16], strides = [1, 1]} : vector<16x18xf32> to vector<16x16xf32>
    %588 = vector.broadcast %586 : f32 to vector<16x16xf32>
    %589 = arith.mulf %588, %587 : vector<16x16xf32>
    %590 = arith.addf %581, %589 : vector<16x16xf32>
    %c82 = arith.constant 82 : index
    %591 = memref.load %arg3[%c82] : memref<288xf32, #tpu.memory_space<smem>>
    %592 = vector.extract_strided_slice %585 {offsets = [0, 1], sizes = [16, 16], strides = [1, 1]} : vector<16x18xf32> to vector<16x16xf32>
    %593 = vector.broadcast %591 : f32 to vector<16x16xf32>
    %594 = arith.mulf %593, %592 : vector<16x16xf32>
    %595 = arith.addf %590, %594 : vector<16x16xf32>
    %c83 = arith.constant 83 : index
    %596 = memref.load %arg3[%c83] : memref<288xf32, #tpu.memory_space<smem>>
    %597 = vector.extract_strided_slice %585 {offsets = [0, 2], sizes = [16, 16], strides = [1, 1]} : vector<16x18xf32> to vector<16x16xf32>
    %598 = vector.broadcast %596 : f32 to vector<16x16xf32>
    %599 = arith.mulf %598, %597 : vector<16x16xf32>
    %600 = arith.addf %595, %599 : vector<16x16xf32>
    %c1_i32_147 = arith.constant 1 : i32
    %601 = arith.addi %1, %c1_i32_147 : i32
    %c0_148 = arith.constant 0 : index
    %c1_149 = arith.constant 1 : index
    %602 = arith.index_cast %601 : i32 to index
    %c0_150 = arith.constant 0 : index
    %603 = vector.load %arg2[%c0_148, %c1_149, %602, %c0_150] : memref<1x4x18x18xf32, #tpu.memory_space<vmem>>, vector<1x1x16x18xf32>
    %604 = vector.shape_cast %603 : vector<1x1x16x18xf32> to vector<16x18xf32>
    %c84 = arith.constant 84 : index
    %605 = memref.load %arg3[%c84] : memref<288xf32, #tpu.memory_space<smem>>
    %606 = vector.extract_strided_slice %604 {offsets = [0, 0], sizes = [16, 16], strides = [1, 1]} : vector<16x18xf32> to vector<16x16xf32>
    %607 = vector.broadcast %605 : f32 to vector<16x16xf32>
    %608 = arith.mulf %607, %606 : vector<16x16xf32>
    %609 = arith.addf %600, %608 : vector<16x16xf32>
    %c85 = arith.constant 85 : index
    %610 = memref.load %arg3[%c85] : memref<288xf32, #tpu.memory_space<smem>>
    %611 = vector.extract_strided_slice %604 {offsets = [0, 1], sizes = [16, 16], strides = [1, 1]} : vector<16x18xf32> to vector<16x16xf32>
    %612 = vector.broadcast %610 : f32 to vector<16x16xf32>
    %613 = arith.mulf %612, %611 : vector<16x16xf32>
    %614 = arith.addf %609, %613 : vector<16x16xf32>
    %c86 = arith.constant 86 : index
    %615 = memref.load %arg3[%c86] : memref<288xf32, #tpu.memory_space<smem>>
    %616 = vector.extract_strided_slice %604 {offsets = [0, 2], sizes = [16, 16], strides = [1, 1]} : vector<16x18xf32> to vector<16x16xf32>
    %617 = vector.broadcast %615 : f32 to vector<16x16xf32>
    %618 = arith.mulf %617, %616 : vector<16x16xf32>
    %619 = arith.addf %614, %618 : vector<16x16xf32>
    %c2_i32_151 = arith.constant 2 : i32
    %620 = arith.addi %1, %c2_i32_151 : i32
    %c0_152 = arith.constant 0 : index
    %c1_153 = arith.constant 1 : index
    %621 = arith.index_cast %620 : i32 to index
    %c0_154 = arith.constant 0 : index
    %622 = vector.load %arg2[%c0_152, %c1_153, %621, %c0_154] : memref<1x4x18x18xf32, #tpu.memory_space<vmem>>, vector<1x1x16x18xf32>
    %623 = vector.shape_cast %622 : vector<1x1x16x18xf32> to vector<16x18xf32>
    %c87 = arith.constant 87 : index
    %624 = memref.load %arg3[%c87] : memref<288xf32, #tpu.memory_space<smem>>
    %625 = vector.extract_strided_slice %623 {offsets = [0, 0], sizes = [16, 16], strides = [1, 1]} : vector<16x18xf32> to vector<16x16xf32>
    %626 = vector.broadcast %624 : f32 to vector<16x16xf32>
    %627 = arith.mulf %626, %625 : vector<16x16xf32>
    %628 = arith.addf %619, %627 : vector<16x16xf32>
    %c88 = arith.constant 88 : index
    %629 = memref.load %arg3[%c88] : memref<288xf32, #tpu.memory_space<smem>>
    %630 = vector.extract_strided_slice %623 {offsets = [0, 1], sizes = [16, 16], strides = [1, 1]} : vector<16x18xf32> to vector<16x16xf32>
    %631 = vector.broadcast %629 : f32 to vector<16x16xf32>
    %632 = arith.mulf %631, %630 : vector<16x16xf32>
    %633 = arith.addf %628, %632 : vector<16x16xf32>
    %c89 = arith.constant 89 : index
    %634 = memref.load %arg3[%c89] : memref<288xf32, #tpu.memory_space<smem>>
    %635 = vector.extract_strided_slice %623 {offsets = [0, 2], sizes = [16, 16], strides = [1, 1]} : vector<16x18xf32> to vector<16x16xf32>
    %636 = vector.broadcast %634 : f32 to vector<16x16xf32>
    %637 = arith.mulf %636, %635 : vector<16x16xf32>
    %638 = arith.addf %633, %637 : vector<16x16xf32>
    %c0_i32_155 = arith.constant 0 : i32
    %639 = arith.addi %1, %c0_i32_155 : i32
    %c0_156 = arith.constant 0 : index
    %c2_157 = arith.constant 2 : index
    %640 = arith.index_cast %639 : i32 to index
    %c0_158 = arith.constant 0 : index
    %641 = vector.load %arg2[%c0_156, %c2_157, %640, %c0_158] : memref<1x4x18x18xf32, #tpu.memory_space<vmem>>, vector<1x1x16x18xf32>
    %642 = vector.shape_cast %641 : vector<1x1x16x18xf32> to vector<16x18xf32>
    %c90 = arith.constant 90 : index
    %643 = memref.load %arg3[%c90] : memref<288xf32, #tpu.memory_space<smem>>
    %644 = vector.extract_strided_slice %642 {offsets = [0, 0], sizes = [16, 16], strides = [1, 1]} : vector<16x18xf32> to vector<16x16xf32>
    %645 = vector.broadcast %643 : f32 to vector<16x16xf32>
    %646 = arith.mulf %645, %644 : vector<16x16xf32>
    %647 = arith.addf %638, %646 : vector<16x16xf32>
    %c91 = arith.constant 91 : index
    %648 = memref.load %arg3[%c91] : memref<288xf32, #tpu.memory_space<smem>>
    %649 = vector.extract_strided_slice %642 {offsets = [0, 1], sizes = [16, 16], strides = [1, 1]} : vector<16x18xf32> to vector<16x16xf32>
    %650 = vector.broadcast %648 : f32 to vector<16x16xf32>
    %651 = arith.mulf %650, %649 : vector<16x16xf32>
    %652 = arith.addf %647, %651 : vector<16x16xf32>
    %c92 = arith.constant 92 : index
    %653 = memref.load %arg3[%c92] : memref<288xf32, #tpu.memory_space<smem>>
    %654 = vector.extract_strided_slice %642 {offsets = [0, 2], sizes = [16, 16], strides = [1, 1]} : vector<16x18xf32> to vector<16x16xf32>
    %655 = vector.broadcast %653 : f32 to vector<16x16xf32>
    %656 = arith.mulf %655, %654 : vector<16x16xf32>
    %657 = arith.addf %652, %656 : vector<16x16xf32>
    %c1_i32_159 = arith.constant 1 : i32
    %658 = arith.addi %1, %c1_i32_159 : i32
    %c0_160 = arith.constant 0 : index
    %c2_161 = arith.constant 2 : index
    %659 = arith.index_cast %658 : i32 to index
    %c0_162 = arith.constant 0 : index
    %660 = vector.load %arg2[%c0_160, %c2_161, %659, %c0_162] : memref<1x4x18x18xf32, #tpu.memory_space<vmem>>, vector<1x1x16x18xf32>
    %661 = vector.shape_cast %660 : vector<1x1x16x18xf32> to vector<16x18xf32>
    %c93 = arith.constant 93 : index
    %662 = memref.load %arg3[%c93] : memref<288xf32, #tpu.memory_space<smem>>
    %663 = vector.extract_strided_slice %661 {offsets = [0, 0], sizes = [16, 16], strides = [1, 1]} : vector<16x18xf32> to vector<16x16xf32>
    %664 = vector.broadcast %662 : f32 to vector<16x16xf32>
    %665 = arith.mulf %664, %663 : vector<16x16xf32>
    %666 = arith.addf %657, %665 : vector<16x16xf32>
    %c94 = arith.constant 94 : index
    %667 = memref.load %arg3[%c94] : memref<288xf32, #tpu.memory_space<smem>>
    %668 = vector.extract_strided_slice %661 {offsets = [0, 1], sizes = [16, 16], strides = [1, 1]} : vector<16x18xf32> to vector<16x16xf32>
    %669 = vector.broadcast %667 : f32 to vector<16x16xf32>
    %670 = arith.mulf %669, %668 : vector<16x16xf32>
    %671 = arith.addf %666, %670 : vector<16x16xf32>
    %c95 = arith.constant 95 : index
    %672 = memref.load %arg3[%c95] : memref<288xf32, #tpu.memory_space<smem>>
    %673 = vector.extract_strided_slice %661 {offsets = [0, 2], sizes = [16, 16], strides = [1, 1]} : vector<16x18xf32> to vector<16x16xf32>
    %674 = vector.broadcast %672 : f32 to vector<16x16xf32>
    %675 = arith.mulf %674, %673 : vector<16x16xf32>
    %676 = arith.addf %671, %675 : vector<16x16xf32>
    %c2_i32_163 = arith.constant 2 : i32
    %677 = arith.addi %1, %c2_i32_163 : i32
    %c0_164 = arith.constant 0 : index
    %c2_165 = arith.constant 2 : index
    %678 = arith.index_cast %677 : i32 to index
    %c0_166 = arith.constant 0 : index
    %679 = vector.load %arg2[%c0_164, %c2_165, %678, %c0_166] : memref<1x4x18x18xf32, #tpu.memory_space<vmem>>, vector<1x1x16x18xf32>
    %680 = vector.shape_cast %679 : vector<1x1x16x18xf32> to vector<16x18xf32>
    %c96 = arith.constant 96 : index
    %681 = memref.load %arg3[%c96] : memref<288xf32, #tpu.memory_space<smem>>
    %682 = vector.extract_strided_slice %680 {offsets = [0, 0], sizes = [16, 16], strides = [1, 1]} : vector<16x18xf32> to vector<16x16xf32>
    %683 = vector.broadcast %681 : f32 to vector<16x16xf32>
    %684 = arith.mulf %683, %682 : vector<16x16xf32>
    %685 = arith.addf %676, %684 : vector<16x16xf32>
    %c97 = arith.constant 97 : index
    %686 = memref.load %arg3[%c97] : memref<288xf32, #tpu.memory_space<smem>>
    %687 = vector.extract_strided_slice %680 {offsets = [0, 1], sizes = [16, 16], strides = [1, 1]} : vector<16x18xf32> to vector<16x16xf32>
    %688 = vector.broadcast %686 : f32 to vector<16x16xf32>
    %689 = arith.mulf %688, %687 : vector<16x16xf32>
    %690 = arith.addf %685, %689 : vector<16x16xf32>
    %c98 = arith.constant 98 : index
    %691 = memref.load %arg3[%c98] : memref<288xf32, #tpu.memory_space<smem>>
    %692 = vector.extract_strided_slice %680 {offsets = [0, 2], sizes = [16, 16], strides = [1, 1]} : vector<16x18xf32> to vector<16x16xf32>
    %693 = vector.broadcast %691 : f32 to vector<16x16xf32>
    %694 = arith.mulf %693, %692 : vector<16x16xf32>
    %695 = arith.addf %690, %694 : vector<16x16xf32>
    %c0_i32_167 = arith.constant 0 : i32
    %696 = arith.addi %1, %c0_i32_167 : i32
    %c0_168 = arith.constant 0 : index
    %c3_169 = arith.constant 3 : index
    %697 = arith.index_cast %696 : i32 to index
    %c0_170 = arith.constant 0 : index
    %698 = vector.load %arg2[%c0_168, %c3_169, %697, %c0_170] : memref<1x4x18x18xf32, #tpu.memory_space<vmem>>, vector<1x1x16x18xf32>
    %699 = vector.shape_cast %698 : vector<1x1x16x18xf32> to vector<16x18xf32>
    %c99 = arith.constant 99 : index
    %700 = memref.load %arg3[%c99] : memref<288xf32, #tpu.memory_space<smem>>
    %701 = vector.extract_strided_slice %699 {offsets = [0, 0], sizes = [16, 16], strides = [1, 1]} : vector<16x18xf32> to vector<16x16xf32>
    %702 = vector.broadcast %700 : f32 to vector<16x16xf32>
    %703 = arith.mulf %702, %701 : vector<16x16xf32>
    %704 = arith.addf %695, %703 : vector<16x16xf32>
    %c100 = arith.constant 100 : index
    %705 = memref.load %arg3[%c100] : memref<288xf32, #tpu.memory_space<smem>>
    %706 = vector.extract_strided_slice %699 {offsets = [0, 1], sizes = [16, 16], strides = [1, 1]} : vector<16x18xf32> to vector<16x16xf32>
    %707 = vector.broadcast %705 : f32 to vector<16x16xf32>
    %708 = arith.mulf %707, %706 : vector<16x16xf32>
    %709 = arith.addf %704, %708 : vector<16x16xf32>
    %c101 = arith.constant 101 : index
    %710 = memref.load %arg3[%c101] : memref<288xf32, #tpu.memory_space<smem>>
    %711 = vector.extract_strided_slice %699 {offsets = [0, 2], sizes = [16, 16], strides = [1, 1]} : vector<16x18xf32> to vector<16x16xf32>
    %712 = vector.broadcast %710 : f32 to vector<16x16xf32>
    %713 = arith.mulf %712, %711 : vector<16x16xf32>
    %714 = arith.addf %709, %713 : vector<16x16xf32>
    %c1_i32_171 = arith.constant 1 : i32
    %715 = arith.addi %1, %c1_i32_171 : i32
    %c0_172 = arith.constant 0 : index
    %c3_173 = arith.constant 3 : index
    %716 = arith.index_cast %715 : i32 to index
    %c0_174 = arith.constant 0 : index
    %717 = vector.load %arg2[%c0_172, %c3_173, %716, %c0_174] : memref<1x4x18x18xf32, #tpu.memory_space<vmem>>, vector<1x1x16x18xf32>
    %718 = vector.shape_cast %717 : vector<1x1x16x18xf32> to vector<16x18xf32>
    %c102 = arith.constant 102 : index
    %719 = memref.load %arg3[%c102] : memref<288xf32, #tpu.memory_space<smem>>
    %720 = vector.extract_strided_slice %718 {offsets = [0, 0], sizes = [16, 16], strides = [1, 1]} : vector<16x18xf32> to vector<16x16xf32>
    %721 = vector.broadcast %719 : f32 to vector<16x16xf32>
    %722 = arith.mulf %721, %720 : vector<16x16xf32>
    %723 = arith.addf %714, %722 : vector<16x16xf32>
    %c103 = arith.constant 103 : index
    %724 = memref.load %arg3[%c103] : memref<288xf32, #tpu.memory_space<smem>>
    %725 = vector.extract_strided_slice %718 {offsets = [0, 1], sizes = [16, 16], strides = [1, 1]} : vector<16x18xf32> to vector<16x16xf32>
    %726 = vector.broadcast %724 : f32 to vector<16x16xf32>
    %727 = arith.mulf %726, %725 : vector<16x16xf32>
    %728 = arith.addf %723, %727 : vector<16x16xf32>
    %c104 = arith.constant 104 : index
    %729 = memref.load %arg3[%c104] : memref<288xf32, #tpu.memory_space<smem>>
    %730 = vector.extract_strided_slice %718 {offsets = [0, 2], sizes = [16, 16], strides = [1, 1]} : vector<16x18xf32> to vector<16x16xf32>
    %731 = vector.broadcast %729 : f32 to vector<16x16xf32>
    %732 = arith.mulf %731, %730 : vector<16x16xf32>
    %733 = arith.addf %728, %732 : vector<16x16xf32>
    %c2_i32_175 = arith.constant 2 : i32
    %734 = arith.addi %1, %c2_i32_175 : i32
    %c0_176 = arith.constant 0 : index
    %c3_177 = arith.constant 3 : index
    %735 = arith.index_cast %734 : i32 to index
    %c0_178 = arith.constant 0 : index
    %736 = vector.load %arg2[%c0_176, %c3_177, %735, %c0_178] : memref<1x4x18x18xf32, #tpu.memory_space<vmem>>, vector<1x1x16x18xf32>
    %737 = vector.shape_cast %736 : vector<1x1x16x18xf32> to vector<16x18xf32>
    %c105 = arith.constant 105 : index
    %738 = memref.load %arg3[%c105] : memref<288xf32, #tpu.memory_space<smem>>
    %739 = vector.extract_strided_slice %737 {offsets = [0, 0], sizes = [16, 16], strides = [1, 1]} : vector<16x18xf32> to vector<16x16xf32>
    %740 = vector.broadcast %738 : f32 to vector<16x16xf32>
    %741 = arith.mulf %740, %739 : vector<16x16xf32>
    %742 = arith.addf %733, %741 : vector<16x16xf32>
    %c106 = arith.constant 106 : index
    %743 = memref.load %arg3[%c106] : memref<288xf32, #tpu.memory_space<smem>>
    %744 = vector.extract_strided_slice %737 {offsets = [0, 1], sizes = [16, 16], strides = [1, 1]} : vector<16x18xf32> to vector<16x16xf32>
    %745 = vector.broadcast %743 : f32 to vector<16x16xf32>
    %746 = arith.mulf %745, %744 : vector<16x16xf32>
    %747 = arith.addf %742, %746 : vector<16x16xf32>
    %c107 = arith.constant 107 : index
    %748 = memref.load %arg3[%c107] : memref<288xf32, #tpu.memory_space<smem>>
    %749 = vector.extract_strided_slice %737 {offsets = [0, 2], sizes = [16, 16], strides = [1, 1]} : vector<16x18xf32> to vector<16x16xf32>
    %750 = vector.broadcast %748 : f32 to vector<16x16xf32>
    %751 = arith.mulf %750, %749 : vector<16x16xf32>
    %752 = arith.addf %747, %751 : vector<16x16xf32>
    %c2_179 = arith.constant 2 : index
    %753 = memref.load %arg4[%c2_179] : memref<8xf32, #tpu.memory_space<smem>>
    %754 = vector.broadcast %753 : f32 to vector<16x16xf32>
    %755 = arith.addf %752, %754 : vector<16x16xf32>
    %cst_180 = arith.constant 2.000000e+00 : f32
    %756 = vector.broadcast %cst_180 : f32 to vector<16x16xf32>
    %757 = arith.subf %755, %756 : vector<16x16xf32>
    %758 = arith.mulf %757, %757 : vector<16x16xf32>
    %cst_181 = arith.constant -1.000000e+00 : f32
    %759 = vector.broadcast %cst_181 : f32 to vector<16x16xf32>
    %760 = arith.mulf %759, %758 : vector<16x16xf32>
    %761 = math.exp %760 : vector<16x16xf32>
    %cst_182 = arith.constant 2.000000e+00 : f32
    %762 = vector.broadcast %cst_182 : f32 to vector<16x16xf32>
    %763 = arith.cmpf olt, %755, %762 : vector<16x16xf32>
    %cst_183 = arith.constant 1.100000e+00 : f32
    %764 = vector.broadcast %cst_183 : f32 to vector<16x16xf32>
    %765 = arith.mulf %764, %761 : vector<16x16xf32>
    %cst_184 = arith.constant 1.000000e-01 : f32
    %766 = vector.broadcast %cst_184 : f32 to vector<16x16xf32>
    %767 = arith.mulf %766, %761 : vector<16x16xf32>
    %cst_185 = arith.constant 1.000000e+00 : f32
    %768 = vector.broadcast %cst_185 : f32 to vector<16x16xf32>
    %769 = arith.addf %768, %767 : vector<16x16xf32>
    %770 = arith.select %763, %765, %769 : vector<16x16xi1>, vector<16x16xf32>
    %cst_186 = arith.constant 0.000000e+00 : f32
    %771 = vector.broadcast %cst_186 : f32 to vector<16x16xf32>
    %772 = arith.maximumf %755, %771 : vector<16x16xf32>
    %cst_187 = arith.constant 9.99999997E-7 : f32
    %773 = vector.broadcast %cst_187 : f32 to vector<16x16xf32>
    %774 = arith.addf %772, %773 : vector<16x16xf32>
    %775 = math.log %774 : vector<16x16xf32>
    %cst_188 = arith.constant 8.000000e-01 : f32
    %776 = vector.broadcast %cst_188 : f32 to vector<16x16xf32>
    %777 = arith.mulf %776, %775 : vector<16x16xf32>
    %778 = math.exp %777 : vector<16x16xf32>
    %c0_189 = arith.constant 0 : index
    %c2_190 = arith.constant 2 : index
    %c0_191 = arith.constant 0 : index
    %c0_192 = arith.constant 0 : index
    %779 = vector.load %arg5[%c0_189, %c2_190, %c0_191, %c0_192] : memref<1x8x16x16xf32, #tpu.memory_space<vmem>>, vector<1x1x16x16xf32>
    %780 = vector.shape_cast %779 : vector<1x1x16x16xf32> to vector<16x16xf32>
    %781 = vector.shape_cast %778 : vector<16x16xf32> to vector<1x1x16x16xf32>
    tpu.vector_store %arg5[%c0_189, %c2_190, %c0_191, %c0_192], %781 {strides = array<i32>} : memref<1x8x16x16xf32, #tpu.memory_space<vmem>>, vector<1x1x16x16xf32>,
    %c0_193 = arith.constant 0 : index
    %c2_194 = arith.constant 2 : index
    %c0_195 = arith.constant 0 : index
    %c0_196 = arith.constant 0 : index
    %782 = vector.load %arg6[%c0_193, %c2_194, %c0_195, %c0_196] : memref<1x8x16x16xf32, #tpu.memory_space<vmem>>, vector<1x1x16x16xf32>
    %783 = vector.shape_cast %782 : vector<1x1x16x16xf32> to vector<16x16xf32>
    %784 = vector.shape_cast %770 : vector<16x16xf32> to vector<1x1x16x16xf32>
    tpu.vector_store %arg6[%c0_193, %c2_194, %c0_195, %c0_196], %784 {strides = array<i32>} : memref<1x8x16x16xf32, #tpu.memory_space<vmem>>, vector<1x1x16x16xf32>,
    %cst_197 = arith.constant 0.000000e+00 : f32
    %785 = vector.broadcast %cst_197 : f32 to vector<16x16xf32>
    %c0_i32_198 = arith.constant 0 : i32
    %786 = arith.addi %1, %c0_i32_198 : i32
    %c0_199 = arith.constant 0 : index
    %c0_200 = arith.constant 0 : index
    %787 = arith.index_cast %786 : i32 to index
    %c0_201 = arith.constant 0 : index
    %788 = vector.load %arg2[%c0_199, %c0_200, %787, %c0_201] : memref<1x4x18x18xf32, #tpu.memory_space<vmem>>, vector<1x1x16x18xf32>
    %789 = vector.shape_cast %788 : vector<1x1x16x18xf32> to vector<16x18xf32>
    %c108 = arith.constant 108 : index
    %790 = memref.load %arg3[%c108] : memref<288xf32, #tpu.memory_space<smem>>
    %791 = vector.extract_strided_slice %789 {offsets = [0, 0], sizes = [16, 16], strides = [1, 1]} : vector<16x18xf32> to vector<16x16xf32>
    %792 = vector.broadcast %790 : f32 to vector<16x16xf32>
    %793 = arith.mulf %792, %791 : vector<16x16xf32>
    %794 = arith.addf %785, %793 : vector<16x16xf32>
    %c109 = arith.constant 109 : index
    %795 = memref.load %arg3[%c109] : memref<288xf32, #tpu.memory_space<smem>>
    %796 = vector.extract_strided_slice %789 {offsets = [0, 1], sizes = [16, 16], strides = [1, 1]} : vector<16x18xf32> to vector<16x16xf32>
    %797 = vector.broadcast %795 : f32 to vector<16x16xf32>
    %798 = arith.mulf %797, %796 : vector<16x16xf32>
    %799 = arith.addf %794, %798 : vector<16x16xf32>
    %c110 = arith.constant 110 : index
    %800 = memref.load %arg3[%c110] : memref<288xf32, #tpu.memory_space<smem>>
    %801 = vector.extract_strided_slice %789 {offsets = [0, 2], sizes = [16, 16], strides = [1, 1]} : vector<16x18xf32> to vector<16x16xf32>
    %802 = vector.broadcast %800 : f32 to vector<16x16xf32>
    %803 = arith.mulf %802, %801 : vector<16x16xf32>
    %804 = arith.addf %799, %803 : vector<16x16xf32>
    %c1_i32_202 = arith.constant 1 : i32
    %805 = arith.addi %1, %c1_i32_202 : i32
    %c0_203 = arith.constant 0 : index
    %c0_204 = arith.constant 0 : index
    %806 = arith.index_cast %805 : i32 to index
    %c0_205 = arith.constant 0 : index
    %807 = vector.load %arg2[%c0_203, %c0_204, %806, %c0_205] : memref<1x4x18x18xf32, #tpu.memory_space<vmem>>, vector<1x1x16x18xf32>
    %808 = vector.shape_cast %807 : vector<1x1x16x18xf32> to vector<16x18xf32>
    %c111 = arith.constant 111 : index
    %809 = memref.load %arg3[%c111] : memref<288xf32, #tpu.memory_space<smem>>
    %810 = vector.extract_strided_slice %808 {offsets = [0, 0], sizes = [16, 16], strides = [1, 1]} : vector<16x18xf32> to vector<16x16xf32>
    %811 = vector.broadcast %809 : f32 to vector<16x16xf32>
    %812 = arith.mulf %811, %810 : vector<16x16xf32>
    %813 = arith.addf %804, %812 : vector<16x16xf32>
    %c112 = arith.constant 112 : index
    %814 = memref.load %arg3[%c112] : memref<288xf32, #tpu.memory_space<smem>>
    %815 = vector.extract_strided_slice %808 {offsets = [0, 1], sizes = [16, 16], strides = [1, 1]} : vector<16x18xf32> to vector<16x16xf32>
    %816 = vector.broadcast %814 : f32 to vector<16x16xf32>
    %817 = arith.mulf %816, %815 : vector<16x16xf32>
    %818 = arith.addf %813, %817 : vector<16x16xf32>
    %c113 = arith.constant 113 : index
    %819 = memref.load %arg3[%c113] : memref<288xf32, #tpu.memory_space<smem>>
    %820 = vector.extract_strided_slice %808 {offsets = [0, 2], sizes = [16, 16], strides = [1, 1]} : vector<16x18xf32> to vector<16x16xf32>
    %821 = vector.broadcast %819 : f32 to vector<16x16xf32>
    %822 = arith.mulf %821, %820 : vector<16x16xf32>
    %823 = arith.addf %818, %822 : vector<16x16xf32>
    %c2_i32_206 = arith.constant 2 : i32
    %824 = arith.addi %1, %c2_i32_206 : i32
    %c0_207 = arith.constant 0 : index
    %c0_208 = arith.constant 0 : index
    %825 = arith.index_cast %824 : i32 to index
    %c0_209 = arith.constant 0 : index
    %826 = vector.load %arg2[%c0_207, %c0_208, %825, %c0_209] : memref<1x4x18x18xf32, #tpu.memory_space<vmem>>, vector<1x1x16x18xf32>
    %827 = vector.shape_cast %826 : vector<1x1x16x18xf32> to vector<16x18xf32>
    %c114 = arith.constant 114 : index
    %828 = memref.load %arg3[%c114] : memref<288xf32, #tpu.memory_space<smem>>
    %829 = vector.extract_strided_slice %827 {offsets = [0, 0], sizes = [16, 16], strides = [1, 1]} : vector<16x18xf32> to vector<16x16xf32>
    %830 = vector.broadcast %828 : f32 to vector<16x16xf32>
    %831 = arith.mulf %830, %829 : vector<16x16xf32>
    %832 = arith.addf %823, %831 : vector<16x16xf32>
    %c115 = arith.constant 115 : index
    %833 = memref.load %arg3[%c115] : memref<288xf32, #tpu.memory_space<smem>>
    %834 = vector.extract_strided_slice %827 {offsets = [0, 1], sizes = [16, 16], strides = [1, 1]} : vector<16x18xf32> to vector<16x16xf32>
    %835 = vector.broadcast %833 : f32 to vector<16x16xf32>
    %836 = arith.mulf %835, %834 : vector<16x16xf32>
    %837 = arith.addf %832, %836 : vector<16x16xf32>
    %c116 = arith.constant 116 : index
    %838 = memref.load %arg3[%c116] : memref<288xf32, #tpu.memory_space<smem>>
    %839 = vector.extract_strided_slice %827 {offsets = [0, 2], sizes = [16, 16], strides = [1, 1]} : vector<16x18xf32> to vector<16x16xf32>
    %840 = vector.broadcast %838 : f32 to vector<16x16xf32>
    %841 = arith.mulf %840, %839 : vector<16x16xf32>
    %842 = arith.addf %837, %841 : vector<16x16xf32>
    %c0_i32_210 = arith.constant 0 : i32
    %843 = arith.addi %1, %c0_i32_210 : i32
    %c0_211 = arith.constant 0 : index
    %c1_212 = arith.constant 1 : index
    %844 = arith.index_cast %843 : i32 to index
    %c0_213 = arith.constant 0 : index
    %845 = vector.load %arg2[%c0_211, %c1_212, %844, %c0_213] : memref<1x4x18x18xf32, #tpu.memory_space<vmem>>, vector<1x1x16x18xf32>
    %846 = vector.shape_cast %845 : vector<1x1x16x18xf32> to vector<16x18xf32>
    %c117 = arith.constant 117 : index
    %847 = memref.load %arg3[%c117] : memref<288xf32, #tpu.memory_space<smem>>
    %848 = vector.extract_strided_slice %846 {offsets = [0, 0], sizes = [16, 16], strides = [1, 1]} : vector<16x18xf32> to vector<16x16xf32>
    %849 = vector.broadcast %847 : f32 to vector<16x16xf32>
    %850 = arith.mulf %849, %848 : vector<16x16xf32>
    %851 = arith.addf %842, %850 : vector<16x16xf32>
    %c118 = arith.constant 118 : index
    %852 = memref.load %arg3[%c118] : memref<288xf32, #tpu.memory_space<smem>>
    %853 = vector.extract_strided_slice %846 {offsets = [0, 1], sizes = [16, 16], strides = [1, 1]} : vector<16x18xf32> to vector<16x16xf32>
    %854 = vector.broadcast %852 : f32 to vector<16x16xf32>
    %855 = arith.mulf %854, %853 : vector<16x16xf32>
    %856 = arith.addf %851, %855 : vector<16x16xf32>
    %c119 = arith.constant 119 : index
    %857 = memref.load %arg3[%c119] : memref<288xf32, #tpu.memory_space<smem>>
    %858 = vector.extract_strided_slice %846 {offsets = [0, 2], sizes = [16, 16], strides = [1, 1]} : vector<16x18xf32> to vector<16x16xf32>
    %859 = vector.broadcast %857 : f32 to vector<16x16xf32>
    %860 = arith.mulf %859, %858 : vector<16x16xf32>
    %861 = arith.addf %856, %860 : vector<16x16xf32>
    %c1_i32_214 = arith.constant 1 : i32
    %862 = arith.addi %1, %c1_i32_214 : i32
    %c0_215 = arith.constant 0 : index
    %c1_216 = arith.constant 1 : index
    %863 = arith.index_cast %862 : i32 to index
    %c0_217 = arith.constant 0 : index
    %864 = vector.load %arg2[%c0_215, %c1_216, %863, %c0_217] : memref<1x4x18x18xf32, #tpu.memory_space<vmem>>, vector<1x1x16x18xf32>
    %865 = vector.shape_cast %864 : vector<1x1x16x18xf32> to vector<16x18xf32>
    %c120 = arith.constant 120 : index
    %866 = memref.load %arg3[%c120] : memref<288xf32, #tpu.memory_space<smem>>
    %867 = vector.extract_strided_slice %865 {offsets = [0, 0], sizes = [16, 16], strides = [1, 1]} : vector<16x18xf32> to vector<16x16xf32>
    %868 = vector.broadcast %866 : f32 to vector<16x16xf32>
    %869 = arith.mulf %868, %867 : vector<16x16xf32>
    %870 = arith.addf %861, %869 : vector<16x16xf32>
    %c121 = arith.constant 121 : index
    %871 = memref.load %arg3[%c121] : memref<288xf32, #tpu.memory_space<smem>>
    %872 = vector.extract_strided_slice %865 {offsets = [0, 1], sizes = [16, 16], strides = [1, 1]} : vector<16x18xf32> to vector<16x16xf32>
    %873 = vector.broadcast %871 : f32 to vector<16x16xf32>
    %874 = arith.mulf %873, %872 : vector<16x16xf32>
    %875 = arith.addf %870, %874 : vector<16x16xf32>
    %c122 = arith.constant 122 : index
    %876 = memref.load %arg3[%c122] : memref<288xf32, #tpu.memory_space<smem>>
    %877 = vector.extract_strided_slice %865 {offsets = [0, 2], sizes = [16, 16], strides = [1, 1]} : vector<16x18xf32> to vector<16x16xf32>
    %878 = vector.broadcast %876 : f32 to vector<16x16xf32>
    %879 = arith.mulf %878, %877 : vector<16x16xf32>
    %880 = arith.addf %875, %879 : vector<16x16xf32>
    %c2_i32_218 = arith.constant 2 : i32
    %881 = arith.addi %1, %c2_i32_218 : i32
    %c0_219 = arith.constant 0 : index
    %c1_220 = arith.constant 1 : index
    %882 = arith.index_cast %881 : i32 to index
    %c0_221 = arith.constant 0 : index
    %883 = vector.load %arg2[%c0_219, %c1_220, %882, %c0_221] : memref<1x4x18x18xf32, #tpu.memory_space<vmem>>, vector<1x1x16x18xf32>
    %884 = vector.shape_cast %883 : vector<1x1x16x18xf32> to vector<16x18xf32>
    %c123 = arith.constant 123 : index
    %885 = memref.load %arg3[%c123] : memref<288xf32, #tpu.memory_space<smem>>
    %886 = vector.extract_strided_slice %884 {offsets = [0, 0], sizes = [16, 16], strides = [1, 1]} : vector<16x18xf32> to vector<16x16xf32>
    %887 = vector.broadcast %885 : f32 to vector<16x16xf32>
    %888 = arith.mulf %887, %886 : vector<16x16xf32>
    %889 = arith.addf %880, %888 : vector<16x16xf32>
    %c124 = arith.constant 124 : index
    %890 = memref.load %arg3[%c124] : memref<288xf32, #tpu.memory_space<smem>>
    %891 = vector.extract_strided_slice %884 {offsets = [0, 1], sizes = [16, 16], strides = [1, 1]} : vector<16x18xf32> to vector<16x16xf32>
    %892 = vector.broadcast %890 : f32 to vector<16x16xf32>
    %893 = arith.mulf %892, %891 : vector<16x16xf32>
    %894 = arith.addf %889, %893 : vector<16x16xf32>
    %c125 = arith.constant 125 : index
    %895 = memref.load %arg3[%c125] : memref<288xf32, #tpu.memory_space<smem>>
    %896 = vector.extract_strided_slice %884 {offsets = [0, 2], sizes = [16, 16], strides = [1, 1]} : vector<16x18xf32> to vector<16x16xf32>
    %897 = vector.broadcast %895 : f32 to vector<16x16xf32>
    %898 = arith.mulf %897, %896 : vector<16x16xf32>
    %899 = arith.addf %894, %898 : vector<16x16xf32>
    %c0_i32_222 = arith.constant 0 : i32
    %900 = arith.addi %1, %c0_i32_222 : i32
    %c0_223 = arith.constant 0 : index
    %c2_224 = arith.constant 2 : index
    %901 = arith.index_cast %900 : i32 to index
    %c0_225 = arith.constant 0 : index
    %902 = vector.load %arg2[%c0_223, %c2_224, %901, %c0_225] : memref<1x4x18x18xf32, #tpu.memory_space<vmem>>, vector<1x1x16x18xf32>
    %903 = vector.shape_cast %902 : vector<1x1x16x18xf32> to vector<16x18xf32>
    %c126 = arith.constant 126 : index
    %904 = memref.load %arg3[%c126] : memref<288xf32, #tpu.memory_space<smem>>
    %905 = vector.extract_strided_slice %903 {offsets = [0, 0], sizes = [16, 16], strides = [1, 1]} : vector<16x18xf32> to vector<16x16xf32>
    %906 = vector.broadcast %904 : f32 to vector<16x16xf32>
    %907 = arith.mulf %906, %905 : vector<16x16xf32>
    %908 = arith.addf %899, %907 : vector<16x16xf32>
    %c127 = arith.constant 127 : index
    %909 = memref.load %arg3[%c127] : memref<288xf32, #tpu.memory_space<smem>>
    %910 = vector.extract_strided_slice %903 {offsets = [0, 1], sizes = [16, 16], strides = [1, 1]} : vector<16x18xf32> to vector<16x16xf32>
    %911 = vector.broadcast %909 : f32 to vector<16x16xf32>
    %912 = arith.mulf %911, %910 : vector<16x16xf32>
    %913 = arith.addf %908, %912 : vector<16x16xf32>
    %c128 = arith.constant 128 : index
    %914 = memref.load %arg3[%c128] : memref<288xf32, #tpu.memory_space<smem>>
    %915 = vector.extract_strided_slice %903 {offsets = [0, 2], sizes = [16, 16], strides = [1, 1]} : vector<16x18xf32> to vector<16x16xf32>
    %916 = vector.broadcast %914 : f32 to vector<16x16xf32>
    %917 = arith.mulf %916, %915 : vector<16x16xf32>
    %918 = arith.addf %913, %917 : vector<16x16xf32>
    %c1_i32_226 = arith.constant 1 : i32
    %919 = arith.addi %1, %c1_i32_226 : i32
    %c0_227 = arith.constant 0 : index
    %c2_228 = arith.constant 2 : index
    %920 = arith.index_cast %919 : i32 to index
    %c0_229 = arith.constant 0 : index
    %921 = vector.load %arg2[%c0_227, %c2_228, %920, %c0_229] : memref<1x4x18x18xf32, #tpu.memory_space<vmem>>, vector<1x1x16x18xf32>
    %922 = vector.shape_cast %921 : vector<1x1x16x18xf32> to vector<16x18xf32>
    %c129 = arith.constant 129 : index
    %923 = memref.load %arg3[%c129] : memref<288xf32, #tpu.memory_space<smem>>
    %924 = vector.extract_strided_slice %922 {offsets = [0, 0], sizes = [16, 16], strides = [1, 1]} : vector<16x18xf32> to vector<16x16xf32>
    %925 = vector.broadcast %923 : f32 to vector<16x16xf32>
    %926 = arith.mulf %925, %924 : vector<16x16xf32>
    %927 = arith.addf %918, %926 : vector<16x16xf32>
    %c130 = arith.constant 130 : index
    %928 = memref.load %arg3[%c130] : memref<288xf32, #tpu.memory_space<smem>>
    %929 = vector.extract_strided_slice %922 {offsets = [0, 1], sizes = [16, 16], strides = [1, 1]} : vector<16x18xf32> to vector<16x16xf32>
    %930 = vector.broadcast %928 : f32 to vector<16x16xf32>
    %931 = arith.mulf %930, %929 : vector<16x16xf32>
    %932 = arith.addf %927, %931 : vector<16x16xf32>
    %c131 = arith.constant 131 : index
    %933 = memref.load %arg3[%c131] : memref<288xf32, #tpu.memory_space<smem>>
    %934 = vector.extract_strided_slice %922 {offsets = [0, 2], sizes = [16, 16], strides = [1, 1]} : vector<16x18xf32> to vector<16x16xf32>
    %935 = vector.broadcast %933 : f32 to vector<16x16xf32>
    %936 = arith.mulf %935, %934 : vector<16x16xf32>
    %937 = arith.addf %932, %936 : vector<16x16xf32>
    %c2_i32_230 = arith.constant 2 : i32
    %938 = arith.addi %1, %c2_i32_230 : i32
    %c0_231 = arith.constant 0 : index
    %c2_232 = arith.constant 2 : index
    %939 = arith.index_cast %938 : i32 to index
    %c0_233 = arith.constant 0 : index
    %940 = vector.load %arg2[%c0_231, %c2_232, %939, %c0_233] : memref<1x4x18x18xf32, #tpu.memory_space<vmem>>, vector<1x1x16x18xf32>
    %941 = vector.shape_cast %940 : vector<1x1x16x18xf32> to vector<16x18xf32>
    %c132 = arith.constant 132 : index
    %942 = memref.load %arg3[%c132] : memref<288xf32, #tpu.memory_space<smem>>
    %943 = vector.extract_strided_slice %941 {offsets = [0, 0], sizes = [16, 16], strides = [1, 1]} : vector<16x18xf32> to vector<16x16xf32>
    %944 = vector.broadcast %942 : f32 to vector<16x16xf32>
    %945 = arith.mulf %944, %943 : vector<16x16xf32>
    %946 = arith.addf %937, %945 : vector<16x16xf32>
    %c133 = arith.constant 133 : index
    %947 = memref.load %arg3[%c133] : memref<288xf32, #tpu.memory_space<smem>>
    %948 = vector.extract_strided_slice %941 {offsets = [0, 1], sizes = [16, 16], strides = [1, 1]} : vector<16x18xf32> to vector<16x16xf32>
    %949 = vector.broadcast %947 : f32 to vector<16x16xf32>
    %950 = arith.mulf %949, %948 : vector<16x16xf32>
    %951 = arith.addf %946, %950 : vector<16x16xf32>
    %c134 = arith.constant 134 : index
    %952 = memref.load %arg3[%c134] : memref<288xf32, #tpu.memory_space<smem>>
    %953 = vector.extract_strided_slice %941 {offsets = [0, 2], sizes = [16, 16], strides = [1, 1]} : vector<16x18xf32> to vector<16x16xf32>
    %954 = vector.broadcast %952 : f32 to vector<16x16xf32>
    %955 = arith.mulf %954, %953 : vector<16x16xf32>
    %956 = arith.addf %951, %955 : vector<16x16xf32>
    %c0_i32_234 = arith.constant 0 : i32
    %957 = arith.addi %1, %c0_i32_234 : i32
    %c0_235 = arith.constant 0 : index
    %c3_236 = arith.constant 3 : index
    %958 = arith.index_cast %957 : i32 to index
    %c0_237 = arith.constant 0 : index
    %959 = vector.load %arg2[%c0_235, %c3_236, %958, %c0_237] : memref<1x4x18x18xf32, #tpu.memory_space<vmem>>, vector<1x1x16x18xf32>
    %960 = vector.shape_cast %959 : vector<1x1x16x18xf32> to vector<16x18xf32>
    %c135 = arith.constant 135 : index
    %961 = memref.load %arg3[%c135] : memref<288xf32, #tpu.memory_space<smem>>
    %962 = vector.extract_strided_slice %960 {offsets = [0, 0], sizes = [16, 16], strides = [1, 1]} : vector<16x18xf32> to vector<16x16xf32>
    %963 = vector.broadcast %961 : f32 to vector<16x16xf32>
    %964 = arith.mulf %963, %962 : vector<16x16xf32>
    %965 = arith.addf %956, %964 : vector<16x16xf32>
    %c136 = arith.constant 136 : index
    %966 = memref.load %arg3[%c136] : memref<288xf32, #tpu.memory_space<smem>>
    %967 = vector.extract_strided_slice %960 {offsets = [0, 1], sizes = [16, 16], strides = [1, 1]} : vector<16x18xf32> to vector<16x16xf32>
    %968 = vector.broadcast %966 : f32 to vector<16x16xf32>
    %969 = arith.mulf %968, %967 : vector<16x16xf32>
    %970 = arith.addf %965, %969 : vector<16x16xf32>
    %c137 = arith.constant 137 : index
    %971 = memref.load %arg3[%c137] : memref<288xf32, #tpu.memory_space<smem>>
    %972 = vector.extract_strided_slice %960 {offsets = [0, 2], sizes = [16, 16], strides = [1, 1]} : vector<16x18xf32> to vector<16x16xf32>
    %973 = vector.broadcast %971 : f32 to vector<16x16xf32>
    %974 = arith.mulf %973, %972 : vector<16x16xf32>
    %975 = arith.addf %970, %974 : vector<16x16xf32>
    %c1_i32_238 = arith.constant 1 : i32
    %976 = arith.addi %1, %c1_i32_238 : i32
    %c0_239 = arith.constant 0 : index
    %c3_240 = arith.constant 3 : index
    %977 = arith.index_cast %976 : i32 to index
    %c0_241 = arith.constant 0 : index
    %978 = vector.load %arg2[%c0_239, %c3_240, %977, %c0_241] : memref<1x4x18x18xf32, #tpu.memory_space<vmem>>, vector<1x1x16x18xf32>
    %979 = vector.shape_cast %978 : vector<1x1x16x18xf32> to vector<16x18xf32>
    %c138 = arith.constant 138 : index
    %980 = memref.load %arg3[%c138] : memref<288xf32, #tpu.memory_space<smem>>
    %981 = vector.extract_strided_slice %979 {offsets = [0, 0], sizes = [16, 16], strides = [1, 1]} : vector<16x18xf32> to vector<16x16xf32>
    %982 = vector.broadcast %980 : f32 to vector<16x16xf32>
    %983 = arith.mulf %982, %981 : vector<16x16xf32>
    %984 = arith.addf %975, %983 : vector<16x16xf32>
    %c139 = arith.constant 139 : index
    %985 = memref.load %arg3[%c139] : memref<288xf32, #tpu.memory_space<smem>>
    %986 = vector.extract_strided_slice %979 {offsets = [0, 1], sizes = [16, 16], strides = [1, 1]} : vector<16x18xf32> to vector<16x16xf32>
    %987 = vector.broadcast %985 : f32 to vector<16x16xf32>
    %988 = arith.mulf %987, %986 : vector<16x16xf32>
    %989 = arith.addf %984, %988 : vector<16x16xf32>
    %c140 = arith.constant 140 : index
    %990 = memref.load %arg3[%c140] : memref<288xf32, #tpu.memory_space<smem>>
    %991 = vector.extract_strided_slice %979 {offsets = [0, 2], sizes = [16, 16], strides = [1, 1]} : vector<16x18xf32> to vector<16x16xf32>
    %992 = vector.broadcast %990 : f32 to vector<16x16xf32>
    %993 = arith.mulf %992, %991 : vector<16x16xf32>
    %994 = arith.addf %989, %993 : vector<16x16xf32>
    %c2_i32_242 = arith.constant 2 : i32
    %995 = arith.addi %1, %c2_i32_242 : i32
    %c0_243 = arith.constant 0 : index
    %c3_244 = arith.constant 3 : index
    %996 = arith.index_cast %995 : i32 to index
    %c0_245 = arith.constant 0 : index
    %997 = vector.load %arg2[%c0_243, %c3_244, %996, %c0_245] : memref<1x4x18x18xf32, #tpu.memory_space<vmem>>, vector<1x1x16x18xf32>
    %998 = vector.shape_cast %997 : vector<1x1x16x18xf32> to vector<16x18xf32>
    %c141 = arith.constant 141 : index
    %999 = memref.load %arg3[%c141] : memref<288xf32, #tpu.memory_space<smem>>
    %1000 = vector.extract_strided_slice %998 {offsets = [0, 0], sizes = [16, 16], strides = [1, 1]} : vector<16x18xf32> to vector<16x16xf32>
    %1001 = vector.broadcast %999 : f32 to vector<16x16xf32>
    %1002 = arith.mulf %1001, %1000 : vector<16x16xf32>
    %1003 = arith.addf %994, %1002 : vector<16x16xf32>
    %c142 = arith.constant 142 : index
    %1004 = memref.load %arg3[%c142] : memref<288xf32, #tpu.memory_space<smem>>
    %1005 = vector.extract_strided_slice %998 {offsets = [0, 1], sizes = [16, 16], strides = [1, 1]} : vector<16x18xf32> to vector<16x16xf32>
    %1006 = vector.broadcast %1004 : f32 to vector<16x16xf32>
    %1007 = arith.mulf %1006, %1005 : vector<16x16xf32>
    %1008 = arith.addf %1003, %1007 : vector<16x16xf32>
    %c143 = arith.constant 143 : index
    %1009 = memref.load %arg3[%c143] : memref<288xf32, #tpu.memory_space<smem>>
    %1010 = vector.extract_strided_slice %998 {offsets = [0, 2], sizes = [16, 16], strides = [1, 1]} : vector<16x18xf32> to vector<16x16xf32>
    %1011 = vector.broadcast %1009 : f32 to vector<16x16xf32>
    %1012 = arith.mulf %1011, %1010 : vector<16x16xf32>
    %1013 = arith.addf %1008, %1012 : vector<16x16xf32>
    %c3_246 = arith.constant 3 : index
    %1014 = memref.load %arg4[%c3_246] : memref<8xf32, #tpu.memory_space<smem>>
    %1015 = vector.broadcast %1014 : f32 to vector<16x16xf32>
    %1016 = arith.addf %1013, %1015 : vector<16x16xf32>
    %cst_247 = arith.constant 2.000000e+00 : f32
    %1017 = vector.broadcast %cst_247 : f32 to vector<16x16xf32>
    %1018 = arith.subf %1016, %1017 : vector<16x16xf32>
    %1019 = arith.mulf %1018, %1018 : vector<16x16xf32>
    %cst_248 = arith.constant -1.000000e+00 : f32
    %1020 = vector.broadcast %cst_248 : f32 to vector<16x16xf32>
    %1021 = arith.mulf %1020, %1019 : vector<16x16xf32>
    %1022 = math.exp %1021 : vector<16x16xf32>
    %cst_249 = arith.constant 2.000000e+00 : f32
    %1023 = vector.broadcast %cst_249 : f32 to vector<16x16xf32>
    %1024 = arith.cmpf olt, %1016, %1023 : vector<16x16xf32>
    %cst_250 = arith.constant 1.100000e+00 : f32
    %1025 = vector.broadcast %cst_250 : f32 to vector<16x16xf32>
    %1026 = arith.mulf %1025, %1022 : vector<16x16xf32>
    %cst_251 = arith.constant 1.000000e-01 : f32
    %1027 = vector.broadcast %cst_251 : f32 to vector<16x16xf32>
    %1028 = arith.mulf %1027, %1022 : vector<16x16xf32>
    %cst_252 = arith.constant 1.000000e+00 : f32
    %1029 = vector.broadcast %cst_252 : f32 to vector<16x16xf32>
    %1030 = arith.addf %1029, %1028 : vector<16x16xf32>
    %1031 = arith.select %1024, %1026, %1030 : vector<16x16xi1>, vector<16x16xf32>
    %cst_253 = arith.constant 0.000000e+00 : f32
    %1032 = vector.broadcast %cst_253 : f32 to vector<16x16xf32>
    %1033 = arith.maximumf %1016, %1032 : vector<16x16xf32>
    %cst_254 = arith.constant 9.99999997E-7 : f32
    %1034 = vector.broadcast %cst_254 : f32 to vector<16x16xf32>
    %1035 = arith.addf %1033, %1034 : vector<16x16xf32>
    %1036 = math.log %1035 : vector<16x16xf32>
    %cst_255 = arith.constant 8.000000e-01 : f32
    %1037 = vector.broadcast %cst_255 : f32 to vector<16x16xf32>
    %1038 = arith.mulf %1037, %1036 : vector<16x16xf32>
    %1039 = math.exp %1038 : vector<16x16xf32>
    %c0_256 = arith.constant 0 : index
    %c3_257 = arith.constant 3 : index
    %c0_258 = arith.constant 0 : index
    %c0_259 = arith.constant 0 : index
    %1040 = vector.load %arg5[%c0_256, %c3_257, %c0_258, %c0_259] : memref<1x8x16x16xf32, #tpu.memory_space<vmem>>, vector<1x1x16x16xf32>
    %1041 = vector.shape_cast %1040 : vector<1x1x16x16xf32> to vector<16x16xf32>
    %1042 = vector.shape_cast %1039 : vector<16x16xf32> to vector<1x1x16x16xf32>
    tpu.vector_store %arg5[%c0_256, %c3_257, %c0_258, %c0_259], %1042 {strides = array<i32>} : memref<1x8x16x16xf32, #tpu.memory_space<vmem>>, vector<1x1x16x16xf32>,
    %c0_260 = arith.constant 0 : index
    %c3_261 = arith.constant 3 : index
    %c0_262 = arith.constant 0 : index
    %c0_263 = arith.constant 0 : index
    %1043 = vector.load %arg6[%c0_260, %c3_261, %c0_262, %c0_263] : memref<1x8x16x16xf32, #tpu.memory_space<vmem>>, vector<1x1x16x16xf32>
    %1044 = vector.shape_cast %1043 : vector<1x1x16x16xf32> to vector<16x16xf32>
    %1045 = vector.shape_cast %1031 : vector<16x16xf32> to vector<1x1x16x16xf32>
    tpu.vector_store %arg6[%c0_260, %c3_261, %c0_262, %c0_263], %1045 {strides = array<i32>} : memref<1x8x16x16xf32, #tpu.memory_space<vmem>>, vector<1x1x16x16xf32>,
    %cst_264 = arith.constant 0.000000e+00 : f32
    %1046 = vector.broadcast %cst_264 : f32 to vector<16x16xf32>
    %c0_i32_265 = arith.constant 0 : i32
    %1047 = arith.addi %1, %c0_i32_265 : i32
    %c0_266 = arith.constant 0 : index
    %c0_267 = arith.constant 0 : index
    %1048 = arith.index_cast %1047 : i32 to index
    %c0_268 = arith.constant 0 : index
    %1049 = vector.load %arg2[%c0_266, %c0_267, %1048, %c0_268] : memref<1x4x18x18xf32, #tpu.memory_space<vmem>>, vector<1x1x16x18xf32>
    %1050 = vector.shape_cast %1049 : vector<1x1x16x18xf32> to vector<16x18xf32>
    %c144 = arith.constant 144 : index
    %1051 = memref.load %arg3[%c144] : memref<288xf32, #tpu.memory_space<smem>>
    %1052 = vector.extract_strided_slice %1050 {offsets = [0, 0], sizes = [16, 16], strides = [1, 1]} : vector<16x18xf32> to vector<16x16xf32>
    %1053 = vector.broadcast %1051 : f32 to vector<16x16xf32>
    %1054 = arith.mulf %1053, %1052 : vector<16x16xf32>
    %1055 = arith.addf %1046, %1054 : vector<16x16xf32>
    %c145 = arith.constant 145 : index
    %1056 = memref.load %arg3[%c145] : memref<288xf32, #tpu.memory_space<smem>>
    %1057 = vector.extract_strided_slice %1050 {offsets = [0, 1], sizes = [16, 16], strides = [1, 1]} : vector<16x18xf32> to vector<16x16xf32>
    %1058 = vector.broadcast %1056 : f32 to vector<16x16xf32>
    %1059 = arith.mulf %1058, %1057 : vector<16x16xf32>
    %1060 = arith.addf %1055, %1059 : vector<16x16xf32>
    %c146 = arith.constant 146 : index
    %1061 = memref.load %arg3[%c146] : memref<288xf32, #tpu.memory_space<smem>>
    %1062 = vector.extract_strided_slice %1050 {offsets = [0, 2], sizes = [16, 16], strides = [1, 1]} : vector<16x18xf32> to vector<16x16xf32>
    %1063 = vector.broadcast %1061 : f32 to vector<16x16xf32>
    %1064 = arith.mulf %1063, %1062 : vector<16x16xf32>
    %1065 = arith.addf %1060, %1064 : vector<16x16xf32>
    %c1_i32_269 = arith.constant 1 : i32
    %1066 = arith.addi %1, %c1_i32_269 : i32
    %c0_270 = arith.constant 0 : index
    %c0_271 = arith.constant 0 : index
    %1067 = arith.index_cast %1066 : i32 to index
    %c0_272 = arith.constant 0 : index
    %1068 = vector.load %arg2[%c0_270, %c0_271, %1067, %c0_272] : memref<1x4x18x18xf32, #tpu.memory_space<vmem>>, vector<1x1x16x18xf32>
    %1069 = vector.shape_cast %1068 : vector<1x1x16x18xf32> to vector<16x18xf32>
    %c147 = arith.constant 147 : index
    %1070 = memref.load %arg3[%c147] : memref<288xf32, #tpu.memory_space<smem>>
    %1071 = vector.extract_strided_slice %1069 {offsets = [0, 0], sizes = [16, 16], strides = [1, 1]} : vector<16x18xf32> to vector<16x16xf32>
    %1072 = vector.broadcast %1070 : f32 to vector<16x16xf32>
    %1073 = arith.mulf %1072, %1071 : vector<16x16xf32>
    %1074 = arith.addf %1065, %1073 : vector<16x16xf32>
    %c148 = arith.constant 148 : index
    %1075 = memref.load %arg3[%c148] : memref<288xf32, #tpu.memory_space<smem>>
    %1076 = vector.extract_strided_slice %1069 {offsets = [0, 1], sizes = [16, 16], strides = [1, 1]} : vector<16x18xf32> to vector<16x16xf32>
    %1077 = vector.broadcast %1075 : f32 to vector<16x16xf32>
    %1078 = arith.mulf %1077, %1076 : vector<16x16xf32>
    %1079 = arith.addf %1074, %1078 : vector<16x16xf32>
    %c149 = arith.constant 149 : index
    %1080 = memref.load %arg3[%c149] : memref<288xf32, #tpu.memory_space<smem>>
    %1081 = vector.extract_strided_slice %1069 {offsets = [0, 2], sizes = [16, 16], strides = [1, 1]} : vector<16x18xf32> to vector<16x16xf32>
    %1082 = vector.broadcast %1080 : f32 to vector<16x16xf32>
    %1083 = arith.mulf %1082, %1081 : vector<16x16xf32>
    %1084 = arith.addf %1079, %1083 : vector<16x16xf32>
    %c2_i32_273 = arith.constant 2 : i32
    %1085 = arith.addi %1, %c2_i32_273 : i32
    %c0_274 = arith.constant 0 : index
    %c0_275 = arith.constant 0 : index
    %1086 = arith.index_cast %1085 : i32 to index
    %c0_276 = arith.constant 0 : index
    %1087 = vector.load %arg2[%c0_274, %c0_275, %1086, %c0_276] : memref<1x4x18x18xf32, #tpu.memory_space<vmem>>, vector<1x1x16x18xf32>
    %1088 = vector.shape_cast %1087 : vector<1x1x16x18xf32> to vector<16x18xf32>
    %c150 = arith.constant 150 : index
    %1089 = memref.load %arg3[%c150] : memref<288xf32, #tpu.memory_space<smem>>
    %1090 = vector.extract_strided_slice %1088 {offsets = [0, 0], sizes = [16, 16], strides = [1, 1]} : vector<16x18xf32> to vector<16x16xf32>
    %1091 = vector.broadcast %1089 : f32 to vector<16x16xf32>
    %1092 = arith.mulf %1091, %1090 : vector<16x16xf32>
    %1093 = arith.addf %1084, %1092 : vector<16x16xf32>
    %c151 = arith.constant 151 : index
    %1094 = memref.load %arg3[%c151] : memref<288xf32, #tpu.memory_space<smem>>
    %1095 = vector.extract_strided_slice %1088 {offsets = [0, 1], sizes = [16, 16], strides = [1, 1]} : vector<16x18xf32> to vector<16x16xf32>
    %1096 = vector.broadcast %1094 : f32 to vector<16x16xf32>
    %1097 = arith.mulf %1096, %1095 : vector<16x16xf32>
    %1098 = arith.addf %1093, %1097 : vector<16x16xf32>
    %c152 = arith.constant 152 : index
    %1099 = memref.load %arg3[%c152] : memref<288xf32, #tpu.memory_space<smem>>
    %1100 = vector.extract_strided_slice %1088 {offsets = [0, 2], sizes = [16, 16], strides = [1, 1]} : vector<16x18xf32> to vector<16x16xf32>
    %1101 = vector.broadcast %1099 : f32 to vector<16x16xf32>
    %1102 = arith.mulf %1101, %1100 : vector<16x16xf32>
    %1103 = arith.addf %1098, %1102 : vector<16x16xf32>
    %c0_i32_277 = arith.constant 0 : i32
    %1104 = arith.addi %1, %c0_i32_277 : i32
    %c0_278 = arith.constant 0 : index
    %c1_279 = arith.constant 1 : index
    %1105 = arith.index_cast %1104 : i32 to index
    %c0_280 = arith.constant 0 : index
    %1106 = vector.load %arg2[%c0_278, %c1_279, %1105, %c0_280] : memref<1x4x18x18xf32, #tpu.memory_space<vmem>>, vector<1x1x16x18xf32>
    %1107 = vector.shape_cast %1106 : vector<1x1x16x18xf32> to vector<16x18xf32>
    %c153 = arith.constant 153 : index
    %1108 = memref.load %arg3[%c153] : memref<288xf32, #tpu.memory_space<smem>>
    %1109 = vector.extract_strided_slice %1107 {offsets = [0, 0], sizes = [16, 16], strides = [1, 1]} : vector<16x18xf32> to vector<16x16xf32>
    %1110 = vector.broadcast %1108 : f32 to vector<16x16xf32>
    %1111 = arith.mulf %1110, %1109 : vector<16x16xf32>
    %1112 = arith.addf %1103, %1111 : vector<16x16xf32>
    %c154 = arith.constant 154 : index
    %1113 = memref.load %arg3[%c154] : memref<288xf32, #tpu.memory_space<smem>>
    %1114 = vector.extract_strided_slice %1107 {offsets = [0, 1], sizes = [16, 16], strides = [1, 1]} : vector<16x18xf32> to vector<16x16xf32>
    %1115 = vector.broadcast %1113 : f32 to vector<16x16xf32>
    %1116 = arith.mulf %1115, %1114 : vector<16x16xf32>
    %1117 = arith.addf %1112, %1116 : vector<16x16xf32>
    %c155 = arith.constant 155 : index
    %1118 = memref.load %arg3[%c155] : memref<288xf32, #tpu.memory_space<smem>>
    %1119 = vector.extract_strided_slice %1107 {offsets = [0, 2], sizes = [16, 16], strides = [1, 1]} : vector<16x18xf32> to vector<16x16xf32>
    %1120 = vector.broadcast %1118 : f32 to vector<16x16xf32>
    %1121 = arith.mulf %1120, %1119 : vector<16x16xf32>
    %1122 = arith.addf %1117, %1121 : vector<16x16xf32>
    %c1_i32_281 = arith.constant 1 : i32
    %1123 = arith.addi %1, %c1_i32_281 : i32
    %c0_282 = arith.constant 0 : index
    %c1_283 = arith.constant 1 : index
    %1124 = arith.index_cast %1123 : i32 to index
    %c0_284 = arith.constant 0 : index
    %1125 = vector.load %arg2[%c0_282, %c1_283, %1124, %c0_284] : memref<1x4x18x18xf32, #tpu.memory_space<vmem>>, vector<1x1x16x18xf32>
    %1126 = vector.shape_cast %1125 : vector<1x1x16x18xf32> to vector<16x18xf32>
    %c156 = arith.constant 156 : index
    %1127 = memref.load %arg3[%c156] : memref<288xf32, #tpu.memory_space<smem>>
    %1128 = vector.extract_strided_slice %1126 {offsets = [0, 0], sizes = [16, 16], strides = [1, 1]} : vector<16x18xf32> to vector<16x16xf32>
    %1129 = vector.broadcast %1127 : f32 to vector<16x16xf32>
    %1130 = arith.mulf %1129, %1128 : vector<16x16xf32>
    %1131 = arith.addf %1122, %1130 : vector<16x16xf32>
    %c157 = arith.constant 157 : index
    %1132 = memref.load %arg3[%c157] : memref<288xf32, #tpu.memory_space<smem>>
    %1133 = vector.extract_strided_slice %1126 {offsets = [0, 1], sizes = [16, 16], strides = [1, 1]} : vector<16x18xf32> to vector<16x16xf32>
    %1134 = vector.broadcast %1132 : f32 to vector<16x16xf32>
    %1135 = arith.mulf %1134, %1133 : vector<16x16xf32>
    %1136 = arith.addf %1131, %1135 : vector<16x16xf32>
    %c158 = arith.constant 158 : index
    %1137 = memref.load %arg3[%c158] : memref<288xf32, #tpu.memory_space<smem>>
    %1138 = vector.extract_strided_slice %1126 {offsets = [0, 2], sizes = [16, 16], strides = [1, 1]} : vector<16x18xf32> to vector<16x16xf32>
    %1139 = vector.broadcast %1137 : f32 to vector<16x16xf32>
    %1140 = arith.mulf %1139, %1138 : vector<16x16xf32>
    %1141 = arith.addf %1136, %1140 : vector<16x16xf32>
    %c2_i32_285 = arith.constant 2 : i32
    %1142 = arith.addi %1, %c2_i32_285 : i32
    %c0_286 = arith.constant 0 : index
    %c1_287 = arith.constant 1 : index
    %1143 = arith.index_cast %1142 : i32 to index
    %c0_288 = arith.constant 0 : index
    %1144 = vector.load %arg2[%c0_286, %c1_287, %1143, %c0_288] : memref<1x4x18x18xf32, #tpu.memory_space<vmem>>, vector<1x1x16x18xf32>
    %1145 = vector.shape_cast %1144 : vector<1x1x16x18xf32> to vector<16x18xf32>
    %c159 = arith.constant 159 : index
    %1146 = memref.load %arg3[%c159] : memref<288xf32, #tpu.memory_space<smem>>
    %1147 = vector.extract_strided_slice %1145 {offsets = [0, 0], sizes = [16, 16], strides = [1, 1]} : vector<16x18xf32> to vector<16x16xf32>
    %1148 = vector.broadcast %1146 : f32 to vector<16x16xf32>
    %1149 = arith.mulf %1148, %1147 : vector<16x16xf32>
    %1150 = arith.addf %1141, %1149 : vector<16x16xf32>
    %c160 = arith.constant 160 : index
    %1151 = memref.load %arg3[%c160] : memref<288xf32, #tpu.memory_space<smem>>
    %1152 = vector.extract_strided_slice %1145 {offsets = [0, 1], sizes = [16, 16], strides = [1, 1]} : vector<16x18xf32> to vector<16x16xf32>
    %1153 = vector.broadcast %1151 : f32 to vector<16x16xf32>
    %1154 = arith.mulf %1153, %1152 : vector<16x16xf32>
    %1155 = arith.addf %1150, %1154 : vector<16x16xf32>
    %c161 = arith.constant 161 : index
    %1156 = memref.load %arg3[%c161] : memref<288xf32, #tpu.memory_space<smem>>
    %1157 = vector.extract_strided_slice %1145 {offsets = [0, 2], sizes = [16, 16], strides = [1, 1]} : vector<16x18xf32> to vector<16x16xf32>
    %1158 = vector.broadcast %1156 : f32 to vector<16x16xf32>
    %1159 = arith.mulf %1158, %1157 : vector<16x16xf32>
    %1160 = arith.addf %1155, %1159 : vector<16x16xf32>
    %c0_i32_289 = arith.constant 0 : i32
    %1161 = arith.addi %1, %c0_i32_289 : i32
    %c0_290 = arith.constant 0 : index
    %c2_291 = arith.constant 2 : index
    %1162 = arith.index_cast %1161 : i32 to index
    %c0_292 = arith.constant 0 : index
    %1163 = vector.load %arg2[%c0_290, %c2_291, %1162, %c0_292] : memref<1x4x18x18xf32, #tpu.memory_space<vmem>>, vector<1x1x16x18xf32>
    %1164 = vector.shape_cast %1163 : vector<1x1x16x18xf32> to vector<16x18xf32>
    %c162 = arith.constant 162 : index
    %1165 = memref.load %arg3[%c162] : memref<288xf32, #tpu.memory_space<smem>>
    %1166 = vector.extract_strided_slice %1164 {offsets = [0, 0], sizes = [16, 16], strides = [1, 1]} : vector<16x18xf32> to vector<16x16xf32>
    %1167 = vector.broadcast %1165 : f32 to vector<16x16xf32>
    %1168 = arith.mulf %1167, %1166 : vector<16x16xf32>
    %1169 = arith.addf %1160, %1168 : vector<16x16xf32>
    %c163 = arith.constant 163 : index
    %1170 = memref.load %arg3[%c163] : memref<288xf32, #tpu.memory_space<smem>>
    %1171 = vector.extract_strided_slice %1164 {offsets = [0, 1], sizes = [16, 16], strides = [1, 1]} : vector<16x18xf32> to vector<16x16xf32>
    %1172 = vector.broadcast %1170 : f32 to vector<16x16xf32>
    %1173 = arith.mulf %1172, %1171 : vector<16x16xf32>
    %1174 = arith.addf %1169, %1173 : vector<16x16xf32>
    %c164 = arith.constant 164 : index
    %1175 = memref.load %arg3[%c164] : memref<288xf32, #tpu.memory_space<smem>>
    %1176 = vector.extract_strided_slice %1164 {offsets = [0, 2], sizes = [16, 16], strides = [1, 1]} : vector<16x18xf32> to vector<16x16xf32>
    %1177 = vector.broadcast %1175 : f32 to vector<16x16xf32>
    %1178 = arith.mulf %1177, %1176 : vector<16x16xf32>
    %1179 = arith.addf %1174, %1178 : vector<16x16xf32>
    %c1_i32_293 = arith.constant 1 : i32
    %1180 = arith.addi %1, %c1_i32_293 : i32
    %c0_294 = arith.constant 0 : index
    %c2_295 = arith.constant 2 : index
    %1181 = arith.index_cast %1180 : i32 to index
    %c0_296 = arith.constant 0 : index
    %1182 = vector.load %arg2[%c0_294, %c2_295, %1181, %c0_296] : memref<1x4x18x18xf32, #tpu.memory_space<vmem>>, vector<1x1x16x18xf32>
    %1183 = vector.shape_cast %1182 : vector<1x1x16x18xf32> to vector<16x18xf32>
    %c165 = arith.constant 165 : index
    %1184 = memref.load %arg3[%c165] : memref<288xf32, #tpu.memory_space<smem>>
    %1185 = vector.extract_strided_slice %1183 {offsets = [0, 0], sizes = [16, 16], strides = [1, 1]} : vector<16x18xf32> to vector<16x16xf32>
    %1186 = vector.broadcast %1184 : f32 to vector<16x16xf32>
    %1187 = arith.mulf %1186, %1185 : vector<16x16xf32>
    %1188 = arith.addf %1179, %1187 : vector<16x16xf32>
    %c166 = arith.constant 166 : index
    %1189 = memref.load %arg3[%c166] : memref<288xf32, #tpu.memory_space<smem>>
    %1190 = vector.extract_strided_slice %1183 {offsets = [0, 1], sizes = [16, 16], strides = [1, 1]} : vector<16x18xf32> to vector<16x16xf32>
    %1191 = vector.broadcast %1189 : f32 to vector<16x16xf32>
    %1192 = arith.mulf %1191, %1190 : vector<16x16xf32>
    %1193 = arith.addf %1188, %1192 : vector<16x16xf32>
    %c167 = arith.constant 167 : index
    %1194 = memref.load %arg3[%c167] : memref<288xf32, #tpu.memory_space<smem>>
    %1195 = vector.extract_strided_slice %1183 {offsets = [0, 2], sizes = [16, 16], strides = [1, 1]} : vector<16x18xf32> to vector<16x16xf32>
    %1196 = vector.broadcast %1194 : f32 to vector<16x16xf32>
    %1197 = arith.mulf %1196, %1195 : vector<16x16xf32>
    %1198 = arith.addf %1193, %1197 : vector<16x16xf32>
    %c2_i32_297 = arith.constant 2 : i32
    %1199 = arith.addi %1, %c2_i32_297 : i32
    %c0_298 = arith.constant 0 : index
    %c2_299 = arith.constant 2 : index
    %1200 = arith.index_cast %1199 : i32 to index
    %c0_300 = arith.constant 0 : index
    %1201 = vector.load %arg2[%c0_298, %c2_299, %1200, %c0_300] : memref<1x4x18x18xf32, #tpu.memory_space<vmem>>, vector<1x1x16x18xf32>
    %1202 = vector.shape_cast %1201 : vector<1x1x16x18xf32> to vector<16x18xf32>
    %c168 = arith.constant 168 : index
    %1203 = memref.load %arg3[%c168] : memref<288xf32, #tpu.memory_space<smem>>
    %1204 = vector.extract_strided_slice %1202 {offsets = [0, 0], sizes = [16, 16], strides = [1, 1]} : vector<16x18xf32> to vector<16x16xf32>
    %1205 = vector.broadcast %1203 : f32 to vector<16x16xf32>
    %1206 = arith.mulf %1205, %1204 : vector<16x16xf32>
    %1207 = arith.addf %1198, %1206 : vector<16x16xf32>
    %c169 = arith.constant 169 : index
    %1208 = memref.load %arg3[%c169] : memref<288xf32, #tpu.memory_space<smem>>
    %1209 = vector.extract_strided_slice %1202 {offsets = [0, 1], sizes = [16, 16], strides = [1, 1]} : vector<16x18xf32> to vector<16x16xf32>
    %1210 = vector.broadcast %1208 : f32 to vector<16x16xf32>
    %1211 = arith.mulf %1210, %1209 : vector<16x16xf32>
    %1212 = arith.addf %1207, %1211 : vector<16x16xf32>
    %c170 = arith.constant 170 : index
    %1213 = memref.load %arg3[%c170] : memref<288xf32, #tpu.memory_space<smem>>
    %1214 = vector.extract_strided_slice %1202 {offsets = [0, 2], sizes = [16, 16], strides = [1, 1]} : vector<16x18xf32> to vector<16x16xf32>
    %1215 = vector.broadcast %1213 : f32 to vector<16x16xf32>
    %1216 = arith.mulf %1215, %1214 : vector<16x16xf32>
    %1217 = arith.addf %1212, %1216 : vector<16x16xf32>
    %c0_i32_301 = arith.constant 0 : i32
    %1218 = arith.addi %1, %c0_i32_301 : i32
    %c0_302 = arith.constant 0 : index
    %c3_303 = arith.constant 3 : index
    %1219 = arith.index_cast %1218 : i32 to index
    %c0_304 = arith.constant 0 : index
    %1220 = vector.load %arg2[%c0_302, %c3_303, %1219, %c0_304] : memref<1x4x18x18xf32, #tpu.memory_space<vmem>>, vector<1x1x16x18xf32>
    %1221 = vector.shape_cast %1220 : vector<1x1x16x18xf32> to vector<16x18xf32>
    %c171 = arith.constant 171 : index
    %1222 = memref.load %arg3[%c171] : memref<288xf32, #tpu.memory_space<smem>>
    %1223 = vector.extract_strided_slice %1221 {offsets = [0, 0], sizes = [16, 16], strides = [1, 1]} : vector<16x18xf32> to vector<16x16xf32>
    %1224 = vector.broadcast %1222 : f32 to vector<16x16xf32>
    %1225 = arith.mulf %1224, %1223 : vector<16x16xf32>
    %1226 = arith.addf %1217, %1225 : vector<16x16xf32>
    %c172 = arith.constant 172 : index
    %1227 = memref.load %arg3[%c172] : memref<288xf32, #tpu.memory_space<smem>>
    %1228 = vector.extract_strided_slice %1221 {offsets = [0, 1], sizes = [16, 16], strides = [1, 1]} : vector<16x18xf32> to vector<16x16xf32>
    %1229 = vector.broadcast %1227 : f32 to vector<16x16xf32>
    %1230 = arith.mulf %1229, %1228 : vector<16x16xf32>
    %1231 = arith.addf %1226, %1230 : vector<16x16xf32>
    %c173 = arith.constant 173 : index
    %1232 = memref.load %arg3[%c173] : memref<288xf32, #tpu.memory_space<smem>>
    %1233 = vector.extract_strided_slice %1221 {offsets = [0, 2], sizes = [16, 16], strides = [1, 1]} : vector<16x18xf32> to vector<16x16xf32>
    %1234 = vector.broadcast %1232 : f32 to vector<16x16xf32>
    %1235 = arith.mulf %1234, %1233 : vector<16x16xf32>
    %1236 = arith.addf %1231, %1235 : vector<16x16xf32>
    %c1_i32_305 = arith.constant 1 : i32
    %1237 = arith.addi %1, %c1_i32_305 : i32
    %c0_306 = arith.constant 0 : index
    %c3_307 = arith.constant 3 : index
    %1238 = arith.index_cast %1237 : i32 to index
    %c0_308 = arith.constant 0 : index
    %1239 = vector.load %arg2[%c0_306, %c3_307, %1238, %c0_308] : memref<1x4x18x18xf32, #tpu.memory_space<vmem>>, vector<1x1x16x18xf32>
    %1240 = vector.shape_cast %1239 : vector<1x1x16x18xf32> to vector<16x18xf32>
    %c174 = arith.constant 174 : index
    %1241 = memref.load %arg3[%c174] : memref<288xf32, #tpu.memory_space<smem>>
    %1242 = vector.extract_strided_slice %1240 {offsets = [0, 0], sizes = [16, 16], strides = [1, 1]} : vector<16x18xf32> to vector<16x16xf32>
    %1243 = vector.broadcast %1241 : f32 to vector<16x16xf32>
    %1244 = arith.mulf %1243, %1242 : vector<16x16xf32>
    %1245 = arith.addf %1236, %1244 : vector<16x16xf32>
    %c175 = arith.constant 175 : index
    %1246 = memref.load %arg3[%c175] : memref<288xf32, #tpu.memory_space<smem>>
    %1247 = vector.extract_strided_slice %1240 {offsets = [0, 1], sizes = [16, 16], strides = [1, 1]} : vector<16x18xf32> to vector<16x16xf32>
    %1248 = vector.broadcast %1246 : f32 to vector<16x16xf32>
    %1249 = arith.mulf %1248, %1247 : vector<16x16xf32>
    %1250 = arith.addf %1245, %1249 : vector<16x16xf32>
    %c176 = arith.constant 176 : index
    %1251 = memref.load %arg3[%c176] : memref<288xf32, #tpu.memory_space<smem>>
    %1252 = vector.extract_strided_slice %1240 {offsets = [0, 2], sizes = [16, 16], strides = [1, 1]} : vector<16x18xf32> to vector<16x16xf32>
    %1253 = vector.broadcast %1251 : f32 to vector<16x16xf32>
    %1254 = arith.mulf %1253, %1252 : vector<16x16xf32>
    %1255 = arith.addf %1250, %1254 : vector<16x16xf32>
    %c2_i32_309 = arith.constant 2 : i32
    %1256 = arith.addi %1, %c2_i32_309 : i32
    %c0_310 = arith.constant 0 : index
    %c3_311 = arith.constant 3 : index
    %1257 = arith.index_cast %1256 : i32 to index
    %c0_312 = arith.constant 0 : index
    %1258 = vector.load %arg2[%c0_310, %c3_311, %1257, %c0_312] : memref<1x4x18x18xf32, #tpu.memory_space<vmem>>, vector<1x1x16x18xf32>
    %1259 = vector.shape_cast %1258 : vector<1x1x16x18xf32> to vector<16x18xf32>
    %c177 = arith.constant 177 : index
    %1260 = memref.load %arg3[%c177] : memref<288xf32, #tpu.memory_space<smem>>
    %1261 = vector.extract_strided_slice %1259 {offsets = [0, 0], sizes = [16, 16], strides = [1, 1]} : vector<16x18xf32> to vector<16x16xf32>
    %1262 = vector.broadcast %1260 : f32 to vector<16x16xf32>
    %1263 = arith.mulf %1262, %1261 : vector<16x16xf32>
    %1264 = arith.addf %1255, %1263 : vector<16x16xf32>
    %c178 = arith.constant 178 : index
    %1265 = memref.load %arg3[%c178] : memref<288xf32, #tpu.memory_space<smem>>
    %1266 = vector.extract_strided_slice %1259 {offsets = [0, 1], sizes = [16, 16], strides = [1, 1]} : vector<16x18xf32> to vector<16x16xf32>
    %1267 = vector.broadcast %1265 : f32 to vector<16x16xf32>
    %1268 = arith.mulf %1267, %1266 : vector<16x16xf32>
    %1269 = arith.addf %1264, %1268 : vector<16x16xf32>
    %c179 = arith.constant 179 : index
    %1270 = memref.load %arg3[%c179] : memref<288xf32, #tpu.memory_space<smem>>
    %1271 = vector.extract_strided_slice %1259 {offsets = [0, 2], sizes = [16, 16], strides = [1, 1]} : vector<16x18xf32> to vector<16x16xf32>
    %1272 = vector.broadcast %1270 : f32 to vector<16x16xf32>
    %1273 = arith.mulf %1272, %1271 : vector<16x16xf32>
    %1274 = arith.addf %1269, %1273 : vector<16x16xf32>
    %c4_313 = arith.constant 4 : index
    %1275 = memref.load %arg4[%c4_313] : memref<8xf32, #tpu.memory_space<smem>>
    %1276 = vector.broadcast %1275 : f32 to vector<16x16xf32>
    %1277 = arith.addf %1274, %1276 : vector<16x16xf32>
    %cst_314 = arith.constant 2.000000e+00 : f32
    %1278 = vector.broadcast %cst_314 : f32 to vector<16x16xf32>
    %1279 = arith.subf %1277, %1278 : vector<16x16xf32>
    %1280 = arith.mulf %1279, %1279 : vector<16x16xf32>
    %cst_315 = arith.constant -1.000000e+00 : f32
    %1281 = vector.broadcast %cst_315 : f32 to vector<16x16xf32>
    %1282 = arith.mulf %1281, %1280 : vector<16x16xf32>
    %1283 = math.exp %1282 : vector<16x16xf32>
    %cst_316 = arith.constant 2.000000e+00 : f32
    %1284 = vector.broadcast %cst_316 : f32 to vector<16x16xf32>
    %1285 = arith.cmpf olt, %1277, %1284 : vector<16x16xf32>
    %cst_317 = arith.constant 1.100000e+00 : f32
    %1286 = vector.broadcast %cst_317 : f32 to vector<16x16xf32>
    %1287 = arith.mulf %1286, %1283 : vector<16x16xf32>
    %cst_318 = arith.constant 1.000000e-01 : f32
    %1288 = vector.broadcast %cst_318 : f32 to vector<16x16xf32>
    %1289 = arith.mulf %1288, %1283 : vector<16x16xf32>
    %cst_319 = arith.constant 1.000000e+00 : f32
    %1290 = vector.broadcast %cst_319 : f32 to vector<16x16xf32>
    %1291 = arith.addf %1290, %1289 : vector<16x16xf32>
    %1292 = arith.select %1285, %1287, %1291 : vector<16x16xi1>, vector<16x16xf32>
    %cst_320 = arith.constant 0.000000e+00 : f32
    %1293 = vector.broadcast %cst_320 : f32 to vector<16x16xf32>
    %1294 = arith.maximumf %1277, %1293 : vector<16x16xf32>
    %cst_321 = arith.constant 9.99999997E-7 : f32
    %1295 = vector.broadcast %cst_321 : f32 to vector<16x16xf32>
    %1296 = arith.addf %1294, %1295 : vector<16x16xf32>
    %1297 = math.log %1296 : vector<16x16xf32>
    %cst_322 = arith.constant 8.000000e-01 : f32
    %1298 = vector.broadcast %cst_322 : f32 to vector<16x16xf32>
    %1299 = arith.mulf %1298, %1297 : vector<16x16xf32>
    %1300 = math.exp %1299 : vector<16x16xf32>
    %c0_323 = arith.constant 0 : index
    %c4_324 = arith.constant 4 : index
    %c0_325 = arith.constant 0 : index
    %c0_326 = arith.constant 0 : index
    %1301 = vector.load %arg5[%c0_323, %c4_324, %c0_325, %c0_326] : memref<1x8x16x16xf32, #tpu.memory_space<vmem>>, vector<1x1x16x16xf32>
    %1302 = vector.shape_cast %1301 : vector<1x1x16x16xf32> to vector<16x16xf32>
    %1303 = vector.shape_cast %1300 : vector<16x16xf32> to vector<1x1x16x16xf32>
    tpu.vector_store %arg5[%c0_323, %c4_324, %c0_325, %c0_326], %1303 {strides = array<i32>} : memref<1x8x16x16xf32, #tpu.memory_space<vmem>>, vector<1x1x16x16xf32>,
    %c0_327 = arith.constant 0 : index
    %c4_328 = arith.constant 4 : index
    %c0_329 = arith.constant 0 : index
    %c0_330 = arith.constant 0 : index
    %1304 = vector.load %arg6[%c0_327, %c4_328, %c0_329, %c0_330] : memref<1x8x16x16xf32, #tpu.memory_space<vmem>>, vector<1x1x16x16xf32>
    %1305 = vector.shape_cast %1304 : vector<1x1x16x16xf32> to vector<16x16xf32>
    %1306 = vector.shape_cast %1292 : vector<16x16xf32> to vector<1x1x16x16xf32>
    tpu.vector_store %arg6[%c0_327, %c4_328, %c0_329, %c0_330], %1306 {strides = array<i32>} : memref<1x8x16x16xf32, #tpu.memory_space<vmem>>, vector<1x1x16x16xf32>,
    %cst_331 = arith.constant 0.000000e+00 : f32
    %1307 = vector.broadcast %cst_331 : f32 to vector<16x16xf32>
    %c0_i32_332 = arith.constant 0 : i32
    %1308 = arith.addi %1, %c0_i32_332 : i32
    %c0_333 = arith.constant 0 : index
    %c0_334 = arith.constant 0 : index
    %1309 = arith.index_cast %1308 : i32 to index
    %c0_335 = arith.constant 0 : index
    %1310 = vector.load %arg2[%c0_333, %c0_334, %1309, %c0_335] : memref<1x4x18x18xf32, #tpu.memory_space<vmem>>, vector<1x1x16x18xf32>
    %1311 = vector.shape_cast %1310 : vector<1x1x16x18xf32> to vector<16x18xf32>
    %c180 = arith.constant 180 : index
    %1312 = memref.load %arg3[%c180] : memref<288xf32, #tpu.memory_space<smem>>
    %1313 = vector.extract_strided_slice %1311 {offsets = [0, 0], sizes = [16, 16], strides = [1, 1]} : vector<16x18xf32> to vector<16x16xf32>
    %1314 = vector.broadcast %1312 : f32 to vector<16x16xf32>
    %1315 = arith.mulf %1314, %1313 : vector<16x16xf32>
    %1316 = arith.addf %1307, %1315 : vector<16x16xf32>
    %c181 = arith.constant 181 : index
    %1317 = memref.load %arg3[%c181] : memref<288xf32, #tpu.memory_space<smem>>
    %1318 = vector.extract_strided_slice %1311 {offsets = [0, 1], sizes = [16, 16], strides = [1, 1]} : vector<16x18xf32> to vector<16x16xf32>
    %1319 = vector.broadcast %1317 : f32 to vector<16x16xf32>
    %1320 = arith.mulf %1319, %1318 : vector<16x16xf32>
    %1321 = arith.addf %1316, %1320 : vector<16x16xf32>
    %c182 = arith.constant 182 : index
    %1322 = memref.load %arg3[%c182] : memref<288xf32, #tpu.memory_space<smem>>
    %1323 = vector.extract_strided_slice %1311 {offsets = [0, 2], sizes = [16, 16], strides = [1, 1]} : vector<16x18xf32> to vector<16x16xf32>
    %1324 = vector.broadcast %1322 : f32 to vector<16x16xf32>
    %1325 = arith.mulf %1324, %1323 : vector<16x16xf32>
    %1326 = arith.addf %1321, %1325 : vector<16x16xf32>
    %c1_i32_336 = arith.constant 1 : i32
    %1327 = arith.addi %1, %c1_i32_336 : i32
    %c0_337 = arith.constant 0 : index
    %c0_338 = arith.constant 0 : index
    %1328 = arith.index_cast %1327 : i32 to index
    %c0_339 = arith.constant 0 : index
    %1329 = vector.load %arg2[%c0_337, %c0_338, %1328, %c0_339] : memref<1x4x18x18xf32, #tpu.memory_space<vmem>>, vector<1x1x16x18xf32>
    %1330 = vector.shape_cast %1329 : vector<1x1x16x18xf32> to vector<16x18xf32>
    %c183 = arith.constant 183 : index
    %1331 = memref.load %arg3[%c183] : memref<288xf32, #tpu.memory_space<smem>>
    %1332 = vector.extract_strided_slice %1330 {offsets = [0, 0], sizes = [16, 16], strides = [1, 1]} : vector<16x18xf32> to vector<16x16xf32>
    %1333 = vector.broadcast %1331 : f32 to vector<16x16xf32>
    %1334 = arith.mulf %1333, %1332 : vector<16x16xf32>
    %1335 = arith.addf %1326, %1334 : vector<16x16xf32>
    %c184 = arith.constant 184 : index
    %1336 = memref.load %arg3[%c184] : memref<288xf32, #tpu.memory_space<smem>>
    %1337 = vector.extract_strided_slice %1330 {offsets = [0, 1], sizes = [16, 16], strides = [1, 1]} : vector<16x18xf32> to vector<16x16xf32>
    %1338 = vector.broadcast %1336 : f32 to vector<16x16xf32>
    %1339 = arith.mulf %1338, %1337 : vector<16x16xf32>
    %1340 = arith.addf %1335, %1339 : vector<16x16xf32>
    %c185 = arith.constant 185 : index
    %1341 = memref.load %arg3[%c185] : memref<288xf32, #tpu.memory_space<smem>>
    %1342 = vector.extract_strided_slice %1330 {offsets = [0, 2], sizes = [16, 16], strides = [1, 1]} : vector<16x18xf32> to vector<16x16xf32>
    %1343 = vector.broadcast %1341 : f32 to vector<16x16xf32>
    %1344 = arith.mulf %1343, %1342 : vector<16x16xf32>
    %1345 = arith.addf %1340, %1344 : vector<16x16xf32>
    %c2_i32_340 = arith.constant 2 : i32
    %1346 = arith.addi %1, %c2_i32_340 : i32
    %c0_341 = arith.constant 0 : index
    %c0_342 = arith.constant 0 : index
    %1347 = arith.index_cast %1346 : i32 to index
    %c0_343 = arith.constant 0 : index
    %1348 = vector.load %arg2[%c0_341, %c0_342, %1347, %c0_343] : memref<1x4x18x18xf32, #tpu.memory_space<vmem>>, vector<1x1x16x18xf32>
    %1349 = vector.shape_cast %1348 : vector<1x1x16x18xf32> to vector<16x18xf32>
    %c186 = arith.constant 186 : index
    %1350 = memref.load %arg3[%c186] : memref<288xf32, #tpu.memory_space<smem>>
    %1351 = vector.extract_strided_slice %1349 {offsets = [0, 0], sizes = [16, 16], strides = [1, 1]} : vector<16x18xf32> to vector<16x16xf32>
    %1352 = vector.broadcast %1350 : f32 to vector<16x16xf32>
    %1353 = arith.mulf %1352, %1351 : vector<16x16xf32>
    %1354 = arith.addf %1345, %1353 : vector<16x16xf32>
    %c187 = arith.constant 187 : index
    %1355 = memref.load %arg3[%c187] : memref<288xf32, #tpu.memory_space<smem>>
    %1356 = vector.extract_strided_slice %1349 {offsets = [0, 1], sizes = [16, 16], strides = [1, 1]} : vector<16x18xf32> to vector<16x16xf32>
    %1357 = vector.broadcast %1355 : f32 to vector<16x16xf32>
    %1358 = arith.mulf %1357, %1356 : vector<16x16xf32>
    %1359 = arith.addf %1354, %1358 : vector<16x16xf32>
    %c188 = arith.constant 188 : index
    %1360 = memref.load %arg3[%c188] : memref<288xf32, #tpu.memory_space<smem>>
    %1361 = vector.extract_strided_slice %1349 {offsets = [0, 2], sizes = [16, 16], strides = [1, 1]} : vector<16x18xf32> to vector<16x16xf32>
    %1362 = vector.broadcast %1360 : f32 to vector<16x16xf32>
    %1363 = arith.mulf %1362, %1361 : vector<16x16xf32>
    %1364 = arith.addf %1359, %1363 : vector<16x16xf32>
    %c0_i32_344 = arith.constant 0 : i32
    %1365 = arith.addi %1, %c0_i32_344 : i32
    %c0_345 = arith.constant 0 : index
    %c1_346 = arith.constant 1 : index
    %1366 = arith.index_cast %1365 : i32 to index
    %c0_347 = arith.constant 0 : index
    %1367 = vector.load %arg2[%c0_345, %c1_346, %1366, %c0_347] : memref<1x4x18x18xf32, #tpu.memory_space<vmem>>, vector<1x1x16x18xf32>
    %1368 = vector.shape_cast %1367 : vector<1x1x16x18xf32> to vector<16x18xf32>
    %c189 = arith.constant 189 : index
    %1369 = memref.load %arg3[%c189] : memref<288xf32, #tpu.memory_space<smem>>
    %1370 = vector.extract_strided_slice %1368 {offsets = [0, 0], sizes = [16, 16], strides = [1, 1]} : vector<16x18xf32> to vector<16x16xf32>
    %1371 = vector.broadcast %1369 : f32 to vector<16x16xf32>
    %1372 = arith.mulf %1371, %1370 : vector<16x16xf32>
    %1373 = arith.addf %1364, %1372 : vector<16x16xf32>
    %c190 = arith.constant 190 : index
    %1374 = memref.load %arg3[%c190] : memref<288xf32, #tpu.memory_space<smem>>
    %1375 = vector.extract_strided_slice %1368 {offsets = [0, 1], sizes = [16, 16], strides = [1, 1]} : vector<16x18xf32> to vector<16x16xf32>
    %1376 = vector.broadcast %1374 : f32 to vector<16x16xf32>
    %1377 = arith.mulf %1376, %1375 : vector<16x16xf32>
    %1378 = arith.addf %1373, %1377 : vector<16x16xf32>
    %c191 = arith.constant 191 : index
    %1379 = memref.load %arg3[%c191] : memref<288xf32, #tpu.memory_space<smem>>
    %1380 = vector.extract_strided_slice %1368 {offsets = [0, 2], sizes = [16, 16], strides = [1, 1]} : vector<16x18xf32> to vector<16x16xf32>
    %1381 = vector.broadcast %1379 : f32 to vector<16x16xf32>
    %1382 = arith.mulf %1381, %1380 : vector<16x16xf32>
    %1383 = arith.addf %1378, %1382 : vector<16x16xf32>
    %c1_i32_348 = arith.constant 1 : i32
    %1384 = arith.addi %1, %c1_i32_348 : i32
    %c0_349 = arith.constant 0 : index
    %c1_350 = arith.constant 1 : index
    %1385 = arith.index_cast %1384 : i32 to index
    %c0_351 = arith.constant 0 : index
    %1386 = vector.load %arg2[%c0_349, %c1_350, %1385, %c0_351] : memref<1x4x18x18xf32, #tpu.memory_space<vmem>>, vector<1x1x16x18xf32>
    %1387 = vector.shape_cast %1386 : vector<1x1x16x18xf32> to vector<16x18xf32>
    %c192 = arith.constant 192 : index
    %1388 = memref.load %arg3[%c192] : memref<288xf32, #tpu.memory_space<smem>>
    %1389 = vector.extract_strided_slice %1387 {offsets = [0, 0], sizes = [16, 16], strides = [1, 1]} : vector<16x18xf32> to vector<16x16xf32>
    %1390 = vector.broadcast %1388 : f32 to vector<16x16xf32>
    %1391 = arith.mulf %1390, %1389 : vector<16x16xf32>
    %1392 = arith.addf %1383, %1391 : vector<16x16xf32>
    %c193 = arith.constant 193 : index
    %1393 = memref.load %arg3[%c193] : memref<288xf32, #tpu.memory_space<smem>>
    %1394 = vector.extract_strided_slice %1387 {offsets = [0, 1], sizes = [16, 16], strides = [1, 1]} : vector<16x18xf32> to vector<16x16xf32>
    %1395 = vector.broadcast %1393 : f32 to vector<16x16xf32>
    %1396 = arith.mulf %1395, %1394 : vector<16x16xf32>
    %1397 = arith.addf %1392, %1396 : vector<16x16xf32>
    %c194 = arith.constant 194 : index
    %1398 = memref.load %arg3[%c194] : memref<288xf32, #tpu.memory_space<smem>>
    %1399 = vector.extract_strided_slice %1387 {offsets = [0, 2], sizes = [16, 16], strides = [1, 1]} : vector<16x18xf32> to vector<16x16xf32>
    %1400 = vector.broadcast %1398 : f32 to vector<16x16xf32>
    %1401 = arith.mulf %1400, %1399 : vector<16x16xf32>
    %1402 = arith.addf %1397, %1401 : vector<16x16xf32>
    %c2_i32_352 = arith.constant 2 : i32
    %1403 = arith.addi %1, %c2_i32_352 : i32
    %c0_353 = arith.constant 0 : index
    %c1_354 = arith.constant 1 : index
    %1404 = arith.index_cast %1403 : i32 to index
    %c0_355 = arith.constant 0 : index
    %1405 = vector.load %arg2[%c0_353, %c1_354, %1404, %c0_355] : memref<1x4x18x18xf32, #tpu.memory_space<vmem>>, vector<1x1x16x18xf32>
    %1406 = vector.shape_cast %1405 : vector<1x1x16x18xf32> to vector<16x18xf32>
    %c195 = arith.constant 195 : index
    %1407 = memref.load %arg3[%c195] : memref<288xf32, #tpu.memory_space<smem>>
    %1408 = vector.extract_strided_slice %1406 {offsets = [0, 0], sizes = [16, 16], strides = [1, 1]} : vector<16x18xf32> to vector<16x16xf32>
    %1409 = vector.broadcast %1407 : f32 to vector<16x16xf32>
    %1410 = arith.mulf %1409, %1408 : vector<16x16xf32>
    %1411 = arith.addf %1402, %1410 : vector<16x16xf32>
    %c196 = arith.constant 196 : index
    %1412 = memref.load %arg3[%c196] : memref<288xf32, #tpu.memory_space<smem>>
    %1413 = vector.extract_strided_slice %1406 {offsets = [0, 1], sizes = [16, 16], strides = [1, 1]} : vector<16x18xf32> to vector<16x16xf32>
    %1414 = vector.broadcast %1412 : f32 to vector<16x16xf32>
    %1415 = arith.mulf %1414, %1413 : vector<16x16xf32>
    %1416 = arith.addf %1411, %1415 : vector<16x16xf32>
    %c197 = arith.constant 197 : index
    %1417 = memref.load %arg3[%c197] : memref<288xf32, #tpu.memory_space<smem>>
    %1418 = vector.extract_strided_slice %1406 {offsets = [0, 2], sizes = [16, 16], strides = [1, 1]} : vector<16x18xf32> to vector<16x16xf32>
    %1419 = vector.broadcast %1417 : f32 to vector<16x16xf32>
    %1420 = arith.mulf %1419, %1418 : vector<16x16xf32>
    %1421 = arith.addf %1416, %1420 : vector<16x16xf32>
    %c0_i32_356 = arith.constant 0 : i32
    %1422 = arith.addi %1, %c0_i32_356 : i32
    %c0_357 = arith.constant 0 : index
    %c2_358 = arith.constant 2 : index
    %1423 = arith.index_cast %1422 : i32 to index
    %c0_359 = arith.constant 0 : index
    %1424 = vector.load %arg2[%c0_357, %c2_358, %1423, %c0_359] : memref<1x4x18x18xf32, #tpu.memory_space<vmem>>, vector<1x1x16x18xf32>
    %1425 = vector.shape_cast %1424 : vector<1x1x16x18xf32> to vector<16x18xf32>
    %c198 = arith.constant 198 : index
    %1426 = memref.load %arg3[%c198] : memref<288xf32, #tpu.memory_space<smem>>
    %1427 = vector.extract_strided_slice %1425 {offsets = [0, 0], sizes = [16, 16], strides = [1, 1]} : vector<16x18xf32> to vector<16x16xf32>
    %1428 = vector.broadcast %1426 : f32 to vector<16x16xf32>
    %1429 = arith.mulf %1428, %1427 : vector<16x16xf32>
    %1430 = arith.addf %1421, %1429 : vector<16x16xf32>
    %c199 = arith.constant 199 : index
    %1431 = memref.load %arg3[%c199] : memref<288xf32, #tpu.memory_space<smem>>
    %1432 = vector.extract_strided_slice %1425 {offsets = [0, 1], sizes = [16, 16], strides = [1, 1]} : vector<16x18xf32> to vector<16x16xf32>
    %1433 = vector.broadcast %1431 : f32 to vector<16x16xf32>
    %1434 = arith.mulf %1433, %1432 : vector<16x16xf32>
    %1435 = arith.addf %1430, %1434 : vector<16x16xf32>
    %c200 = arith.constant 200 : index
    %1436 = memref.load %arg3[%c200] : memref<288xf32, #tpu.memory_space<smem>>
    %1437 = vector.extract_strided_slice %1425 {offsets = [0, 2], sizes = [16, 16], strides = [1, 1]} : vector<16x18xf32> to vector<16x16xf32>
    %1438 = vector.broadcast %1436 : f32 to vector<16x16xf32>
    %1439 = arith.mulf %1438, %1437 : vector<16x16xf32>
    %1440 = arith.addf %1435, %1439 : vector<16x16xf32>
    %c1_i32_360 = arith.constant 1 : i32
    %1441 = arith.addi %1, %c1_i32_360 : i32
    %c0_361 = arith.constant 0 : index
    %c2_362 = arith.constant 2 : index
    %1442 = arith.index_cast %1441 : i32 to index
    %c0_363 = arith.constant 0 : index
    %1443 = vector.load %arg2[%c0_361, %c2_362, %1442, %c0_363] : memref<1x4x18x18xf32, #tpu.memory_space<vmem>>, vector<1x1x16x18xf32>
    %1444 = vector.shape_cast %1443 : vector<1x1x16x18xf32> to vector<16x18xf32>
    %c201 = arith.constant 201 : index
    %1445 = memref.load %arg3[%c201] : memref<288xf32, #tpu.memory_space<smem>>
    %1446 = vector.extract_strided_slice %1444 {offsets = [0, 0], sizes = [16, 16], strides = [1, 1]} : vector<16x18xf32> to vector<16x16xf32>
    %1447 = vector.broadcast %1445 : f32 to vector<16x16xf32>
    %1448 = arith.mulf %1447, %1446 : vector<16x16xf32>
    %1449 = arith.addf %1440, %1448 : vector<16x16xf32>
    %c202 = arith.constant 202 : index
    %1450 = memref.load %arg3[%c202] : memref<288xf32, #tpu.memory_space<smem>>
    %1451 = vector.extract_strided_slice %1444 {offsets = [0, 1], sizes = [16, 16], strides = [1, 1]} : vector<16x18xf32> to vector<16x16xf32>
    %1452 = vector.broadcast %1450 : f32 to vector<16x16xf32>
    %1453 = arith.mulf %1452, %1451 : vector<16x16xf32>
    %1454 = arith.addf %1449, %1453 : vector<16x16xf32>
    %c203 = arith.constant 203 : index
    %1455 = memref.load %arg3[%c203] : memref<288xf32, #tpu.memory_space<smem>>
    %1456 = vector.extract_strided_slice %1444 {offsets = [0, 2], sizes = [16, 16], strides = [1, 1]} : vector<16x18xf32> to vector<16x16xf32>
    %1457 = vector.broadcast %1455 : f32 to vector<16x16xf32>
    %1458 = arith.mulf %1457, %1456 : vector<16x16xf32>
    %1459 = arith.addf %1454, %1458 : vector<16x16xf32>
    %c2_i32_364 = arith.constant 2 : i32
    %1460 = arith.addi %1, %c2_i32_364 : i32
    %c0_365 = arith.constant 0 : index
    %c2_366 = arith.constant 2 : index
    %1461 = arith.index_cast %1460 : i32 to index
    %c0_367 = arith.constant 0 : index
    %1462 = vector.load %arg2[%c0_365, %c2_366, %1461, %c0_367] : memref<1x4x18x18xf32, #tpu.memory_space<vmem>>, vector<1x1x16x18xf32>
    %1463 = vector.shape_cast %1462 : vector<1x1x16x18xf32> to vector<16x18xf32>
    %c204 = arith.constant 204 : index
    %1464 = memref.load %arg3[%c204] : memref<288xf32, #tpu.memory_space<smem>>
    %1465 = vector.extract_strided_slice %1463 {offsets = [0, 0], sizes = [16, 16], strides = [1, 1]} : vector<16x18xf32> to vector<16x16xf32>
    %1466 = vector.broadcast %1464 : f32 to vector<16x16xf32>
    %1467 = arith.mulf %1466, %1465 : vector<16x16xf32>
    %1468 = arith.addf %1459, %1467 : vector<16x16xf32>
    %c205 = arith.constant 205 : index
    %1469 = memref.load %arg3[%c205] : memref<288xf32, #tpu.memory_space<smem>>
    %1470 = vector.extract_strided_slice %1463 {offsets = [0, 1], sizes = [16, 16], strides = [1, 1]} : vector<16x18xf32> to vector<16x16xf32>
    %1471 = vector.broadcast %1469 : f32 to vector<16x16xf32>
    %1472 = arith.mulf %1471, %1470 : vector<16x16xf32>
    %1473 = arith.addf %1468, %1472 : vector<16x16xf32>
    %c206 = arith.constant 206 : index
    %1474 = memref.load %arg3[%c206] : memref<288xf32, #tpu.memory_space<smem>>
    %1475 = vector.extract_strided_slice %1463 {offsets = [0, 2], sizes = [16, 16], strides = [1, 1]} : vector<16x18xf32> to vector<16x16xf32>
    %1476 = vector.broadcast %1474 : f32 to vector<16x16xf32>
    %1477 = arith.mulf %1476, %1475 : vector<16x16xf32>
    %1478 = arith.addf %1473, %1477 : vector<16x16xf32>
    %c0_i32_368 = arith.constant 0 : i32
    %1479 = arith.addi %1, %c0_i32_368 : i32
    %c0_369 = arith.constant 0 : index
    %c3_370 = arith.constant 3 : index
    %1480 = arith.index_cast %1479 : i32 to index
    %c0_371 = arith.constant 0 : index
    %1481 = vector.load %arg2[%c0_369, %c3_370, %1480, %c0_371] : memref<1x4x18x18xf32, #tpu.memory_space<vmem>>, vector<1x1x16x18xf32>
    %1482 = vector.shape_cast %1481 : vector<1x1x16x18xf32> to vector<16x18xf32>
    %c207 = arith.constant 207 : index
    %1483 = memref.load %arg3[%c207] : memref<288xf32, #tpu.memory_space<smem>>
    %1484 = vector.extract_strided_slice %1482 {offsets = [0, 0], sizes = [16, 16], strides = [1, 1]} : vector<16x18xf32> to vector<16x16xf32>
    %1485 = vector.broadcast %1483 : f32 to vector<16x16xf32>
    %1486 = arith.mulf %1485, %1484 : vector<16x16xf32>
    %1487 = arith.addf %1478, %1486 : vector<16x16xf32>
    %c208 = arith.constant 208 : index
    %1488 = memref.load %arg3[%c208] : memref<288xf32, #tpu.memory_space<smem>>
    %1489 = vector.extract_strided_slice %1482 {offsets = [0, 1], sizes = [16, 16], strides = [1, 1]} : vector<16x18xf32> to vector<16x16xf32>
    %1490 = vector.broadcast %1488 : f32 to vector<16x16xf32>
    %1491 = arith.mulf %1490, %1489 : vector<16x16xf32>
    %1492 = arith.addf %1487, %1491 : vector<16x16xf32>
    %c209 = arith.constant 209 : index
    %1493 = memref.load %arg3[%c209] : memref<288xf32, #tpu.memory_space<smem>>
    %1494 = vector.extract_strided_slice %1482 {offsets = [0, 2], sizes = [16, 16], strides = [1, 1]} : vector<16x18xf32> to vector<16x16xf32>
    %1495 = vector.broadcast %1493 : f32 to vector<16x16xf32>
    %1496 = arith.mulf %1495, %1494 : vector<16x16xf32>
    %1497 = arith.addf %1492, %1496 : vector<16x16xf32>
    %c1_i32_372 = arith.constant 1 : i32
    %1498 = arith.addi %1, %c1_i32_372 : i32
    %c0_373 = arith.constant 0 : index
    %c3_374 = arith.constant 3 : index
    %1499 = arith.index_cast %1498 : i32 to index
    %c0_375 = arith.constant 0 : index
    %1500 = vector.load %arg2[%c0_373, %c3_374, %1499, %c0_375] : memref<1x4x18x18xf32, #tpu.memory_space<vmem>>, vector<1x1x16x18xf32>
    %1501 = vector.shape_cast %1500 : vector<1x1x16x18xf32> to vector<16x18xf32>
    %c210 = arith.constant 210 : index
    %1502 = memref.load %arg3[%c210] : memref<288xf32, #tpu.memory_space<smem>>
    %1503 = vector.extract_strided_slice %1501 {offsets = [0, 0], sizes = [16, 16], strides = [1, 1]} : vector<16x18xf32> to vector<16x16xf32>
    %1504 = vector.broadcast %1502 : f32 to vector<16x16xf32>
    %1505 = arith.mulf %1504, %1503 : vector<16x16xf32>
    %1506 = arith.addf %1497, %1505 : vector<16x16xf32>
    %c211 = arith.constant 211 : index
    %1507 = memref.load %arg3[%c211] : memref<288xf32, #tpu.memory_space<smem>>
    %1508 = vector.extract_strided_slice %1501 {offsets = [0, 1], sizes = [16, 16], strides = [1, 1]} : vector<16x18xf32> to vector<16x16xf32>
    %1509 = vector.broadcast %1507 : f32 to vector<16x16xf32>
    %1510 = arith.mulf %1509, %1508 : vector<16x16xf32>
    %1511 = arith.addf %1506, %1510 : vector<16x16xf32>
    %c212 = arith.constant 212 : index
    %1512 = memref.load %arg3[%c212] : memref<288xf32, #tpu.memory_space<smem>>
    %1513 = vector.extract_strided_slice %1501 {offsets = [0, 2], sizes = [16, 16], strides = [1, 1]} : vector<16x18xf32> to vector<16x16xf32>
    %1514 = vector.broadcast %1512 : f32 to vector<16x16xf32>
    %1515 = arith.mulf %1514, %1513 : vector<16x16xf32>
    %1516 = arith.addf %1511, %1515 : vector<16x16xf32>
    %c2_i32_376 = arith.constant 2 : i32
    %1517 = arith.addi %1, %c2_i32_376 : i32
    %c0_377 = arith.constant 0 : index
    %c3_378 = arith.constant 3 : index
    %1518 = arith.index_cast %1517 : i32 to index
    %c0_379 = arith.constant 0 : index
    %1519 = vector.load %arg2[%c0_377, %c3_378, %1518, %c0_379] : memref<1x4x18x18xf32, #tpu.memory_space<vmem>>, vector<1x1x16x18xf32>
    %1520 = vector.shape_cast %1519 : vector<1x1x16x18xf32> to vector<16x18xf32>
    %c213 = arith.constant 213 : index
    %1521 = memref.load %arg3[%c213] : memref<288xf32, #tpu.memory_space<smem>>
    %1522 = vector.extract_strided_slice %1520 {offsets = [0, 0], sizes = [16, 16], strides = [1, 1]} : vector<16x18xf32> to vector<16x16xf32>
    %1523 = vector.broadcast %1521 : f32 to vector<16x16xf32>
    %1524 = arith.mulf %1523, %1522 : vector<16x16xf32>
    %1525 = arith.addf %1516, %1524 : vector<16x16xf32>
    %c214 = arith.constant 214 : index
    %1526 = memref.load %arg3[%c214] : memref<288xf32, #tpu.memory_space<smem>>
    %1527 = vector.extract_strided_slice %1520 {offsets = [0, 1], sizes = [16, 16], strides = [1, 1]} : vector<16x18xf32> to vector<16x16xf32>
    %1528 = vector.broadcast %1526 : f32 to vector<16x16xf32>
    %1529 = arith.mulf %1528, %1527 : vector<16x16xf32>
    %1530 = arith.addf %1525, %1529 : vector<16x16xf32>
    %c215 = arith.constant 215 : index
    %1531 = memref.load %arg3[%c215] : memref<288xf32, #tpu.memory_space<smem>>
    %1532 = vector.extract_strided_slice %1520 {offsets = [0, 2], sizes = [16, 16], strides = [1, 1]} : vector<16x18xf32> to vector<16x16xf32>
    %1533 = vector.broadcast %1531 : f32 to vector<16x16xf32>
    %1534 = arith.mulf %1533, %1532 : vector<16x16xf32>
    %1535 = arith.addf %1530, %1534 : vector<16x16xf32>
    %c5_380 = arith.constant 5 : index
    %1536 = memref.load %arg4[%c5_380] : memref<8xf32, #tpu.memory_space<smem>>
    %1537 = vector.broadcast %1536 : f32 to vector<16x16xf32>
    %1538 = arith.addf %1535, %1537 : vector<16x16xf32>
    %cst_381 = arith.constant 2.000000e+00 : f32
    %1539 = vector.broadcast %cst_381 : f32 to vector<16x16xf32>
    %1540 = arith.subf %1538, %1539 : vector<16x16xf32>
    %1541 = arith.mulf %1540, %1540 : vector<16x16xf32>
    %cst_382 = arith.constant -1.000000e+00 : f32
    %1542 = vector.broadcast %cst_382 : f32 to vector<16x16xf32>
    %1543 = arith.mulf %1542, %1541 : vector<16x16xf32>
    %1544 = math.exp %1543 : vector<16x16xf32>
    %cst_383 = arith.constant 2.000000e+00 : f32
    %1545 = vector.broadcast %cst_383 : f32 to vector<16x16xf32>
    %1546 = arith.cmpf olt, %1538, %1545 : vector<16x16xf32>
    %cst_384 = arith.constant 1.100000e+00 : f32
    %1547 = vector.broadcast %cst_384 : f32 to vector<16x16xf32>
    %1548 = arith.mulf %1547, %1544 : vector<16x16xf32>
    %cst_385 = arith.constant 1.000000e-01 : f32
    %1549 = vector.broadcast %cst_385 : f32 to vector<16x16xf32>
    %1550 = arith.mulf %1549, %1544 : vector<16x16xf32>
    %cst_386 = arith.constant 1.000000e+00 : f32
    %1551 = vector.broadcast %cst_386 : f32 to vector<16x16xf32>
    %1552 = arith.addf %1551, %1550 : vector<16x16xf32>
    %1553 = arith.select %1546, %1548, %1552 : vector<16x16xi1>, vector<16x16xf32>
    %cst_387 = arith.constant 0.000000e+00 : f32
    %1554 = vector.broadcast %cst_387 : f32 to vector<16x16xf32>
    %1555 = arith.maximumf %1538, %1554 : vector<16x16xf32>
    %cst_388 = arith.constant 9.99999997E-7 : f32
    %1556 = vector.broadcast %cst_388 : f32 to vector<16x16xf32>
    %1557 = arith.addf %1555, %1556 : vector<16x16xf32>
    %1558 = math.log %1557 : vector<16x16xf32>
    %cst_389 = arith.constant 8.000000e-01 : f32
    %1559 = vector.broadcast %cst_389 : f32 to vector<16x16xf32>
    %1560 = arith.mulf %1559, %1558 : vector<16x16xf32>
    %1561 = math.exp %1560 : vector<16x16xf32>
    %c0_390 = arith.constant 0 : index
    %c5_391 = arith.constant 5 : index
    %c0_392 = arith.constant 0 : index
    %c0_393 = arith.constant 0 : index
    %1562 = vector.load %arg5[%c0_390, %c5_391, %c0_392, %c0_393] : memref<1x8x16x16xf32, #tpu.memory_space<vmem>>, vector<1x1x16x16xf32>
    %1563 = vector.shape_cast %1562 : vector<1x1x16x16xf32> to vector<16x16xf32>
    %1564 = vector.shape_cast %1561 : vector<16x16xf32> to vector<1x1x16x16xf32>
    tpu.vector_store %arg5[%c0_390, %c5_391, %c0_392, %c0_393], %1564 {strides = array<i32>} : memref<1x8x16x16xf32, #tpu.memory_space<vmem>>, vector<1x1x16x16xf32>,
    %c0_394 = arith.constant 0 : index
    %c5_395 = arith.constant 5 : index
    %c0_396 = arith.constant 0 : index
    %c0_397 = arith.constant 0 : index
    %1565 = vector.load %arg6[%c0_394, %c5_395, %c0_396, %c0_397] : memref<1x8x16x16xf32, #tpu.memory_space<vmem>>, vector<1x1x16x16xf32>
    %1566 = vector.shape_cast %1565 : vector<1x1x16x16xf32> to vector<16x16xf32>
    %1567 = vector.shape_cast %1553 : vector<16x16xf32> to vector<1x1x16x16xf32>
    tpu.vector_store %arg6[%c0_394, %c5_395, %c0_396, %c0_397], %1567 {strides = array<i32>} : memref<1x8x16x16xf32, #tpu.memory_space<vmem>>, vector<1x1x16x16xf32>,
    %cst_398 = arith.constant 0.000000e+00 : f32
    %1568 = vector.broadcast %cst_398 : f32 to vector<16x16xf32>
    %c0_i32_399 = arith.constant 0 : i32
    %1569 = arith.addi %1, %c0_i32_399 : i32
    %c0_400 = arith.constant 0 : index
    %c0_401 = arith.constant 0 : index
    %1570 = arith.index_cast %1569 : i32 to index
    %c0_402 = arith.constant 0 : index
    %1571 = vector.load %arg2[%c0_400, %c0_401, %1570, %c0_402] : memref<1x4x18x18xf32, #tpu.memory_space<vmem>>, vector<1x1x16x18xf32>
    %1572 = vector.shape_cast %1571 : vector<1x1x16x18xf32> to vector<16x18xf32>
    %c216 = arith.constant 216 : index
    %1573 = memref.load %arg3[%c216] : memref<288xf32, #tpu.memory_space<smem>>
    %1574 = vector.extract_strided_slice %1572 {offsets = [0, 0], sizes = [16, 16], strides = [1, 1]} : vector<16x18xf32> to vector<16x16xf32>
    %1575 = vector.broadcast %1573 : f32 to vector<16x16xf32>
    %1576 = arith.mulf %1575, %1574 : vector<16x16xf32>
    %1577 = arith.addf %1568, %1576 : vector<16x16xf32>
    %c217 = arith.constant 217 : index
    %1578 = memref.load %arg3[%c217] : memref<288xf32, #tpu.memory_space<smem>>
    %1579 = vector.extract_strided_slice %1572 {offsets = [0, 1], sizes = [16, 16], strides = [1, 1]} : vector<16x18xf32> to vector<16x16xf32>
    %1580 = vector.broadcast %1578 : f32 to vector<16x16xf32>
    %1581 = arith.mulf %1580, %1579 : vector<16x16xf32>
    %1582 = arith.addf %1577, %1581 : vector<16x16xf32>
    %c218 = arith.constant 218 : index
    %1583 = memref.load %arg3[%c218] : memref<288xf32, #tpu.memory_space<smem>>
    %1584 = vector.extract_strided_slice %1572 {offsets = [0, 2], sizes = [16, 16], strides = [1, 1]} : vector<16x18xf32> to vector<16x16xf32>
    %1585 = vector.broadcast %1583 : f32 to vector<16x16xf32>
    %1586 = arith.mulf %1585, %1584 : vector<16x16xf32>
    %1587 = arith.addf %1582, %1586 : vector<16x16xf32>
    %c1_i32_403 = arith.constant 1 : i32
    %1588 = arith.addi %1, %c1_i32_403 : i32
    %c0_404 = arith.constant 0 : index
    %c0_405 = arith.constant 0 : index
    %1589 = arith.index_cast %1588 : i32 to index
    %c0_406 = arith.constant 0 : index
    %1590 = vector.load %arg2[%c0_404, %c0_405, %1589, %c0_406] : memref<1x4x18x18xf32, #tpu.memory_space<vmem>>, vector<1x1x16x18xf32>
    %1591 = vector.shape_cast %1590 : vector<1x1x16x18xf32> to vector<16x18xf32>
    %c219 = arith.constant 219 : index
    %1592 = memref.load %arg3[%c219] : memref<288xf32, #tpu.memory_space<smem>>
    %1593 = vector.extract_strided_slice %1591 {offsets = [0, 0], sizes = [16, 16], strides = [1, 1]} : vector<16x18xf32> to vector<16x16xf32>
    %1594 = vector.broadcast %1592 : f32 to vector<16x16xf32>
    %1595 = arith.mulf %1594, %1593 : vector<16x16xf32>
    %1596 = arith.addf %1587, %1595 : vector<16x16xf32>
    %c220 = arith.constant 220 : index
    %1597 = memref.load %arg3[%c220] : memref<288xf32, #tpu.memory_space<smem>>
    %1598 = vector.extract_strided_slice %1591 {offsets = [0, 1], sizes = [16, 16], strides = [1, 1]} : vector<16x18xf32> to vector<16x16xf32>
    %1599 = vector.broadcast %1597 : f32 to vector<16x16xf32>
    %1600 = arith.mulf %1599, %1598 : vector<16x16xf32>
    %1601 = arith.addf %1596, %1600 : vector<16x16xf32>
    %c221 = arith.constant 221 : index
    %1602 = memref.load %arg3[%c221] : memref<288xf32, #tpu.memory_space<smem>>
    %1603 = vector.extract_strided_slice %1591 {offsets = [0, 2], sizes = [16, 16], strides = [1, 1]} : vector<16x18xf32> to vector<16x16xf32>
    %1604 = vector.broadcast %1602 : f32 to vector<16x16xf32>
    %1605 = arith.mulf %1604, %1603 : vector<16x16xf32>
    %1606 = arith.addf %1601, %1605 : vector<16x16xf32>
    %c2_i32_407 = arith.constant 2 : i32
    %1607 = arith.addi %1, %c2_i32_407 : i32
    %c0_408 = arith.constant 0 : index
    %c0_409 = arith.constant 0 : index
    %1608 = arith.index_cast %1607 : i32 to index
    %c0_410 = arith.constant 0 : index
    %1609 = vector.load %arg2[%c0_408, %c0_409, %1608, %c0_410] : memref<1x4x18x18xf32, #tpu.memory_space<vmem>>, vector<1x1x16x18xf32>
    %1610 = vector.shape_cast %1609 : vector<1x1x16x18xf32> to vector<16x18xf32>
    %c222 = arith.constant 222 : index
    %1611 = memref.load %arg3[%c222] : memref<288xf32, #tpu.memory_space<smem>>
    %1612 = vector.extract_strided_slice %1610 {offsets = [0, 0], sizes = [16, 16], strides = [1, 1]} : vector<16x18xf32> to vector<16x16xf32>
    %1613 = vector.broadcast %1611 : f32 to vector<16x16xf32>
    %1614 = arith.mulf %1613, %1612 : vector<16x16xf32>
    %1615 = arith.addf %1606, %1614 : vector<16x16xf32>
    %c223 = arith.constant 223 : index
    %1616 = memref.load %arg3[%c223] : memref<288xf32, #tpu.memory_space<smem>>
    %1617 = vector.extract_strided_slice %1610 {offsets = [0, 1], sizes = [16, 16], strides = [1, 1]} : vector<16x18xf32> to vector<16x16xf32>
    %1618 = vector.broadcast %1616 : f32 to vector<16x16xf32>
    %1619 = arith.mulf %1618, %1617 : vector<16x16xf32>
    %1620 = arith.addf %1615, %1619 : vector<16x16xf32>
    %c224 = arith.constant 224 : index
    %1621 = memref.load %arg3[%c224] : memref<288xf32, #tpu.memory_space<smem>>
    %1622 = vector.extract_strided_slice %1610 {offsets = [0, 2], sizes = [16, 16], strides = [1, 1]} : vector<16x18xf32> to vector<16x16xf32>
    %1623 = vector.broadcast %1621 : f32 to vector<16x16xf32>
    %1624 = arith.mulf %1623, %1622 : vector<16x16xf32>
    %1625 = arith.addf %1620, %1624 : vector<16x16xf32>
    %c0_i32_411 = arith.constant 0 : i32
    %1626 = arith.addi %1, %c0_i32_411 : i32
    %c0_412 = arith.constant 0 : index
    %c1_413 = arith.constant 1 : index
    %1627 = arith.index_cast %1626 : i32 to index
    %c0_414 = arith.constant 0 : index
    %1628 = vector.load %arg2[%c0_412, %c1_413, %1627, %c0_414] : memref<1x4x18x18xf32, #tpu.memory_space<vmem>>, vector<1x1x16x18xf32>
    %1629 = vector.shape_cast %1628 : vector<1x1x16x18xf32> to vector<16x18xf32>
    %c225 = arith.constant 225 : index
    %1630 = memref.load %arg3[%c225] : memref<288xf32, #tpu.memory_space<smem>>
    %1631 = vector.extract_strided_slice %1629 {offsets = [0, 0], sizes = [16, 16], strides = [1, 1]} : vector<16x18xf32> to vector<16x16xf32>
    %1632 = vector.broadcast %1630 : f32 to vector<16x16xf32>
    %1633 = arith.mulf %1632, %1631 : vector<16x16xf32>
    %1634 = arith.addf %1625, %1633 : vector<16x16xf32>
    %c226 = arith.constant 226 : index
    %1635 = memref.load %arg3[%c226] : memref<288xf32, #tpu.memory_space<smem>>
    %1636 = vector.extract_strided_slice %1629 {offsets = [0, 1], sizes = [16, 16], strides = [1, 1]} : vector<16x18xf32> to vector<16x16xf32>
    %1637 = vector.broadcast %1635 : f32 to vector<16x16xf32>
    %1638 = arith.mulf %1637, %1636 : vector<16x16xf32>
    %1639 = arith.addf %1634, %1638 : vector<16x16xf32>
    %c227 = arith.constant 227 : index
    %1640 = memref.load %arg3[%c227] : memref<288xf32, #tpu.memory_space<smem>>
    %1641 = vector.extract_strided_slice %1629 {offsets = [0, 2], sizes = [16, 16], strides = [1, 1]} : vector<16x18xf32> to vector<16x16xf32>
    %1642 = vector.broadcast %1640 : f32 to vector<16x16xf32>
    %1643 = arith.mulf %1642, %1641 : vector<16x16xf32>
    %1644 = arith.addf %1639, %1643 : vector<16x16xf32>
    %c1_i32_415 = arith.constant 1 : i32
    %1645 = arith.addi %1, %c1_i32_415 : i32
    %c0_416 = arith.constant 0 : index
    %c1_417 = arith.constant 1 : index
    %1646 = arith.index_cast %1645 : i32 to index
    %c0_418 = arith.constant 0 : index
    %1647 = vector.load %arg2[%c0_416, %c1_417, %1646, %c0_418] : memref<1x4x18x18xf32, #tpu.memory_space<vmem>>, vector<1x1x16x18xf32>
    %1648 = vector.shape_cast %1647 : vector<1x1x16x18xf32> to vector<16x18xf32>
    %c228 = arith.constant 228 : index
    %1649 = memref.load %arg3[%c228] : memref<288xf32, #tpu.memory_space<smem>>
    %1650 = vector.extract_strided_slice %1648 {offsets = [0, 0], sizes = [16, 16], strides = [1, 1]} : vector<16x18xf32> to vector<16x16xf32>
    %1651 = vector.broadcast %1649 : f32 to vector<16x16xf32>
    %1652 = arith.mulf %1651, %1650 : vector<16x16xf32>
    %1653 = arith.addf %1644, %1652 : vector<16x16xf32>
    %c229 = arith.constant 229 : index
    %1654 = memref.load %arg3[%c229] : memref<288xf32, #tpu.memory_space<smem>>
    %1655 = vector.extract_strided_slice %1648 {offsets = [0, 1], sizes = [16, 16], strides = [1, 1]} : vector<16x18xf32> to vector<16x16xf32>
    %1656 = vector.broadcast %1654 : f32 to vector<16x16xf32>
    %1657 = arith.mulf %1656, %1655 : vector<16x16xf32>
    %1658 = arith.addf %1653, %1657 : vector<16x16xf32>
    %c230 = arith.constant 230 : index
    %1659 = memref.load %arg3[%c230] : memref<288xf32, #tpu.memory_space<smem>>
    %1660 = vector.extract_strided_slice %1648 {offsets = [0, 2], sizes = [16, 16], strides = [1, 1]} : vector<16x18xf32> to vector<16x16xf32>
    %1661 = vector.broadcast %1659 : f32 to vector<16x16xf32>
    %1662 = arith.mulf %1661, %1660 : vector<16x16xf32>
    %1663 = arith.addf %1658, %1662 : vector<16x16xf32>
    %c2_i32_419 = arith.constant 2 : i32
    %1664 = arith.addi %1, %c2_i32_419 : i32
    %c0_420 = arith.constant 0 : index
    %c1_421 = arith.constant 1 : index
    %1665 = arith.index_cast %1664 : i32 to index
    %c0_422 = arith.constant 0 : index
    %1666 = vector.load %arg2[%c0_420, %c1_421, %1665, %c0_422] : memref<1x4x18x18xf32, #tpu.memory_space<vmem>>, vector<1x1x16x18xf32>
    %1667 = vector.shape_cast %1666 : vector<1x1x16x18xf32> to vector<16x18xf32>
    %c231 = arith.constant 231 : index
    %1668 = memref.load %arg3[%c231] : memref<288xf32, #tpu.memory_space<smem>>
    %1669 = vector.extract_strided_slice %1667 {offsets = [0, 0], sizes = [16, 16], strides = [1, 1]} : vector<16x18xf32> to vector<16x16xf32>
    %1670 = vector.broadcast %1668 : f32 to vector<16x16xf32>
    %1671 = arith.mulf %1670, %1669 : vector<16x16xf32>
    %1672 = arith.addf %1663, %1671 : vector<16x16xf32>
    %c232 = arith.constant 232 : index
    %1673 = memref.load %arg3[%c232] : memref<288xf32, #tpu.memory_space<smem>>
    %1674 = vector.extract_strided_slice %1667 {offsets = [0, 1], sizes = [16, 16], strides = [1, 1]} : vector<16x18xf32> to vector<16x16xf32>
    %1675 = vector.broadcast %1673 : f32 to vector<16x16xf32>
    %1676 = arith.mulf %1675, %1674 : vector<16x16xf32>
    %1677 = arith.addf %1672, %1676 : vector<16x16xf32>
    %c233 = arith.constant 233 : index
    %1678 = memref.load %arg3[%c233] : memref<288xf32, #tpu.memory_space<smem>>
    %1679 = vector.extract_strided_slice %1667 {offsets = [0, 2], sizes = [16, 16], strides = [1, 1]} : vector<16x18xf32> to vector<16x16xf32>
    %1680 = vector.broadcast %1678 : f32 to vector<16x16xf32>
    %1681 = arith.mulf %1680, %1679 : vector<16x16xf32>
    %1682 = arith.addf %1677, %1681 : vector<16x16xf32>
    %c0_i32_423 = arith.constant 0 : i32
    %1683 = arith.addi %1, %c0_i32_423 : i32
    %c0_424 = arith.constant 0 : index
    %c2_425 = arith.constant 2 : index
    %1684 = arith.index_cast %1683 : i32 to index
    %c0_426 = arith.constant 0 : index
    %1685 = vector.load %arg2[%c0_424, %c2_425, %1684, %c0_426] : memref<1x4x18x18xf32, #tpu.memory_space<vmem>>, vector<1x1x16x18xf32>
    %1686 = vector.shape_cast %1685 : vector<1x1x16x18xf32> to vector<16x18xf32>
    %c234 = arith.constant 234 : index
    %1687 = memref.load %arg3[%c234] : memref<288xf32, #tpu.memory_space<smem>>
    %1688 = vector.extract_strided_slice %1686 {offsets = [0, 0], sizes = [16, 16], strides = [1, 1]} : vector<16x18xf32> to vector<16x16xf32>
    %1689 = vector.broadcast %1687 : f32 to vector<16x16xf32>
    %1690 = arith.mulf %1689, %1688 : vector<16x16xf32>
    %1691 = arith.addf %1682, %1690 : vector<16x16xf32>
    %c235 = arith.constant 235 : index
    %1692 = memref.load %arg3[%c235] : memref<288xf32, #tpu.memory_space<smem>>
    %1693 = vector.extract_strided_slice %1686 {offsets = [0, 1], sizes = [16, 16], strides = [1, 1]} : vector<16x18xf32> to vector<16x16xf32>
    %1694 = vector.broadcast %1692 : f32 to vector<16x16xf32>
    %1695 = arith.mulf %1694, %1693 : vector<16x16xf32>
    %1696 = arith.addf %1691, %1695 : vector<16x16xf32>
    %c236 = arith.constant 236 : index
    %1697 = memref.load %arg3[%c236] : memref<288xf32, #tpu.memory_space<smem>>
    %1698 = vector.extract_strided_slice %1686 {offsets = [0, 2], sizes = [16, 16], strides = [1, 1]} : vector<16x18xf32> to vector<16x16xf32>
    %1699 = vector.broadcast %1697 : f32 to vector<16x16xf32>
    %1700 = arith.mulf %1699, %1698 : vector<16x16xf32>
    %1701 = arith.addf %1696, %1700 : vector<16x16xf32>
    %c1_i32_427 = arith.constant 1 : i32
    %1702 = arith.addi %1, %c1_i32_427 : i32
    %c0_428 = arith.constant 0 : index
    %c2_429 = arith.constant 2 : index
    %1703 = arith.index_cast %1702 : i32 to index
    %c0_430 = arith.constant 0 : index
    %1704 = vector.load %arg2[%c0_428, %c2_429, %1703, %c0_430] : memref<1x4x18x18xf32, #tpu.memory_space<vmem>>, vector<1x1x16x18xf32>
    %1705 = vector.shape_cast %1704 : vector<1x1x16x18xf32> to vector<16x18xf32>
    %c237 = arith.constant 237 : index
    %1706 = memref.load %arg3[%c237] : memref<288xf32, #tpu.memory_space<smem>>
    %1707 = vector.extract_strided_slice %1705 {offsets = [0, 0], sizes = [16, 16], strides = [1, 1]} : vector<16x18xf32> to vector<16x16xf32>
    %1708 = vector.broadcast %1706 : f32 to vector<16x16xf32>
    %1709 = arith.mulf %1708, %1707 : vector<16x16xf32>
    %1710 = arith.addf %1701, %1709 : vector<16x16xf32>
    %c238 = arith.constant 238 : index
    %1711 = memref.load %arg3[%c238] : memref<288xf32, #tpu.memory_space<smem>>
    %1712 = vector.extract_strided_slice %1705 {offsets = [0, 1], sizes = [16, 16], strides = [1, 1]} : vector<16x18xf32> to vector<16x16xf32>
    %1713 = vector.broadcast %1711 : f32 to vector<16x16xf32>
    %1714 = arith.mulf %1713, %1712 : vector<16x16xf32>
    %1715 = arith.addf %1710, %1714 : vector<16x16xf32>
    %c239 = arith.constant 239 : index
    %1716 = memref.load %arg3[%c239] : memref<288xf32, #tpu.memory_space<smem>>
    %1717 = vector.extract_strided_slice %1705 {offsets = [0, 2], sizes = [16, 16], strides = [1, 1]} : vector<16x18xf32> to vector<16x16xf32>
    %1718 = vector.broadcast %1716 : f32 to vector<16x16xf32>
    %1719 = arith.mulf %1718, %1717 : vector<16x16xf32>
    %1720 = arith.addf %1715, %1719 : vector<16x16xf32>
    %c2_i32_431 = arith.constant 2 : i32
    %1721 = arith.addi %1, %c2_i32_431 : i32
    %c0_432 = arith.constant 0 : index
    %c2_433 = arith.constant 2 : index
    %1722 = arith.index_cast %1721 : i32 to index
    %c0_434 = arith.constant 0 : index
    %1723 = vector.load %arg2[%c0_432, %c2_433, %1722, %c0_434] : memref<1x4x18x18xf32, #tpu.memory_space<vmem>>, vector<1x1x16x18xf32>
    %1724 = vector.shape_cast %1723 : vector<1x1x16x18xf32> to vector<16x18xf32>
    %c240 = arith.constant 240 : index
    %1725 = memref.load %arg3[%c240] : memref<288xf32, #tpu.memory_space<smem>>
    %1726 = vector.extract_strided_slice %1724 {offsets = [0, 0], sizes = [16, 16], strides = [1, 1]} : vector<16x18xf32> to vector<16x16xf32>
    %1727 = vector.broadcast %1725 : f32 to vector<16x16xf32>
    %1728 = arith.mulf %1727, %1726 : vector<16x16xf32>
    %1729 = arith.addf %1720, %1728 : vector<16x16xf32>
    %c241 = arith.constant 241 : index
    %1730 = memref.load %arg3[%c241] : memref<288xf32, #tpu.memory_space<smem>>
    %1731 = vector.extract_strided_slice %1724 {offsets = [0, 1], sizes = [16, 16], strides = [1, 1]} : vector<16x18xf32> to vector<16x16xf32>
    %1732 = vector.broadcast %1730 : f32 to vector<16x16xf32>
    %1733 = arith.mulf %1732, %1731 : vector<16x16xf32>
    %1734 = arith.addf %1729, %1733 : vector<16x16xf32>
    %c242 = arith.constant 242 : index
    %1735 = memref.load %arg3[%c242] : memref<288xf32, #tpu.memory_space<smem>>
    %1736 = vector.extract_strided_slice %1724 {offsets = [0, 2], sizes = [16, 16], strides = [1, 1]} : vector<16x18xf32> to vector<16x16xf32>
    %1737 = vector.broadcast %1735 : f32 to vector<16x16xf32>
    %1738 = arith.mulf %1737, %1736 : vector<16x16xf32>
    %1739 = arith.addf %1734, %1738 : vector<16x16xf32>
    %c0_i32_435 = arith.constant 0 : i32
    %1740 = arith.addi %1, %c0_i32_435 : i32
    %c0_436 = arith.constant 0 : index
    %c3_437 = arith.constant 3 : index
    %1741 = arith.index_cast %1740 : i32 to index
    %c0_438 = arith.constant 0 : index
    %1742 = vector.load %arg2[%c0_436, %c3_437, %1741, %c0_438] : memref<1x4x18x18xf32, #tpu.memory_space<vmem>>, vector<1x1x16x18xf32>
    %1743 = vector.shape_cast %1742 : vector<1x1x16x18xf32> to vector<16x18xf32>
    %c243 = arith.constant 243 : index
    %1744 = memref.load %arg3[%c243] : memref<288xf32, #tpu.memory_space<smem>>
    %1745 = vector.extract_strided_slice %1743 {offsets = [0, 0], sizes = [16, 16], strides = [1, 1]} : vector<16x18xf32> to vector<16x16xf32>
    %1746 = vector.broadcast %1744 : f32 to vector<16x16xf32>
    %1747 = arith.mulf %1746, %1745 : vector<16x16xf32>
    %1748 = arith.addf %1739, %1747 : vector<16x16xf32>
    %c244 = arith.constant 244 : index
    %1749 = memref.load %arg3[%c244] : memref<288xf32, #tpu.memory_space<smem>>
    %1750 = vector.extract_strided_slice %1743 {offsets = [0, 1], sizes = [16, 16], strides = [1, 1]} : vector<16x18xf32> to vector<16x16xf32>
    %1751 = vector.broadcast %1749 : f32 to vector<16x16xf32>
    %1752 = arith.mulf %1751, %1750 : vector<16x16xf32>
    %1753 = arith.addf %1748, %1752 : vector<16x16xf32>
    %c245 = arith.constant 245 : index
    %1754 = memref.load %arg3[%c245] : memref<288xf32, #tpu.memory_space<smem>>
    %1755 = vector.extract_strided_slice %1743 {offsets = [0, 2], sizes = [16, 16], strides = [1, 1]} : vector<16x18xf32> to vector<16x16xf32>
    %1756 = vector.broadcast %1754 : f32 to vector<16x16xf32>
    %1757 = arith.mulf %1756, %1755 : vector<16x16xf32>
    %1758 = arith.addf %1753, %1757 : vector<16x16xf32>
    %c1_i32_439 = arith.constant 1 : i32
    %1759 = arith.addi %1, %c1_i32_439 : i32
    %c0_440 = arith.constant 0 : index
    %c3_441 = arith.constant 3 : index
    %1760 = arith.index_cast %1759 : i32 to index
    %c0_442 = arith.constant 0 : index
    %1761 = vector.load %arg2[%c0_440, %c3_441, %1760, %c0_442] : memref<1x4x18x18xf32, #tpu.memory_space<vmem>>, vector<1x1x16x18xf32>
    %1762 = vector.shape_cast %1761 : vector<1x1x16x18xf32> to vector<16x18xf32>
    %c246 = arith.constant 246 : index
    %1763 = memref.load %arg3[%c246] : memref<288xf32, #tpu.memory_space<smem>>
    %1764 = vector.extract_strided_slice %1762 {offsets = [0, 0], sizes = [16, 16], strides = [1, 1]} : vector<16x18xf32> to vector<16x16xf32>
    %1765 = vector.broadcast %1763 : f32 to vector<16x16xf32>
    %1766 = arith.mulf %1765, %1764 : vector<16x16xf32>
    %1767 = arith.addf %1758, %1766 : vector<16x16xf32>
    %c247 = arith.constant 247 : index
    %1768 = memref.load %arg3[%c247] : memref<288xf32, #tpu.memory_space<smem>>
    %1769 = vector.extract_strided_slice %1762 {offsets = [0, 1], sizes = [16, 16], strides = [1, 1]} : vector<16x18xf32> to vector<16x16xf32>
    %1770 = vector.broadcast %1768 : f32 to vector<16x16xf32>
    %1771 = arith.mulf %1770, %1769 : vector<16x16xf32>
    %1772 = arith.addf %1767, %1771 : vector<16x16xf32>
    %c248 = arith.constant 248 : index
    %1773 = memref.load %arg3[%c248] : memref<288xf32, #tpu.memory_space<smem>>
    %1774 = vector.extract_strided_slice %1762 {offsets = [0, 2], sizes = [16, 16], strides = [1, 1]} : vector<16x18xf32> to vector<16x16xf32>
    %1775 = vector.broadcast %1773 : f32 to vector<16x16xf32>
    %1776 = arith.mulf %1775, %1774 : vector<16x16xf32>
    %1777 = arith.addf %1772, %1776 : vector<16x16xf32>
    %c2_i32_443 = arith.constant 2 : i32
    %1778 = arith.addi %1, %c2_i32_443 : i32
    %c0_444 = arith.constant 0 : index
    %c3_445 = arith.constant 3 : index
    %1779 = arith.index_cast %1778 : i32 to index
    %c0_446 = arith.constant 0 : index
    %1780 = vector.load %arg2[%c0_444, %c3_445, %1779, %c0_446] : memref<1x4x18x18xf32, #tpu.memory_space<vmem>>, vector<1x1x16x18xf32>
    %1781 = vector.shape_cast %1780 : vector<1x1x16x18xf32> to vector<16x18xf32>
    %c249 = arith.constant 249 : index
    %1782 = memref.load %arg3[%c249] : memref<288xf32, #tpu.memory_space<smem>>
    %1783 = vector.extract_strided_slice %1781 {offsets = [0, 0], sizes = [16, 16], strides = [1, 1]} : vector<16x18xf32> to vector<16x16xf32>
    %1784 = vector.broadcast %1782 : f32 to vector<16x16xf32>
    %1785 = arith.mulf %1784, %1783 : vector<16x16xf32>
    %1786 = arith.addf %1777, %1785 : vector<16x16xf32>
    %c250 = arith.constant 250 : index
    %1787 = memref.load %arg3[%c250] : memref<288xf32, #tpu.memory_space<smem>>
    %1788 = vector.extract_strided_slice %1781 {offsets = [0, 1], sizes = [16, 16], strides = [1, 1]} : vector<16x18xf32> to vector<16x16xf32>
    %1789 = vector.broadcast %1787 : f32 to vector<16x16xf32>
    %1790 = arith.mulf %1789, %1788 : vector<16x16xf32>
    %1791 = arith.addf %1786, %1790 : vector<16x16xf32>
    %c251 = arith.constant 251 : index
    %1792 = memref.load %arg3[%c251] : memref<288xf32, #tpu.memory_space<smem>>
    %1793 = vector.extract_strided_slice %1781 {offsets = [0, 2], sizes = [16, 16], strides = [1, 1]} : vector<16x18xf32> to vector<16x16xf32>
    %1794 = vector.broadcast %1792 : f32 to vector<16x16xf32>
    %1795 = arith.mulf %1794, %1793 : vector<16x16xf32>
    %1796 = arith.addf %1791, %1795 : vector<16x16xf32>
    %c6_447 = arith.constant 6 : index
    %1797 = memref.load %arg4[%c6_447] : memref<8xf32, #tpu.memory_space<smem>>
    %1798 = vector.broadcast %1797 : f32 to vector<16x16xf32>
    %1799 = arith.addf %1796, %1798 : vector<16x16xf32>
    %cst_448 = arith.constant 2.000000e+00 : f32
    %1800 = vector.broadcast %cst_448 : f32 to vector<16x16xf32>
    %1801 = arith.subf %1799, %1800 : vector<16x16xf32>
    %1802 = arith.mulf %1801, %1801 : vector<16x16xf32>
    %cst_449 = arith.constant -1.000000e+00 : f32
    %1803 = vector.broadcast %cst_449 : f32 to vector<16x16xf32>
    %1804 = arith.mulf %1803, %1802 : vector<16x16xf32>
    %1805 = math.exp %1804 : vector<16x16xf32>
    %cst_450 = arith.constant 2.000000e+00 : f32
    %1806 = vector.broadcast %cst_450 : f32 to vector<16x16xf32>
    %1807 = arith.cmpf olt, %1799, %1806 : vector<16x16xf32>
    %cst_451 = arith.constant 1.100000e+00 : f32
    %1808 = vector.broadcast %cst_451 : f32 to vector<16x16xf32>
    %1809 = arith.mulf %1808, %1805 : vector<16x16xf32>
    %cst_452 = arith.constant 1.000000e-01 : f32
    %1810 = vector.broadcast %cst_452 : f32 to vector<16x16xf32>
    %1811 = arith.mulf %1810, %1805 : vector<16x16xf32>
    %cst_453 = arith.constant 1.000000e+00 : f32
    %1812 = vector.broadcast %cst_453 : f32 to vector<16x16xf32>
    %1813 = arith.addf %1812, %1811 : vector<16x16xf32>
    %1814 = arith.select %1807, %1809, %1813 : vector<16x16xi1>, vector<16x16xf32>
    %cst_454 = arith.constant 0.000000e+00 : f32
    %1815 = vector.broadcast %cst_454 : f32 to vector<16x16xf32>
    %1816 = arith.maximumf %1799, %1815 : vector<16x16xf32>
    %cst_455 = arith.constant 9.99999997E-7 : f32
    %1817 = vector.broadcast %cst_455 : f32 to vector<16x16xf32>
    %1818 = arith.addf %1816, %1817 : vector<16x16xf32>
    %1819 = math.log %1818 : vector<16x16xf32>
    %cst_456 = arith.constant 8.000000e-01 : f32
    %1820 = vector.broadcast %cst_456 : f32 to vector<16x16xf32>
    %1821 = arith.mulf %1820, %1819 : vector<16x16xf32>
    %1822 = math.exp %1821 : vector<16x16xf32>
    %c0_457 = arith.constant 0 : index
    %c6_458 = arith.constant 6 : index
    %c0_459 = arith.constant 0 : index
    %c0_460 = arith.constant 0 : index
    %1823 = vector.load %arg5[%c0_457, %c6_458, %c0_459, %c0_460] : memref<1x8x16x16xf32, #tpu.memory_space<vmem>>, vector<1x1x16x16xf32>
    %1824 = vector.shape_cast %1823 : vector<1x1x16x16xf32> to vector<16x16xf32>
    %1825 = vector.shape_cast %1822 : vector<16x16xf32> to vector<1x1x16x16xf32>
    tpu.vector_store %arg5[%c0_457, %c6_458, %c0_459, %c0_460], %1825 {strides = array<i32>} : memref<1x8x16x16xf32, #tpu.memory_space<vmem>>, vector<1x1x16x16xf32>,
    %c0_461 = arith.constant 0 : index
    %c6_462 = arith.constant 6 : index
    %c0_463 = arith.constant 0 : index
    %c0_464 = arith.constant 0 : index
    %1826 = vector.load %arg6[%c0_461, %c6_462, %c0_463, %c0_464] : memref<1x8x16x16xf32, #tpu.memory_space<vmem>>, vector<1x1x16x16xf32>
    %1827 = vector.shape_cast %1826 : vector<1x1x16x16xf32> to vector<16x16xf32>
    %1828 = vector.shape_cast %1814 : vector<16x16xf32> to vector<1x1x16x16xf32>
    tpu.vector_store %arg6[%c0_461, %c6_462, %c0_463, %c0_464], %1828 {strides = array<i32>} : memref<1x8x16x16xf32, #tpu.memory_space<vmem>>, vector<1x1x16x16xf32>,
    %cst_465 = arith.constant 0.000000e+00 : f32
    %1829 = vector.broadcast %cst_465 : f32 to vector<16x16xf32>
    %c0_i32_466 = arith.constant 0 : i32
    %1830 = arith.addi %1, %c0_i32_466 : i32
    %c0_467 = arith.constant 0 : index
    %c0_468 = arith.constant 0 : index
    %1831 = arith.index_cast %1830 : i32 to index
    %c0_469 = arith.constant 0 : index
    %1832 = vector.load %arg2[%c0_467, %c0_468, %1831, %c0_469] : memref<1x4x18x18xf32, #tpu.memory_space<vmem>>, vector<1x1x16x18xf32>
    %1833 = vector.shape_cast %1832 : vector<1x1x16x18xf32> to vector<16x18xf32>
    %c252 = arith.constant 252 : index
    %1834 = memref.load %arg3[%c252] : memref<288xf32, #tpu.memory_space<smem>>
    %1835 = vector.extract_strided_slice %1833 {offsets = [0, 0], sizes = [16, 16], strides = [1, 1]} : vector<16x18xf32> to vector<16x16xf32>
    %1836 = vector.broadcast %1834 : f32 to vector<16x16xf32>
    %1837 = arith.mulf %1836, %1835 : vector<16x16xf32>
    %1838 = arith.addf %1829, %1837 : vector<16x16xf32>
    %c253 = arith.constant 253 : index
    %1839 = memref.load %arg3[%c253] : memref<288xf32, #tpu.memory_space<smem>>
    %1840 = vector.extract_strided_slice %1833 {offsets = [0, 1], sizes = [16, 16], strides = [1, 1]} : vector<16x18xf32> to vector<16x16xf32>
    %1841 = vector.broadcast %1839 : f32 to vector<16x16xf32>
    %1842 = arith.mulf %1841, %1840 : vector<16x16xf32>
    %1843 = arith.addf %1838, %1842 : vector<16x16xf32>
    %c254 = arith.constant 254 : index
    %1844 = memref.load %arg3[%c254] : memref<288xf32, #tpu.memory_space<smem>>
    %1845 = vector.extract_strided_slice %1833 {offsets = [0, 2], sizes = [16, 16], strides = [1, 1]} : vector<16x18xf32> to vector<16x16xf32>
    %1846 = vector.broadcast %1844 : f32 to vector<16x16xf32>
    %1847 = arith.mulf %1846, %1845 : vector<16x16xf32>
    %1848 = arith.addf %1843, %1847 : vector<16x16xf32>
    %c1_i32_470 = arith.constant 1 : i32
    %1849 = arith.addi %1, %c1_i32_470 : i32
    %c0_471 = arith.constant 0 : index
    %c0_472 = arith.constant 0 : index
    %1850 = arith.index_cast %1849 : i32 to index
    %c0_473 = arith.constant 0 : index
    %1851 = vector.load %arg2[%c0_471, %c0_472, %1850, %c0_473] : memref<1x4x18x18xf32, #tpu.memory_space<vmem>>, vector<1x1x16x18xf32>
    %1852 = vector.shape_cast %1851 : vector<1x1x16x18xf32> to vector<16x18xf32>
    %c255 = arith.constant 255 : index
    %1853 = memref.load %arg3[%c255] : memref<288xf32, #tpu.memory_space<smem>>
    %1854 = vector.extract_strided_slice %1852 {offsets = [0, 0], sizes = [16, 16], strides = [1, 1]} : vector<16x18xf32> to vector<16x16xf32>
    %1855 = vector.broadcast %1853 : f32 to vector<16x16xf32>
    %1856 = arith.mulf %1855, %1854 : vector<16x16xf32>
    %1857 = arith.addf %1848, %1856 : vector<16x16xf32>
    %c256 = arith.constant 256 : index
    %1858 = memref.load %arg3[%c256] : memref<288xf32, #tpu.memory_space<smem>>
    %1859 = vector.extract_strided_slice %1852 {offsets = [0, 1], sizes = [16, 16], strides = [1, 1]} : vector<16x18xf32> to vector<16x16xf32>
    %1860 = vector.broadcast %1858 : f32 to vector<16x16xf32>
    %1861 = arith.mulf %1860, %1859 : vector<16x16xf32>
    %1862 = arith.addf %1857, %1861 : vector<16x16xf32>
    %c257 = arith.constant 257 : index
    %1863 = memref.load %arg3[%c257] : memref<288xf32, #tpu.memory_space<smem>>
    %1864 = vector.extract_strided_slice %1852 {offsets = [0, 2], sizes = [16, 16], strides = [1, 1]} : vector<16x18xf32> to vector<16x16xf32>
    %1865 = vector.broadcast %1863 : f32 to vector<16x16xf32>
    %1866 = arith.mulf %1865, %1864 : vector<16x16xf32>
    %1867 = arith.addf %1862, %1866 : vector<16x16xf32>
    %c2_i32_474 = arith.constant 2 : i32
    %1868 = arith.addi %1, %c2_i32_474 : i32
    %c0_475 = arith.constant 0 : index
    %c0_476 = arith.constant 0 : index
    %1869 = arith.index_cast %1868 : i32 to index
    %c0_477 = arith.constant 0 : index
    %1870 = vector.load %arg2[%c0_475, %c0_476, %1869, %c0_477] : memref<1x4x18x18xf32, #tpu.memory_space<vmem>>, vector<1x1x16x18xf32>
    %1871 = vector.shape_cast %1870 : vector<1x1x16x18xf32> to vector<16x18xf32>
    %c258 = arith.constant 258 : index
    %1872 = memref.load %arg3[%c258] : memref<288xf32, #tpu.memory_space<smem>>
    %1873 = vector.extract_strided_slice %1871 {offsets = [0, 0], sizes = [16, 16], strides = [1, 1]} : vector<16x18xf32> to vector<16x16xf32>
    %1874 = vector.broadcast %1872 : f32 to vector<16x16xf32>
    %1875 = arith.mulf %1874, %1873 : vector<16x16xf32>
    %1876 = arith.addf %1867, %1875 : vector<16x16xf32>
    %c259 = arith.constant 259 : index
    %1877 = memref.load %arg3[%c259] : memref<288xf32, #tpu.memory_space<smem>>
    %1878 = vector.extract_strided_slice %1871 {offsets = [0, 1], sizes = [16, 16], strides = [1, 1]} : vector<16x18xf32> to vector<16x16xf32>
    %1879 = vector.broadcast %1877 : f32 to vector<16x16xf32>
    %1880 = arith.mulf %1879, %1878 : vector<16x16xf32>
    %1881 = arith.addf %1876, %1880 : vector<16x16xf32>
    %c260 = arith.constant 260 : index
    %1882 = memref.load %arg3[%c260] : memref<288xf32, #tpu.memory_space<smem>>
    %1883 = vector.extract_strided_slice %1871 {offsets = [0, 2], sizes = [16, 16], strides = [1, 1]} : vector<16x18xf32> to vector<16x16xf32>
    %1884 = vector.broadcast %1882 : f32 to vector<16x16xf32>
    %1885 = arith.mulf %1884, %1883 : vector<16x16xf32>
    %1886 = arith.addf %1881, %1885 : vector<16x16xf32>
    %c0_i32_478 = arith.constant 0 : i32
    %1887 = arith.addi %1, %c0_i32_478 : i32
    %c0_479 = arith.constant 0 : index
    %c1_480 = arith.constant 1 : index
    %1888 = arith.index_cast %1887 : i32 to index
    %c0_481 = arith.constant 0 : index
    %1889 = vector.load %arg2[%c0_479, %c1_480, %1888, %c0_481] : memref<1x4x18x18xf32, #tpu.memory_space<vmem>>, vector<1x1x16x18xf32>
    %1890 = vector.shape_cast %1889 : vector<1x1x16x18xf32> to vector<16x18xf32>
    %c261 = arith.constant 261 : index
    %1891 = memref.load %arg3[%c261] : memref<288xf32, #tpu.memory_space<smem>>
    %1892 = vector.extract_strided_slice %1890 {offsets = [0, 0], sizes = [16, 16], strides = [1, 1]} : vector<16x18xf32> to vector<16x16xf32>
    %1893 = vector.broadcast %1891 : f32 to vector<16x16xf32>
    %1894 = arith.mulf %1893, %1892 : vector<16x16xf32>
    %1895 = arith.addf %1886, %1894 : vector<16x16xf32>
    %c262 = arith.constant 262 : index
    %1896 = memref.load %arg3[%c262] : memref<288xf32, #tpu.memory_space<smem>>
    %1897 = vector.extract_strided_slice %1890 {offsets = [0, 1], sizes = [16, 16], strides = [1, 1]} : vector<16x18xf32> to vector<16x16xf32>
    %1898 = vector.broadcast %1896 : f32 to vector<16x16xf32>
    %1899 = arith.mulf %1898, %1897 : vector<16x16xf32>
    %1900 = arith.addf %1895, %1899 : vector<16x16xf32>
    %c263 = arith.constant 263 : index
    %1901 = memref.load %arg3[%c263] : memref<288xf32, #tpu.memory_space<smem>>
    %1902 = vector.extract_strided_slice %1890 {offsets = [0, 2], sizes = [16, 16], strides = [1, 1]} : vector<16x18xf32> to vector<16x16xf32>
    %1903 = vector.broadcast %1901 : f32 to vector<16x16xf32>
    %1904 = arith.mulf %1903, %1902 : vector<16x16xf32>
    %1905 = arith.addf %1900, %1904 : vector<16x16xf32>
    %c1_i32_482 = arith.constant 1 : i32
    %1906 = arith.addi %1, %c1_i32_482 : i32
    %c0_483 = arith.constant 0 : index
    %c1_484 = arith.constant 1 : index
    %1907 = arith.index_cast %1906 : i32 to index
    %c0_485 = arith.constant 0 : index
    %1908 = vector.load %arg2[%c0_483, %c1_484, %1907, %c0_485] : memref<1x4x18x18xf32, #tpu.memory_space<vmem>>, vector<1x1x16x18xf32>
    %1909 = vector.shape_cast %1908 : vector<1x1x16x18xf32> to vector<16x18xf32>
    %c264 = arith.constant 264 : index
    %1910 = memref.load %arg3[%c264] : memref<288xf32, #tpu.memory_space<smem>>
    %1911 = vector.extract_strided_slice %1909 {offsets = [0, 0], sizes = [16, 16], strides = [1, 1]} : vector<16x18xf32> to vector<16x16xf32>
    %1912 = vector.broadcast %1910 : f32 to vector<16x16xf32>
    %1913 = arith.mulf %1912, %1911 : vector<16x16xf32>
    %1914 = arith.addf %1905, %1913 : vector<16x16xf32>
    %c265 = arith.constant 265 : index
    %1915 = memref.load %arg3[%c265] : memref<288xf32, #tpu.memory_space<smem>>
    %1916 = vector.extract_strided_slice %1909 {offsets = [0, 1], sizes = [16, 16], strides = [1, 1]} : vector<16x18xf32> to vector<16x16xf32>
    %1917 = vector.broadcast %1915 : f32 to vector<16x16xf32>
    %1918 = arith.mulf %1917, %1916 : vector<16x16xf32>
    %1919 = arith.addf %1914, %1918 : vector<16x16xf32>
    %c266 = arith.constant 266 : index
    %1920 = memref.load %arg3[%c266] : memref<288xf32, #tpu.memory_space<smem>>
    %1921 = vector.extract_strided_slice %1909 {offsets = [0, 2], sizes = [16, 16], strides = [1, 1]} : vector<16x18xf32> to vector<16x16xf32>
    %1922 = vector.broadcast %1920 : f32 to vector<16x16xf32>
    %1923 = arith.mulf %1922, %1921 : vector<16x16xf32>
    %1924 = arith.addf %1919, %1923 : vector<16x16xf32>
    %c2_i32_486 = arith.constant 2 : i32
    %1925 = arith.addi %1, %c2_i32_486 : i32
    %c0_487 = arith.constant 0 : index
    %c1_488 = arith.constant 1 : index
    %1926 = arith.index_cast %1925 : i32 to index
    %c0_489 = arith.constant 0 : index
    %1927 = vector.load %arg2[%c0_487, %c1_488, %1926, %c0_489] : memref<1x4x18x18xf32, #tpu.memory_space<vmem>>, vector<1x1x16x18xf32>
    %1928 = vector.shape_cast %1927 : vector<1x1x16x18xf32> to vector<16x18xf32>
    %c267 = arith.constant 267 : index
    %1929 = memref.load %arg3[%c267] : memref<288xf32, #tpu.memory_space<smem>>
    %1930 = vector.extract_strided_slice %1928 {offsets = [0, 0], sizes = [16, 16], strides = [1, 1]} : vector<16x18xf32> to vector<16x16xf32>
    %1931 = vector.broadcast %1929 : f32 to vector<16x16xf32>
    %1932 = arith.mulf %1931, %1930 : vector<16x16xf32>
    %1933 = arith.addf %1924, %1932 : vector<16x16xf32>
    %c268 = arith.constant 268 : index
    %1934 = memref.load %arg3[%c268] : memref<288xf32, #tpu.memory_space<smem>>
    %1935 = vector.extract_strided_slice %1928 {offsets = [0, 1], sizes = [16, 16], strides = [1, 1]} : vector<16x18xf32> to vector<16x16xf32>
    %1936 = vector.broadcast %1934 : f32 to vector<16x16xf32>
    %1937 = arith.mulf %1936, %1935 : vector<16x16xf32>
    %1938 = arith.addf %1933, %1937 : vector<16x16xf32>
    %c269 = arith.constant 269 : index
    %1939 = memref.load %arg3[%c269] : memref<288xf32, #tpu.memory_space<smem>>
    %1940 = vector.extract_strided_slice %1928 {offsets = [0, 2], sizes = [16, 16], strides = [1, 1]} : vector<16x18xf32> to vector<16x16xf32>
    %1941 = vector.broadcast %1939 : f32 to vector<16x16xf32>
    %1942 = arith.mulf %1941, %1940 : vector<16x16xf32>
    %1943 = arith.addf %1938, %1942 : vector<16x16xf32>
    %c0_i32_490 = arith.constant 0 : i32
    %1944 = arith.addi %1, %c0_i32_490 : i32
    %c0_491 = arith.constant 0 : index
    %c2_492 = arith.constant 2 : index
    %1945 = arith.index_cast %1944 : i32 to index
    %c0_493 = arith.constant 0 : index
    %1946 = vector.load %arg2[%c0_491, %c2_492, %1945, %c0_493] : memref<1x4x18x18xf32, #tpu.memory_space<vmem>>, vector<1x1x16x18xf32>
    %1947 = vector.shape_cast %1946 : vector<1x1x16x18xf32> to vector<16x18xf32>
    %c270 = arith.constant 270 : index
    %1948 = memref.load %arg3[%c270] : memref<288xf32, #tpu.memory_space<smem>>
    %1949 = vector.extract_strided_slice %1947 {offsets = [0, 0], sizes = [16, 16], strides = [1, 1]} : vector<16x18xf32> to vector<16x16xf32>
    %1950 = vector.broadcast %1948 : f32 to vector<16x16xf32>
    %1951 = arith.mulf %1950, %1949 : vector<16x16xf32>
    %1952 = arith.addf %1943, %1951 : vector<16x16xf32>
    %c271 = arith.constant 271 : index
    %1953 = memref.load %arg3[%c271] : memref<288xf32, #tpu.memory_space<smem>>
    %1954 = vector.extract_strided_slice %1947 {offsets = [0, 1], sizes = [16, 16], strides = [1, 1]} : vector<16x18xf32> to vector<16x16xf32>
    %1955 = vector.broadcast %1953 : f32 to vector<16x16xf32>
    %1956 = arith.mulf %1955, %1954 : vector<16x16xf32>
    %1957 = arith.addf %1952, %1956 : vector<16x16xf32>
    %c272 = arith.constant 272 : index
    %1958 = memref.load %arg3[%c272] : memref<288xf32, #tpu.memory_space<smem>>
    %1959 = vector.extract_strided_slice %1947 {offsets = [0, 2], sizes = [16, 16], strides = [1, 1]} : vector<16x18xf32> to vector<16x16xf32>
    %1960 = vector.broadcast %1958 : f32 to vector<16x16xf32>
    %1961 = arith.mulf %1960, %1959 : vector<16x16xf32>
    %1962 = arith.addf %1957, %1961 : vector<16x16xf32>
    %c1_i32_494 = arith.constant 1 : i32
    %1963 = arith.addi %1, %c1_i32_494 : i32
    %c0_495 = arith.constant 0 : index
    %c2_496 = arith.constant 2 : index
    %1964 = arith.index_cast %1963 : i32 to index
    %c0_497 = arith.constant 0 : index
    %1965 = vector.load %arg2[%c0_495, %c2_496, %1964, %c0_497] : memref<1x4x18x18xf32, #tpu.memory_space<vmem>>, vector<1x1x16x18xf32>
    %1966 = vector.shape_cast %1965 : vector<1x1x16x18xf32> to vector<16x18xf32>
    %c273 = arith.constant 273 : index
    %1967 = memref.load %arg3[%c273] : memref<288xf32, #tpu.memory_space<smem>>
    %1968 = vector.extract_strided_slice %1966 {offsets = [0, 0], sizes = [16, 16], strides = [1, 1]} : vector<16x18xf32> to vector<16x16xf32>
    %1969 = vector.broadcast %1967 : f32 to vector<16x16xf32>
    %1970 = arith.mulf %1969, %1968 : vector<16x16xf32>
    %1971 = arith.addf %1962, %1970 : vector<16x16xf32>
    %c274 = arith.constant 274 : index
    %1972 = memref.load %arg3[%c274] : memref<288xf32, #tpu.memory_space<smem>>
    %1973 = vector.extract_strided_slice %1966 {offsets = [0, 1], sizes = [16, 16], strides = [1, 1]} : vector<16x18xf32> to vector<16x16xf32>
    %1974 = vector.broadcast %1972 : f32 to vector<16x16xf32>
    %1975 = arith.mulf %1974, %1973 : vector<16x16xf32>
    %1976 = arith.addf %1971, %1975 : vector<16x16xf32>
    %c275 = arith.constant 275 : index
    %1977 = memref.load %arg3[%c275] : memref<288xf32, #tpu.memory_space<smem>>
    %1978 = vector.extract_strided_slice %1966 {offsets = [0, 2], sizes = [16, 16], strides = [1, 1]} : vector<16x18xf32> to vector<16x16xf32>
    %1979 = vector.broadcast %1977 : f32 to vector<16x16xf32>
    %1980 = arith.mulf %1979, %1978 : vector<16x16xf32>
    %1981 = arith.addf %1976, %1980 : vector<16x16xf32>
    %c2_i32_498 = arith.constant 2 : i32
    %1982 = arith.addi %1, %c2_i32_498 : i32
    %c0_499 = arith.constant 0 : index
    %c2_500 = arith.constant 2 : index
    %1983 = arith.index_cast %1982 : i32 to index
    %c0_501 = arith.constant 0 : index
    %1984 = vector.load %arg2[%c0_499, %c2_500, %1983, %c0_501] : memref<1x4x18x18xf32, #tpu.memory_space<vmem>>, vector<1x1x16x18xf32>
    %1985 = vector.shape_cast %1984 : vector<1x1x16x18xf32> to vector<16x18xf32>
    %c276 = arith.constant 276 : index
    %1986 = memref.load %arg3[%c276] : memref<288xf32, #tpu.memory_space<smem>>
    %1987 = vector.extract_strided_slice %1985 {offsets = [0, 0], sizes = [16, 16], strides = [1, 1]} : vector<16x18xf32> to vector<16x16xf32>
    %1988 = vector.broadcast %1986 : f32 to vector<16x16xf32>
    %1989 = arith.mulf %1988, %1987 : vector<16x16xf32>
    %1990 = arith.addf %1981, %1989 : vector<16x16xf32>
    %c277 = arith.constant 277 : index
    %1991 = memref.load %arg3[%c277] : memref<288xf32, #tpu.memory_space<smem>>
    %1992 = vector.extract_strided_slice %1985 {offsets = [0, 1], sizes = [16, 16], strides = [1, 1]} : vector<16x18xf32> to vector<16x16xf32>
    %1993 = vector.broadcast %1991 : f32 to vector<16x16xf32>
    %1994 = arith.mulf %1993, %1992 : vector<16x16xf32>
    %1995 = arith.addf %1990, %1994 : vector<16x16xf32>
    %c278 = arith.constant 278 : index
    %1996 = memref.load %arg3[%c278] : memref<288xf32, #tpu.memory_space<smem>>
    %1997 = vector.extract_strided_slice %1985 {offsets = [0, 2], sizes = [16, 16], strides = [1, 1]} : vector<16x18xf32> to vector<16x16xf32>
    %1998 = vector.broadcast %1996 : f32 to vector<16x16xf32>
    %1999 = arith.mulf %1998, %1997 : vector<16x16xf32>
    %2000 = arith.addf %1995, %1999 : vector<16x16xf32>
    %c0_i32_502 = arith.constant 0 : i32
    %2001 = arith.addi %1, %c0_i32_502 : i32
    %c0_503 = arith.constant 0 : index
    %c3_504 = arith.constant 3 : index
    %2002 = arith.index_cast %2001 : i32 to index
    %c0_505 = arith.constant 0 : index
    %2003 = vector.load %arg2[%c0_503, %c3_504, %2002, %c0_505] : memref<1x4x18x18xf32, #tpu.memory_space<vmem>>, vector<1x1x16x18xf32>
    %2004 = vector.shape_cast %2003 : vector<1x1x16x18xf32> to vector<16x18xf32>
    %c279 = arith.constant 279 : index
    %2005 = memref.load %arg3[%c279] : memref<288xf32, #tpu.memory_space<smem>>
    %2006 = vector.extract_strided_slice %2004 {offsets = [0, 0], sizes = [16, 16], strides = [1, 1]} : vector<16x18xf32> to vector<16x16xf32>
    %2007 = vector.broadcast %2005 : f32 to vector<16x16xf32>
    %2008 = arith.mulf %2007, %2006 : vector<16x16xf32>
    %2009 = arith.addf %2000, %2008 : vector<16x16xf32>
    %c280 = arith.constant 280 : index
    %2010 = memref.load %arg3[%c280] : memref<288xf32, #tpu.memory_space<smem>>
    %2011 = vector.extract_strided_slice %2004 {offsets = [0, 1], sizes = [16, 16], strides = [1, 1]} : vector<16x18xf32> to vector<16x16xf32>
    %2012 = vector.broadcast %2010 : f32 to vector<16x16xf32>
    %2013 = arith.mulf %2012, %2011 : vector<16x16xf32>
    %2014 = arith.addf %2009, %2013 : vector<16x16xf32>
    %c281 = arith.constant 281 : index
    %2015 = memref.load %arg3[%c281] : memref<288xf32, #tpu.memory_space<smem>>
    %2016 = vector.extract_strided_slice %2004 {offsets = [0, 2], sizes = [16, 16], strides = [1, 1]} : vector<16x18xf32> to vector<16x16xf32>
    %2017 = vector.broadcast %2015 : f32 to vector<16x16xf32>
    %2018 = arith.mulf %2017, %2016 : vector<16x16xf32>
    %2019 = arith.addf %2014, %2018 : vector<16x16xf32>
    %c1_i32_506 = arith.constant 1 : i32
    %2020 = arith.addi %1, %c1_i32_506 : i32
    %c0_507 = arith.constant 0 : index
    %c3_508 = arith.constant 3 : index
    %2021 = arith.index_cast %2020 : i32 to index
    %c0_509 = arith.constant 0 : index
    %2022 = vector.load %arg2[%c0_507, %c3_508, %2021, %c0_509] : memref<1x4x18x18xf32, #tpu.memory_space<vmem>>, vector<1x1x16x18xf32>
    %2023 = vector.shape_cast %2022 : vector<1x1x16x18xf32> to vector<16x18xf32>
    %c282 = arith.constant 282 : index
    %2024 = memref.load %arg3[%c282] : memref<288xf32, #tpu.memory_space<smem>>
    %2025 = vector.extract_strided_slice %2023 {offsets = [0, 0], sizes = [16, 16], strides = [1, 1]} : vector<16x18xf32> to vector<16x16xf32>
    %2026 = vector.broadcast %2024 : f32 to vector<16x16xf32>
    %2027 = arith.mulf %2026, %2025 : vector<16x16xf32>
    %2028 = arith.addf %2019, %2027 : vector<16x16xf32>
    %c283 = arith.constant 283 : index
    %2029 = memref.load %arg3[%c283] : memref<288xf32, #tpu.memory_space<smem>>
    %2030 = vector.extract_strided_slice %2023 {offsets = [0, 1], sizes = [16, 16], strides = [1, 1]} : vector<16x18xf32> to vector<16x16xf32>
    %2031 = vector.broadcast %2029 : f32 to vector<16x16xf32>
    %2032 = arith.mulf %2031, %2030 : vector<16x16xf32>
    %2033 = arith.addf %2028, %2032 : vector<16x16xf32>
    %c284 = arith.constant 284 : index
    %2034 = memref.load %arg3[%c284] : memref<288xf32, #tpu.memory_space<smem>>
    %2035 = vector.extract_strided_slice %2023 {offsets = [0, 2], sizes = [16, 16], strides = [1, 1]} : vector<16x18xf32> to vector<16x16xf32>
    %2036 = vector.broadcast %2034 : f32 to vector<16x16xf32>
    %2037 = arith.mulf %2036, %2035 : vector<16x16xf32>
    %2038 = arith.addf %2033, %2037 : vector<16x16xf32>
    %c2_i32_510 = arith.constant 2 : i32
    %2039 = arith.addi %1, %c2_i32_510 : i32
    %c0_511 = arith.constant 0 : index
    %c3_512 = arith.constant 3 : index
    %2040 = arith.index_cast %2039 : i32 to index
    %c0_513 = arith.constant 0 : index
    %2041 = vector.load %arg2[%c0_511, %c3_512, %2040, %c0_513] : memref<1x4x18x18xf32, #tpu.memory_space<vmem>>, vector<1x1x16x18xf32>
    %2042 = vector.shape_cast %2041 : vector<1x1x16x18xf32> to vector<16x18xf32>
    %c285 = arith.constant 285 : index
    %2043 = memref.load %arg3[%c285] : memref<288xf32, #tpu.memory_space<smem>>
    %2044 = vector.extract_strided_slice %2042 {offsets = [0, 0], sizes = [16, 16], strides = [1, 1]} : vector<16x18xf32> to vector<16x16xf32>
    %2045 = vector.broadcast %2043 : f32 to vector<16x16xf32>
    %2046 = arith.mulf %2045, %2044 : vector<16x16xf32>
    %2047 = arith.addf %2038, %2046 : vector<16x16xf32>
    %c286 = arith.constant 286 : index
    %2048 = memref.load %arg3[%c286] : memref<288xf32, #tpu.memory_space<smem>>
    %2049 = vector.extract_strided_slice %2042 {offsets = [0, 1], sizes = [16, 16], strides = [1, 1]} : vector<16x18xf32> to vector<16x16xf32>
    %2050 = vector.broadcast %2048 : f32 to vector<16x16xf32>
    %2051 = arith.mulf %2050, %2049 : vector<16x16xf32>
    %2052 = arith.addf %2047, %2051 : vector<16x16xf32>
    %c287 = arith.constant 287 : index
    %2053 = memref.load %arg3[%c287] : memref<288xf32, #tpu.memory_space<smem>>
    %2054 = vector.extract_strided_slice %2042 {offsets = [0, 2], sizes = [16, 16], strides = [1, 1]} : vector<16x18xf32> to vector<16x16xf32>
    %2055 = vector.broadcast %2053 : f32 to vector<16x16xf32>
    %2056 = arith.mulf %2055, %2054 : vector<16x16xf32>
    %2057 = arith.addf %2052, %2056 : vector<16x16xf32>
    %c7_514 = arith.constant 7 : index
    %2058 = memref.load %arg4[%c7_514] : memref<8xf32, #tpu.memory_space<smem>>
    %2059 = vector.broadcast %2058 : f32 to vector<16x16xf32>
    %2060 = arith.addf %2057, %2059 : vector<16x16xf32>
    %cst_515 = arith.constant 2.000000e+00 : f32
    %2061 = vector.broadcast %cst_515 : f32 to vector<16x16xf32>
    %2062 = arith.subf %2060, %2061 : vector<16x16xf32>
    %2063 = arith.mulf %2062, %2062 : vector<16x16xf32>
    %cst_516 = arith.constant -1.000000e+00 : f32
    %2064 = vector.broadcast %cst_516 : f32 to vector<16x16xf32>
    %2065 = arith.mulf %2064, %2063 : vector<16x16xf32>
    %2066 = math.exp %2065 : vector<16x16xf32>
    %cst_517 = arith.constant 2.000000e+00 : f32
    %2067 = vector.broadcast %cst_517 : f32 to vector<16x16xf32>
    %2068 = arith.cmpf olt, %2060, %2067 : vector<16x16xf32>
    %cst_518 = arith.constant 1.100000e+00 : f32
    %2069 = vector.broadcast %cst_518 : f32 to vector<16x16xf32>
    %2070 = arith.mulf %2069, %2066 : vector<16x16xf32>
    %cst_519 = arith.constant 1.000000e-01 : f32
    %2071 = vector.broadcast %cst_519 : f32 to vector<16x16xf32>
    %2072 = arith.mulf %2071, %2066 : vector<16x16xf32>
    %cst_520 = arith.constant 1.000000e+00 : f32
    %2073 = vector.broadcast %cst_520 : f32 to vector<16x16xf32>
    %2074 = arith.addf %2073, %2072 : vector<16x16xf32>
    %2075 = arith.select %2068, %2070, %2074 : vector<16x16xi1>, vector<16x16xf32>
    %cst_521 = arith.constant 0.000000e+00 : f32
    %2076 = vector.broadcast %cst_521 : f32 to vector<16x16xf32>
    %2077 = arith.maximumf %2060, %2076 : vector<16x16xf32>
    %cst_522 = arith.constant 9.99999997E-7 : f32
    %2078 = vector.broadcast %cst_522 : f32 to vector<16x16xf32>
    %2079 = arith.addf %2077, %2078 : vector<16x16xf32>
    %2080 = math.log %2079 : vector<16x16xf32>
    %cst_523 = arith.constant 8.000000e-01 : f32
    %2081 = vector.broadcast %cst_523 : f32 to vector<16x16xf32>
    %2082 = arith.mulf %2081, %2080 : vector<16x16xf32>
    %2083 = math.exp %2082 : vector<16x16xf32>
    %c0_524 = arith.constant 0 : index
    %c7_525 = arith.constant 7 : index
    %c0_526 = arith.constant 0 : index
    %c0_527 = arith.constant 0 : index
    %2084 = vector.load %arg5[%c0_524, %c7_525, %c0_526, %c0_527] : memref<1x8x16x16xf32, #tpu.memory_space<vmem>>, vector<1x1x16x16xf32>
    %2085 = vector.shape_cast %2084 : vector<1x1x16x16xf32> to vector<16x16xf32>
    %2086 = vector.shape_cast %2083 : vector<16x16xf32> to vector<1x1x16x16xf32>
    tpu.vector_store %arg5[%c0_524, %c7_525, %c0_526, %c0_527], %2086 {strides = array<i32>} : memref<1x8x16x16xf32, #tpu.memory_space<vmem>>, vector<1x1x16x16xf32>,
    %c0_528 = arith.constant 0 : index
    %c7_529 = arith.constant 7 : index
    %c0_530 = arith.constant 0 : index
    %c0_531 = arith.constant 0 : index
    %2087 = vector.load %arg6[%c0_528, %c7_529, %c0_530, %c0_531] : memref<1x8x16x16xf32, #tpu.memory_space<vmem>>, vector<1x1x16x16xf32>
    %2088 = vector.shape_cast %2087 : vector<1x1x16x16xf32> to vector<16x16xf32>
    %2089 = vector.shape_cast %2075 : vector<16x16xf32> to vector<1x1x16x16xf32>
    tpu.vector_store %arg6[%c0_528, %c7_529, %c0_530, %c0_531], %2089 {strides = array<i32>} : memref<1x8x16x16xf32, #tpu.memory_space<vmem>>, vector<1x1x16x16xf32>,
    return
  }
  func.func @transform_0(%arg0: i32, %arg1: i32) -> (i32, i32, i32, i32) {
    %c0_i32 = arith.constant 0 : i32
    %c0_i32_0 = arith.constant 0 : i32
    %c0_i32_1 = arith.constant 0 : i32
    %c0_i32_2 = arith.constant 0 : i32
    return %arg0, %c0_i32, %c0_i32_0, %c0_i32_1 : i32, i32, i32, i32
  }
  func.func @transform_1(%arg0: i32, %arg1: i32) -> i32 {
    %c0_i32 = arith.constant 0 : i32
    %c0_i32_0 = arith.constant 0 : i32
    return %c0_i32 : i32
  }
  func.func @transform_2(%arg0: i32, %arg1: i32) -> i32 {
    %c0_i32 = arith.constant 0 : i32
    %c0_i32_0 = arith.constant 0 : i32
    return %c0_i32 : i32
  }
  func.func @transform_3(%arg0: i32, %arg1: i32) -> (i32, i32, i32, i32) {
    %c0_i32 = arith.constant 0 : i32
    %c0_i32_0 = arith.constant 0 : i32
    %c0_i32_1 = arith.constant 0 : i32
    return %arg0, %c0_i32, %arg1, %c0_i32_0 : i32, i32, i32, i32
  }
  func.func @transform_4(%arg0: i32, %arg1: i32) -> (i32, i32, i32, i32) {
    %c0_i32 = arith.constant 0 : i32
    %c0_i32_0 = arith.constant 0 : i32
    %c0_i32_1 = arith.constant 0 : i32
    return %arg0, %c0_i32, %arg1, %c0_i32_0 : i32, i32, i32, i32
  }
}

</mosaic_0001>

<llo_original>
// kernel: tpu_custom_call.1
$region0: #{tpu_custom_call.1}
  #allocation0 [shape = 'u32[]', space=smem, size = 0x4, offset = 0x4, fixed_abs, tag = 'smem constant byte address 0x4 - core index']
  #allocation1 [shape = 'u32[144,128]{1,0:T(1,128)}', space=vmem, size = 0x12000, scoped, tag = 'internal scratch']
  %s0 = inlined_call_operand.vmem [shape: f32[2,4,18,18], index: 0, kind: input, shape index: {}]
  %s1 = inlined_call_operand.vmem [shape: f32[288], index: 1, kind: input, shape index: {}]
  %s2 = inlined_call_operand.vmem [shape: f32[8], index: 2, kind: input, shape index: {}]
  %s3 = inlined_call_operand.hbm [shape: f32[2,8,16,16], index: 3, kind: output, shape index: {0}]
  %s4 = inlined_call_operand.hbm [shape: f32[2,8,16,16], index: 4, kind: output, shape index: {1}]
  %5 = xla_tuple %s3, %s4
  %s6 = sld [smem:[#allocation0]]
  $region61: #{tpu_custom_call.1} parent=0
    _
  %s8 = ssub.s32 1, %s6
  %s9 = scalar_select 0, %s8, %s6
  $region1: #{tpu_custom_call.1} parent=0
    #allocation2 [shape = 'u8[1536]{0}', space=smem, size = 0x600, scoped, tag = 'input window, operand 1, single buffered']
    #allocation3 [shape = 's32[2]{0}', space=sflag, size = 0x8, scoped, tag = 'scoped memory for tpu_custom_call.1']
    #allocation4 [shape = 's32[2]{0}', space=sflag, size = 0x8, scoped, tag = 'scoped memory for tpu_custom_call.1']
    #allocation5 [shape = 'u8[512]{0}', space=smem, size = 0x200, scoped, tag = 'input window, operand 2, single buffered']
    #allocation6 [shape = 's32[1]{0}', space=sflag, size = 0x4, scoped, tag = 'scoped memory for tpu_custom_call.1']
    #allocation7 [shape = 'u8[131072]{0}', space=vmem, size = 0x20000, scoped, tag = 'output window, operand 0']
    #allocation8 [shape = 'u8[131072]{0}', space=vmem, size = 0x20000, scoped, tag = 'output window, operand 1']
    #allocation9 [shape = 's32[2]{0}', space=sflag, size = 0x8, scoped, tag = 'scoped memory for tpu_custom_call.1']
    %10 = vsyncpa [#allocation4], 0
    %11 = vsyncpa [#allocation6], 0
    %12 = vsyncpa [#allocation3], 0
    %s13 = scalar_lea.sflag [#allocation3], 1
    %14 = vsyncpa %s13, 0
    %15 = vsyncpa [#allocation9], 0
    %s16 = scalar_lea.sflag [#allocation9], 1
    %17 = vsyncpa %s16, 0
    loop: start=0, step=1, limit=4
    $region2: #{tpu_custom_call.1} parent=1 // loop_pre_header
      _
    $region3: #{tpu_custom_call.1} parent=1 // loop_header
      %s19 = sphi 0, %s23
      %p20 = scmp.ge.s32.totalorder %s19, 4
      %s26 = sphi 0, %s38
      %s27 = sphi 0, %s34
      %s28 = sphi 0, %s26
      %s29 = sphi 0, %s27
      %s30 = sphi 0, %s28
      %s31 = sphi 0, %s29
      %s41 = sphi 0, %s43
      %s44 = sphi 0, %s41
      %s45 = sphi 0, %s44
      %s61 = sphi 0, %s45
      %s65 = sphi 0, %s65
      %s67 = sphi 0, %s65
      %s68 = sphi 0, %s67
      %s82 = sphi 0, %s68
      %s86 = sphi 0, %s86
      %s88 = sphi 0, %s86
      %s89 = sphi 0, %s88
      %s103 = sphi 0, %s89
      %s111 = sphi 0, %s113
      %s114 = sphi 0, %s111
      %s115 = sphi 0, %s114
      %s131 = sphi 0, %s115
      %s139 = sphi 0, %s141
      %s142 = sphi 0, %s139
      %s143 = sphi 0, %s142
      %s159 = sphi 0, %s143
    $region4: #{tpu_custom_call.1} parent=1 // loop_header_branch
      %22 = sbr.rel (%p20) target = $region8
    $region5: #{tpu_custom_call.1} parent=1 // loop_body
      %s24 = ssub.s32 %s19, 1
      %s25 = ssub.s32 %s19, 2
      %s32 = sadd.s32 1, %s27
      %p33 = scmp.ge.s32.totalorder %s32, 1
      %s34 = scalar_select %p33, 0, %s32
      %s35 = sadd.s32 1, %s26
      %s36 = scalar_select %p33, %s35, %s26
      %p37 = scmp.ge.s32.totalorder %s36, 2
      %s38 = scalar_select %p37, 0, %s36
      %s39 = ssub.s32 %s26, %s38
      %p40 = scmp.eq.s32.totalorder %s39, 0
      %s42 = sadd.s32 %s41, 1
      %s43 = scalar_select %p40, %s41, %s42
      %p46 = pneg %p40
      %p47 = scmp.eq.s32.totalorder %s19, 1
      %p48 = por %p46, %p47
      %p49 = scmp.ne.s32.totalorder %s41, %s44
      %p50 = scmp.eq.s32.totalorder %s19, 0
      %p51 = por %p49, %p50
      %p52 = scmp.ne.s32.totalorder %s41, %s44
      %p53 = scmp.eq.s32.totalorder %s24, 1
      %p54 = por %p52, %p53
      %p55 = scmp.ne.s32.totalorder %s44, %s45
      %p56 = scmp.eq.s32.totalorder %s24, 0
      %p57 = por %p55, %p56
      %p58 = scmp.ne.s32.totalorder %s44, %s45
      %p59 = scmp.eq.s32.totalorder %s25, 1
      %p60 = por %p58, %p59
      %p62 = scmp.ne.s32.totalorder %s45, %s61
      %p63 = scmp.eq.s32.totalorder %s25, 0
      %p64 = por %p62, %p63
      %s66 = sadd.s32 %s65, 1
      %p69 = scmp.eq.s32.totalorder %s19, 1
      %p70 = scmp.ne.s32.totalorder %s65, %s67
      %p71 = scmp.eq.s32.totalorder %s19, 0
      %p72 = por %p70, %p71
      %p73 = scmp.ne.s32.totalorder %s65, %s67
      %p74 = scmp.eq.s32.totalorder %s24, 1
      %p75 = por %p73, %p74
      %p76 = scmp.ne.s32.totalorder %s67, %s68
      %p77 = scmp.eq.s32.totalorder %s24, 0
      %p78 = por %p76, %p77
      %p79 = scmp.ne.s32.totalorder %s67, %s68
      %p80 = scmp.eq.s32.totalorder %s25, 1
      %p81 = por %p79, %p80
      %p83 = scmp.ne.s32.totalorder %s68, %s82
      %p84 = scmp.eq.s32.totalorder %s25, 0
      %p85 = por %p83, %p84
      %s87 = sadd.s32 %s86, 1
      %p90 = scmp.eq.s32.totalorder %s19, 1
      %p91 = scmp.ne.s32.totalorder %s86, %s88
      %p92 = scmp.eq.s32.totalorder %s19, 0
      %p93 = por %p91, %p92
      %p94 = scmp.ne.s32.totalorder %s86, %s88
      %p95 = scmp.eq.s32.totalorder %s24, 1
      %p96 = por %p94, %p95
      %p97 = scmp.ne.s32.totalorder %s88, %s89
      %p98 = scmp.eq.s32.totalorder %s24, 0
      %p99 = por %p97, %p98
      %p100 = scmp.ne.s32.totalorder %s88, %s89
      %p101 = scmp.eq.s32.totalorder %s25, 1
      %p102 = por %p100, %p101
      %p104 = scmp.ne.s32.totalorder %s89, %s103
      %p105 = scmp.eq.s32.totalorder %s25, 0
      %p106 = por %p104, %p105
      %s107 = ssub.s32 %s26, %s38
      %s108 = ssub.s32 %s27, %s34
      %s109 = sor.u32 %s107, %s108
      %p110 = scmp.eq.s32.totalorder %s109, 0
      %s112 = sadd.s32 %s111, 1
      %s113 = scalar_select %p110, %s111, %s112
      %p116 = pneg %p110
      %p117 = scmp.eq.s32.totalorder %s19, 1
      %p118 = por %p116, %p117
      %p119 = scmp.ne.s32.totalorder %s111, %s114
      %p120 = scmp.eq.s32.totalorder %s19, 0
      %p121 = por %p119, %p120
      %p122 = scmp.ne.s32.totalorder %s111, %s114
      %p123 = scmp.eq.s32.totalorder %s24, 1
      %p124 = por %p122, %p123
      %p125 = scmp.ne.s32.totalorder %s114, %s115
      %p126 = scmp.eq.s32.totalorder %s24, 0
      %p127 = por %p125, %p126
      %p128 = scmp.ne.s32.totalorder %s114, %s115
      %p129 = scmp.eq.s32.totalorder %s25, 1
      %p130 = por %p128, %p129
      %p132 = scmp.ne.s32.totalorder %s115, %s131
      %p133 = scmp.eq.s32.totalorder %s25, 0
      %p134 = por %p132, %p133
      %s135 = ssub.s32 %s26, %s38
      %s136 = ssub.s32 %s27, %s34
      %s137 = sor.u32 %s135, %s136
      %p138 = scmp.eq.s32.totalorder %s137, 0
      %s140 = sadd.s32 %s139, 1
      %s141 = scalar_select %p138, %s139, %s140
      %p144 = pneg %p138
      %p145 = scmp.eq.s32.totalorder %s19, 1
      %p146 = por %p144, %p145
      %p147 = scmp.ne.s32.totalorder %s139, %s142
      %p148 = scmp.eq.s32.totalorder %s19, 0
      %p149 = por %p147, %p148
      %p150 = scmp.ne.s32.totalorder %s139, %s142
      %p151 = scmp.eq.s32.totalorder %s24, 1
      %p152 = por %p150, %p151
      %p153 = scmp.ne.s32.totalorder %s142, %s143
      %p154 = scmp.eq.s32.totalorder %s24, 0
      %p155 = por %p153, %p154
      %p156 = scmp.ne.s32.totalorder %s142, %s143
      %p157 = scmp.eq.s32.totalorder %s25, 1
      %p158 = por %p156, %p157
      %p160 = scmp.ne.s32.totalorder %s143, %s159
      %p161 = scmp.eq.s32.totalorder %s25, 0
      %p162 = por %p160, %p161
      %p163 = scmp.le.s32.totalorder 1, %s19
      %p164 = scmp.lt.s32.totalorder %s19, 3
      %p165 = pnand %p163, %p164
      %p166 = pneg %p165
      // Predicated region
      $region9: #{tpu_custom_call.1} parent=5 // pred_check
        _
      $region10: #{tpu_custom_call.1} parent=5 // pred_check_branch
        %168 = sbr.rel (%p165) target = $region12
      $region11: #{tpu_custom_call.1} parent=5 // pred_region
        %s169 = ssub.s32 %s19, 1
        // Predicated region
        $region13: #{tpu_custom_call.1} parent=11 // pred_check
          %p170 = pneg %p78
        $region14: #{tpu_custom_call.1} parent=11 // pred_check_branch
          %172 = sbr.rel (%p170) target = $region16
        $region15: #{tpu_custom_call.1} parent=11 // pred_region
          %s174 = ssub.s32 48, 48
          %175 = vsyncadd [#allocation4], %s174
          %s177 = sshll.u32 %s1, 4
          %s178 = int_to_ptr.vmem [resolvable:$true] %s177
          %180 = dma.vmem_to_smem %s178, 48, [#allocation2], [#allocation4]
        $region16: #{tpu_custom_call.1} parent=11 // pred_fallthru
          _
        // Predicated region
        $region17: #{tpu_custom_call.1} parent=11 // pred_check
          %p181 = pneg %p99
        $region18: #{tpu_custom_call.1} parent=11 // pred_check_branch
          %183 = sbr.rel (%p181) target = $region20
        $region19: #{tpu_custom_call.1} parent=11 // pred_region
          %s185 = ssub.s32 16, 16
          %186 = vsyncadd [#allocation6], %s185
          %s188 = sshll.u32 %s2, 4
          %s189 = int_to_ptr.vmem [resolvable:$true] %s188
          %191 = dma.vmem_to_smem %s189, 16, [#allocation5], [#allocation6]
        $region20: #{tpu_custom_call.1} parent=11 // pred_fallthru
          _
      $region12: #{tpu_custom_call.1} parent=5 // pred_fallthru
        _
      %p192 = scmp.lt.s32.totalorder %s19, 2
      // Predicated region
      $region21: #{tpu_custom_call.1} parent=5 // pred_check
        %p193 = pneg %p192
      $region22: #{tpu_custom_call.1} parent=5 // pred_check_branch
        %195 = sbr.rel (%p193) target = $region24
      $region23: #{tpu_custom_call.1} parent=5 // pred_region
        // Predicated region
        $region25: #{tpu_custom_call.1} parent=23 // pred_check
          %p196 = pneg %p51
        $region26: #{tpu_custom_call.1} parent=23 // pred_check_branch
          %198 = sbr.rel (%p196) target = $region28
        $region27: #{tpu_custom_call.1} parent=23 // pred_region
          %p199 = scmp.lt.s32.totalorder %s26, 1
          %s200 = scalar_select %p199, %s26, 1
          %s201 = smul.addr %s200, 12
          %s202 = smul.addr %s201, 8
          %s203 = scalar_lea.vmem %s0, %s202
        $region28: #{tpu_custom_call.1} parent=23 // pred_fallthru
          _
      $region24: #{tpu_custom_call.1} parent=5 // pred_fallthru
        _
      %p204 = scmp.le.s32.totalorder 1, %s19
      %p205 = scmp.lt.s32.totalorder %s19, 3
      %p206 = pnand %p204, %p205
      %p207 = pneg %p206
      // Predicated region
      $region29: #{tpu_custom_call.1} parent=5 // pred_check
        _
      $region30: #{tpu_custom_call.1} parent=5 // pred_check_branch
        %209 = sbr.rel (%p206) target = $region32
      $region31: #{tpu_custom_call.1} parent=5 // pred_region
        %s210 = ssub.s32 %s19, 1
        // Predicated region
        $region33: #{tpu_custom_call.1} parent=31 // pred_check
          %p211 = pneg %p78
        $region34: #{tpu_custom_call.1} parent=31 // pred_check_branch
          %213 = sbr.rel (%p211) target = $region36
        $region35: #{tpu_custom_call.1} parent=31 // pred_region
          %214 = dma.done [#allocation4], 48
        $region36: #{tpu_custom_call.1} parent=31 // pred_fallthru
          _
        // Predicated region
        $region37: #{tpu_custom_call.1} parent=31 // pred_check
          %p215 = pneg %p99
        $region38: #{tpu_custom_call.1} parent=31 // pred_check_branch
          %217 = sbr.rel (%p215) target = $region40
        $region39: #{tpu_custom_call.1} parent=31 // pred_region
          %218 = dma.done [#allocation6], 16
        $region40: #{tpu_custom_call.1} parent=31 // pred_fallthru
          _
        %219 = sfence
        %p220 = scmp.lt.s32.totalorder %s28, 1
        %s221 = scalar_select %p220, %s28, 1
        %s222 = smul.addr %s221, 12
        %s223 = smul.addr %s222, 8
        %s224 = scalar_lea.vmem %s0, %s223
        %p225 = pneg %p57
        %p226 = pneg %p54
        %p227 = pneg %p78
        %p228 = pneg %p75
        %p229 = pneg %p99
        %p230 = pneg %p96
        %p231 = pneg %p127
        %p232 = pneg %p124
        %s233 = sand.u32 %s114, 1
        %s234 = scalar_lea.sflag [#allocation3], %s233
        %s235 = sand.u32 %s114, 1
        %s236 = smul.addr %s235, 128
        %s237 = scalar_lea.vmem [#allocation7], %s236
        %p238 = pneg %p155
        %p239 = pneg %p152
        %s240 = sand.u32 %s142, 1
        %s241 = scalar_lea.sflag [#allocation9], %s240
        %s242 = sand.u32 %s142, 1
        %s243 = smul.addr %s242, 128
        %s244 = scalar_lea.vmem [#allocation8], %s243
        %p245 = scmp.lt.s32.totalorder %s28, 1
        %s246 = scalar_select %p245, %s28, 1
        %s247 = smul.addr %s246, 12
        %s248 = smul.addr %s247, 8
        %s249 = scalar_lea.vmem %s0, %s248
        %s250 = smul.u32 2, %s29
        %s251 = smul.u32 2, %s29
        %s252 = smul.u32 %s29, 16
        %s253 = scalar_lea.vmem %s249, %s252
        %v254 = vld [vmem:[%s253] sm:$0xff]
        %v255 = vld [vmem:[%s253 + $0x8] sm:$0xff]
        %s256 = sld [smem:[#allocation2]]
        %v257 = vstv %s256
        %v258 = vmul.f32 %v257, %v254
        %v259 = vmul.f32 %v257, %v255
        %v260 = vadd.f32 %v258, 0.0
        %v261 = vadd.f32 %v259, 0.0
        %s262 = sld [smem:[#allocation2 + $0x1]]
        %v263 = vstv %s262
        %v264 = vmul.f32 %v263, %v254
        %v265 = vmul.f32 %v263, %v255
        %268 = vrot.lane.b32.xlu0 %v264, 127
        %v269 = vpop.permute.xlu0 %268
        %270 = vrot.lane.b32.xlu0 %v265, 127
        %v271 = vpop.permute.xlu0 %270
        %v274 = vadd.f32 %v260, %v269
        %v275 = vadd.f32 %v261, %v271
        %s276 = sld [smem:[#allocation2 + $0x2]]
        %v277 = vstv %s276
        %v278 = vmul.f32 %v277, %v254
        %v279 = vmul.f32 %v277, %v255
        %282 = vrot.lane.b32.xlu0 %v278, 126
        %v283 = vpop.permute.xlu0 %282
        %284 = vrot.lane.b32.xlu0 %v279, 126
        %v285 = vpop.permute.xlu0 %284
        %v288 = vadd.f32 %v274, %v283
        %v289 = vadd.f32 %v275, %v285
        %s290 = sadd.s32 %s252, 1
        %s291 = scalar_lea.vmem %s249, %s290
        %v292 = vld [vmem:[%s291] sm:$0xff]
        %v293 = vld [vmem:[%s291 + $0x8] sm:$0xff]
        %s294 = sld [smem:[#allocation2 + $0x3]]
        %v295 = vstv %s294
        %v296 = vmul.f32 %v295, %v292
        %v297 = vmul.f32 %v295, %v293
        %v298 = vadd.f32 %v288, %v296
        %v299 = vadd.f32 %v289, %v297
        %s300 = sld [smem:[#allocation2 + $0x4]]
        %v301 = vstv %s300
        %v302 = vmul.f32 %v301, %v292
        %v303 = vmul.f32 %v301, %v293
        %306 = vrot.lane.b32.xlu0 %v302, 127
        %v307 = vpop.permute.xlu0 %306
        %308 = vrot.lane.b32.xlu0 %v303, 127
        %v309 = vpop.permute.xlu0 %308
        %v312 = vadd.f32 %v298, %v307
        %v313 = vadd.f32 %v299, %v309
        %s314 = sld [smem:[#allocation2 + $0x5]]
        %v315 = vstv %s314
        %v316 = vmul.f32 %v315, %v292
        %v317 = vmul.f32 %v315, %v293
        %320 = vrot.lane.b32.xlu0 %v316, 126
        %v321 = vpop.permute.xlu0 %320
        %322 = vrot.lane.b32.xlu0 %v317, 126
        %v323 = vpop.permute.xlu0 %322
        %v326 = vadd.f32 %v312, %v321
        %v327 = vadd.f32 %v313, %v323
        %s328 = sadd.s32 %s252, 2
        %s329 = scalar_lea.vmem %s249, %s328
        %v330 = vld [vmem:[%s329] sm:$0xff]
        %v331 = vld [vmem:[%s329 + $0x8] sm:$0xff]
        %s332 = sld [smem:[#allocation2 + $0x6]]
        %v333 = vstv %s332
        %v334 = vmul.f32 %v333, %v330
        %v335 = vmul.f32 %v333, %v331
        %v336 = vadd.f32 %v326, %v334
        %v337 = vadd.f32 %v327, %v335
        %s338 = sld [smem:[#allocation2 + $0x7]]
        %v339 = vstv %s338
        %v340 = vmul.f32 %v339, %v330
        %v341 = vmul.f32 %v339, %v331
        %344 = vrot.lane.b32.xlu0 %v340, 127
        %v345 = vpop.permute.xlu0 %344
        %346 = vrot.lane.b32.xlu0 %v341, 127
        %v347 = vpop.permute.xlu0 %346
        %v350 = vadd.f32 %v336, %v345
        %v351 = vadd.f32 %v337, %v347
        %s352 = sld [smem:[#allocation2 + $0x8]]
        %v353 = vstv %s352
        %v354 = vmul.f32 %v353, %v330
        %v355 = vmul.f32 %v353, %v331
        %358 = vrot.lane.b32.xlu0 %v354, 126
        %v359 = vpop.permute.xlu0 %358
        %360 = vrot.lane.b32.xlu0 %v355, 126
        %v361 = vpop.permute.xlu0 %360
        %v364 = vadd.f32 %v350, %v359
        %v365 = vadd.f32 %v351, %v361
        %s366 = sadd.s32 %s252, 24
        %s367 = scalar_lea.vmem %s249, %s366
        %v368 = vld [vmem:[%s367] sm:$0xff]
        %v369 = vld [vmem:[%s367 + $0x8] sm:$0xff]
        %s370 = sld [smem:[#allocation2 + $0x9]]
        %v371 = vstv %s370
        %v372 = vmul.f32 %v371, %v368
        %v373 = vmul.f32 %v371, %v369
        %v374 = vadd.f32 %v364, %v372
        %v375 = vadd.f32 %v365, %v373
        %s376 = sld [smem:[#allocation2 + $0xa]]
        %v377 = vstv %s376
        %v378 = vmul.f32 %v377, %v368
        %v379 = vmul.f32 %v377, %v369
        %382 = vrot.lane.b32.xlu0 %v378, 127
        %v383 = vpop.permute.xlu0 %382
        %384 = vrot.lane.b32.xlu0 %v379, 127
        %v385 = vpop.permute.xlu0 %384
        %v388 = vadd.f32 %v374, %v383
        %v389 = vadd.f32 %v375, %v385
        %s390 = sld [smem:[#allocation2 + $0xb]]
        %v391 = vstv %s390
        %v392 = vmul.f32 %v391, %v368
        %v393 = vmul.f32 %v391, %v369
        %396 = vrot.lane.b32.xlu0 %v392, 126
        %v397 = vpop.permute.xlu0 %396
        %398 = vrot.lane.b32.xlu0 %v393, 126
        %v399 = vpop.permute.xlu0 %398
        %v402 = vadd.f32 %v388, %v397
        %v403 = vadd.f32 %v389, %v399
        %s404 = sadd.s32 %s290, 24
        %s405 = scalar_lea.vmem %s249, %s404
        %v406 = vld [vmem:[%s405] sm:$0xff]
        %v407 = vld [vmem:[%s405 + $0x8] sm:$0xff]
        %s408 = sld [smem:[#allocation2 + $0xc]]
        %v409 = vstv %s408
        %v410 = vmul.f32 %v409, %v406
        %v411 = vmul.f32 %v409, %v407
        %v412 = vadd.f32 %v402, %v410
        %v413 = vadd.f32 %v403, %v411
        %s414 = sld [smem:[#allocation2 + $0xd]]
        %v415 = vstv %s414
        %v416 = vmul.f32 %v415, %v406
        %v417 = vmul.f32 %v415, %v407
        %420 = vrot.lane.b32.xlu0 %v416, 127
        %v421 = vpop.permute.xlu0 %420
        %422 = vrot.lane.b32.xlu0 %v417, 127
        %v423 = vpop.permute.xlu0 %422
        %v426 = vadd.f32 %v412, %v421
        %v427 = vadd.f32 %v413, %v423
        %s428 = sld [smem:[#allocation2 + $0xe]]
        %v429 = vstv %s428
        %v430 = vmul.f32 %v429, %v406
        %v431 = vmul.f32 %v429, %v407
        %434 = vrot.lane.b32.xlu0 %v430, 126
        %v435 = vpop.permute.xlu0 %434
        %436 = vrot.lane.b32.xlu0 %v431, 126
        %v437 = vpop.permute.xlu0 %436
        %v440 = vadd.f32 %v426, %v435
        %v441 = vadd.f32 %v427, %v437
        %s442 = sadd.s32 %s328, 24
        %s443 = scalar_lea.vmem %s249, %s442
        %v444 = vld [vmem:[%s443] sm:$0xff]
        %v445 = vld [vmem:[%s443 + $0x8] sm:$0xff]
        %s446 = sld [smem:[#allocation2 + $0xf]]
        %v447 = vstv %s446
        %v448 = vmul.f32 %v447, %v444
        %v449 = vmul.f32 %v447, %v445
        %v450 = vadd.f32 %v440, %v448
        %v451 = vadd.f32 %v441, %v449
        %s452 = sld [smem:[#allocation2 + $0x10]]
        %v453 = vstv %s452
        %v454 = vmul.f32 %v453, %v444
        %v455 = vmul.f32 %v453, %v445
        %458 = vrot.lane.b32.xlu0 %v454, 127
        %v459 = vpop.permute.xlu0 %458
        %460 = vrot.lane.b32.xlu0 %v455, 127
        %v461 = vpop.permute.xlu0 %460
        %v464 = vadd.f32 %v450, %v459
        %v465 = vadd.f32 %v451, %v461
        %s466 = sld [smem:[#allocation2 + $0x11]]
        %v467 = vstv %s466
        %v468 = vmul.f32 %v467, %v444
        %v469 = vmul.f32 %v467, %v445
        %472 = vrot.lane.b32.xlu0 %v468, 126
        %v473 = vpop.permute.xlu0 %472
        %474 = vrot.lane.b32.xlu0 %v469, 126
        %v475 = vpop.permute.xlu0 %474
        %v478 = vadd.f32 %v464, %v473
        %v479 = vadd.f32 %v465, %v475
        %s480 = sadd.s32 %s252, 48
        %s481 = scalar_lea.vmem %s249, %s480
        %v482 = vld [vmem:[%s481] sm:$0xff]
        %v483 = vld [vmem:[%s481 + $0x8] sm:$0xff]
        %s484 = sld [smem:[#allocation2 + $0x12]]
        %v485 = vstv %s484
        %v486 = vmul.f32 %v485, %v482
        %v487 = vmul.f32 %v485, %v483
        %v488 = vadd.f32 %v478, %v486
        %v489 = vadd.f32 %v479, %v487
        %s490 = sld [smem:[#allocation2 + $0x13]]
        %v491 = vstv %s490
        %v492 = vmul.f32 %v491, %v482
        %v493 = vmul.f32 %v491, %v483
        %496 = vrot.lane.b32.xlu0 %v492, 127
        %v497 = vpop.permute.xlu0 %496
        %498 = vrot.lane.b32.xlu0 %v493, 127
        %v499 = vpop.permute.xlu0 %498
        %v502 = vadd.f32 %v488, %v497
        %v503 = vadd.f32 %v489, %v499
        %s504 = sld [smem:[#allocation2 + $0x14]]
        %v505 = vstv %s504
        %v506 = vmul.f32 %v505, %v482
        %v507 = vmul.f32 %v505, %v483
        %510 = vrot.lane.b32.xlu0 %v506, 126
        %v511 = vpop.permute.xlu0 %510
        %512 = vrot.lane.b32.xlu0 %v507, 126
        %v513 = vpop.permute.xlu0 %512
        %v516 = vadd.f32 %v502, %v511
        %v517 = vadd.f32 %v503, %v513
        %s518 = sadd.s32 %s290, 48
        %s519 = scalar_lea.vmem %s249, %s518
        %v520 = vld [vmem:[%s519] sm:$0xff]
        %v521 = vld [vmem:[%s519 + $0x8] sm:$0xff]
        %s522 = sld [smem:[#allocation2 + $0x15]]
        %v523 = vstv %s522
        %v524 = vmul.f32 %v523, %v520
        %v525 = vmul.f32 %v523, %v521
        %v526 = vadd.f32 %v516, %v524
        %v527 = vadd.f32 %v517, %v525
        %s528 = sld [smem:[#allocation2 + $0x16]]
        %v529 = vstv %s528
        %v530 = vmul.f32 %v529, %v520
        %v531 = vmul.f32 %v529, %v521
        %534 = vrot.lane.b32.xlu0 %v530, 127
        %v535 = vpop.permute.xlu0 %534
        %536 = vrot.lane.b32.xlu0 %v531, 127
        %v537 = vpop.permute.xlu0 %536
        %v540 = vadd.f32 %v526, %v535
        %v541 = vadd.f32 %v527, %v537
        %s542 = sld [smem:[#allocation2 + $0x17]]
        %v543 = vstv %s542
        %v544 = vmul.f32 %v543, %v520
        %v545 = vmul.f32 %v543, %v521
        %548 = vrot.lane.b32.xlu0 %v544, 126
        %v549 = vpop.permute.xlu0 %548
        %550 = vrot.lane.b32.xlu0 %v545, 126
        %v551 = vpop.permute.xlu0 %550
        %v554 = vadd.f32 %v540, %v549
        %v555 = vadd.f32 %v541, %v551
        %s556 = sadd.s32 %s328, 48
        %s557 = scalar_lea.vmem %s249, %s556
        %v558 = vld [vmem:[%s557] sm:$0xff]
        %v559 = vld [vmem:[%s557 + $0x8] sm:$0xff]
        %s560 = sld [smem:[#allocation2 + $0x18]]
        %v561 = vstv %s560
        %v562 = vmul.f32 %v561, %v558
        %v563 = vmul.f32 %v561, %v559
        %v564 = vadd.f32 %v554, %v562
        %v565 = vadd.f32 %v555, %v563
        %s566 = sld [smem:[#allocation2 + $0x19]]
        %v567 = vstv %s566
        %v568 = vmul.f32 %v567, %v558
        %v569 = vmul.f32 %v567, %v559
        %572 = vrot.lane.b32.xlu0 %v568, 127
        %v573 = vpop.permute.xlu0 %572
        %574 = vrot.lane.b32.xlu0 %v569, 127
        %v575 = vpop.permute.xlu0 %574
        %v578 = vadd.f32 %v564, %v573
        %v579 = vadd.f32 %v565, %v575
        %s580 = sld [smem:[#allocation2 + $0x1a]]
        %v581 = vstv %s580
        %v582 = vmul.f32 %v581, %v558
        %v583 = vmul.f32 %v581, %v559
        %586 = vrot.lane.b32.xlu0 %v582, 126
        %v587 = vpop.permute.xlu0 %586
        %588 = vrot.lane.b32.xlu0 %v583, 126
        %v589 = vpop.permute.xlu0 %588
        %v592 = vadd.f32 %v578, %v587
        %v593 = vadd.f32 %v579, %v589
        %s594 = sadd.s32 %s252, 72
        %s595 = scalar_lea.vmem %s249, %s594
        %v596 = vld [vmem:[%s595] sm:$0xff]
        %v597 = vld [vmem:[%s595 + $0x8] sm:$0xff]
        %s598 = sld [smem:[#allocation2 + $0x1b]]
        %v599 = vstv %s598
        %v600 = vmul.f32 %v599, %v596
        %v601 = vmul.f32 %v599, %v597
        %v602 = vadd.f32 %v592, %v600
        %v603 = vadd.f32 %v593, %v601
        %s604 = sld [smem:[#allocation2 + $0x1c]]
        %v605 = vstv %s604
        %v606 = vmul.f32 %v605, %v596
        %v607 = vmul.f32 %v605, %v597
        %610 = vrot.lane.b32.xlu0 %v606, 127
        %v611 = vpop.permute.xlu0 %610
        %612 = vrot.lane.b32.xlu0 %v607, 127
        %v613 = vpop.permute.xlu0 %612
        %v616 = vadd.f32 %v602, %v611
        %v617 = vadd.f32 %v603, %v613
        %s618 = sld [smem:[#allocation2 + $0x1d]]
        %v619 = vstv %s618
        %v620 = vmul.f32 %v619, %v596
        %v621 = vmul.f32 %v619, %v597
        %624 = vrot.lane.b32.xlu0 %v620, 126
        %v625 = vpop.permute.xlu0 %624
        %626 = vrot.lane.b32.xlu0 %v621, 126
        %v627 = vpop.permute.xlu0 %626
        %v630 = vadd.f32 %v616, %v625
        %v631 = vadd.f32 %v617, %v627
        %s632 = sadd.s32 %s290, 72
        %s633 = scalar_lea.vmem %s249, %s632
        %v634 = vld [vmem:[%s633] sm:$0xff]
        %v635 = vld [vmem:[%s633 + $0x8] sm:$0xff]
        %s636 = sld [smem:[#allocation2 + $0x1e]]
        %v637 = vstv %s636
        %v638 = vmul.f32 %v637, %v634
        %v639 = vmul.f32 %v637, %v635
        %v640 = vadd.f32 %v630, %v638
        %v641 = vadd.f32 %v631, %v639
        %s642 = sld [smem:[#allocation2 + $0x1f]]
        %v643 = vstv %s642
        %v644 = vmul.f32 %v643, %v634
        %v645 = vmul.f32 %v643, %v635
        %648 = vrot.lane.b32.xlu0 %v644, 127
        %v649 = vpop.permute.xlu0 %648
        %650 = vrot.lane.b32.xlu0 %v645, 127
        %v651 = vpop.permute.xlu0 %650
        %v654 = vadd.f32 %v640, %v649
        %v655 = vadd.f32 %v641, %v651
        %s656 = sld [smem:[#allocation2 + $0x20]]
        %v657 = vstv %s656
        %v658 = vmul.f32 %v657, %v634
        %v659 = vmul.f32 %v657, %v635
        %662 = vrot.lane.b32.xlu0 %v658, 126
        %v663 = vpop.permute.xlu0 %662
        %664 = vrot.lane.b32.xlu0 %v659, 126
        %v665 = vpop.permute.xlu0 %664
        %v668 = vadd.f32 %v654, %v663
        %v669 = vadd.f32 %v655, %v665
        %s670 = sadd.s32 %s328, 72
        %s671 = scalar_lea.vmem %s249, %s670
        %v672 = vld [vmem:[%s671] sm:$0xff]
        %v673 = vld [vmem:[%s671 + $0x8] sm:$0xff]
        %s674 = sld [smem:[#allocation2 + $0x21]]
        %v675 = vstv %s674
        %v676 = vmul.f32 %v675, %v672
        %v677 = vmul.f32 %v675, %v673
        %v678 = vadd.f32 %v668, %v676
        %v679 = vadd.f32 %v669, %v677
        %s680 = sld [smem:[#allocation2 + $0x22]]
        %v681 = vstv %s680
        %v682 = vmul.f32 %v681, %v672
        %v683 = vmul.f32 %v681, %v673
        %686 = vrot.lane.b32.xlu0 %v682, 127
        %v687 = vpop.permute.xlu0 %686
        %688 = vrot.lane.b32.xlu0 %v683, 127
        %v689 = vpop.permute.xlu0 %688
        %v692 = vadd.f32 %v678, %v687
        %v693 = vadd.f32 %v679, %v689
        %s694 = sld [smem:[#allocation2 + $0x23]]
        %v695 = vstv %s694
        %v696 = vmul.f32 %v695, %v672
        %v697 = vmul.f32 %v695, %v673
        %700 = vrot.lane.b32.xlu0 %v696, 126
        %v701 = vpop.permute.xlu0 %700
        %702 = vrot.lane.b32.xlu0 %v697, 126
        %v703 = vpop.permute.xlu0 %702
        %v706 = vadd.f32 %v692, %v701
        %v707 = vadd.f32 %v693, %v703
        %s708 = sld [smem:[#allocation5]]
        %v709 = vstv %s708
        %v710 = vadd.f32 %v706, %v709
        %v711 = vadd.f32 %v707, %v709
        %v712 = vsub.f32 %v710, 2.0
        %v713 = vsub.f32 %v711, 2.0
        %v714 = vmul.f32 %v712, %v712
        %v715 = vmul.f32 %v713, %v713
        %v716 = vmul.f32 %v714, -1.0
        %v717 = vmul.f32 %v715, -1.0
        %v718 = vmul.f32 %v716, 1.442695
        %v719 = vpow.pop %v718
        %v720 = vmul.f32 %v717, 1.442695
        %v721 = vpow.pop %v720
        %vm722 = vcmp.lt.f32.partialorder %v710, 2.0
        %vm723 = vcmp.lt.f32.partialorder %v711, 2.0
        %v724 = vmul.f32 %v719, 1.1
        %v725 = vmul.f32 %v721, 1.1
        %v726 = vmul.f32 %v719, 0.1
        %v727 = vmul.f32 %v721, 0.1
        %v728 = vadd.f32 %v726, 1.0
        %v729 = vadd.f32 %v727, 1.0
        %v730 = vsel %vm722, %v724, %v728
        %v731 = vsel %vm723, %v725, %v729
        %v732 = vmax.f32 %v710, 0.0
        %v733 = vmax.f32 %v711, 0.0
        %v734 = vadd.f32 %v732, 1e-06
        %v735 = vadd.f32 %v733, 1e-06
        %v736 = vlog2.pop %v734
        %v737 = vmul.f32 %v736, 0.6931472
        %v738 = vlog2.pop %v735
        %v739 = vmul.f32 %v738, 0.6931472
        %v740 = vmul.f32 %v737, 0.8
        %v741 = vmul.f32 %v739, 0.8
        %v742 = vmul.f32 %v740, 1.442695
        %v743 = vpow.pop %v742
        %v744 = vmul.f32 %v741, 1.442695
        %v745 = vpow.pop %v744
        %vm746 = vcmask 130048
        %747 = vst.msk [vmem:[%s237] sm:$0xff] %vm746, %v743
        %748 = vst.msk [vmem:[%s237 + $0x8] sm:$0xff] %vm746, %v745
        %749 = vst.msk [vmem:[%s244] sm:$0xff] %vm746, %v730
        %750 = vst.msk [vmem:[%s244 + $0x8] sm:$0xff] %vm746, %v731
        %v751 = vld [vmem:[%s253] sm:$0xff]
        %v752 = vld [vmem:[%s253 + $0x8] sm:$0xff]
        %s753 = sld [smem:[#allocation2 + $0x24]]
        %v754 = vstv %s753
        %v755 = vmul.f32 %v754, %v751
        %v756 = vmul.f32 %v754, %v752
        %v757 = vadd.f32 %v755, 0.0
        %v758 = vadd.f32 %v756, 0.0
        %s759 = sld [smem:[#allocation2 + $0x25]]
        %v760 = vstv %s759
        %v761 = vmul.f32 %v760, %v751
        %v762 = vmul.f32 %v760, %v752
        %765 = vrot.lane.b32.xlu0 %v761, 127
        %v766 = vpop.permute.xlu0 %765
        %767 = vrot.lane.b32.xlu0 %v762, 127
        %v768 = vpop.permute.xlu0 %767
        %v771 = vadd.f32 %v757, %v766
        %v772 = vadd.f32 %v758, %v768
        %s773 = sld [smem:[#allocation2 + $0x26]]
        %v774 = vstv %s773
        %v775 = vmul.f32 %v774, %v751
        %v776 = vmul.f32 %v774, %v752
        %779 = vrot.lane.b32.xlu0 %v775, 126
        %v780 = vpop.permute.xlu0 %779
        %781 = vrot.lane.b32.xlu0 %v776, 126
        %v782 = vpop.permute.xlu0 %781
        %v785 = vadd.f32 %v771, %v780
        %v786 = vadd.f32 %v772, %v782
        %v787 = vld [vmem:[%s291] sm:$0xff]
        %v788 = vld [vmem:[%s291 + $0x8] sm:$0xff]
        %s789 = sld [smem:[#allocation2 + $0x27]]
        %v790 = vstv %s789
        %v791 = vmul.f32 %v790, %v787
        %v792 = vmul.f32 %v790, %v788
        %v793 = vadd.f32 %v785, %v791
        %v794 = vadd.f32 %v786, %v792
        %s795 = sld [smem:[#allocation2 + $0x28]]
        %v796 = vstv %s795
        %v797 = vmul.f32 %v796, %v787
        %v798 = vmul.f32 %v796, %v788
        %801 = vrot.lane.b32.xlu0 %v797, 127
        %v802 = vpop.permute.xlu0 %801
        %803 = vrot.lane.b32.xlu0 %v798, 127
        %v804 = vpop.permute.xlu0 %803
        %v807 = vadd.f32 %v793, %v802
        %v808 = vadd.f32 %v794, %v804
        %s809 = sld [smem:[#allocation2 + $0x29]]
        %v810 = vstv %s809
        %v811 = vmul.f32 %v810, %v787
        %v812 = vmul.f32 %v810, %v788
        %815 = vrot.lane.b32.xlu0 %v811, 126
        %v816 = vpop.permute.xlu0 %815
        %817 = vrot.lane.b32.xlu0 %v812, 126
        %v818 = vpop.permute.xlu0 %817
        %v821 = vadd.f32 %v807, %v816
        %v822 = vadd.f32 %v808, %v818
        %v823 = vld [vmem:[%s329] sm:$0xff]
        %v824 = vld [vmem:[%s329 + $0x8] sm:$0xff]
        %s825 = sld [smem:[#allocation2 + $0x2a]]
        %v826 = vstv %s825
        %v827 = vmul.f32 %v826, %v823
        %v828 = vmul.f32 %v826, %v824
        %v829 = vadd.f32 %v821, %v827
        %v830 = vadd.f32 %v822, %v828
        %s831 = sld [smem:[#allocation2 + $0x2b]]
        %v832 = vstv %s831
        %v833 = vmul.f32 %v832, %v823
        %v834 = vmul.f32 %v832, %v824
        %837 = vrot.lane.b32.xlu0 %v833, 127
        %v838 = vpop.permute.xlu0 %837
        %839 = vrot.lane.b32.xlu0 %v834, 127
        %v840 = vpop.permute.xlu0 %839
        %v843 = vadd.f32 %v829, %v838
        %v844 = vadd.f32 %v830, %v840
        %s845 = sld [smem:[#allocation2 + $0x2c]]
        %v846 = vstv %s845
        %v847 = vmul.f32 %v846, %v823
        %v848 = vmul.f32 %v846, %v824
        %851 = vrot.lane.b32.xlu0 %v847, 126
        %v852 = vpop.permute.xlu0 %851
        %853 = vrot.lane.b32.xlu0 %v848, 126
        %v854 = vpop.permute.xlu0 %853
        %v857 = vadd.f32 %v843, %v852
        %v858 = vadd.f32 %v844, %v854
        %v859 = vld [vmem:[%s367] sm:$0xff]
        %v860 = vld [vmem:[%s367 + $0x8] sm:$0xff]
        %s861 = sld [smem:[#allocation2 + $0x2d]]
        %v862 = vstv %s861
        %v863 = vmul.f32 %v862, %v859
        %v864 = vmul.f32 %v862, %v860
        %v865 = vadd.f32 %v857, %v863
        %v866 = vadd.f32 %v858, %v864
        %s867 = sld [smem:[#allocation2 + $0x2e]]
        %v868 = vstv %s867
        %v869 = vmul.f32 %v868, %v859
        %v870 = vmul.f32 %v868, %v860
        %873 = vrot.lane.b32.xlu0 %v869, 127
        %v874 = vpop.permute.xlu0 %873
        %875 = vrot.lane.b32.xlu0 %v870, 127
        %v876 = vpop.permute.xlu0 %875
        %v879 = vadd.f32 %v865, %v874
        %v880 = vadd.f32 %v866, %v876
        %s881 = sld [smem:[#allocation2 + $0x2f]]
        %v882 = vstv %s881
        %v883 = vmul.f32 %v882, %v859
        %v884 = vmul.f32 %v882, %v860
        %887 = vrot.lane.b32.xlu0 %v883, 126
        %v888 = vpop.permute.xlu0 %887
        %889 = vrot.lane.b32.xlu0 %v884, 126
        %v890 = vpop.permute.xlu0 %889
        %v893 = vadd.f32 %v879, %v888
        %v894 = vadd.f32 %v880, %v890
        %v895 = vld [vmem:[%s405] sm:$0xff]
        %v896 = vld [vmem:[%s405 + $0x8] sm:$0xff]
        %s897 = sld [smem:[#allocation2 + $0x30]]
        %v898 = vstv %s897
        %v899 = vmul.f32 %v898, %v895
        %v900 = vmul.f32 %v898, %v896
        %v901 = vadd.f32 %v893, %v899
        %v902 = vadd.f32 %v894, %v900
        %s903 = sld [smem:[#allocation2 + $0x31]]
        %v904 = vstv %s903
        %v905 = vmul.f32 %v904, %v895
        %v906 = vmul.f32 %v904, %v896
        %909 = vrot.lane.b32.xlu0 %v905, 127
        %v910 = vpop.permute.xlu0 %909
        %911 = vrot.lane.b32.xlu0 %v906, 127
        %v912 = vpop.permute.xlu0 %911
        %v915 = vadd.f32 %v901, %v910
        %v916 = vadd.f32 %v902, %v912
        %s917 = sld [smem:[#allocation2 + $0x32]]
        %v918 = vstv %s917
        %v919 = vmul.f32 %v918, %v895
        %v920 = vmul.f32 %v918, %v896
        %923 = vrot.lane.b32.xlu0 %v919, 126
        %v924 = vpop.permute.xlu0 %923
        %925 = vrot.lane.b32.xlu0 %v920, 126
        %v926 = vpop.permute.xlu0 %925
        %v929 = vadd.f32 %v915, %v924
        %v930 = vadd.f32 %v916, %v926
        %v931 = vld [vmem:[%s443] sm:$0xff]
        %v932 = vld [vmem:[%s443 + $0x8] sm:$0xff]
        %s933 = sld [smem:[#allocation2 + $0x33]]
        %v934 = vstv %s933
        %v935 = vmul.f32 %v934, %v931
        %v936 = vmul.f32 %v934, %v932
        %v937 = vadd.f32 %v929, %v935
        %v938 = vadd.f32 %v930, %v936
        %s939 = sld [smem:[#allocation2 + $0x34]]
        %v940 = vstv %s939
        %v941 = vmul.f32 %v940, %v931
        %v942 = vmul.f32 %v940, %v932
        %945 = vrot.lane.b32.xlu0 %v941, 127
        %v946 = vpop.permute.xlu0 %945
        %947 = vrot.lane.b32.xlu0 %v942, 127
        %v948 = vpop.permute.xlu0 %947
        %v951 = vadd.f32 %v937, %v946
        %v952 = vadd.f32 %v938, %v948
        %s953 = sld [smem:[#allocation2 + $0x35]]
        %v954 = vstv %s953
        %v955 = vmul.f32 %v954, %v931
        %v956 = vmul.f32 %v954, %v932
        %959 = vrot.lane.b32.xlu0 %v955, 126
        %v960 = vpop.permute.xlu0 %959
        %961 = vrot.lane.b32.xlu0 %v956, 126
        %v962 = vpop.permute.xlu0 %961
        %v965 = vadd.f32 %v951, %v960
        %v966 = vadd.f32 %v952, %v962
        %v967 = vld [vmem:[%s481] sm:$0xff]
        %v968 = vld [vmem:[%s481 + $0x8] sm:$0xff]
        %s969 = sld [smem:[#allocation2 + $0x36]]
        %v970 = vstv %s969
        %v971 = vmul.f32 %v970, %v967
        %v972 = vmul.f32 %v970, %v968
        %v973 = vadd.f32 %v965, %v971
        %v974 = vadd.f32 %v966, %v972
        %s975 = sld [smem:[#allocation2 + $0x37]]
        %v976 = vstv %s975
        %v977 = vmul.f32 %v976, %v967
        %v978 = vmul.f32 %v976, %v968
        %981 = vrot.lane.b32.xlu0 %v977, 127
        %v982 = vpop.permute.xlu0 %981
        %983 = vrot.lane.b32.xlu0 %v978, 127
        %v984 = vpop.permute.xlu0 %983
        %v987 = vadd.f32 %v973, %v982
        %v988 = vadd.f32 %v974, %v984
        %s989 = sld [smem:[#allocation2 + $0x38]]
        %v990 = vstv %s989
        %v991 = vmul.f32 %v990, %v967
        %v992 = vmul.f32 %v990, %v968
        %995 = vrot.lane.b32.xlu0 %v991, 126
        %v996 = vpop.permute.xlu0 %995
        %997 = vrot.lane.b32.xlu0 %v992, 126
        %v998 = vpop.permute.xlu0 %997
        %v1001 = vadd.f32 %v987, %v996
        %v1002 = vadd.f32 %v988, %v998
        %v1003 = vld [vmem:[%s519] sm:$0xff]
        %v1004 = vld [vmem:[%s519 + $0x8] sm:$0xff]
        %s1005 = sld [smem:[#allocation2 + $0x39]]
        %v1006 = vstv %s1005
        %v1007 = vmul.f32 %v1006, %v1003
        %v1008 = vmul.f32 %v1006, %v1004
        %v1009 = vadd.f32 %v1001, %v1007
        %v1010 = vadd.f32 %v1002, %v1008
        %s1011 = sld [smem:[#allocation2 + $0x3a]]
        %v1012 = vstv %s1011
        %v1013 = vmul.f32 %v1012, %v1003
        %v1014 = vmul.f32 %v1012, %v1004
        %1017 = vrot.lane.b32.xlu0 %v1013, 127
        %v1018 = vpop.permute.xlu0 %1017
        %1019 = vrot.lane.b32.xlu0 %v1014, 127
        %v1020 = vpop.permute.xlu0 %1019
        %v1023 = vadd.f32 %v1009, %v1018
        %v1024 = vadd.f32 %v1010, %v1020
        %s1025 = sld [smem:[#allocation2 + $0x3b]]
        %v1026 = vstv %s1025
        %v1027 = vmul.f32 %v1026, %v1003
        %v1028 = vmul.f32 %v1026, %v1004
        %1031 = vrot.lane.b32.xlu0 %v1027, 126
        %v1032 = vpop.permute.xlu0 %1031
        %1033 = vrot.lane.b32.xlu0 %v1028, 126
        %v1034 = vpop.permute.xlu0 %1033
        %v1037 = vadd.f32 %v1023, %v1032
        %v1038 = vadd.f32 %v1024, %v1034
        %v1039 = vld [vmem:[%s557] sm:$0xff]
        %v1040 = vld [vmem:[%s557 + $0x8] sm:$0xff]
        %s1041 = sld [smem:[#allocation2 + $0x3c]]
        %v1042 = vstv %s1041
        %v1043 = vmul.f32 %v1042, %v1039
        %v1044 = vmul.f32 %v1042, %v1040
        %v1045 = vadd.f32 %v1037, %v1043
        %v1046 = vadd.f32 %v1038, %v1044
        %s1047 = sld [smem:[#allocation2 + $0x3d]]
        %v1048 = vstv %s1047
        %v1049 = vmul.f32 %v1048, %v1039
        %v1050 = vmul.f32 %v1048, %v1040
        %1053 = vrot.lane.b32.xlu0 %v1049, 127
        %v1054 = vpop.permute.xlu0 %1053
        %1055 = vrot.lane.b32.xlu0 %v1050, 127
        %v1056 = vpop.permute.xlu0 %1055
        %v1059 = vadd.f32 %v1045, %v1054
        %v1060 = vadd.f32 %v1046, %v1056
        %s1061 = sld [smem:[#allocation2 + $0x3e]]
        %v1062 = vstv %s1061
        %v1063 = vmul.f32 %v1062, %v1039
        %v1064 = vmul.f32 %v1062, %v1040
        %1067 = vrot.lane.b32.xlu0 %v1063, 126
        %v1068 = vpop.permute.xlu0 %1067
        %1069 = vrot.lane.b32.xlu0 %v1064, 126
        %v1070 = vpop.permute.xlu0 %1069
        %v1073 = vadd.f32 %v1059, %v1068
        %v1074 = vadd.f32 %v1060, %v1070
        %v1075 = vld [vmem:[%s595] sm:$0xff]
        %v1076 = vld [vmem:[%s595 + $0x8] sm:$0xff]
        %s1077 = sld [smem:[#allocation2 + $0x3f]]
        %v1078 = vstv %s1077
        %v1079 = vmul.f32 %v1078, %v1075
        %v1080 = vmul.f32 %v1078, %v1076
        %v1081 = vadd.f32 %v1073, %v1079
        %v1082 = vadd.f32 %v1074, %v1080
        %s1083 = sld [smem:[#allocation2 + $0x40]]
        %v1084 = vstv %s1083
        %v1085 = vmul.f32 %v1084, %v1075
        %v1086 = vmul.f32 %v1084, %v1076
        %1089 = vrot.lane.b32.xlu0 %v1085, 127
        %v1090 = vpop.permute.xlu0 %1089
        %1091 = vrot.lane.b32.xlu0 %v1086, 127
        %v1092 = vpop.permute.xlu0 %1091
        %v1095 = vadd.f32 %v1081, %v1090
        %v1096 = vadd.f32 %v1082, %v1092
        %s1097 = sld [smem:[#allocation2 + $0x41]]
        %v1098 = vstv %s1097
        %v1099 = vmul.f32 %v1098, %v1075
        %v1100 = vmul.f32 %v1098, %v1076
        %1103 = vrot.lane.b32.xlu0 %v1099, 126
        %v1104 = vpop.permute.xlu0 %1103
        %1105 = vrot.lane.b32.xlu0 %v1100, 126
        %v1106 = vpop.permute.xlu0 %1105
        %v1109 = vadd.f32 %v1095, %v1104
        %v1110 = vadd.f32 %v1096, %v1106
        %v1111 = vld [vmem:[%s633] sm:$0xff]
        %v1112 = vld [vmem:[%s633 + $0x8] sm:$0xff]
        %s1113 = sld [smem:[#allocation2 + $0x42]]
        %v1114 = vstv %s1113
        %v1115 = vmul.f32 %v1114, %v1111
        %v1116 = vmul.f32 %v1114, %v1112
        %v1117 = vadd.f32 %v1109, %v1115
        %v1118 = vadd.f32 %v1110, %v1116
        %s1119 = sld [smem:[#allocation2 + $0x43]]
        %v1120 = vstv %s1119
        %v1121 = vmul.f32 %v1120, %v1111
        %v1122 = vmul.f32 %v1120, %v1112
        %1125 = vrot.lane.b32.xlu0 %v1121, 127
        %v1126 = vpop.permute.xlu0 %1125
        %1127 = vrot.lane.b32.xlu0 %v1122, 127
        %v1128 = vpop.permute.xlu0 %1127
        %v1131 = vadd.f32 %v1117, %v1126
        %v1132 = vadd.f32 %v1118, %v1128
        %s1133 = sld [smem:[#allocation2 + $0x44]]
        %v1134 = vstv %s1133
        %v1135 = vmul.f32 %v1134, %v1111
        %v1136 = vmul.f32 %v1134, %v1112
        %1139 = vrot.lane.b32.xlu0 %v1135, 126
        %v1140 = vpop.permute.xlu0 %1139
        %1141 = vrot.lane.b32.xlu0 %v1136, 126
        %v1142 = vpop.permute.xlu0 %1141
        %v1145 = vadd.f32 %v1131, %v1140
        %v1146 = vadd.f32 %v1132, %v1142
        %v1147 = vld [vmem:[%s671] sm:$0xff]
        %v1148 = vld [vmem:[%s671 + $0x8] sm:$0xff]
        %s1149 = sld [smem:[#allocation2 + $0x45]]
        %v1150 = vstv %s1149
        %v1151 = vmul.f32 %v1150, %v1147
        %v1152 = vmul.f32 %v1150, %v1148
        %v1153 = vadd.f32 %v1145, %v1151
        %v1154 = vadd.f32 %v1146, %v1152
        %s1155 = sld [smem:[#allocation2 + $0x46]]
        %v1156 = vstv %s1155
        %v1157 = vmul.f32 %v1156, %v1147
        %v1158 = vmul.f32 %v1156, %v1148
        %1161 = vrot.lane.b32.xlu0 %v1157, 127
        %v1162 = vpop.permute.xlu0 %1161
        %1163 = vrot.lane.b32.xlu0 %v1158, 127
        %v1164 = vpop.permute.xlu0 %1163
        %v1167 = vadd.f32 %v1153, %v1162
        %v1168 = vadd.f32 %v1154, %v1164
        %s1169 = sld [smem:[#allocation2 + $0x47]]
        %v1170 = vstv %s1169
        %v1171 = vmul.f32 %v1170, %v1147
        %v1172 = vmul.f32 %v1170, %v1148
        %1175 = vrot.lane.b32.xlu0 %v1171, 126
        %v1176 = vpop.permute.xlu0 %1175
        %1177 = vrot.lane.b32.xlu0 %v1172, 126
        %v1178 = vpop.permute.xlu0 %1177
        %v1181 = vadd.f32 %v1167, %v1176
        %v1182 = vadd.f32 %v1168, %v1178
        %s1183 = sld [smem:[#allocation5 + $0x1]]
        %v1184 = vstv %s1183
        %v1185 = vadd.f32 %v1181, %v1184
        %v1186 = vadd.f32 %v1182, %v1184
        %v1187 = vsub.f32 %v1185, 2.0
        %v1188 = vsub.f32 %v1186, 2.0
        %v1189 = vmul.f32 %v1187, %v1187
        %v1190 = vmul.f32 %v1188, %v1188
        %v1191 = vmul.f32 %v1189, -1.0
        %v1192 = vmul.f32 %v1190, -1.0
        %v1193 = vmul.f32 %v1191, 1.442695
        %v1194 = vpow.pop %v1193
        %v1195 = vmul.f32 %v1192, 1.442695
        %v1196 = vpow.pop %v1195
        %vm1197 = vcmp.lt.f32.partialorder %v1185, 2.0
        %vm1198 = vcmp.lt.f32.partialorder %v1186, 2.0
        %v1199 = vmul.f32 %v1194, 1.1
        %v1200 = vmul.f32 %v1196, 1.1
        %v1201 = vmul.f32 %v1194, 0.1
        %v1202 = vmul.f32 %v1196, 0.1
        %v1203 = vadd.f32 %v1201, 1.0
        %v1204 = vadd.f32 %v1202, 1.0
        %v1205 = vsel %vm1197, %v1199, %v1203
        %v1206 = vsel %vm1198, %v1200, %v1204
        %v1207 = vmax.f32 %v1185, 0.0
        %v1208 = vmax.f32 %v1186, 0.0
        %v1209 = vadd.f32 %v1207, 1e-06
        %v1210 = vadd.f32 %v1208, 1e-06
        %v1211 = vlog2.pop %v1209
        %v1212 = vmul.f32 %v1211, 0.6931472
        %v1213 = vlog2.pop %v1210
        %v1214 = vmul.f32 %v1213, 0.6931472
        %v1215 = vmul.f32 %v1212, 0.8
        %v1216 = vmul.f32 %v1214, 0.8
        %v1217 = vmul.f32 %v1215, 1.442695
        %v1218 = vpow.pop %v1217
        %v1219 = vmul.f32 %v1216, 1.442695
        %v1220 = vpow.pop %v1219
        %s1221 = scalar_lea.vmem %s237, 16 [#allocation7]
        %1222 = vst.msk [vmem:[%s1221] sm:$0xff] %vm746, %v1218
        %1223 = vst.msk [vmem:[%s1221 + $0x8] sm:$0xff] %vm746, %v1220
        %s1224 = scalar_lea.vmem %s244, 16 [#allocation8]
        %1225 = vst.msk [vmem:[%s1224] sm:$0xff] %vm746, %v1205
        %1226 = vst.msk [vmem:[%s1224 + $0x8] sm:$0xff] %vm746, %v1206
        %v1227 = vld [vmem:[%s253] sm:$0xff]
        %v1228 = vld [vmem:[%s253 + $0x8] sm:$0xff]
        %s1229 = sld [smem:[#allocation2 + $0x48]]
        %v1230 = vstv %s1229
        %v1231 = vmul.f32 %v1230, %v1227
        %v1232 = vmul.f32 %v1230, %v1228
        %v1233 = vadd.f32 %v1231, 0.0
        %v1234 = vadd.f32 %v1232, 0.0
        %s1235 = sld [smem:[#allocation2 + $0x49]]
        %v1236 = vstv %s1235
        %v1237 = vmul.f32 %v1236, %v1227
        %v1238 = vmul.f32 %v1236, %v1228
        %1241 = vrot.lane.b32.xlu0 %v1237, 127
        %v1242 = vpop.permute.xlu0 %1241
        %1243 = vrot.lane.b32.xlu0 %v1238, 127
        %v1244 = vpop.permute.xlu0 %1243
        %v1247 = vadd.f32 %v1233, %v1242
        %v1248 = vadd.f32 %v1234, %v1244
        %s1249 = sld [smem:[#allocation2 + $0x4a]]
        %v1250 = vstv %s1249
        %v1251 = vmul.f32 %v1250, %v1227
        %v1252 = vmul.f32 %v1250, %v1228
        %1255 = vrot.lane.b32.xlu0 %v1251, 126
        %v1256 = vpop.permute.xlu0 %1255
        %1257 = vrot.lane.b32.xlu0 %v1252, 126
        %v1258 = vpop.permute.xlu0 %1257
        %v1261 = vadd.f32 %v1247, %v1256
        %v1262 = vadd.f32 %v1248, %v1258
        %v1263 = vld [vmem:[%s291] sm:$0xff]
        %v1264 = vld [vmem:[%s291 + $0x8] sm:$0xff]
        %s1265 = sld [smem:[#allocation2 + $0x4b]]
        %v1266 = vstv %s1265
        %v1267 = vmul.f32 %v1266, %v1263
        %v1268 = vmul.f32 %v1266, %v1264
        %v1269 = vadd.f32 %v1261, %v1267
        %v1270 = vadd.f32 %v1262, %v1268
        %s1271 = sld [smem:[#allocation2 + $0x4c]]
        %v1272 = vstv %s1271
        %v1273 = vmul.f32 %v1272, %v1263
        %v1274 = vmul.f32 %v1272, %v1264
        %1277 = vrot.lane.b32.xlu0 %v1273, 127
        %v1278 = vpop.permute.xlu0 %1277
        %1279 = vrot.lane.b32.xlu0 %v1274, 127
        %v1280 = vpop.permute.xlu0 %1279
        %v1283 = vadd.f32 %v1269, %v1278
        %v1284 = vadd.f32 %v1270, %v1280
        %s1285 = sld [smem:[#allocation2 + $0x4d]]
        %v1286 = vstv %s1285
        %v1287 = vmul.f32 %v1286, %v1263
        %v1288 = vmul.f32 %v1286, %v1264
        %1291 = vrot.lane.b32.xlu0 %v1287, 126
        %v1292 = vpop.permute.xlu0 %1291
        %1293 = vrot.lane.b32.xlu0 %v1288, 126
        %v1294 = vpop.permute.xlu0 %1293
        %v1297 = vadd.f32 %v1283, %v1292
        %v1298 = vadd.f32 %v1284, %v1294
        %v1299 = vld [vmem:[%s329] sm:$0xff]
        %v1300 = vld [vmem:[%s329 + $0x8] sm:$0xff]
        %s1301 = sld [smem:[#allocation2 + $0x4e]]
        %v1302 = vstv %s1301
        %v1303 = vmul.f32 %v1302, %v1299
        %v1304 = vmul.f32 %v1302, %v1300
        %v1305 = vadd.f32 %v1297, %v1303
        %v1306 = vadd.f32 %v1298, %v1304
        %s1307 = sld [smem:[#allocation2 + $0x4f]]
        %v1308 = vstv %s1307
        %v1309 = vmul.f32 %v1308, %v1299
        %v1310 = vmul.f32 %v1308, %v1300
        %1313 = vrot.lane.b32.xlu0 %v1309, 127
        %v1314 = vpop.permute.xlu0 %1313
        %1315 = vrot.lane.b32.xlu0 %v1310, 127
        %v1316 = vpop.permute.xlu0 %1315
        %v1319 = vadd.f32 %v1305, %v1314
        %v1320 = vadd.f32 %v1306, %v1316
        %s1321 = sld [smem:[#allocation2 + $0x50]]
        %v1322 = vstv %s1321
        %v1323 = vmul.f32 %v1322, %v1299
        %v1324 = vmul.f32 %v1322, %v1300
        %1327 = vrot.lane.b32.xlu0 %v1323, 126
        %v1328 = vpop.permute.xlu0 %1327
        %1329 = vrot.lane.b32.xlu0 %v1324, 126
        %v1330 = vpop.permute.xlu0 %1329
        %v1333 = vadd.f32 %v1319, %v1328
        %v1334 = vadd.f32 %v1320, %v1330
        %v1335 = vld [vmem:[%s367] sm:$0xff]
        %v1336 = vld [vmem:[%s367 + $0x8] sm:$0xff]
        %s1337 = sld [smem:[#allocation2 + $0x51]]
        %v1338 = vstv %s1337
        %v1339 = vmul.f32 %v1338, %v1335
        %v1340 = vmul.f32 %v1338, %v1336
        %v1341 = vadd.f32 %v1333, %v1339
        %v1342 = vadd.f32 %v1334, %v1340
        %s1343 = sld [smem:[#allocation2 + $0x52]]
        %v1344 = vstv %s1343
        %v1345 = vmul.f32 %v1344, %v1335
        %v1346 = vmul.f32 %v1344, %v1336
        %1349 = vrot.lane.b32.xlu0 %v1345, 127
        %v1350 = vpop.permute.xlu0 %1349
        %1351 = vrot.lane.b32.xlu0 %v1346, 127
        %v1352 = vpop.permute.xlu0 %1351
        %v1355 = vadd.f32 %v1341, %v1350
        %v1356 = vadd.f32 %v1342, %v1352
        %s1357 = sld [smem:[#allocation2 + $0x53]]
        %v1358 = vstv %s1357
        %v1359 = vmul.f32 %v1358, %v1335
        %v1360 = vmul.f32 %v1358, %v1336
        %1363 = vrot.lane.b32.xlu0 %v1359, 126
        %v1364 = vpop.permute.xlu0 %1363
        %1365 = vrot.lane.b32.xlu0 %v1360, 126
        %v1366 = vpop.permute.xlu0 %1365
        %v1369 = vadd.f32 %v1355, %v1364
        %v1370 = vadd.f32 %v1356, %v1366
        %v1371 = vld [vmem:[%s405] sm:$0xff]
        %v1372 = vld [vmem:[%s405 + $0x8] sm:$0xff]
        %s1373 = sld [smem:[#allocation2 + $0x54]]
        %v1374 = vstv %s1373
        %v1375 = vmul.f32 %v1374, %v1371
        %v1376 = vmul.f32 %v1374, %v1372
        %v1377 = vadd.f32 %v1369, %v1375
        %v1378 = vadd.f32 %v1370, %v1376
        %s1379 = sld [smem:[#allocation2 + $0x55]]
        %v1380 = vstv %s1379
        %v1381 = vmul.f32 %v1380, %v1371
        %v1382 = vmul.f32 %v1380, %v1372
        %1385 = vrot.lane.b32.xlu0 %v1381, 127
        %v1386 = vpop.permute.xlu0 %1385
        %1387 = vrot.lane.b32.xlu0 %v1382, 127
        %v1388 = vpop.permute.xlu0 %1387
        %v1391 = vadd.f32 %v1377, %v1386
        %v1392 = vadd.f32 %v1378, %v1388
        %s1393 = sld [smem:[#allocation2 + $0x56]]
        %v1394 = vstv %s1393
        %v1395 = vmul.f32 %v1394, %v1371
        %v1396 = vmul.f32 %v1394, %v1372
        %1399 = vrot.lane.b32.xlu0 %v1395, 126
        %v1400 = vpop.permute.xlu0 %1399
        %1401 = vrot.lane.b32.xlu0 %v1396, 126
        %v1402 = vpop.permute.xlu0 %1401
        %v1405 = vadd.f32 %v1391, %v1400
        %v1406 = vadd.f32 %v1392, %v1402
        %v1407 = vld [vmem:[%s443] sm:$0xff]
        %v1408 = vld [vmem:[%s443 + $0x8] sm:$0xff]
        %s1409 = sld [smem:[#allocation2 + $0x57]]
        %v1410 = vstv %s1409
        %v1411 = vmul.f32 %v1410, %v1407
        %v1412 = vmul.f32 %v1410, %v1408
        %v1413 = vadd.f32 %v1405, %v1411
        %v1414 = vadd.f32 %v1406, %v1412
        %s1415 = sld [smem:[#allocation2 + $0x58]]
        %v1416 = vstv %s1415
        %v1417 = vmul.f32 %v1416, %v1407
        %v1418 = vmul.f32 %v1416, %v1408
        %1421 = vrot.lane.b32.xlu0 %v1417, 127
        %v1422 = vpop.permute.xlu0 %1421
        %1423 = vrot.lane.b32.xlu0 %v1418, 127
        %v1424 = vpop.permute.xlu0 %1423
        %v1427 = vadd.f32 %v1413, %v1422
        %v1428 = vadd.f32 %v1414, %v1424
        %s1429 = sld [smem:[#allocation2 + $0x59]]
        %v1430 = vstv %s1429
        %v1431 = vmul.f32 %v1430, %v1407
        %v1432 = vmul.f32 %v1430, %v1408
        %1435 = vrot.lane.b32.xlu0 %v1431, 126
        %v1436 = vpop.permute.xlu0 %1435
        %1437 = vrot.lane.b32.xlu0 %v1432, 126
        %v1438 = vpop.permute.xlu0 %1437
        %v1441 = vadd.f32 %v1427, %v1436
        %v1442 = vadd.f32 %v1428, %v1438
        %v1443 = vld [vmem:[%s481] sm:$0xff]
        %v1444 = vld [vmem:[%s481 + $0x8] sm:$0xff]
        %s1445 = sld [smem:[#allocation2 + $0x5a]]
        %v1446 = vstv %s1445
        %v1447 = vmul.f32 %v1446, %v1443
        %v1448 = vmul.f32 %v1446, %v1444
        %v1449 = vadd.f32 %v1441, %v1447
        %v1450 = vadd.f32 %v1442, %v1448
        %s1451 = sld [smem:[#allocation2 + $0x5b]]
        %v1452 = vstv %s1451
        %v1453 = vmul.f32 %v1452, %v1443
        %v1454 = vmul.f32 %v1452, %v1444
        %1457 = vrot.lane.b32.xlu0 %v1453, 127
        %v1458 = vpop.permute.xlu0 %1457
        %1459 = vrot.lane.b32.xlu0 %v1454, 127
        %v1460 = vpop.permute.xlu0 %1459
        %v1463 = vadd.f32 %v1449, %v1458
        %v1464 = vadd.f32 %v1450, %v1460
        %s1465 = sld [smem:[#allocation2 + $0x5c]]
        %v1466 = vstv %s1465
        %v1467 = vmul.f32 %v1466, %v1443
        %v1468 = vmul.f32 %v1466, %v1444
        %1471 = vrot.lane.b32.xlu0 %v1467, 126
        %v1472 = vpop.permute.xlu0 %1471
        %1473 = vrot.lane.b32.xlu0 %v1468, 126
        %v1474 = vpop.permute.xlu0 %1473
        %v1477 = vadd.f32 %v1463, %v1472
        %v1478 = vadd.f32 %v1464, %v1474
        %v1479 = vld [vmem:[%s519] sm:$0xff]
        %v1480 = vld [vmem:[%s519 + $0x8] sm:$0xff]
        %s1481 = sld [smem:[#allocation2 + $0x5d]]
        %v1482 = vstv %s1481
        %v1483 = vmul.f32 %v1482, %v1479
        %v1484 = vmul.f32 %v1482, %v1480
        %v1485 = vadd.f32 %v1477, %v1483
        %v1486 = vadd.f32 %v1478, %v1484
        %s1487 = sld [smem:[#allocation2 + $0x5e]]
        %v1488 = vstv %s1487
        %v1489 = vmul.f32 %v1488, %v1479
        %v1490 = vmul.f32 %v1488, %v1480
        %1493 = vrot.lane.b32.xlu0 %v1489, 127
        %v1494 = vpop.permute.xlu0 %1493
        %1495 = vrot.lane.b32.xlu0 %v1490, 127
        %v1496 = vpop.permute.xlu0 %1495
        %v1499 = vadd.f32 %v1485, %v1494
        %v1500 = vadd.f32 %v1486, %v1496
        %s1501 = sld [smem:[#allocation2 + $0x5f]]
        %v1502 = vstv %s1501
        %v1503 = vmul.f32 %v1502, %v1479
        %v1504 = vmul.f32 %v1502, %v1480
        %1507 = vrot.lane.b32.xlu0 %v1503, 126
        %v1508 = vpop.permute.xlu0 %1507
        %1509 = vrot.lane.b32.xlu0 %v1504, 126
        %v1510 = vpop.permute.xlu0 %1509
        %v1513 = vadd.f32 %v1499, %v1508
        %v1514 = vadd.f32 %v1500, %v1510
        %v1515 = vld [vmem:[%s557] sm:$0xff]
        %v1516 = vld [vmem:[%s557 + $0x8] sm:$0xff]
        %s1517 = sld [smem:[#allocation2 + $0x60]]
        %v1518 = vstv %s1517
        %v1519 = vmul.f32 %v1518, %v1515
        %v1520 = vmul.f32 %v1518, %v1516
        %v1521 = vadd.f32 %v1513, %v1519
        %v1522 = vadd.f32 %v1514, %v1520
        %s1523 = sld [smem:[#allocation2 + $0x61]]
        %v1524 = vstv %s1523
        %v1525 = vmul.f32 %v1524, %v1515
        %v1526 = vmul.f32 %v1524, %v1516
        %1529 = vrot.lane.b32.xlu0 %v1525, 127
        %v1530 = vpop.permute.xlu0 %1529
        %1531 = vrot.lane.b32.xlu0 %v1526, 127
        %v1532 = vpop.permute.xlu0 %1531
        %v1535 = vadd.f32 %v1521, %v1530
        %v1536 = vadd.f32 %v1522, %v1532
        %s1537 = sld [smem:[#allocation2 + $0x62]]
        %v1538 = vstv %s1537
        %v1539 = vmul.f32 %v1538, %v1515
        %v1540 = vmul.f32 %v1538, %v1516
        %1543 = vrot.lane.b32.xlu0 %v1539, 126
        %v1544 = vpop.permute.xlu0 %1543
        %1545 = vrot.lane.b32.xlu0 %v1540, 126
        %v1546 = vpop.permute.xlu0 %1545
        %v1549 = vadd.f32 %v1535, %v1544
        %v1550 = vadd.f32 %v1536, %v1546
        %v1551 = vld [vmem:[%s595] sm:$0xff]
        %v1552 = vld [vmem:[%s595 + $0x8] sm:$0xff]
        %s1553 = sld [smem:[#allocation2 + $0x63]]
        %v1554 = vstv %s1553
        %v1555 = vmul.f32 %v1554, %v1551
        %v1556 = vmul.f32 %v1554, %v1552
        %v1557 = vadd.f32 %v1549, %v1555
        %v1558 = vadd.f32 %v1550, %v1556
        %s1559 = sld [smem:[#allocation2 + $0x64]]
        %v1560 = vstv %s1559
        %v1561 = vmul.f32 %v1560, %v1551
        %v1562 = vmul.f32 %v1560, %v1552
        %1565 = vrot.lane.b32.xlu0 %v1561, 127
        %v1566 = vpop.permute.xlu0 %1565
        %1567 = vrot.lane.b32.xlu0 %v1562, 127
        %v1568 = vpop.permute.xlu0 %1567
        %v1571 = vadd.f32 %v1557, %v1566
        %v1572 = vadd.f32 %v1558, %v1568
        %s1573 = sld [smem:[#allocation2 + $0x65]]
        %v1574 = vstv %s1573
        %v1575 = vmul.f32 %v1574, %v1551
        %v1576 = vmul.f32 %v1574, %v1552
        %1579 = vrot.lane.b32.xlu0 %v1575, 126
        %v1580 = vpop.permute.xlu0 %1579
        %1581 = vrot.lane.b32.xlu0 %v1576, 126
        %v1582 = vpop.permute.xlu0 %1581
        %v1585 = vadd.f32 %v1571, %v1580
        %v1586 = vadd.f32 %v1572, %v1582
        %v1587 = vld [vmem:[%s633] sm:$0xff]
        %v1588 = vld [vmem:[%s633 + $0x8] sm:$0xff]
        %s1589 = sld [smem:[#allocation2 + $0x66]]
        %v1590 = vstv %s1589
        %v1591 = vmul.f32 %v1590, %v1587
        %v1592 = vmul.f32 %v1590, %v1588
        %v1593 = vadd.f32 %v1585, %v1591
        %v1594 = vadd.f32 %v1586, %v1592
        %s1595 = sld [smem:[#allocation2 + $0x67]]
        %v1596 = vstv %s1595
        %v1597 = vmul.f32 %v1596, %v1587
        %v1598 = vmul.f32 %v1596, %v1588
        %1601 = vrot.lane.b32.xlu0 %v1597, 127
        %v1602 = vpop.permute.xlu0 %1601
        %1603 = vrot.lane.b32.xlu0 %v1598, 127
        %v1604 = vpop.permute.xlu0 %1603
        %v1607 = vadd.f32 %v1593, %v1602
        %v1608 = vadd.f32 %v1594, %v1604
        %s1609 = sld [smem:[#allocation2 + $0x68]]
        %v1610 = vstv %s1609
        %v1611 = vmul.f32 %v1610, %v1587
        %v1612 = vmul.f32 %v1610, %v1588
        %1615 = vrot.lane.b32.xlu0 %v1611, 126
        %v1616 = vpop.permute.xlu0 %1615
        %1617 = vrot.lane.b32.xlu0 %v1612, 126
        %v1618 = vpop.permute.xlu0 %1617
        %v1621 = vadd.f32 %v1607, %v1616
        %v1622 = vadd.f32 %v1608, %v1618
        %v1623 = vld [vmem:[%s671] sm:$0xff]
        %v1624 = vld [vmem:[%s671 + $0x8] sm:$0xff]
        %s1625 = sld [smem:[#allocation2 + $0x69]]
        %v1626 = vstv %s1625
        %v1627 = vmul.f32 %v1626, %v1623
        %v1628 = vmul.f32 %v1626, %v1624
        %v1629 = vadd.f32 %v1621, %v1627
        %v1630 = vadd.f32 %v1622, %v1628
        %s1631 = sld [smem:[#allocation2 + $0x6a]]
        %v1632 = vstv %s1631
        %v1633 = vmul.f32 %v1632, %v1623
        %v1634 = vmul.f32 %v1632, %v1624
        %1637 = vrot.lane.b32.xlu0 %v1633, 127
        %v1638 = vpop.permute.xlu0 %1637
        %1639 = vrot.lane.b32.xlu0 %v1634, 127
        %v1640 = vpop.permute.xlu0 %1639
        %v1643 = vadd.f32 %v1629, %v1638
        %v1644 = vadd.f32 %v1630, %v1640
        %s1645 = sld [smem:[#allocation2 + $0x6b]]
        %v1646 = vstv %s1645
        %v1647 = vmul.f32 %v1646, %v1623
        %v1648 = vmul.f32 %v1646, %v1624
        %1651 = vrot.lane.b32.xlu0 %v1647, 126
        %v1652 = vpop.permute.xlu0 %1651
        %1653 = vrot.lane.b32.xlu0 %v1648, 126
        %v1654 = vpop.permute.xlu0 %1653
        %v1657 = vadd.f32 %v1643, %v1652
        %v1658 = vadd.f32 %v1644, %v1654
        %s1659 = sld [smem:[#allocation5 + $0x2]]
        %v1660 = vstv %s1659
        %v1661 = vadd.f32 %v1657, %v1660
        %v1662 = vadd.f32 %v1658, %v1660
        %v1663 = vsub.f32 %v1661, 2.0
        %v1664 = vsub.f32 %v1662, 2.0
        %v1665 = vmul.f32 %v1663, %v1663
        %v1666 = vmul.f32 %v1664, %v1664
        %v1667 = vmul.f32 %v1665, -1.0
        %v1668 = vmul.f32 %v1666, -1.0
        %v1669 = vmul.f32 %v1667, 1.442695
        %v1670 = vpow.pop %v1669
        %v1671 = vmul.f32 %v1668, 1.442695
        %v1672 = vpow.pop %v1671
        %vm1673 = vcmp.lt.f32.partialorder %v1661, 2.0
        %vm1674 = vcmp.lt.f32.partialorder %v1662, 2.0
        %v1675 = vmul.f32 %v1670, 1.1
        %v1676 = vmul.f32 %v1672, 1.1
        %v1677 = vmul.f32 %v1670, 0.1
        %v1678 = vmul.f32 %v1672, 0.1
        %v1679 = vadd.f32 %v1677, 1.0
        %v1680 = vadd.f32 %v1678, 1.0
        %v1681 = vsel %vm1673, %v1675, %v1679
        %v1682 = vsel %vm1674, %v1676, %v1680
        %v1683 = vmax.f32 %v1661, 0.0
        %v1684 = vmax.f32 %v1662, 0.0
        %v1685 = vadd.f32 %v1683, 1e-06
        %v1686 = vadd.f32 %v1684, 1e-06
        %v1687 = vlog2.pop %v1685
        %v1688 = vmul.f32 %v1687, 0.6931472
        %v1689 = vlog2.pop %v1686
        %v1690 = vmul.f32 %v1689, 0.6931472
        %v1691 = vmul.f32 %v1688, 0.8
        %v1692 = vmul.f32 %v1690, 0.8
        %v1693 = vmul.f32 %v1691, 1.442695
        %v1694 = vpow.pop %v1693
        %v1695 = vmul.f32 %v1692, 1.442695
        %v1696 = vpow.pop %v1695
        %s1697 = scalar_lea.vmem %s237, 32 [#allocation7]
        %1698 = vst.msk [vmem:[%s1697] sm:$0xff] %vm746, %v1694
        %1699 = vst.msk [vmem:[%s1697 + $0x8] sm:$0xff] %vm746, %v1696
        %s1700 = scalar_lea.vmem %s244, 32 [#allocation8]
        %1701 = vst.msk [vmem:[%s1700] sm:$0xff] %vm746, %v1681
        %1702 = vst.msk [vmem:[%s1700 + $0x8] sm:$0xff] %vm746, %v1682
        %v1703 = vld [vmem:[%s253] sm:$0xff]
        %v1704 = vld [vmem:[%s253 + $0x8] sm:$0xff]
        %s1705 = sld [smem:[#allocation2 + $0x6c]]
        %v1706 = vstv %s1705
        %v1707 = vmul.f32 %v1706, %v1703
        %v1708 = vmul.f32 %v1706, %v1704
        %v1709 = vadd.f32 %v1707, 0.0
        %v1710 = vadd.f32 %v1708, 0.0
        %s1711 = sld [smem:[#allocation2 + $0x6d]]
        %v1712 = vstv %s1711
        %v1713 = vmul.f32 %v1712, %v1703
        %v1714 = vmul.f32 %v1712, %v1704
        %1717 = vrot.lane.b32.xlu0 %v1713, 127
        %v1718 = vpop.permute.xlu0 %1717
        %1719 = vrot.lane.b32.xlu0 %v1714, 127
        %v1720 = vpop.permute.xlu0 %1719
        %v1723 = vadd.f32 %v1709, %v1718
        %v1724 = vadd.f32 %v1710, %v1720
        %s1725 = sld [smem:[#allocation2 + $0x6e]]
        %v1726 = vstv %s1725
        %v1727 = vmul.f32 %v1726, %v1703
        %v1728 = vmul.f32 %v1726, %v1704
        %1731 = vrot.lane.b32.xlu0 %v1727, 126
        %v1732 = vpop.permute.xlu0 %1731
        %1733 = vrot.lane.b32.xlu0 %v1728, 126
        %v1734 = vpop.permute.xlu0 %1733
        %v1737 = vadd.f32 %v1723, %v1732
        %v1738 = vadd.f32 %v1724, %v1734
        %v1739 = vld [vmem:[%s291] sm:$0xff]
        %v1740 = vld [vmem:[%s291 + $0x8] sm:$0xff]
        %s1741 = sld [smem:[#allocation2 + $0x6f]]
        %v1742 = vstv %s1741
        %v1743 = vmul.f32 %v1742, %v1739
        %v1744 = vmul.f32 %v1742, %v1740
        %v1745 = vadd.f32 %v1737, %v1743
        %v1746 = vadd.f32 %v1738, %v1744
        %s1747 = sld [smem:[#allocation2 + $0x70]]
        %v1748 = vstv %s1747
        %v1749 = vmul.f32 %v1748, %v1739
        %v1750 = vmul.f32 %v1748, %v1740
        %1753 = vrot.lane.b32.xlu0 %v1749, 127
        %v1754 = vpop.permute.xlu0 %1753
        %1755 = vrot.lane.b32.xlu0 %v1750, 127
        %v1756 = vpop.permute.xlu0 %1755
        %v1759 = vadd.f32 %v1745, %v1754
        %v1760 = vadd.f32 %v1746, %v1756
        %s1761 = sld [smem:[#allocation2 + $0x71]]
        %v1762 = vstv %s1761
        %v1763 = vmul.f32 %v1762, %v1739
        %v1764 = vmul.f32 %v1762, %v1740
        %1767 = vrot.lane.b32.xlu0 %v1763, 126
        %v1768 = vpop.permute.xlu0 %1767
        %1769 = vrot.lane.b32.xlu0 %v1764, 126
        %v1770 = vpop.permute.xlu0 %1769
        %v1773 = vadd.f32 %v1759, %v1768
        %v1774 = vadd.f32 %v1760, %v1770
        %v1775 = vld [vmem:[%s329] sm:$0xff]
        %v1776 = vld [vmem:[%s329 + $0x8] sm:$0xff]
        %s1777 = sld [smem:[#allocation2 + $0x72]]
        %v1778 = vstv %s1777
        %v1779 = vmul.f32 %v1778, %v1775
        %v1780 = vmul.f32 %v1778, %v1776
        %v1781 = vadd.f32 %v1773, %v1779
        %v1782 = vadd.f32 %v1774, %v1780
        %s1783 = sld [smem:[#allocation2 + $0x73]]
        %v1784 = vstv %s1783
        %v1785 = vmul.f32 %v1784, %v1775
        %v1786 = vmul.f32 %v1784, %v1776
        %1789 = vrot.lane.b32.xlu0 %v1785, 127
        %v1790 = vpop.permute.xlu0 %1789
        %1791 = vrot.lane.b32.xlu0 %v1786, 127
        %v1792 = vpop.permute.xlu0 %1791
        %v1795 = vadd.f32 %v1781, %v1790
        %v1796 = vadd.f32 %v1782, %v1792
        %s1797 = sld [smem:[#allocation2 + $0x74]]
        %v1798 = vstv %s1797
        %v1799 = vmul.f32 %v1798, %v1775
        %v1800 = vmul.f32 %v1798, %v1776
        %1803 = vrot.lane.b32.xlu0 %v1799, 126
        %v1804 = vpop.permute.xlu0 %1803
        %1805 = vrot.lane.b32.xlu0 %v1800, 126
        %v1806 = vpop.permute.xlu0 %1805
        %v1809 = vadd.f32 %v1795, %v1804
        %v1810 = vadd.f32 %v1796, %v1806
        %v1811 = vld [vmem:[%s367] sm:$0xff]
        %v1812 = vld [vmem:[%s367 + $0x8] sm:$0xff]
        %s1813 = sld [smem:[#allocation2 + $0x75]]
        %v1814 = vstv %s1813
        %v1815 = vmul.f32 %v1814, %v1811
        %v1816 = vmul.f32 %v1814, %v1812
        %v1817 = vadd.f32 %v1809, %v1815
        %v1818 = vadd.f32 %v1810, %v1816
        %s1819 = sld [smem:[#allocation2 + $0x76]]
        %v1820 = vstv %s1819
        %v1821 = vmul.f32 %v1820, %v1811
        %v1822 = vmul.f32 %v1820, %v1812
        %1825 = vrot.lane.b32.xlu0 %v1821, 127
        %v1826 = vpop.permute.xlu0 %1825
        %1827 = vrot.lane.b32.xlu0 %v1822, 127
        %v1828 = vpop.permute.xlu0 %1827
        %v1831 = vadd.f32 %v1817, %v1826
        %v1832 = vadd.f32 %v1818, %v1828
        %s1833 = sld [smem:[#allocation2 + $0x77]]
        %v1834 = vstv %s1833
        %v1835 = vmul.f32 %v1834, %v1811
        %v1836 = vmul.f32 %v1834, %v1812
        %1839 = vrot.lane.b32.xlu0 %v1835, 126
        %v1840 = vpop.permute.xlu0 %1839
        %1841 = vrot.lane.b32.xlu0 %v1836, 126
        %v1842 = vpop.permute.xlu0 %1841
        %v1845 = vadd.f32 %v1831, %v1840
        %v1846 = vadd.f32 %v1832, %v1842
        %v1847 = vld [vmem:[%s405] sm:$0xff]
        %v1848 = vld [vmem:[%s405 + $0x8] sm:$0xff]
        %s1849 = sld [smem:[#allocation2 + $0x78]]
        %v1850 = vstv %s1849
        %v1851 = vmul.f32 %v1850, %v1847
        %v1852 = vmul.f32 %v1850, %v1848
        %v1853 = vadd.f32 %v1845, %v1851
        %v1854 = vadd.f32 %v1846, %v1852
        %s1855 = sld [smem:[#allocation2 + $0x79]]
        %v1856 = vstv %s1855
        %v1857 = vmul.f32 %v1856, %v1847
        %v1858 = vmul.f32 %v1856, %v1848
        %1861 = vrot.lane.b32.xlu0 %v1857, 127
        %v1862 = vpop.permute.xlu0 %1861
        %1863 = vrot.lane.b32.xlu0 %v1858, 127
        %v1864 = vpop.permute.xlu0 %1863
        %v1867 = vadd.f32 %v1853, %v1862
        %v1868 = vadd.f32 %v1854, %v1864
        %s1869 = sld [smem:[#allocation2 + $0x7a]]
        %v1870 = vstv %s1869
        %v1871 = vmul.f32 %v1870, %v1847
        %v1872 = vmul.f32 %v1870, %v1848
        %1875 = vrot.lane.b32.xlu0 %v1871, 126
        %v1876 = vpop.permute.xlu0 %1875
        %1877 = vrot.lane.b32.xlu0 %v1872, 126
        %v1878 = vpop.permute.xlu0 %1877
        %v1881 = vadd.f32 %v1867, %v1876
        %v1882 = vadd.f32 %v1868, %v1878
        %v1883 = vld [vmem:[%s443] sm:$0xff]
        %v1884 = vld [vmem:[%s443 + $0x8] sm:$0xff]
        %s1885 = sld [smem:[#allocation2 + $0x7b]]
        %v1886 = vstv %s1885
        %v1887 = vmul.f32 %v1886, %v1883
        %v1888 = vmul.f32 %v1886, %v1884
        %v1889 = vadd.f32 %v1881, %v1887
        %v1890 = vadd.f32 %v1882, %v1888
        %s1891 = sld [smem:[#allocation2 + $0x7c]]
        %v1892 = vstv %s1891
        %v1893 = vmul.f32 %v1892, %v1883
        %v1894 = vmul.f32 %v1892, %v1884
        %1897 = vrot.lane.b32.xlu0 %v1893, 127
        %v1898 = vpop.permute.xlu0 %1897
        %1899 = vrot.lane.b32.xlu0 %v1894, 127
        %v1900 = vpop.permute.xlu0 %1899
        %v1903 = vadd.f32 %v1889, %v1898
        %v1904 = vadd.f32 %v1890, %v1900
        %s1905 = sld [smem:[#allocation2 + $0x7d]]
        %v1906 = vstv %s1905
        %v1907 = vmul.f32 %v1906, %v1883
        %v1908 = vmul.f32 %v1906, %v1884
        %1911 = vrot.lane.b32.xlu0 %v1907, 126
        %v1912 = vpop.permute.xlu0 %1911
        %1913 = vrot.lane.b32.xlu0 %v1908, 126
        %v1914 = vpop.permute.xlu0 %1913
        %v1917 = vadd.f32 %v1903, %v1912
        %v1918 = vadd.f32 %v1904, %v1914
        %v1919 = vld [vmem:[%s481] sm:$0xff]
        %v1920 = vld [vmem:[%s481 + $0x8] sm:$0xff]
        %s1921 = sld [smem:[#allocation2 + $0x7e]]
        %v1922 = vstv %s1921
        %v1923 = vmul.f32 %v1922, %v1919
        %v1924 = vmul.f32 %v1922, %v1920
        %v1925 = vadd.f32 %v1917, %v1923
        %v1926 = vadd.f32 %v1918, %v1924
        %s1927 = sld [smem:[#allocation2 + $0x7f]]
        %v1928 = vstv %s1927
        %v1929 = vmul.f32 %v1928, %v1919
        %v1930 = vmul.f32 %v1928, %v1920
        %1933 = vrot.lane.b32.xlu0 %v1929, 127
        %v1934 = vpop.permute.xlu0 %1933
        %1935 = vrot.lane.b32.xlu0 %v1930, 127
        %v1936 = vpop.permute.xlu0 %1935
        %v1939 = vadd.f32 %v1925, %v1934
        %v1940 = vadd.f32 %v1926, %v1936
        %s1941 = sld [smem:[#allocation2 + $0x80]]
        %v1942 = vstv %s1941
        %v1943 = vmul.f32 %v1942, %v1919
        %v1944 = vmul.f32 %v1942, %v1920
        %1947 = vrot.lane.b32.xlu0 %v1943, 126
        %v1948 = vpop.permute.xlu0 %1947
        %1949 = vrot.lane.b32.xlu0 %v1944, 126
        %v1950 = vpop.permute.xlu0 %1949
        %v1953 = vadd.f32 %v1939, %v1948
        %v1954 = vadd.f32 %v1940, %v1950
        %v1955 = vld [vmem:[%s519] sm:$0xff]
        %v1956 = vld [vmem:[%s519 + $0x8] sm:$0xff]
        %s1957 = sld [smem:[#allocation2 + $0x81]]
        %v1958 = vstv %s1957
        %v1959 = vmul.f32 %v1958, %v1955
        %v1960 = vmul.f32 %v1958, %v1956
        %v1961 = vadd.f32 %v1953, %v1959
        %v1962 = vadd.f32 %v1954, %v1960
        %s1963 = sld [smem:[#allocation2 + $0x82]]
        %v1964 = vstv %s1963
        %v1965 = vmul.f32 %v1964, %v1955
        %v1966 = vmul.f32 %v1964, %v1956
        %1969 = vrot.lane.b32.xlu0 %v1965, 127
        %v1970 = vpop.permute.xlu0 %1969
        %1971 = vrot.lane.b32.xlu0 %v1966, 127
        %v1972 = vpop.permute.xlu0 %1971
        %v1975 = vadd.f32 %v1961, %v1970
        %v1976 = vadd.f32 %v1962, %v1972
        %s1977 = sld [smem:[#allocation2 + $0x83]]
        %v1978 = vstv %s1977
        %v1979 = vmul.f32 %v1978, %v1955
        %v1980 = vmul.f32 %v1978, %v1956
        %1983 = vrot.lane.b32.xlu0 %v1979, 126
        %v1984 = vpop.permute.xlu0 %1983
        %1985 = vrot.lane.b32.xlu0 %v1980, 126
        %v1986 = vpop.permute.xlu0 %1985
        %v1989 = vadd.f32 %v1975, %v1984
        %v1990 = vadd.f32 %v1976, %v1986
        %v1991 = vld [vmem:[%s557] sm:$0xff]
        %v1992 = vld [vmem:[%s557 + $0x8] sm:$0xff]
        %s1993 = sld [smem:[#allocation2 + $0x84]]
        %v1994 = vstv %s1993
        %v1995 = vmul.f32 %v1994, %v1991
        %v1996 = vmul.f32 %v1994, %v1992
        %v1997 = vadd.f32 %v1989, %v1995
        %v1998 = vadd.f32 %v1990, %v1996
        %s1999 = sld [smem:[#allocation2 + $0x85]]
        %v2000 = vstv %s1999
        %v2001 = vmul.f32 %v2000, %v1991
        %v2002 = vmul.f32 %v2000, %v1992
        %2005 = vrot.lane.b32.xlu0 %v2001, 127
        %v2006 = vpop.permute.xlu0 %2005
        %2007 = vrot.lane.b32.xlu0 %v2002, 127
        %v2008 = vpop.permute.xlu0 %2007
        %v2011 = vadd.f32 %v1997, %v2006
        %v2012 = vadd.f32 %v1998, %v2008
        %s2013 = sld [smem:[#allocation2 + $0x86]]
        %v2014 = vstv %s2013
        %v2015 = vmul.f32 %v2014, %v1991
        %v2016 = vmul.f32 %v2014, %v1992
        %2019 = vrot.lane.b32.xlu0 %v2015, 126
        %v2020 = vpop.permute.xlu0 %2019
        %2021 = vrot.lane.b32.xlu0 %v2016, 126
        %v2022 = vpop.permute.xlu0 %2021
        %v2025 = vadd.f32 %v2011, %v2020
        %v2026 = vadd.f32 %v2012, %v2022
        %v2027 = vld [vmem:[%s595] sm:$0xff]
        %v2028 = vld [vmem:[%s595 + $0x8] sm:$0xff]
        %s2029 = sld [smem:[#allocation2 + $0x87]]
        %v2030 = vstv %s2029
        %v2031 = vmul.f32 %v2030, %v2027
        %v2032 = vmul.f32 %v2030, %v2028
        %v2033 = vadd.f32 %v2025, %v2031
        %v2034 = vadd.f32 %v2026, %v2032
        %s2035 = sld [smem:[#allocation2 + $0x88]]
        %v2036 = vstv %s2035
        %v2037 = vmul.f32 %v2036, %v2027
        %v2038 = vmul.f32 %v2036, %v2028
        %2041 = vrot.lane.b32.xlu0 %v2037, 127
        %v2042 = vpop.permute.xlu0 %2041
        %2043 = vrot.lane.b32.xlu0 %v2038, 127
        %v2044 = vpop.permute.xlu0 %2043
        %v2047 = vadd.f32 %v2033, %v2042
        %v2048 = vadd.f32 %v2034, %v2044
        %s2049 = sld [smem:[#allocation2 + $0x89]]
        %v2050 = vstv %s2049
        %v2051 = vmul.f32 %v2050, %v2027
        %v2052 = vmul.f32 %v2050, %v2028
        %2055 = vrot.lane.b32.xlu0 %v2051, 126
        %v2056 = vpop.permute.xlu0 %2055
        %2057 = vrot.lane.b32.xlu0 %v2052, 126
        %v2058 = vpop.permute.xlu0 %2057
        %v2061 = vadd.f32 %v2047, %v2056
        %v2062 = vadd.f32 %v2048, %v2058
        %v2063 = vld [vmem:[%s633] sm:$0xff]
        %v2064 = vld [vmem:[%s633 + $0x8] sm:$0xff]
        %s2065 = sld [smem:[#allocation2 + $0x8a]]
        %v2066 = vstv %s2065
        %v2067 = vmul.f32 %v2066, %v2063
        %v2068 = vmul.f32 %v2066, %v2064
        %v2069 = vadd.f32 %v2061, %v2067
        %v2070 = vadd.f32 %v2062, %v2068
        %s2071 = sld [smem:[#allocation2 + $0x8b]]
        %v2072 = vstv %s2071
        %v2073 = vmul.f32 %v2072, %v2063
        %v2074 = vmul.f32 %v2072, %v2064
        %2077 = vrot.lane.b32.xlu0 %v2073, 127
        %v2078 = vpop.permute.xlu0 %2077
        %2079 = vrot.lane.b32.xlu0 %v2074, 127
        %v2080 = vpop.permute.xlu0 %2079
        %v2083 = vadd.f32 %v2069, %v2078
        %v2084 = vadd.f32 %v2070, %v2080
        %s2085 = sld [smem:[#allocation2 + $0x8c]]
        %v2086 = vstv %s2085
        %v2087 = vmul.f32 %v2086, %v2063
        %v2088 = vmul.f32 %v2086, %v2064
        %2091 = vrot.lane.b32.xlu0 %v2087, 126
        %v2092 = vpop.permute.xlu0 %2091
        %2093 = vrot.lane.b32.xlu0 %v2088, 126
        %v2094 = vpop.permute.xlu0 %2093
        %v2097 = vadd.f32 %v2083, %v2092
        %v2098 = vadd.f32 %v2084, %v2094
        %v2099 = vld [vmem:[%s671] sm:$0xff]
        %v2100 = vld [vmem:[%s671 + $0x8] sm:$0xff]
        %s2101 = sld [smem:[#allocation2 + $0x8d]]
        %v2102 = vstv %s2101
        %v2103 = vmul.f32 %v2102, %v2099
        %v2104 = vmul.f32 %v2102, %v2100
        %v2105 = vadd.f32 %v2097, %v2103
        %v2106 = vadd.f32 %v2098, %v2104
        %s2107 = sld [smem:[#allocation2 + $0x8e]]
        %v2108 = vstv %s2107
        %v2109 = vmul.f32 %v2108, %v2099
        %v2110 = vmul.f32 %v2108, %v2100
        %2113 = vrot.lane.b32.xlu0 %v2109, 127
        %v2114 = vpop.permute.xlu0 %2113
        %2115 = vrot.lane.b32.xlu0 %v2110, 127
        %v2116 = vpop.permute.xlu0 %2115
        %v2119 = vadd.f32 %v2105, %v2114
        %v2120 = vadd.f32 %v2106, %v2116
        %s2121 = sld [smem:[#allocation2 + $0x8f]]
        %v2122 = vstv %s2121
        %v2123 = vmul.f32 %v2122, %v2099
        %v2124 = vmul.f32 %v2122, %v2100
        %2127 = vrot.lane.b32.xlu0 %v2123, 126
        %v2128 = vpop.permute.xlu0 %2127
        %2129 = vrot.lane.b32.xlu0 %v2124, 126
        %v2130 = vpop.permute.xlu0 %2129
        %v2133 = vadd.f32 %v2119, %v2128
        %v2134 = vadd.f32 %v2120, %v2130
        %s2135 = sld [smem:[#allocation5 + $0x3]]
        %v2136 = vstv %s2135
        %v2137 = vadd.f32 %v2133, %v2136
        %v2138 = vadd.f32 %v2134, %v2136
        %v2139 = vsub.f32 %v2137, 2.0
        %v2140 = vsub.f32 %v2138, 2.0
        %v2141 = vmul.f32 %v2139, %v2139
        %v2142 = vmul.f32 %v2140, %v2140
        %v2143 = vmul.f32 %v2141, -1.0
        %v2144 = vmul.f32 %v2142, -1.0
        %v2145 = vmul.f32 %v2143, 1.442695
        %v2146 = vpow.pop %v2145
        %v2147 = vmul.f32 %v2144, 1.442695
        %v2148 = vpow.pop %v2147
        %vm2149 = vcmp.lt.f32.partialorder %v2137, 2.0
        %vm2150 = vcmp.lt.f32.partialorder %v2138, 2.0
        %v2151 = vmul.f32 %v2146, 1.1
        %v2152 = vmul.f32 %v2148, 1.1
        %v2153 = vmul.f32 %v2146, 0.1
        %v2154 = vmul.f32 %v2148, 0.1
        %v2155 = vadd.f32 %v2153, 1.0
        %v2156 = vadd.f32 %v2154, 1.0
        %v2157 = vsel %vm2149, %v2151, %v2155
        %v2158 = vsel %vm2150, %v2152, %v2156
        %v2159 = vmax.f32 %v2137, 0.0
        %v2160 = vmax.f32 %v2138, 0.0
        %v2161 = vadd.f32 %v2159, 1e-06
        %v2162 = vadd.f32 %v2160, 1e-06
        %v2163 = vlog2.pop %v2161
        %v2164 = vmul.f32 %v2163, 0.6931472
        %v2165 = vlog2.pop %v2162
        %v2166 = vmul.f32 %v2165, 0.6931472
        %v2167 = vmul.f32 %v2164, 0.8
        %v2168 = vmul.f32 %v2166, 0.8
        %v2169 = vmul.f32 %v2167, 1.442695
        %v2170 = vpow.pop %v2169
        %v2171 = vmul.f32 %v2168, 1.442695
        %v2172 = vpow.pop %v2171
        %s2173 = scalar_lea.vmem %s237, 48 [#allocation7]
        %2174 = vst.msk [vmem:[%s2173] sm:$0xff] %vm746, %v2170
        %2175 = vst.msk [vmem:[%s2173 + $0x8] sm:$0xff] %vm746, %v2172
        %s2176 = scalar_lea.vmem %s244, 48 [#allocation8]
        %2177 = vst.msk [vmem:[%s2176] sm:$0xff] %vm746, %v2157
        %2178 = vst.msk [vmem:[%s2176 + $0x8] sm:$0xff] %vm746, %v2158
        %v2179 = vld [vmem:[%s253] sm:$0xff]
        %v2180 = vld [vmem:[%s253 + $0x8] sm:$0xff]
        %s2181 = sld [smem:[#allocation2 + $0x90]]
        %v2182 = vstv %s2181
        %v2183 = vmul.f32 %v2182, %v2179
        %v2184 = vmul.f32 %v2182, %v2180
        %v2185 = vadd.f32 %v2183, 0.0
        %v2186 = vadd.f32 %v2184, 0.0
        %s2187 = sld [smem:[#allocation2 + $0x91]]
        %v2188 = vstv %s2187
        %v2189 = vmul.f32 %v2188, %v2179
        %v2190 = vmul.f32 %v2188, %v2180
        %2193 = vrot.lane.b32.xlu0 %v2189, 127
        %v2194 = vpop.permute.xlu0 %2193
        %2195 = vrot.lane.b32.xlu0 %v2190, 127
        %v2196 = vpop.permute.xlu0 %2195
        %v2199 = vadd.f32 %v2185, %v2194
        %v2200 = vadd.f32 %v2186, %v2196
        %s2201 = sld [smem:[#allocation2 + $0x92]]
        %v2202 = vstv %s2201
        %v2203 = vmul.f32 %v2202, %v2179
        %v2204 = vmul.f32 %v2202, %v2180
        %2207 = vrot.lane.b32.xlu0 %v2203, 126
        %v2208 = vpop.permute.xlu0 %2207
        %2209 = vrot.lane.b32.xlu0 %v2204, 126
        %v2210 = vpop.permute.xlu0 %2209
        %v2213 = vadd.f32 %v2199, %v2208
        %v2214 = vadd.f32 %v2200, %v2210
        %v2215 = vld [vmem:[%s291] sm:$0xff]
        %v2216 = vld [vmem:[%s291 + $0x8] sm:$0xff]
        %s2217 = sld [smem:[#allocation2 + $0x93]]
        %v2218 = vstv %s2217
        %v2219 = vmul.f32 %v2218, %v2215
        %v2220 = vmul.f32 %v2218, %v2216
        %v2221 = vadd.f32 %v2213, %v2219
        %v2222 = vadd.f32 %v2214, %v2220
        %s2223 = sld [smem:[#allocation2 + $0x94]]
        %v2224 = vstv %s2223
        %v2225 = vmul.f32 %v2224, %v2215
        %v2226 = vmul.f32 %v2224, %v2216
        %2229 = vrot.lane.b32.xlu0 %v2225, 127
        %v2230 = vpop.permute.xlu0 %2229
        %2231 = vrot.lane.b32.xlu0 %v2226, 127
        %v2232 = vpop.permute.xlu0 %2231
        %v2235 = vadd.f32 %v2221, %v2230
        %v2236 = vadd.f32 %v2222, %v2232
        %s2237 = sld [smem:[#allocation2 + $0x95]]
        %v2238 = vstv %s2237
        %v2239 = vmul.f32 %v2238, %v2215
        %v2240 = vmul.f32 %v2238, %v2216
        %2243 = vrot.lane.b32.xlu0 %v2239, 126
        %v2244 = vpop.permute.xlu0 %2243
        %2245 = vrot.lane.b32.xlu0 %v2240, 126
        %v2246 = vpop.permute.xlu0 %2245
        %v2249 = vadd.f32 %v2235, %v2244
        %v2250 = vadd.f32 %v2236, %v2246
        %v2251 = vld [vmem:[%s329] sm:$0xff]
        %v2252 = vld [vmem:[%s329 + $0x8] sm:$0xff]
        %s2253 = sld [smem:[#allocation2 + $0x96]]
        %v2254 = vstv %s2253
        %v2255 = vmul.f32 %v2254, %v2251
        %v2256 = vmul.f32 %v2254, %v2252
        %v2257 = vadd.f32 %v2249, %v2255
        %v2258 = vadd.f32 %v2250, %v2256
        %s2259 = sld [smem:[#allocation2 + $0x97]]
        %v2260 = vstv %s2259
        %v2261 = vmul.f32 %v2260, %v2251
        %v2262 = vmul.f32 %v2260, %v2252
        %2265 = vrot.lane.b32.xlu0 %v2261, 127
        %v2266 = vpop.permute.xlu0 %2265
        %2267 = vrot.lane.b32.xlu0 %v2262, 127
        %v2268 = vpop.permute.xlu0 %2267
        %v2271 = vadd.f32 %v2257, %v2266
        %v2272 = vadd.f32 %v2258, %v2268
        %s2273 = sld [smem:[#allocation2 + $0x98]]
        %v2274 = vstv %s2273
        %v2275 = vmul.f32 %v2274, %v2251
        %v2276 = vmul.f32 %v2274, %v2252
        %2279 = vrot.lane.b32.xlu0 %v2275, 126
        %v2280 = vpop.permute.xlu0 %2279
        %2281 = vrot.lane.b32.xlu0 %v2276, 126
        %v2282 = vpop.permute.xlu0 %2281
        %v2285 = vadd.f32 %v2271, %v2280
        %v2286 = vadd.f32 %v2272, %v2282
        %v2287 = vld [vmem:[%s367] sm:$0xff]
        %v2288 = vld [vmem:[%s367 + $0x8] sm:$0xff]
        %s2289 = sld [smem:[#allocation2 + $0x99]]
        %v2290 = vstv %s2289
        %v2291 = vmul.f32 %v2290, %v2287
        %v2292 = vmul.f32 %v2290, %v2288
        %v2293 = vadd.f32 %v2285, %v2291
        %v2294 = vadd.f32 %v2286, %v2292
        %s2295 = sld [smem:[#allocation2 + $0x9a]]
        %v2296 = vstv %s2295
        %v2297 = vmul.f32 %v2296, %v2287
        %v2298 = vmul.f32 %v2296, %v2288
        %2301 = vrot.lane.b32.xlu0 %v2297, 127
        %v2302 = vpop.permute.xlu0 %2301
        %2303 = vrot.lane.b32.xlu0 %v2298, 127
        %v2304 = vpop.permute.xlu0 %2303
        %v2307 = vadd.f32 %v2293, %v2302
        %v2308 = vadd.f32 %v2294, %v2304
        %s2309 = sld [smem:[#allocation2 + $0x9b]]
        %v2310 = vstv %s2309
        %v2311 = vmul.f32 %v2310, %v2287
        %v2312 = vmul.f32 %v2310, %v2288
        %2315 = vrot.lane.b32.xlu0 %v2311, 126
        %v2316 = vpop.permute.xlu0 %2315
        %2317 = vrot.lane.b32.xlu0 %v2312, 126
        %v2318 = vpop.permute.xlu0 %2317
        %v2321 = vadd.f32 %v2307, %v2316
        %v2322 = vadd.f32 %v2308, %v2318
        %v2323 = vld [vmem:[%s405] sm:$0xff]
        %v2324 = vld [vmem:[%s405 + $0x8] sm:$0xff]
        %s2325 = sld [smem:[#allocation2 + $0x9c]]
        %v2326 = vstv %s2325
        %v2327 = vmul.f32 %v2326, %v2323
        %v2328 = vmul.f32 %v2326, %v2324
        %v2329 = vadd.f32 %v2321, %v2327
        %v2330 = vadd.f32 %v2322, %v2328
        %s2331 = sld [smem:[#allocation2 + $0x9d]]
        %v2332 = vstv %s2331
        %v2333 = vmul.f32 %v2332, %v2323
        %v2334 = vmul.f32 %v2332, %v2324
        %2337 = vrot.lane.b32.xlu0 %v2333, 127
        %v2338 = vpop.permute.xlu0 %2337
        %2339 = vrot.lane.b32.xlu0 %v2334, 127
        %v2340 = vpop.permute.xlu0 %2339
        %v2343 = vadd.f32 %v2329, %v2338
        %v2344 = vadd.f32 %v2330, %v2340
        %s2345 = sld [smem:[#allocation2 + $0x9e]]
        %v2346 = vstv %s2345
        %v2347 = vmul.f32 %v2346, %v2323
        %v2348 = vmul.f32 %v2346, %v2324
        %2351 = vrot.lane.b32.xlu0 %v2347, 126
        %v2352 = vpop.permute.xlu0 %2351
        %2353 = vrot.lane.b32.xlu0 %v2348, 126
        %v2354 = vpop.permute.xlu0 %2353
        %v2357 = vadd.f32 %v2343, %v2352
        %v2358 = vadd.f32 %v2344, %v2354
        %v2359 = vld [vmem:[%s443] sm:$0xff]
        %v2360 = vld [vmem:[%s443 + $0x8] sm:$0xff]
        %s2361 = sld [smem:[#allocation2 + $0x9f]]
        %v2362 = vstv %s2361
        %v2363 = vmul.f32 %v2362, %v2359
        %v2364 = vmul.f32 %v2362, %v2360
        %v2365 = vadd.f32 %v2357, %v2363
        %v2366 = vadd.f32 %v2358, %v2364
        %s2367 = sld [smem:[#allocation2 + $0xa0]]
        %v2368 = vstv %s2367
        %v2369 = vmul.f32 %v2368, %v2359
        %v2370 = vmul.f32 %v2368, %v2360
        %2373 = vrot.lane.b32.xlu0 %v2369, 127
        %v2374 = vpop.permute.xlu0 %2373
        %2375 = vrot.lane.b32.xlu0 %v2370, 127
        %v2376 = vpop.permute.xlu0 %2375
        %v2379 = vadd.f32 %v2365, %v2374
        %v2380 = vadd.f32 %v2366, %v2376
        %s2381 = sld [smem:[#allocation2 + $0xa1]]
        %v2382 = vstv %s2381
        %v2383 = vmul.f32 %v2382, %v2359
        %v2384 = vmul.f32 %v2382, %v2360
        %2387 = vrot.lane.b32.xlu0 %v2383, 126
        %v2388 = vpop.permute.xlu0 %2387
        %2389 = vrot.lane.b32.xlu0 %v2384, 126
        %v2390 = vpop.permute.xlu0 %2389
        %v2393 = vadd.f32 %v2379, %v2388
        %v2394 = vadd.f32 %v2380, %v2390
        %v2395 = vld [vmem:[%s481] sm:$0xff]
        %v2396 = vld [vmem:[%s481 + $0x8] sm:$0xff]
        %s2397 = sld [smem:[#allocation2 + $0xa2]]
        %v2398 = vstv %s2397
        %v2399 = vmul.f32 %v2398, %v2395
        %v2400 = vmul.f32 %v2398, %v2396
        %v2401 = vadd.f32 %v2393, %v2399
        %v2402 = vadd.f32 %v2394, %v2400
        %s2403 = sld [smem:[#allocation2 + $0xa3]]
        %v2404 = vstv %s2403
        %v2405 = vmul.f32 %v2404, %v2395
        %v2406 = vmul.f32 %v2404, %v2396
        %2409 = vrot.lane.b32.xlu0 %v2405, 127
        %v2410 = vpop.permute.xlu0 %2409
        %2411 = vrot.lane.b32.xlu0 %v2406, 127
        %v2412 = vpop.permute.xlu0 %2411
        %v2415 = vadd.f32 %v2401, %v2410
        %v2416 = vadd.f32 %v2402, %v2412
        %s2417 = sld [smem:[#allocation2 + $0xa4]]
        %v2418 = vstv %s2417
        %v2419 = vmul.f32 %v2418, %v2395
        %v2420 = vmul.f32 %v2418, %v2396
        %2423 = vrot.lane.b32.xlu0 %v2419, 126
        %v2424 = vpop.permute.xlu0 %2423
        %2425 = vrot.lane.b32.xlu0 %v2420, 126
        %v2426 = vpop.permute.xlu0 %2425
        %v2429 = vadd.f32 %v2415, %v2424
        %v2430 = vadd.f32 %v2416, %v2426
        %v2431 = vld [vmem:[%s519] sm:$0xff]
        %v2432 = vld [vmem:[%s519 + $0x8] sm:$0xff]
        %s2433 = sld [smem:[#allocation2 + $0xa5]]
        %v2434 = vstv %s2433
        %v2435 = vmul.f32 %v2434, %v2431
        %v2436 = vmul.f32 %v2434, %v2432
        %v2437 = vadd.f32 %v2429, %v2435
        %v2438 = vadd.f32 %v2430, %v2436
        %s2439 = sld [smem:[#allocation2 + $0xa6]]
        %v2440 = vstv %s2439
        %v2441 = vmul.f32 %v2440, %v2431
        %v2442 = vmul.f32 %v2440, %v2432
        %2445 = vrot.lane.b32.xlu0 %v2441, 127
        %v2446 = vpop.permute.xlu0 %2445
        %2447 = vrot.lane.b32.xlu0 %v2442, 127
        %v2448 = vpop.permute.xlu0 %2447
        %v2451 = vadd.f32 %v2437, %v2446
        %v2452 = vadd.f32 %v2438, %v2448
        %s2453 = sld [smem:[#allocation2 + $0xa7]]
        %v2454 = vstv %s2453
        %v2455 = vmul.f32 %v2454, %v2431
        %v2456 = vmul.f32 %v2454, %v2432
        %2459 = vrot.lane.b32.xlu0 %v2455, 126
        %v2460 = vpop.permute.xlu0 %2459
        %2461 = vrot.lane.b32.xlu0 %v2456, 126
        %v2462 = vpop.permute.xlu0 %2461
        %v2465 = vadd.f32 %v2451, %v2460
        %v2466 = vadd.f32 %v2452, %v2462
        %v2467 = vld [vmem:[%s557] sm:$0xff]
        %v2468 = vld [vmem:[%s557 + $0x8] sm:$0xff]
        %s2469 = sld [smem:[#allocation2 + $0xa8]]
        %v2470 = vstv %s2469
        %v2471 = vmul.f32 %v2470, %v2467
        %v2472 = vmul.f32 %v2470, %v2468
        %v2473 = vadd.f32 %v2465, %v2471
        %v2474 = vadd.f32 %v2466, %v2472
        %s2475 = sld [smem:[#allocation2 + $0xa9]]
        %v2476 = vstv %s2475
        %v2477 = vmul.f32 %v2476, %v2467
        %v2478 = vmul.f32 %v2476, %v2468
        %2481 = vrot.lane.b32.xlu0 %v2477, 127
        %v2482 = vpop.permute.xlu0 %2481
        %2483 = vrot.lane.b32.xlu0 %v2478, 127
        %v2484 = vpop.permute.xlu0 %2483
        %v2487 = vadd.f32 %v2473, %v2482
        %v2488 = vadd.f32 %v2474, %v2484
        %s2489 = sld [smem:[#allocation2 + $0xaa]]
        %v2490 = vstv %s2489
        %v2491 = vmul.f32 %v2490, %v2467
        %v2492 = vmul.f32 %v2490, %v2468
        %2495 = vrot.lane.b32.xlu0 %v2491, 126
        %v2496 = vpop.permute.xlu0 %2495
        %2497 = vrot.lane.b32.xlu0 %v2492, 126
        %v2498 = vpop.permute.xlu0 %2497
        %v2501 = vadd.f32 %v2487, %v2496
        %v2502 = vadd.f32 %v2488, %v2498
        %v2503 = vld [vmem:[%s595] sm:$0xff]
        %v2504 = vld [vmem:[%s595 + $0x8] sm:$0xff]
        %s2505 = sld [smem:[#allocation2 + $0xab]]
        %v2506 = vstv %s2505
        %v2507 = vmul.f32 %v2506, %v2503
        %v2508 = vmul.f32 %v2506, %v2504
        %v2509 = vadd.f32 %v2501, %v2507
        %v2510 = vadd.f32 %v2502, %v2508
        %s2511 = sld [smem:[#allocation2 + $0xac]]
        %v2512 = vstv %s2511
        %v2513 = vmul.f32 %v2512, %v2503
        %v2514 = vmul.f32 %v2512, %v2504
        %2517 = vrot.lane.b32.xlu0 %v2513, 127
        %v2518 = vpop.permute.xlu0 %2517
        %2519 = vrot.lane.b32.xlu0 %v2514, 127
        %v2520 = vpop.permute.xlu0 %2519
        %v2523 = vadd.f32 %v2509, %v2518
        %v2524 = vadd.f32 %v2510, %v2520
        %s2525 = sld [smem:[#allocation2 + $0xad]]
        %v2526 = vstv %s2525
        %v2527 = vmul.f32 %v2526, %v2503
        %v2528 = vmul.f32 %v2526, %v2504
        %2531 = vrot.lane.b32.xlu0 %v2527, 126
        %v2532 = vpop.permute.xlu0 %2531
        %2533 = vrot.lane.b32.xlu0 %v2528, 126
        %v2534 = vpop.permute.xlu0 %2533
        %v2537 = vadd.f32 %v2523, %v2532
        %v2538 = vadd.f32 %v2524, %v2534
        %v2539 = vld [vmem:[%s633] sm:$0xff]
        %v2540 = vld [vmem:[%s633 + $0x8] sm:$0xff]
        %s2541 = sld [smem:[#allocation2 + $0xae]]
        %v2542 = vstv %s2541
        %v2543 = vmul.f32 %v2542, %v2539
        %v2544 = vmul.f32 %v2542, %v2540
        %v2545 = vadd.f32 %v2537, %v2543
        %v2546 = vadd.f32 %v2538, %v2544
        %s2547 = sld [smem:[#allocation2 + $0xaf]]
        %v2548 = vstv %s2547
        %v2549 = vmul.f32 %v2548, %v2539
        %v2550 = vmul.f32 %v2548, %v2540
        %2553 = vrot.lane.b32.xlu0 %v2549, 127
        %v2554 = vpop.permute.xlu0 %2553
        %2555 = vrot.lane.b32.xlu0 %v2550, 127
        %v2556 = vpop.permute.xlu0 %2555
        %v2559 = vadd.f32 %v2545, %v2554
        %v2560 = vadd.f32 %v2546, %v2556
        %s2561 = sld [smem:[#allocation2 + $0xb0]]
        %v2562 = vstv %s2561
        %v2563 = vmul.f32 %v2562, %v2539
        %v2564 = vmul.f32 %v2562, %v2540
        %2567 = vrot.lane.b32.xlu0 %v2563, 126
        %v2568 = vpop.permute.xlu0 %2567
        %2569 = vrot.lane.b32.xlu0 %v2564, 126
        %v2570 = vpop.permute.xlu0 %2569
        %v2573 = vadd.f32 %v2559, %v2568
        %v2574 = vadd.f32 %v2560, %v2570
        %v2575 = vld [vmem:[%s671] sm:$0xff]
        %v2576 = vld [vmem:[%s671 + $0x8] sm:$0xff]
        %s2577 = sld [smem:[#allocation2 + $0xb1]]
        %v2578 = vstv %s2577
        %v2579 = vmul.f32 %v2578, %v2575
        %v2580 = vmul.f32 %v2578, %v2576
        %v2581 = vadd.f32 %v2573, %v2579
        %v2582 = vadd.f32 %v2574, %v2580
        %s2583 = sld [smem:[#allocation2 + $0xb2]]
        %v2584 = vstv %s2583
        %v2585 = vmul.f32 %v2584, %v2575
        %v2586 = vmul.f32 %v2584, %v2576
        %2589 = vrot.lane.b32.xlu0 %v2585, 127
        %v2590 = vpop.permute.xlu0 %2589
        %2591 = vrot.lane.b32.xlu0 %v2586, 127
        %v2592 = vpop.permute.xlu0 %2591
        %v2595 = vadd.f32 %v2581, %v2590
        %v2596 = vadd.f32 %v2582, %v2592
        %s2597 = sld [smem:[#allocation2 + $0xb3]]
        %v2598 = vstv %s2597
        %v2599 = vmul.f32 %v2598, %v2575
        %v2600 = vmul.f32 %v2598, %v2576
        %2603 = vrot.lane.b32.xlu0 %v2599, 126
        %v2604 = vpop.permute.xlu0 %2603
        %2605 = vrot.lane.b32.xlu0 %v2600, 126
        %v2606 = vpop.permute.xlu0 %2605
        %v2609 = vadd.f32 %v2595, %v2604
        %v2610 = vadd.f32 %v2596, %v2606
        %s2611 = sld [smem:[#allocation5 + $0x4]]
        %v2612 = vstv %s2611
        %v2613 = vadd.f32 %v2609, %v2612
        %v2614 = vadd.f32 %v2610, %v2612
        %v2615 = vsub.f32 %v2613, 2.0
        %v2616 = vsub.f32 %v2614, 2.0
        %v2617 = vmul.f32 %v2615, %v2615
        %v2618 = vmul.f32 %v2616, %v2616
        %v2619 = vmul.f32 %v2617, -1.0
        %v2620 = vmul.f32 %v2618, -1.0
        %v2621 = vmul.f32 %v2619, 1.442695
        %v2622 = vpow.pop %v2621
        %v2623 = vmul.f32 %v2620, 1.442695
        %v2624 = vpow.pop %v2623
        %vm2625 = vcmp.lt.f32.partialorder %v2613, 2.0
        %vm2626 = vcmp.lt.f32.partialorder %v2614, 2.0
        %v2627 = vmul.f32 %v2622, 1.1
        %v2628 = vmul.f32 %v2624, 1.1
        %v2629 = vmul.f32 %v2622, 0.1
        %v2630 = vmul.f32 %v2624, 0.1
        %v2631 = vadd.f32 %v2629, 1.0
        %v2632 = vadd.f32 %v2630, 1.0
        %v2633 = vsel %vm2625, %v2627, %v2631
        %v2634 = vsel %vm2626, %v2628, %v2632
        %v2635 = vmax.f32 %v2613, 0.0
        %v2636 = vmax.f32 %v2614, 0.0
        %v2637 = vadd.f32 %v2635, 1e-06
        %v2638 = vadd.f32 %v2636, 1e-06
        %v2639 = vlog2.pop %v2637
        %v2640 = vmul.f32 %v2639, 0.6931472
        %v2641 = vlog2.pop %v2638
        %v2642 = vmul.f32 %v2641, 0.6931472
        %v2643 = vmul.f32 %v2640, 0.8
        %v2644 = vmul.f32 %v2642, 0.8
        %v2645 = vmul.f32 %v2643, 1.442695
        %v2646 = vpow.pop %v2645
        %v2647 = vmul.f32 %v2644, 1.442695
        %v2648 = vpow.pop %v2647
        %s2649 = scalar_lea.vmem %s237, 64 [#allocation7]
        %2650 = vst.msk [vmem:[%s2649] sm:$0xff] %vm746, %v2646
        %2651 = vst.msk [vmem:[%s2649 + $0x8] sm:$0xff] %vm746, %v2648
        %s2652 = scalar_lea.vmem %s244, 64 [#allocation8]
        %2653 = vst.msk [vmem:[%s2652] sm:$0xff] %vm746, %v2633
        %2654 = vst.msk [vmem:[%s2652 + $0x8] sm:$0xff] %vm746, %v2634
        %v2655 = vld [vmem:[%s253] sm:$0xff]
        %v2656 = vld [vmem:[%s253 + $0x8] sm:$0xff]
        %s2657 = sld [smem:[#allocation2 + $0xb4]]
        %v2658 = vstv %s2657
        %v2659 = vmul.f32 %v2658, %v2655
        %v2660 = vmul.f32 %v2658, %v2656
        %v2661 = vadd.f32 %v2659, 0.0
        %v2662 = vadd.f32 %v2660, 0.0
        %s2663 = sld [smem:[#allocation2 + $0xb5]]
        %v2664 = vstv %s2663
        %v2665 = vmul.f32 %v2664, %v2655
        %v2666 = vmul.f32 %v2664, %v2656
        %2669 = vrot.lane.b32.xlu0 %v2665, 127
        %v2670 = vpop.permute.xlu0 %2669
        %2671 = vrot.lane.b32.xlu0 %v2666, 127
        %v2672 = vpop.permute.xlu0 %2671
        %v2675 = vadd.f32 %v2661, %v2670
        %v2676 = vadd.f32 %v2662, %v2672
        %s2677 = sld [smem:[#allocation2 + $0xb6]]
        %v2678 = vstv %s2677
        %v2679 = vmul.f32 %v2678, %v2655
        %v2680 = vmul.f32 %v2678, %v2656
        %2683 = vrot.lane.b32.xlu0 %v2679, 126
        %v2684 = vpop.permute.xlu0 %2683
        %2685 = vrot.lane.b32.xlu0 %v2680, 126
        %v2686 = vpop.permute.xlu0 %2685
        %v2689 = vadd.f32 %v2675, %v2684
        %v2690 = vadd.f32 %v2676, %v2686
        %v2691 = vld [vmem:[%s291] sm:$0xff]
        %v2692 = vld [vmem:[%s291 + $0x8] sm:$0xff]
        %s2693 = sld [smem:[#allocation2 + $0xb7]]
        %v2694 = vstv %s2693
        %v2695 = vmul.f32 %v2694, %v2691
        %v2696 = vmul.f32 %v2694, %v2692
        %v2697 = vadd.f32 %v2689, %v2695
        %v2698 = vadd.f32 %v2690, %v2696
        %s2699 = sld [smem:[#allocation2 + $0xb8]]
        %v2700 = vstv %s2699
        %v2701 = vmul.f32 %v2700, %v2691
        %v2702 = vmul.f32 %v2700, %v2692
        %2705 = vrot.lane.b32.xlu0 %v2701, 127
        %v2706 = vpop.permute.xlu0 %2705
        %2707 = vrot.lane.b32.xlu0 %v2702, 127
        %v2708 = vpop.permute.xlu0 %2707
        %v2711 = vadd.f32 %v2697, %v2706
        %v2712 = vadd.f32 %v2698, %v2708
        %s2713 = sld [smem:[#allocation2 + $0xb9]]
        %v2714 = vstv %s2713
        %v2715 = vmul.f32 %v2714, %v2691
        %v2716 = vmul.f32 %v2714, %v2692
        %2719 = vrot.lane.b32.xlu0 %v2715, 126
        %v2720 = vpop.permute.xlu0 %2719
        %2721 = vrot.lane.b32.xlu0 %v2716, 126
        %v2722 = vpop.permute.xlu0 %2721
        %v2725 = vadd.f32 %v2711, %v2720
        %v2726 = vadd.f32 %v2712, %v2722
        %v2727 = vld [vmem:[%s329] sm:$0xff]
        %v2728 = vld [vmem:[%s329 + $0x8] sm:$0xff]
        %s2729 = sld [smem:[#allocation2 + $0xba]]
        %v2730 = vstv %s2729
        %v2731 = vmul.f32 %v2730, %v2727
        %v2732 = vmul.f32 %v2730, %v2728
        %v2733 = vadd.f32 %v2725, %v2731
        %v2734 = vadd.f32 %v2726, %v2732
        %s2735 = sld [smem:[#allocation2 + $0xbb]]
        %v2736 = vstv %s2735
        %v2737 = vmul.f32 %v2736, %v2727
        %v2738 = vmul.f32 %v2736, %v2728
        %2741 = vrot.lane.b32.xlu0 %v2737, 127
        %v2742 = vpop.permute.xlu0 %2741
        %2743 = vrot.lane.b32.xlu0 %v2738, 127
        %v2744 = vpop.permute.xlu0 %2743
        %v2747 = vadd.f32 %v2733, %v2742
        %v2748 = vadd.f32 %v2734, %v2744
        %s2749 = sld [smem:[#allocation2 + $0xbc]]
        %v2750 = vstv %s2749
        %v2751 = vmul.f32 %v2750, %v2727
        %v2752 = vmul.f32 %v2750, %v2728
        %2755 = vrot.lane.b32.xlu0 %v2751, 126
        %v2756 = vpop.permute.xlu0 %2755
        %2757 = vrot.lane.b32.xlu0 %v2752, 126
        %v2758 = vpop.permute.xlu0 %2757
        %v2761 = vadd.f32 %v2747, %v2756
        %v2762 = vadd.f32 %v2748, %v2758
        %v2763 = vld [vmem:[%s367] sm:$0xff]
        %v2764 = vld [vmem:[%s367 + $0x8] sm:$0xff]
        %s2765 = sld [smem:[#allocation2 + $0xbd]]
        %v2766 = vstv %s2765
        %v2767 = vmul.f32 %v2766, %v2763
        %v2768 = vmul.f32 %v2766, %v2764
        %v2769 = vadd.f32 %v2761, %v2767
        %v2770 = vadd.f32 %v2762, %v2768
        %s2771 = sld [smem:[#allocation2 + $0xbe]]
        %v2772 = vstv %s2771
        %v2773 = vmul.f32 %v2772, %v2763
        %v2774 = vmul.f32 %v2772, %v2764
        %2777 = vrot.lane.b32.xlu0 %v2773, 127
        %v2778 = vpop.permute.xlu0 %2777
        %2779 = vrot.lane.b32.xlu0 %v2774, 127
        %v2780 = vpop.permute.xlu0 %2779
        %v2783 = vadd.f32 %v2769, %v2778
        %v2784 = vadd.f32 %v2770, %v2780
        %s2785 = sld [smem:[#allocation2 + $0xbf]]
        %v2786 = vstv %s2785
        %v2787 = vmul.f32 %v2786, %v2763
        %v2788 = vmul.f32 %v2786, %v2764
        %2791 = vrot.lane.b32.xlu0 %v2787, 126
        %v2792 = vpop.permute.xlu0 %2791
        %2793 = vrot.lane.b32.xlu0 %v2788, 126
        %v2794 = vpop.permute.xlu0 %2793
        %v2797 = vadd.f32 %v2783, %v2792
        %v2798 = vadd.f32 %v2784, %v2794
        %v2799 = vld [vmem:[%s405] sm:$0xff]
        %v2800 = vld [vmem:[%s405 + $0x8] sm:$0xff]
        %s2801 = sld [smem:[#allocation2 + $0xc0]]
        %v2802 = vstv %s2801
        %v2803 = vmul.f32 %v2802, %v2799
        %v2804 = vmul.f32 %v2802, %v2800
        %v2805 = vadd.f32 %v2797, %v2803
        %v2806 = vadd.f32 %v2798, %v2804
        %s2807 = sld [smem:[#allocation2 + $0xc1]]
        %v2808 = vstv %s2807
        %v2809 = vmul.f32 %v2808, %v2799
        %v2810 = vmul.f32 %v2808, %v2800
        %2813 = vrot.lane.b32.xlu0 %v2809, 127
        %v2814 = vpop.permute.xlu0 %2813
        %2815 = vrot.lane.b32.xlu0 %v2810, 127
        %v2816 = vpop.permute.xlu0 %2815
        %v2819 = vadd.f32 %v2805, %v2814
        %v2820 = vadd.f32 %v2806, %v2816
        %s2821 = sld [smem:[#allocation2 + $0xc2]]
        %v2822 = vstv %s2821
        %v2823 = vmul.f32 %v2822, %v2799
        %v2824 = vmul.f32 %v2822, %v2800
        %2827 = vrot.lane.b32.xlu0 %v2823, 126
        %v2828 = vpop.permute.xlu0 %2827
        %2829 = vrot.lane.b32.xlu0 %v2824, 126
        %v2830 = vpop.permute.xlu0 %2829
        %v2833 = vadd.f32 %v2819, %v2828
        %v2834 = vadd.f32 %v2820, %v2830
        %v2835 = vld [vmem:[%s443] sm:$0xff]
        %v2836 = vld [vmem:[%s443 + $0x8] sm:$0xff]
        %s2837 = sld [smem:[#allocation2 + $0xc3]]
        %v2838 = vstv %s2837
        %v2839 = vmul.f32 %v2838, %v2835
        %v2840 = vmul.f32 %v2838, %v2836
        %v2841 = vadd.f32 %v2833, %v2839
        %v2842 = vadd.f32 %v2834, %v2840
        %s2843 = sld [smem:[#allocation2 + $0xc4]]
        %v2844 = vstv %s2843
        %v2845 = vmul.f32 %v2844, %v2835
        %v2846 = vmul.f32 %v2844, %v2836
        %2849 = vrot.lane.b32.xlu0 %v2845, 127
        %v2850 = vpop.permute.xlu0 %2849
        %2851 = vrot.lane.b32.xlu0 %v2846, 127
        %v2852 = vpop.permute.xlu0 %2851
        %v2855 = vadd.f32 %v2841, %v2850
        %v2856 = vadd.f32 %v2842, %v2852
        %s2857 = sld [smem:[#allocation2 + $0xc5]]
        %v2858 = vstv %s2857
        %v2859 = vmul.f32 %v2858, %v2835
        %v2860 = vmul.f32 %v2858, %v2836
        %2863 = vrot.lane.b32.xlu0 %v2859, 126
        %v2864 = vpop.permute.xlu0 %2863
        %2865 = vrot.lane.b32.xlu0 %v2860, 126
        %v2866 = vpop.permute.xlu0 %2865
        %v2869 = vadd.f32 %v2855, %v2864
        %v2870 = vadd.f32 %v2856, %v2866
        %v2871 = vld [vmem:[%s481] sm:$0xff]
        %v2872 = vld [vmem:[%s481 + $0x8] sm:$0xff]
        %s2873 = sld [smem:[#allocation2 + $0xc6]]
        %v2874 = vstv %s2873
        %v2875 = vmul.f32 %v2874, %v2871
        %v2876 = vmul.f32 %v2874, %v2872
        %v2877 = vadd.f32 %v2869, %v2875
        %v2878 = vadd.f32 %v2870, %v2876
        %s2879 = sld [smem:[#allocation2 + $0xc7]]
        %v2880 = vstv %s2879
        %v2881 = vmul.f32 %v2880, %v2871
        %v2882 = vmul.f32 %v2880, %v2872
        %2885 = vrot.lane.b32.xlu0 %v2881, 127
        %v2886 = vpop.permute.xlu0 %2885
        %2887 = vrot.lane.b32.xlu0 %v2882, 127
        %v2888 = vpop.permute.xlu0 %2887
        %v2891 = vadd.f32 %v2877, %v2886
        %v2892 = vadd.f32 %v2878, %v2888
        %s2893 = sld [smem:[#allocation2 + $0xc8]]
        %v2894 = vstv %s2893
        %v2895 = vmul.f32 %v2894, %v2871
        %v2896 = vmul.f32 %v2894, %v2872
        %2899 = vrot.lane.b32.xlu0 %v2895, 126
        %v2900 = vpop.permute.xlu0 %2899
        %2901 = vrot.lane.b32.xlu0 %v2896, 126
        %v2902 = vpop.permute.xlu0 %2901
        %v2905 = vadd.f32 %v2891, %v2900
        %v2906 = vadd.f32 %v2892, %v2902
        %v2907 = vld [vmem:[%s519] sm:$0xff]
        %v2908 = vld [vmem:[%s519 + $0x8] sm:$0xff]
        %s2909 = sld [smem:[#allocation2 + $0xc9]]
        %v2910 = vstv %s2909
        %v2911 = vmul.f32 %v2910, %v2907
        %v2912 = vmul.f32 %v2910, %v2908
        %v2913 = vadd.f32 %v2905, %v2911
        %v2914 = vadd.f32 %v2906, %v2912
        %s2915 = sld [smem:[#allocation2 + $0xca]]
        %v2916 = vstv %s2915
        %v2917 = vmul.f32 %v2916, %v2907
        %v2918 = vmul.f32 %v2916, %v2908
        %2921 = vrot.lane.b32.xlu0 %v2917, 127
        %v2922 = vpop.permute.xlu0 %2921
        %2923 = vrot.lane.b32.xlu0 %v2918, 127
        %v2924 = vpop.permute.xlu0 %2923
        %v2927 = vadd.f32 %v2913, %v2922
        %v2928 = vadd.f32 %v2914, %v2924
        %s2929 = sld [smem:[#allocation2 + $0xcb]]
        %v2930 = vstv %s2929
        %v2931 = vmul.f32 %v2930, %v2907
        %v2932 = vmul.f32 %v2930, %v2908
        %2935 = vrot.lane.b32.xlu0 %v2931, 126
        %v2936 = vpop.permute.xlu0 %2935
        %2937 = vrot.lane.b32.xlu0 %v2932, 126
        %v2938 = vpop.permute.xlu0 %2937
        %v2941 = vadd.f32 %v2927, %v2936
        %v2942 = vadd.f32 %v2928, %v2938
        %v2943 = vld [vmem:[%s557] sm:$0xff]
        %v2944 = vld [vmem:[%s557 + $0x8] sm:$0xff]
        %s2945 = sld [smem:[#allocation2 + $0xcc]]
        %v2946 = vstv %s2945
        %v2947 = vmul.f32 %v2946, %v2943
        %v2948 = vmul.f32 %v2946, %v2944
        %v2949 = vadd.f32 %v2941, %v2947
        %v2950 = vadd.f32 %v2942, %v2948
        %s2951 = sld [smem:[#allocation2 + $0xcd]]
        %v2952 = vstv %s2951
        %v2953 = vmul.f32 %v2952, %v2943
        %v2954 = vmul.f32 %v2952, %v2944
        %2957 = vrot.lane.b32.xlu0 %v2953, 127
        %v2958 = vpop.permute.xlu0 %2957
        %2959 = vrot.lane.b32.xlu0 %v2954, 127
        %v2960 = vpop.permute.xlu0 %2959
        %v2963 = vadd.f32 %v2949, %v2958
        %v2964 = vadd.f32 %v2950, %v2960
        %s2965 = sld [smem:[#allocation2 + $0xce]]
        %v2966 = vstv %s2965
        %v2967 = vmul.f32 %v2966, %v2943
        %v2968 = vmul.f32 %v2966, %v2944
        %2971 = vrot.lane.b32.xlu0 %v2967, 126
        %v2972 = vpop.permute.xlu0 %2971
        %2973 = vrot.lane.b32.xlu0 %v2968, 126
        %v2974 = vpop.permute.xlu0 %2973
        %v2977 = vadd.f32 %v2963, %v2972
        %v2978 = vadd.f32 %v2964, %v2974
        %v2979 = vld [vmem:[%s595] sm:$0xff]
        %v2980 = vld [vmem:[%s595 + $0x8] sm:$0xff]
        %s2981 = sld [smem:[#allocation2 + $0xcf]]
        %v2982 = vstv %s2981
        %v2983 = vmul.f32 %v2982, %v2979
        %v2984 = vmul.f32 %v2982, %v2980
        %v2985 = vadd.f32 %v2977, %v2983
        %v2986 = vadd.f32 %v2978, %v2984
        %s2987 = sld [smem:[#allocation2 + $0xd0]]
        %v2988 = vstv %s2987
        %v2989 = vmul.f32 %v2988, %v2979
        %v2990 = vmul.f32 %v2988, %v2980
        %2993 = vrot.lane.b32.xlu0 %v2989, 127
        %v2994 = vpop.permute.xlu0 %2993
        %2995 = vrot.lane.b32.xlu0 %v2990, 127
        %v2996 = vpop.permute.xlu0 %2995
        %v2999 = vadd.f32 %v2985, %v2994
        %v3000 = vadd.f32 %v2986, %v2996
        %s3001 = sld [smem:[#allocation2 + $0xd1]]
        %v3002 = vstv %s3001
        %v3003 = vmul.f32 %v3002, %v2979
        %v3004 = vmul.f32 %v3002, %v2980
        %3007 = vrot.lane.b32.xlu0 %v3003, 126
        %v3008 = vpop.permute.xlu0 %3007
        %3009 = vrot.lane.b32.xlu0 %v3004, 126
        %v3010 = vpop.permute.xlu0 %3009
        %v3013 = vadd.f32 %v2999, %v3008
        %v3014 = vadd.f32 %v3000, %v3010
        %v3015 = vld [vmem:[%s633] sm:$0xff]
        %v3016 = vld [vmem:[%s633 + $0x8] sm:$0xff]
        %s3017 = sld [smem:[#allocation2 + $0xd2]]
        %v3018 = vstv %s3017
        %v3019 = vmul.f32 %v3018, %v3015
        %v3020 = vmul.f32 %v3018, %v3016
        %v3021 = vadd.f32 %v3013, %v3019
        %v3022 = vadd.f32 %v3014, %v3020
        %s3023 = sld [smem:[#allocation2 + $0xd3]]
        %v3024 = vstv %s3023
        %v3025 = vmul.f32 %v3024, %v3015
        %v3026 = vmul.f32 %v3024, %v3016
        %3029 = vrot.lane.b32.xlu0 %v3025, 127
        %v3030 = vpop.permute.xlu0 %3029
        %3031 = vrot.lane.b32.xlu0 %v3026, 127
        %v3032 = vpop.permute.xlu0 %3031
        %v3035 = vadd.f32 %v3021, %v3030
        %v3036 = vadd.f32 %v3022, %v3032
        %s3037 = sld [smem:[#allocation2 + $0xd4]]
        %v3038 = vstv %s3037
        %v3039 = vmul.f32 %v3038, %v3015
        %v3040 = vmul.f32 %v3038, %v3016
        %3043 = vrot.lane.b32.xlu0 %v3039, 126
        %v3044 = vpop.permute.xlu0 %3043
        %3045 = vrot.lane.b32.xlu0 %v3040, 126
        %v3046 = vpop.permute.xlu0 %3045
        %v3049 = vadd.f32 %v3035, %v3044
        %v3050 = vadd.f32 %v3036, %v3046
        %v3051 = vld [vmem:[%s671] sm:$0xff]
        %v3052 = vld [vmem:[%s671 + $0x8] sm:$0xff]
        %s3053 = sld [smem:[#allocation2 + $0xd5]]
        %v3054 = vstv %s3053
        %v3055 = vmul.f32 %v3054, %v3051
        %v3056 = vmul.f32 %v3054, %v3052
        %v3057 = vadd.f32 %v3049, %v3055
        %v3058 = vadd.f32 %v3050, %v3056
        %s3059 = sld [smem:[#allocation2 + $0xd6]]
        %v3060 = vstv %s3059
        %v3061 = vmul.f32 %v3060, %v3051
        %v3062 = vmul.f32 %v3060, %v3052
        %3065 = vrot.lane.b32.xlu0 %v3061, 127
        %v3066 = vpop.permute.xlu0 %3065
        %3067 = vrot.lane.b32.xlu0 %v3062, 127
        %v3068 = vpop.permute.xlu0 %3067
        %v3071 = vadd.f32 %v3057, %v3066
        %v3072 = vadd.f32 %v3058, %v3068
        %s3073 = sld [smem:[#allocation2 + $0xd7]]
        %v3074 = vstv %s3073
        %v3075 = vmul.f32 %v3074, %v3051
        %v3076 = vmul.f32 %v3074, %v3052
        %3079 = vrot.lane.b32.xlu0 %v3075, 126
        %v3080 = vpop.permute.xlu0 %3079
        %3081 = vrot.lane.b32.xlu0 %v3076, 126
        %v3082 = vpop.permute.xlu0 %3081
        %v3085 = vadd.f32 %v3071, %v3080
        %v3086 = vadd.f32 %v3072, %v3082
        %s3087 = sld [smem:[#allocation5 + $0x5]]
        %v3088 = vstv %s3087
        %v3089 = vadd.f32 %v3085, %v3088
        %v3090 = vadd.f32 %v3086, %v3088
        %v3091 = vsub.f32 %v3089, 2.0
        %v3092 = vsub.f32 %v3090, 2.0
        %v3093 = vmul.f32 %v3091, %v3091
        %v3094 = vmul.f32 %v3092, %v3092
        %v3095 = vmul.f32 %v3093, -1.0
        %v3096 = vmul.f32 %v3094, -1.0
        %v3097 = vmul.f32 %v3095, 1.442695
        %v3098 = vpow.pop %v3097
        %v3099 = vmul.f32 %v3096, 1.442695
        %v3100 = vpow.pop %v3099
        %vm3101 = vcmp.lt.f32.partialorder %v3089, 2.0
        %vm3102 = vcmp.lt.f32.partialorder %v3090, 2.0
        %v3103 = vmul.f32 %v3098, 1.1
        %v3104 = vmul.f32 %v3100, 1.1
        %v3105 = vmul.f32 %v3098, 0.1
        %v3106 = vmul.f32 %v3100, 0.1
        %v3107 = vadd.f32 %v3105, 1.0
        %v3108 = vadd.f32 %v3106, 1.0
        %v3109 = vsel %vm3101, %v3103, %v3107
        %v3110 = vsel %vm3102, %v3104, %v3108
        %v3111 = vmax.f32 %v3089, 0.0
        %v3112 = vmax.f32 %v3090, 0.0
        %v3113 = vadd.f32 %v3111, 1e-06
        %v3114 = vadd.f32 %v3112, 1e-06
        %v3115 = vlog2.pop %v3113
        %v3116 = vmul.f32 %v3115, 0.6931472
        %v3117 = vlog2.pop %v3114
        %v3118 = vmul.f32 %v3117, 0.6931472
        %v3119 = vmul.f32 %v3116, 0.8
        %v3120 = vmul.f32 %v3118, 0.8
        %v3121 = vmul.f32 %v3119, 1.442695
        %v3122 = vpow.pop %v3121
        %v3123 = vmul.f32 %v3120, 1.442695
        %v3124 = vpow.pop %v3123
        %s3125 = scalar_lea.vmem %s237, 80 [#allocation7]
        %3126 = vst.msk [vmem:[%s3125] sm:$0xff] %vm746, %v3122
        %3127 = vst.msk [vmem:[%s3125 + $0x8] sm:$0xff] %vm746, %v3124
        %s3128 = scalar_lea.vmem %s244, 80 [#allocation8]
        %3129 = vst.msk [vmem:[%s3128] sm:$0xff] %vm746, %v3109
        %3130 = vst.msk [vmem:[%s3128 + $0x8] sm:$0xff] %vm746, %v3110
        %v3131 = vld [vmem:[%s253] sm:$0xff]
        %v3132 = vld [vmem:[%s253 + $0x8] sm:$0xff]
        %s3133 = sld [smem:[#allocation2 + $0xd8]]
        %v3134 = vstv %s3133
        %v3135 = vmul.f32 %v3134, %v3131
        %v3136 = vmul.f32 %v3134, %v3132
        %v3137 = vadd.f32 %v3135, 0.0
        %v3138 = vadd.f32 %v3136, 0.0
        %s3139 = sld [smem:[#allocation2 + $0xd9]]
        %v3140 = vstv %s3139
        %v3141 = vmul.f32 %v3140, %v3131
        %v3142 = vmul.f32 %v3140, %v3132
        %3145 = vrot.lane.b32.xlu0 %v3141, 127
        %v3146 = vpop.permute.xlu0 %3145
        %3147 = vrot.lane.b32.xlu0 %v3142, 127
        %v3148 = vpop.permute.xlu0 %3147
        %v3151 = vadd.f32 %v3137, %v3146
        %v3152 = vadd.f32 %v3138, %v3148
        %s3153 = sld [smem:[#allocation2 + $0xda]]
        %v3154 = vstv %s3153
        %v3155 = vmul.f32 %v3154, %v3131
        %v3156 = vmul.f32 %v3154, %v3132
        %3159 = vrot.lane.b32.xlu0 %v3155, 126
        %v3160 = vpop.permute.xlu0 %3159
        %3161 = vrot.lane.b32.xlu0 %v3156, 126
        %v3162 = vpop.permute.xlu0 %3161
        %v3165 = vadd.f32 %v3151, %v3160
        %v3166 = vadd.f32 %v3152, %v3162
        %v3167 = vld [vmem:[%s291] sm:$0xff]
        %v3168 = vld [vmem:[%s291 + $0x8] sm:$0xff]
        %s3169 = sld [smem:[#allocation2 + $0xdb]]
        %v3170 = vstv %s3169
        %v3171 = vmul.f32 %v3170, %v3167
        %v3172 = vmul.f32 %v3170, %v3168
        %v3173 = vadd.f32 %v3165, %v3171
        %v3174 = vadd.f32 %v3166, %v3172
        %s3175 = sld [smem:[#allocation2 + $0xdc]]
        %v3176 = vstv %s3175
        %v3177 = vmul.f32 %v3176, %v3167
        %v3178 = vmul.f32 %v3176, %v3168
        %3181 = vrot.lane.b32.xlu0 %v3177, 127
        %v3182 = vpop.permute.xlu0 %3181
        %3183 = vrot.lane.b32.xlu0 %v3178, 127
        %v3184 = vpop.permute.xlu0 %3183
        %v3187 = vadd.f32 %v3173, %v3182
        %v3188 = vadd.f32 %v3174, %v3184
        %s3189 = sld [smem:[#allocation2 + $0xdd]]
        %v3190 = vstv %s3189
        %v3191 = vmul.f32 %v3190, %v3167
        %v3192 = vmul.f32 %v3190, %v3168
        %3195 = vrot.lane.b32.xlu0 %v3191, 126
        %v3196 = vpop.permute.xlu0 %3195
        %3197 = vrot.lane.b32.xlu0 %v3192, 126
        %v3198 = vpop.permute.xlu0 %3197
        %v3201 = vadd.f32 %v3187, %v3196
        %v3202 = vadd.f32 %v3188, %v3198
        %v3203 = vld [vmem:[%s329] sm:$0xff]
        %v3204 = vld [vmem:[%s329 + $0x8] sm:$0xff]
        %s3205 = sld [smem:[#allocation2 + $0xde]]
        %v3206 = vstv %s3205
        %v3207 = vmul.f32 %v3206, %v3203
        %v3208 = vmul.f32 %v3206, %v3204
        %v3209 = vadd.f32 %v3201, %v3207
        %v3210 = vadd.f32 %v3202, %v3208
        %s3211 = sld [smem:[#allocation2 + $0xdf]]
        %v3212 = vstv %s3211
        %v3213 = vmul.f32 %v3212, %v3203
        %v3214 = vmul.f32 %v3212, %v3204
        %3217 = vrot.lane.b32.xlu0 %v3213, 127
        %v3218 = vpop.permute.xlu0 %3217
        %3219 = vrot.lane.b32.xlu0 %v3214, 127
        %v3220 = vpop.permute.xlu0 %3219
        %v3223 = vadd.f32 %v3209, %v3218
        %v3224 = vadd.f32 %v3210, %v3220
        %s3225 = sld [smem:[#allocation2 + $0xe0]]
        %v3226 = vstv %s3225
        %v3227 = vmul.f32 %v3226, %v3203
        %v3228 = vmul.f32 %v3226, %v3204
        %3231 = vrot.lane.b32.xlu0 %v3227, 126
        %v3232 = vpop.permute.xlu0 %3231
        %3233 = vrot.lane.b32.xlu0 %v3228, 126
        %v3234 = vpop.permute.xlu0 %3233
        %v3237 = vadd.f32 %v3223, %v3232
        %v3238 = vadd.f32 %v3224, %v3234
        %v3239 = vld [vmem:[%s367] sm:$0xff]
        %v3240 = vld [vmem:[%s367 + $0x8] sm:$0xff]
        %s3241 = sld [smem:[#allocation2 + $0xe1]]
        %v3242 = vstv %s3241
        %v3243 = vmul.f32 %v3242, %v3239
        %v3244 = vmul.f32 %v3242, %v3240
        %v3245 = vadd.f32 %v3237, %v3243
        %v3246 = vadd.f32 %v3238, %v3244
        %s3247 = sld [smem:[#allocation2 + $0xe2]]
        %v3248 = vstv %s3247
        %v3249 = vmul.f32 %v3248, %v3239
        %v3250 = vmul.f32 %v3248, %v3240
        %3253 = vrot.lane.b32.xlu0 %v3249, 127
        %v3254 = vpop.permute.xlu0 %3253
        %3255 = vrot.lane.b32.xlu0 %v3250, 127
        %v3256 = vpop.permute.xlu0 %3255
        %v3259 = vadd.f32 %v3245, %v3254
        %v3260 = vadd.f32 %v3246, %v3256
        %s3261 = sld [smem:[#allocation2 + $0xe3]]
        %v3262 = vstv %s3261
        %v3263 = vmul.f32 %v3262, %v3239
        %v3264 = vmul.f32 %v3262, %v3240
        %3267 = vrot.lane.b32.xlu0 %v3263, 126
        %v3268 = vpop.permute.xlu0 %3267
        %3269 = vrot.lane.b32.xlu0 %v3264, 126
        %v3270 = vpop.permute.xlu0 %3269
        %v3273 = vadd.f32 %v3259, %v3268
        %v3274 = vadd.f32 %v3260, %v3270
        %v3275 = vld [vmem:[%s405] sm:$0xff]
        %v3276 = vld [vmem:[%s405 + $0x8] sm:$0xff]
        %s3277 = sld [smem:[#allocation2 + $0xe4]]
        %v3278 = vstv %s3277
        %v3279 = vmul.f32 %v3278, %v3275
        %v3280 = vmul.f32 %v3278, %v3276
        %v3281 = vadd.f32 %v3273, %v3279
        %v3282 = vadd.f32 %v3274, %v3280
        %s3283 = sld [smem:[#allocation2 + $0xe5]]
        %v3284 = vstv %s3283
        %v3285 = vmul.f32 %v3284, %v3275
        %v3286 = vmul.f32 %v3284, %v3276
        %3289 = vrot.lane.b32.xlu0 %v3285, 127
        %v3290 = vpop.permute.xlu0 %3289
        %3291 = vrot.lane.b32.xlu0 %v3286, 127
        %v3292 = vpop.permute.xlu0 %3291
        %v3295 = vadd.f32 %v3281, %v3290
        %v3296 = vadd.f32 %v3282, %v3292
        %s3297 = sld [smem:[#allocation2 + $0xe6]]
        %v3298 = vstv %s3297
        %v3299 = vmul.f32 %v3298, %v3275
        %v3300 = vmul.f32 %v3298, %v3276
        %3303 = vrot.lane.b32.xlu0 %v3299, 126
        %v3304 = vpop.permute.xlu0 %3303
        %3305 = vrot.lane.b32.xlu0 %v3300, 126
        %v3306 = vpop.permute.xlu0 %3305
        %v3309 = vadd.f32 %v3295, %v3304
        %v3310 = vadd.f32 %v3296, %v3306
        %v3311 = vld [vmem:[%s443] sm:$0xff]
        %v3312 = vld [vmem:[%s443 + $0x8] sm:$0xff]
        %s3313 = sld [smem:[#allocation2 + $0xe7]]
        %v3314 = vstv %s3313
        %v3315 = vmul.f32 %v3314, %v3311
        %v3316 = vmul.f32 %v3314, %v3312
        %v3317 = vadd.f32 %v3309, %v3315
        %v3318 = vadd.f32 %v3310, %v3316
        %s3319 = sld [smem:[#allocation2 + $0xe8]]
        %v3320 = vstv %s3319
        %v3321 = vmul.f32 %v3320, %v3311
        %v3322 = vmul.f32 %v3320, %v3312
        %3325 = vrot.lane.b32.xlu0 %v3321, 127
        %v3326 = vpop.permute.xlu0 %3325
        %3327 = vrot.lane.b32.xlu0 %v3322, 127
        %v3328 = vpop.permute.xlu0 %3327
        %v3331 = vadd.f32 %v3317, %v3326
        %v3332 = vadd.f32 %v3318, %v3328
        %s3333 = sld [smem:[#allocation2 + $0xe9]]
        %v3334 = vstv %s3333
        %v3335 = vmul.f32 %v3334, %v3311
        %v3336 = vmul.f32 %v3334, %v3312
        %3339 = vrot.lane.b32.xlu0 %v3335, 126
        %v3340 = vpop.permute.xlu0 %3339
        %3341 = vrot.lane.b32.xlu0 %v3336, 126
        %v3342 = vpop.permute.xlu0 %3341
        %v3345 = vadd.f32 %v3331, %v3340
        %v3346 = vadd.f32 %v3332, %v3342
        %v3347 = vld [vmem:[%s481] sm:$0xff]
        %v3348 = vld [vmem:[%s481 + $0x8] sm:$0xff]
        %s3349 = sld [smem:[#allocation2 + $0xea]]
        %v3350 = vstv %s3349
        %v3351 = vmul.f32 %v3350, %v3347
        %v3352 = vmul.f32 %v3350, %v3348
        %v3353 = vadd.f32 %v3345, %v3351
        %v3354 = vadd.f32 %v3346, %v3352
        %s3355 = sld [smem:[#allocation2 + $0xeb]]
        %v3356 = vstv %s3355
        %v3357 = vmul.f32 %v3356, %v3347
        %v3358 = vmul.f32 %v3356, %v3348
        %3361 = vrot.lane.b32.xlu0 %v3357, 127
        %v3362 = vpop.permute.xlu0 %3361
        %3363 = vrot.lane.b32.xlu0 %v3358, 127
        %v3364 = vpop.permute.xlu0 %3363
        %v3367 = vadd.f32 %v3353, %v3362
        %v3368 = vadd.f32 %v3354, %v3364
        %s3369 = sld [smem:[#allocation2 + $0xec]]
        %v3370 = vstv %s3369
        %v3371 = vmul.f32 %v3370, %v3347
        %v3372 = vmul.f32 %v3370, %v3348
        %3375 = vrot.lane.b32.xlu0 %v3371, 126
        %v3376 = vpop.permute.xlu0 %3375
        %3377 = vrot.lane.b32.xlu0 %v3372, 126
        %v3378 = vpop.permute.xlu0 %3377
        %v3381 = vadd.f32 %v3367, %v3376
        %v3382 = vadd.f32 %v3368, %v3378
        %v3383 = vld [vmem:[%s519] sm:$0xff]
        %v3384 = vld [vmem:[%s519 + $0x8] sm:$0xff]
        %s3385 = sld [smem:[#allocation2 + $0xed]]
        %v3386 = vstv %s3385
        %v3387 = vmul.f32 %v3386, %v3383
        %v3388 = vmul.f32 %v3386, %v3384
        %v3389 = vadd.f32 %v3381, %v3387
        %v3390 = vadd.f32 %v3382, %v3388
        %s3391 = sld [smem:[#allocation2 + $0xee]]
        %v3392 = vstv %s3391
        %v3393 = vmul.f32 %v3392, %v3383
        %v3394 = vmul.f32 %v3392, %v3384
        %3397 = vrot.lane.b32.xlu0 %v3393, 127
        %v3398 = vpop.permute.xlu0 %3397
        %3399 = vrot.lane.b32.xlu0 %v3394, 127
        %v3400 = vpop.permute.xlu0 %3399
        %v3403 = vadd.f32 %v3389, %v3398
        %v3404 = vadd.f32 %v3390, %v3400
        %s3405 = sld [smem:[#allocation2 + $0xef]]
        %v3406 = vstv %s3405
        %v3407 = vmul.f32 %v3406, %v3383
        %v3408 = vmul.f32 %v3406, %v3384
        %3411 = vrot.lane.b32.xlu0 %v3407, 126
        %v3412 = vpop.permute.xlu0 %3411
        %3413 = vrot.lane.b32.xlu0 %v3408, 126
        %v3414 = vpop.permute.xlu0 %3413
        %v3417 = vadd.f32 %v3403, %v3412
        %v3418 = vadd.f32 %v3404, %v3414
        %v3419 = vld [vmem:[%s557] sm:$0xff]
        %v3420 = vld [vmem:[%s557 + $0x8] sm:$0xff]
        %s3421 = sld [smem:[#allocation2 + $0xf0]]
        %v3422 = vstv %s3421
        %v3423 = vmul.f32 %v3422, %v3419
        %v3424 = vmul.f32 %v3422, %v3420
        %v3425 = vadd.f32 %v3417, %v3423
        %v3426 = vadd.f32 %v3418, %v3424
        %s3427 = sld [smem:[#allocation2 + $0xf1]]
        %v3428 = vstv %s3427
        %v3429 = vmul.f32 %v3428, %v3419
        %v3430 = vmul.f32 %v3428, %v3420
        %3433 = vrot.lane.b32.xlu0 %v3429, 127
        %v3434 = vpop.permute.xlu0 %3433
        %3435 = vrot.lane.b32.xlu0 %v3430, 127
        %v3436 = vpop.permute.xlu0 %3435
        %v3439 = vadd.f32 %v3425, %v3434
        %v3440 = vadd.f32 %v3426, %v3436
        %s3441 = sld [smem:[#allocation2 + $0xf2]]
        %v3442 = vstv %s3441
        %v3443 = vmul.f32 %v3442, %v3419
        %v3444 = vmul.f32 %v3442, %v3420
        %3447 = vrot.lane.b32.xlu0 %v3443, 126
        %v3448 = vpop.permute.xlu0 %3447
        %3449 = vrot.lane.b32.xlu0 %v3444, 126
        %v3450 = vpop.permute.xlu0 %3449
        %v3453 = vadd.f32 %v3439, %v3448
        %v3454 = vadd.f32 %v3440, %v3450
        %v3455 = vld [vmem:[%s595] sm:$0xff]
        %v3456 = vld [vmem:[%s595 + $0x8] sm:$0xff]
        %s3457 = sld [smem:[#allocation2 + $0xf3]]
        %v3458 = vstv %s3457
        %v3459 = vmul.f32 %v3458, %v3455
        %v3460 = vmul.f32 %v3458, %v3456
        %v3461 = vadd.f32 %v3453, %v3459
        %v3462 = vadd.f32 %v3454, %v3460
        %s3463 = sld [smem:[#allocation2 + $0xf4]]
        %v3464 = vstv %s3463
        %v3465 = vmul.f32 %v3464, %v3455
        %v3466 = vmul.f32 %v3464, %v3456
        %3469 = vrot.lane.b32.xlu0 %v3465, 127
        %v3470 = vpop.permute.xlu0 %3469
        %3471 = vrot.lane.b32.xlu0 %v3466, 127
        %v3472 = vpop.permute.xlu0 %3471
        %v3475 = vadd.f32 %v3461, %v3470
        %v3476 = vadd.f32 %v3462, %v3472
        %s3477 = sld [smem:[#allocation2 + $0xf5]]
        %v3478 = vstv %s3477
        %v3479 = vmul.f32 %v3478, %v3455
        %v3480 = vmul.f32 %v3478, %v3456
        %3483 = vrot.lane.b32.xlu0 %v3479, 126
        %v3484 = vpop.permute.xlu0 %3483
        %3485 = vrot.lane.b32.xlu0 %v3480, 126
        %v3486 = vpop.permute.xlu0 %3485
        %v3489 = vadd.f32 %v3475, %v3484
        %v3490 = vadd.f32 %v3476, %v3486
        %v3491 = vld [vmem:[%s633] sm:$0xff]
        %v3492 = vld [vmem:[%s633 + $0x8] sm:$0xff]
        %s3493 = sld [smem:[#allocation2 + $0xf6]]
        %v3494 = vstv %s3493
        %v3495 = vmul.f32 %v3494, %v3491
        %v3496 = vmul.f32 %v3494, %v3492
        %v3497 = vadd.f32 %v3489, %v3495
        %v3498 = vadd.f32 %v3490, %v3496
        %s3499 = sld [smem:[#allocation2 + $0xf7]]
        %v3500 = vstv %s3499
        %v3501 = vmul.f32 %v3500, %v3491
        %v3502 = vmul.f32 %v3500, %v3492
        %3505 = vrot.lane.b32.xlu0 %v3501, 127
        %v3506 = vpop.permute.xlu0 %3505
        %3507 = vrot.lane.b32.xlu0 %v3502, 127
        %v3508 = vpop.permute.xlu0 %3507
        %v3511 = vadd.f32 %v3497, %v3506
        %v3512 = vadd.f32 %v3498, %v3508
        %s3513 = sld [smem:[#allocation2 + $0xf8]]
        %v3514 = vstv %s3513
        %v3515 = vmul.f32 %v3514, %v3491
        %v3516 = vmul.f32 %v3514, %v3492
        %3519 = vrot.lane.b32.xlu0 %v3515, 126
        %v3520 = vpop.permute.xlu0 %3519
        %3521 = vrot.lane.b32.xlu0 %v3516, 126
        %v3522 = vpop.permute.xlu0 %3521
        %v3525 = vadd.f32 %v3511, %v3520
        %v3526 = vadd.f32 %v3512, %v3522
        %v3527 = vld [vmem:[%s671] sm:$0xff]
        %v3528 = vld [vmem:[%s671 + $0x8] sm:$0xff]
        %s3529 = sld [smem:[#allocation2 + $0xf9]]
        %v3530 = vstv %s3529
        %v3531 = vmul.f32 %v3530, %v3527
        %v3532 = vmul.f32 %v3530, %v3528
        %v3533 = vadd.f32 %v3525, %v3531
        %v3534 = vadd.f32 %v3526, %v3532
        %s3535 = sld [smem:[#allocation2 + $0xfa]]
        %v3536 = vstv %s3535
        %v3537 = vmul.f32 %v3536, %v3527
        %v3538 = vmul.f32 %v3536, %v3528
        %3541 = vrot.lane.b32.xlu0 %v3537, 127
        %v3542 = vpop.permute.xlu0 %3541
        %3543 = vrot.lane.b32.xlu0 %v3538, 127
        %v3544 = vpop.permute.xlu0 %3543
        %v3547 = vadd.f32 %v3533, %v3542
        %v3548 = vadd.f32 %v3534, %v3544
        %s3549 = sld [smem:[#allocation2 + $0xfb]]
        %v3550 = vstv %s3549
        %v3551 = vmul.f32 %v3550, %v3527
        %v3552 = vmul.f32 %v3550, %v3528
        %3555 = vrot.lane.b32.xlu0 %v3551, 126
        %v3556 = vpop.permute.xlu0 %3555
        %3557 = vrot.lane.b32.xlu0 %v3552, 126
        %v3558 = vpop.permute.xlu0 %3557
        %v3561 = vadd.f32 %v3547, %v3556
        %v3562 = vadd.f32 %v3548, %v3558
        %s3563 = sld [smem:[#allocation5 + $0x6]]
        %v3564 = vstv %s3563
        %v3565 = vadd.f32 %v3561, %v3564
        %v3566 = vadd.f32 %v3562, %v3564
        %v3567 = vsub.f32 %v3565, 2.0
        %v3568 = vsub.f32 %v3566, 2.0
        %v3569 = vmul.f32 %v3567, %v3567
        %v3570 = vmul.f32 %v3568, %v3568
        %v3571 = vmul.f32 %v3569, -1.0
        %v3572 = vmul.f32 %v3570, -1.0
        %v3573 = vmul.f32 %v3571, 1.442695
        %v3574 = vpow.pop %v3573
        %v3575 = vmul.f32 %v3572, 1.442695
        %v3576 = vpow.pop %v3575
        %vm3577 = vcmp.lt.f32.partialorder %v3565, 2.0
        %vm3578 = vcmp.lt.f32.partialorder %v3566, 2.0
        %v3579 = vmul.f32 %v3574, 1.1
        %v3580 = vmul.f32 %v3576, 1.1
        %v3581 = vmul.f32 %v3574, 0.1
        %v3582 = vmul.f32 %v3576, 0.1
        %v3583 = vadd.f32 %v3581, 1.0
        %v3584 = vadd.f32 %v3582, 1.0
        %v3585 = vsel %vm3577, %v3579, %v3583
        %v3586 = vsel %vm3578, %v3580, %v3584
        %v3587 = vmax.f32 %v3565, 0.0
        %v3588 = vmax.f32 %v3566, 0.0
        %v3589 = vadd.f32 %v3587, 1e-06
        %v3590 = vadd.f32 %v3588, 1e-06
        %v3591 = vlog2.pop %v3589
        %v3592 = vmul.f32 %v3591, 0.6931472
        %v3593 = vlog2.pop %v3590
        %v3594 = vmul.f32 %v3593, 0.6931472
        %v3595 = vmul.f32 %v3592, 0.8
        %v3596 = vmul.f32 %v3594, 0.8
        %v3597 = vmul.f32 %v3595, 1.442695
        %v3598 = vpow.pop %v3597
        %v3599 = vmul.f32 %v3596, 1.442695
        %v3600 = vpow.pop %v3599
        %s3601 = scalar_lea.vmem %s237, 96 [#allocation7]
        %3602 = vst.msk [vmem:[%s3601] sm:$0xff] %vm746, %v3598
        %3603 = vst.msk [vmem:[%s3601 + $0x8] sm:$0xff] %vm746, %v3600
        %s3604 = scalar_lea.vmem %s244, 96 [#allocation8]
        %3605 = vst.msk [vmem:[%s3604] sm:$0xff] %vm746, %v3585
        %3606 = vst.msk [vmem:[%s3604 + $0x8] sm:$0xff] %vm746, %v3586
        %v3607 = vld [vmem:[%s253] sm:$0xff]
        %v3608 = vld [vmem:[%s253 + $0x8] sm:$0xff]
        %s3609 = sld [smem:[#allocation2 + $0xfc]]
        %v3610 = vstv %s3609
        %v3611 = vmul.f32 %v3610, %v3607
        %v3612 = vmul.f32 %v3610, %v3608
        %v3613 = vadd.f32 %v3611, 0.0
        %v3614 = vadd.f32 %v3612, 0.0
        %s3615 = sld [smem:[#allocation2 + $0xfd]]
        %v3616 = vstv %s3615
        %v3617 = vmul.f32 %v3616, %v3607
        %v3618 = vmul.f32 %v3616, %v3608
        %3621 = vrot.lane.b32.xlu0 %v3617, 127
        %v3622 = vpop.permute.xlu0 %3621
        %3623 = vrot.lane.b32.xlu0 %v3618, 127
        %v3624 = vpop.permute.xlu0 %3623
        %v3627 = vadd.f32 %v3613, %v3622
        %v3628 = vadd.f32 %v3614, %v3624
        %s3629 = sld [smem:[#allocation2 + $0xfe]]
        %v3630 = vstv %s3629
        %v3631 = vmul.f32 %v3630, %v3607
        %v3632 = vmul.f32 %v3630, %v3608
        %3635 = vrot.lane.b32.xlu0 %v3631, 126
        %v3636 = vpop.permute.xlu0 %3635
        %3637 = vrot.lane.b32.xlu0 %v3632, 126
        %v3638 = vpop.permute.xlu0 %3637
        %v3641 = vadd.f32 %v3627, %v3636
        %v3642 = vadd.f32 %v3628, %v3638
        %v3643 = vld [vmem:[%s291] sm:$0xff]
        %v3644 = vld [vmem:[%s291 + $0x8] sm:$0xff]
        %s3645 = sld [smem:[#allocation2 + $0xff]]
        %v3646 = vstv %s3645
        %v3647 = vmul.f32 %v3646, %v3643
        %v3648 = vmul.f32 %v3646, %v3644
        %v3649 = vadd.f32 %v3641, %v3647
        %v3650 = vadd.f32 %v3642, %v3648
        %s3651 = sld [smem:[#allocation2 + $0x100]]
        %v3652 = vstv %s3651
        %v3653 = vmul.f32 %v3652, %v3643
        %v3654 = vmul.f32 %v3652, %v3644
        %3657 = vrot.lane.b32.xlu0 %v3653, 127
        %v3658 = vpop.permute.xlu0 %3657
        %3659 = vrot.lane.b32.xlu0 %v3654, 127
        %v3660 = vpop.permute.xlu0 %3659
        %v3663 = vadd.f32 %v3649, %v3658
        %v3664 = vadd.f32 %v3650, %v3660
        %s3665 = sld [smem:[#allocation2 + $0x101]]
        %v3666 = vstv %s3665
        %v3667 = vmul.f32 %v3666, %v3643
        %v3668 = vmul.f32 %v3666, %v3644
        %3671 = vrot.lane.b32.xlu0 %v3667, 126
        %v3672 = vpop.permute.xlu0 %3671
        %3673 = vrot.lane.b32.xlu0 %v3668, 126
        %v3674 = vpop.permute.xlu0 %3673
        %v3677 = vadd.f32 %v3663, %v3672
        %v3678 = vadd.f32 %v3664, %v3674
        %v3679 = vld [vmem:[%s329] sm:$0xff]
        %v3680 = vld [vmem:[%s329 + $0x8] sm:$0xff]
        %s3681 = sld [smem:[#allocation2 + $0x102]]
        %v3682 = vstv %s3681
        %v3683 = vmul.f32 %v3682, %v3679
        %v3684 = vmul.f32 %v3682, %v3680
        %v3685 = vadd.f32 %v3677, %v3683
        %v3686 = vadd.f32 %v3678, %v3684
        %s3687 = sld [smem:[#allocation2 + $0x103]]
        %v3688 = vstv %s3687
        %v3689 = vmul.f32 %v3688, %v3679
        %v3690 = vmul.f32 %v3688, %v3680
        %3693 = vrot.lane.b32.xlu0 %v3689, 127
        %v3694 = vpop.permute.xlu0 %3693
        %3695 = vrot.lane.b32.xlu0 %v3690, 127
        %v3696 = vpop.permute.xlu0 %3695
        %v3699 = vadd.f32 %v3685, %v3694
        %v3700 = vadd.f32 %v3686, %v3696
        %s3701 = sld [smem:[#allocation2 + $0x104]]
        %v3702 = vstv %s3701
        %v3703 = vmul.f32 %v3702, %v3679
        %v3704 = vmul.f32 %v3702, %v3680
        %3707 = vrot.lane.b32.xlu0 %v3703, 126
        %v3708 = vpop.permute.xlu0 %3707
        %3709 = vrot.lane.b32.xlu0 %v3704, 126
        %v3710 = vpop.permute.xlu0 %3709
        %v3713 = vadd.f32 %v3699, %v3708
        %v3714 = vadd.f32 %v3700, %v3710
        %v3715 = vld [vmem:[%s367] sm:$0xff]
        %v3716 = vld [vmem:[%s367 + $0x8] sm:$0xff]
        %s3717 = sld [smem:[#allocation2 + $0x105]]
        %v3718 = vstv %s3717
        %v3719 = vmul.f32 %v3718, %v3715
        %v3720 = vmul.f32 %v3718, %v3716
        %v3721 = vadd.f32 %v3713, %v3719
        %v3722 = vadd.f32 %v3714, %v3720
        %s3723 = sld [smem:[#allocation2 + $0x106]]
        %v3724 = vstv %s3723
        %v3725 = vmul.f32 %v3724, %v3715
        %v3726 = vmul.f32 %v3724, %v3716
        %3729 = vrot.lane.b32.xlu0 %v3725, 127
        %v3730 = vpop.permute.xlu0 %3729
        %3731 = vrot.lane.b32.xlu0 %v3726, 127
        %v3732 = vpop.permute.xlu0 %3731
        %v3735 = vadd.f32 %v3721, %v3730
        %v3736 = vadd.f32 %v3722, %v3732
        %s3737 = sld [smem:[#allocation2 + $0x107]]
        %v3738 = vstv %s3737
        %v3739 = vmul.f32 %v3738, %v3715
        %v3740 = vmul.f32 %v3738, %v3716
        %3743 = vrot.lane.b32.xlu0 %v3739, 126
        %v3744 = vpop.permute.xlu0 %3743
        %3745 = vrot.lane.b32.xlu0 %v3740, 126
        %v3746 = vpop.permute.xlu0 %3745
        %v3749 = vadd.f32 %v3735, %v3744
        %v3750 = vadd.f32 %v3736, %v3746
        %v3751 = vld [vmem:[%s405] sm:$0xff]
        %v3752 = vld [vmem:[%s405 + $0x8] sm:$0xff]
        %s3753 = sld [smem:[#allocation2 + $0x108]]
        %v3754 = vstv %s3753
        %v3755 = vmul.f32 %v3754, %v3751
        %v3756 = vmul.f32 %v3754, %v3752
        %v3757 = vadd.f32 %v3749, %v3755
        %v3758 = vadd.f32 %v3750, %v3756
        %s3759 = sld [smem:[#allocation2 + $0x109]]
        %v3760 = vstv %s3759
        %v3761 = vmul.f32 %v3760, %v3751
        %v3762 = vmul.f32 %v3760, %v3752
        %3765 = vrot.lane.b32.xlu0 %v3761, 127
        %v3766 = vpop.permute.xlu0 %3765
        %3767 = vrot.lane.b32.xlu0 %v3762, 127
        %v3768 = vpop.permute.xlu0 %3767
        %v3771 = vadd.f32 %v3757, %v3766
        %v3772 = vadd.f32 %v3758, %v3768
        %s3773 = sld [smem:[#allocation2 + $0x10a]]
        %v3774 = vstv %s3773
        %v3775 = vmul.f32 %v3774, %v3751
        %v3776 = vmul.f32 %v3774, %v3752
        %3779 = vrot.lane.b32.xlu0 %v3775, 126
        %v3780 = vpop.permute.xlu0 %3779
        %3781 = vrot.lane.b32.xlu0 %v3776, 126
        %v3782 = vpop.permute.xlu0 %3781
        %v3785 = vadd.f32 %v3771, %v3780
        %v3786 = vadd.f32 %v3772, %v3782
        %v3787 = vld [vmem:[%s443] sm:$0xff]
        %v3788 = vld [vmem:[%s443 + $0x8] sm:$0xff]
        %s3789 = sld [smem:[#allocation2 + $0x10b]]
        %v3790 = vstv %s3789
        %v3791 = vmul.f32 %v3790, %v3787
        %v3792 = vmul.f32 %v3790, %v3788
        %v3793 = vadd.f32 %v3785, %v3791
        %v3794 = vadd.f32 %v3786, %v3792
        %s3795 = sld [smem:[#allocation2 + $0x10c]]
        %v3796 = vstv %s3795
        %v3797 = vmul.f32 %v3796, %v3787
        %v3798 = vmul.f32 %v3796, %v3788
        %3801 = vrot.lane.b32.xlu0 %v3797, 127
        %v3802 = vpop.permute.xlu0 %3801
        %3803 = vrot.lane.b32.xlu0 %v3798, 127
        %v3804 = vpop.permute.xlu0 %3803
        %v3807 = vadd.f32 %v3793, %v3802
        %v3808 = vadd.f32 %v3794, %v3804
        %s3809 = sld [smem:[#allocation2 + $0x10d]]
        %v3810 = vstv %s3809
        %v3811 = vmul.f32 %v3810, %v3787
        %v3812 = vmul.f32 %v3810, %v3788
        %3815 = vrot.lane.b32.xlu0 %v3811, 126
        %v3816 = vpop.permute.xlu0 %3815
        %3817 = vrot.lane.b32.xlu0 %v3812, 126
        %v3818 = vpop.permute.xlu0 %3817
        %v3821 = vadd.f32 %v3807, %v3816
        %v3822 = vadd.f32 %v3808, %v3818
        %v3823 = vld [vmem:[%s481] sm:$0xff]
        %v3824 = vld [vmem:[%s481 + $0x8] sm:$0xff]
        %s3825 = sld [smem:[#allocation2 + $0x10e]]
        %v3826 = vstv %s3825
        %v3827 = vmul.f32 %v3826, %v3823
        %v3828 = vmul.f32 %v3826, %v3824
        %v3829 = vadd.f32 %v3821, %v3827
        %v3830 = vadd.f32 %v3822, %v3828
        %s3831 = sld [smem:[#allocation2 + $0x10f]]
        %v3832 = vstv %s3831
        %v3833 = vmul.f32 %v3832, %v3823
        %v3834 = vmul.f32 %v3832, %v3824
        %3837 = vrot.lane.b32.xlu0 %v3833, 127
        %v3838 = vpop.permute.xlu0 %3837
        %3839 = vrot.lane.b32.xlu0 %v3834, 127
        %v3840 = vpop.permute.xlu0 %3839
        %v3843 = vadd.f32 %v3829, %v3838
        %v3844 = vadd.f32 %v3830, %v3840
        %s3845 = sld [smem:[#allocation2 + $0x110]]
        %v3846 = vstv %s3845
        %v3847 = vmul.f32 %v3846, %v3823
        %v3848 = vmul.f32 %v3846, %v3824
        %3851 = vrot.lane.b32.xlu0 %v3847, 126
        %v3852 = vpop.permute.xlu0 %3851
        %3853 = vrot.lane.b32.xlu0 %v3848, 126
        %v3854 = vpop.permute.xlu0 %3853
        %v3857 = vadd.f32 %v3843, %v3852
        %v3858 = vadd.f32 %v3844, %v3854
        %v3859 = vld [vmem:[%s519] sm:$0xff]
        %v3860 = vld [vmem:[%s519 + $0x8] sm:$0xff]
        %s3861 = sld [smem:[#allocation2 + $0x111]]
        %v3862 = vstv %s3861
        %v3863 = vmul.f32 %v3862, %v3859
        %v3864 = vmul.f32 %v3862, %v3860
        %v3865 = vadd.f32 %v3857, %v3863
        %v3866 = vadd.f32 %v3858, %v3864
        %s3867 = sld [smem:[#allocation2 + $0x112]]
        %v3868 = vstv %s3867
        %v3869 = vmul.f32 %v3868, %v3859
        %v3870 = vmul.f32 %v3868, %v3860
        %3873 = vrot.lane.b32.xlu0 %v3869, 127
        %v3874 = vpop.permute.xlu0 %3873
        %3875 = vrot.lane.b32.xlu0 %v3870, 127
        %v3876 = vpop.permute.xlu0 %3875
        %v3879 = vadd.f32 %v3865, %v3874
        %v3880 = vadd.f32 %v3866, %v3876
        %s3881 = sld [smem:[#allocation2 + $0x113]]
        %v3882 = vstv %s3881
        %v3883 = vmul.f32 %v3882, %v3859
        %v3884 = vmul.f32 %v3882, %v3860
        %3887 = vrot.lane.b32.xlu0 %v3883, 126
        %v3888 = vpop.permute.xlu0 %3887
        %3889 = vrot.lane.b32.xlu0 %v3884, 126
        %v3890 = vpop.permute.xlu0 %3889
        %v3893 = vadd.f32 %v3879, %v3888
        %v3894 = vadd.f32 %v3880, %v3890
        %v3895 = vld [vmem:[%s557] sm:$0xff]
        %v3896 = vld [vmem:[%s557 + $0x8] sm:$0xff]
        %s3897 = sld [smem:[#allocation2 + $0x114]]
        %v3898 = vstv %s3897
        %v3899 = vmul.f32 %v3898, %v3895
        %v3900 = vmul.f32 %v3898, %v3896
        %v3901 = vadd.f32 %v3893, %v3899
        %v3902 = vadd.f32 %v3894, %v3900
        %s3903 = sld [smem:[#allocation2 + $0x115]]
        %v3904 = vstv %s3903
        %v3905 = vmul.f32 %v3904, %v3895
        %v3906 = vmul.f32 %v3904, %v3896
        %3909 = vrot.lane.b32.xlu0 %v3905, 127
        %v3910 = vpop.permute.xlu0 %3909
        %3911 = vrot.lane.b32.xlu0 %v3906, 127
        %v3912 = vpop.permute.xlu0 %3911
        %v3915 = vadd.f32 %v3901, %v3910
        %v3916 = vadd.f32 %v3902, %v3912
        %s3917 = sld [smem:[#allocation2 + $0x116]]
        %v3918 = vstv %s3917
        %v3919 = vmul.f32 %v3918, %v3895
        %v3920 = vmul.f32 %v3918, %v3896
        %3923 = vrot.lane.b32.xlu0 %v3919, 126
        %v3924 = vpop.permute.xlu0 %3923
        %3925 = vrot.lane.b32.xlu0 %v3920, 126
        %v3926 = vpop.permute.xlu0 %3925
        %v3929 = vadd.f32 %v3915, %v3924
        %v3930 = vadd.f32 %v3916, %v3926
        %v3931 = vld [vmem:[%s595] sm:$0xff]
        %v3932 = vld [vmem:[%s595 + $0x8] sm:$0xff]
        %s3933 = sld [smem:[#allocation2 + $0x117]]
        %v3934 = vstv %s3933
        %v3935 = vmul.f32 %v3934, %v3931
        %v3936 = vmul.f32 %v3934, %v3932
        %v3937 = vadd.f32 %v3929, %v3935
        %v3938 = vadd.f32 %v3930, %v3936
        %s3939 = sld [smem:[#allocation2 + $0x118]]
        %v3940 = vstv %s3939
        %v3941 = vmul.f32 %v3940, %v3931
        %v3942 = vmul.f32 %v3940, %v3932
        %3945 = vrot.lane.b32.xlu0 %v3941, 127
        %v3946 = vpop.permute.xlu0 %3945
        %3947 = vrot.lane.b32.xlu0 %v3942, 127
        %v3948 = vpop.permute.xlu0 %3947
        %v3951 = vadd.f32 %v3937, %v3946
        %v3952 = vadd.f32 %v3938, %v3948
        %s3953 = sld [smem:[#allocation2 + $0x119]]
        %v3954 = vstv %s3953
        %v3955 = vmul.f32 %v3954, %v3931
        %v3956 = vmul.f32 %v3954, %v3932
        %3959 = vrot.lane.b32.xlu0 %v3955, 126
        %v3960 = vpop.permute.xlu0 %3959
        %3961 = vrot.lane.b32.xlu0 %v3956, 126
        %v3962 = vpop.permute.xlu0 %3961
        %v3965 = vadd.f32 %v3951, %v3960
        %v3966 = vadd.f32 %v3952, %v3962
        %v3967 = vld [vmem:[%s633] sm:$0xff]
        %v3968 = vld [vmem:[%s633 + $0x8] sm:$0xff]
        %s3969 = sld [smem:[#allocation2 + $0x11a]]
        %v3970 = vstv %s3969
        %v3971 = vmul.f32 %v3970, %v3967
        %v3972 = vmul.f32 %v3970, %v3968
        %v3973 = vadd.f32 %v3965, %v3971
        %v3974 = vadd.f32 %v3966, %v3972
        %s3975 = sld [smem:[#allocation2 + $0x11b]]
        %v3976 = vstv %s3975
        %v3977 = vmul.f32 %v3976, %v3967
        %v3978 = vmul.f32 %v3976, %v3968
        %3981 = vrot.lane.b32.xlu0 %v3977, 127
        %v3982 = vpop.permute.xlu0 %3981
        %3983 = vrot.lane.b32.xlu0 %v3978, 127
        %v3984 = vpop.permute.xlu0 %3983
        %v3987 = vadd.f32 %v3973, %v3982
        %v3988 = vadd.f32 %v3974, %v3984
        %s3989 = sld [smem:[#allocation2 + $0x11c]]
        %v3990 = vstv %s3989
        %v3991 = vmul.f32 %v3990, %v3967
        %v3992 = vmul.f32 %v3990, %v3968
        %3995 = vrot.lane.b32.xlu0 %v3991, 126
        %v3996 = vpop.permute.xlu0 %3995
        %3997 = vrot.lane.b32.xlu0 %v3992, 126
        %v3998 = vpop.permute.xlu0 %3997
        %v4001 = vadd.f32 %v3987, %v3996
        %v4002 = vadd.f32 %v3988, %v3998
        %v4003 = vld [vmem:[%s671] sm:$0xff]
        %v4004 = vld [vmem:[%s671 + $0x8] sm:$0xff]
        %s4005 = sld [smem:[#allocation2 + $0x11d]]
        %v4006 = vstv %s4005
        %v4007 = vmul.f32 %v4006, %v4003
        %v4008 = vmul.f32 %v4006, %v4004
        %v4009 = vadd.f32 %v4001, %v4007
        %v4010 = vadd.f32 %v4002, %v4008
        %s4011 = sld [smem:[#allocation2 + $0x11e]]
        %v4012 = vstv %s4011
        %v4013 = vmul.f32 %v4012, %v4003
        %v4014 = vmul.f32 %v4012, %v4004
        %4017 = vrot.lane.b32.xlu0 %v4013, 127
        %v4018 = vpop.permute.xlu0 %4017
        %4019 = vrot.lane.b32.xlu0 %v4014, 127
        %v4020 = vpop.permute.xlu0 %4019
        %v4023 = vadd.f32 %v4009, %v4018
        %v4024 = vadd.f32 %v4010, %v4020
        %s4025 = sld [smem:[#allocation2 + $0x11f]]
        %v4026 = vstv %s4025
        %v4027 = vmul.f32 %v4026, %v4003
        %v4028 = vmul.f32 %v4026, %v4004
        %4031 = vrot.lane.b32.xlu0 %v4027, 126
        %v4032 = vpop.permute.xlu0 %4031
        %4033 = vrot.lane.b32.xlu0 %v4028, 126
        %v4034 = vpop.permute.xlu0 %4033
        %v4037 = vadd.f32 %v4023, %v4032
        %v4038 = vadd.f32 %v4024, %v4034
        %s4039 = sld [smem:[#allocation5 + $0x7]]
        %v4040 = vstv %s4039
        %v4041 = vadd.f32 %v4037, %v4040
        %v4042 = vadd.f32 %v4038, %v4040
        %v4043 = vsub.f32 %v4041, 2.0
        %v4044 = vsub.f32 %v4042, 2.0
        %v4045 = vmul.f32 %v4043, %v4043
        %v4046 = vmul.f32 %v4044, %v4044
        %v4047 = vmul.f32 %v4045, -1.0
        %v4048 = vmul.f32 %v4046, -1.0
        %v4049 = vmul.f32 %v4047, 1.442695
        %v4050 = vpow.pop %v4049
        %v4051 = vmul.f32 %v4048, 1.442695
        %v4052 = vpow.pop %v4051
        %vm4053 = vcmp.lt.f32.partialorder %v4041, 2.0
        %vm4054 = vcmp.lt.f32.partialorder %v4042, 2.0
        %v4055 = vmul.f32 %v4050, 1.1
        %v4056 = vmul.f32 %v4052, 1.1
        %v4057 = vmul.f32 %v4050, 0.1
        %v4058 = vmul.f32 %v4052, 0.1
        %v4059 = vadd.f32 %v4057, 1.0
        %v4060 = vadd.f32 %v4058, 1.0
        %v4061 = vsel %vm4053, %v4055, %v4059
        %v4062 = vsel %vm4054, %v4056, %v4060
        %v4063 = vmax.f32 %v4041, 0.0
        %v4064 = vmax.f32 %v4042, 0.0
        %v4065 = vadd.f32 %v4063, 1e-06
        %v4066 = vadd.f32 %v4064, 1e-06
        %v4067 = vlog2.pop %v4065
        %v4068 = vmul.f32 %v4067, 0.6931472
        %v4069 = vlog2.pop %v4066
        %v4070 = vmul.f32 %v4069, 0.6931472
        %v4071 = vmul.f32 %v4068, 0.8
        %v4072 = vmul.f32 %v4070, 0.8
        %v4073 = vmul.f32 %v4071, 1.442695
        %v4074 = vpow.pop %v4073
        %v4075 = vmul.f32 %v4072, 1.442695
        %v4076 = vpow.pop %v4075
        %s4077 = scalar_lea.vmem %s237, 112 [#allocation7]
        %4078 = vst.msk [vmem:[%s4077] sm:$0xff] %vm746, %v4074
        %4079 = vst.msk [vmem:[%s4077 + $0x8] sm:$0xff] %vm746, %v4076
        %s4080 = scalar_lea.vmem %s244, 112 [#allocation8]
        %4081 = vst.msk [vmem:[%s4080] sm:$0xff] %vm746, %v4061
        %4082 = vst.msk [vmem:[%s4080 + $0x8] sm:$0xff] %vm746, %v4062
        %s4083 = sand.u32 %s114, 1
        %s4084 = scalar_lea.sflag [#allocation3], %s4083
        %s4085 = sand.u32 %s114, 1
        %s4086 = smul.addr %s4085, 128
        %s4087 = scalar_lea.vmem [#allocation7], %s4086
        %s4088 = sand.u32 %s142, 1
        %s4089 = scalar_lea.sflag [#allocation9], %s4088
        %s4090 = sand.u32 %s142, 1
        %s4091 = smul.addr %s4090, 128
        %s4092 = scalar_lea.vmem [#allocation8], %s4091
        // Predicated region
        $region41: #{tpu_custom_call.1} parent=31 // pred_check
          %p4093 = pneg %p124
        $region42: #{tpu_custom_call.1} parent=31 // pred_check_branch
          %4095 = sbr.rel (%p4093) target = $region44
        $region43: #{tpu_custom_call.1} parent=31 // pred_region
          %s4096 = smul.u32 2, %s29
          %s4098 = ssub.s32 2048, 2048
          %4099 = vsyncadd %s4084, %s4098
          %s4100 = smul.addr %s28, 16
          %s4101 = sadd.s32 %s4096, %s4100
          %s4102 = smul.addr %s4101, 128
          %s4103 = scalar_lea.hbm %s3, %s4102
          %s4104 = sshll.u32 %s4087, 4
          %s4105 = int_to_ptr.vmem [resolvable:$true] %s4104
          %4110 = dma.vmem_to_hbm [thread:$0]  %s4105, 2048, %s4103, %s4084, 128, 128, 8
        $region44: #{tpu_custom_call.1} parent=31 // pred_fallthru
          _
        // Predicated region
        $region45: #{tpu_custom_call.1} parent=31 // pred_check
          %p4111 = pneg %p152
        $region46: #{tpu_custom_call.1} parent=31 // pred_check_branch
          %4113 = sbr.rel (%p4111) target = $region48
        $region47: #{tpu_custom_call.1} parent=31 // pred_region
          %s4114 = smul.u32 2, %s29
          %s4116 = ssub.s32 2048, 2048
          %4117 = vsyncadd %s4089, %s4116
          %s4118 = smul.addr %s28, 16
          %s4119 = sadd.s32 %s4114, %s4118
          %s4120 = smul.addr %s4119, 128
          %s4121 = scalar_lea.hbm %s4, %s4120
          %s4122 = sshll.u32 %s4092, 4
          %s4123 = int_to_ptr.vmem [resolvable:$true] %s4122
          %4128 = dma.vmem_to_hbm [thread:$0]  %s4123, 2048, %s4121, %s4089, 128, 128, 8
        $region48: #{tpu_custom_call.1} parent=31 // pred_fallthru
          _
      $region32: #{tpu_custom_call.1} parent=5 // pred_fallthru
        _
      %p4129 = scmp.le.s32.totalorder 2, %s19
      // Predicated region
      $region49: #{tpu_custom_call.1} parent=5 // pred_check
        %p4130 = pneg %p4129
      $region50: #{tpu_custom_call.1} parent=5 // pred_check_branch
        %4132 = sbr.rel (%p4130) target = $region52
      $region51: #{tpu_custom_call.1} parent=5 // pred_region
        %s4133 = ssub.s32 %s19, 2
        // Predicated region
        $region53: #{tpu_custom_call.1} parent=51 // pred_check
          %p4134 = pneg %p130
        $region54: #{tpu_custom_call.1} parent=51 // pred_check_branch
          %4136 = sbr.rel (%p4134) target = $region56
        $region55: #{tpu_custom_call.1} parent=51 // pred_region
          %s4137 = sand.u32 %s115, 1
          %s4138 = scalar_lea.sflag [#allocation3], %s4137
          %s4139 = sand.u32 %s115, 1
          %s4140 = smul.addr %s4139, 128
          %s4141 = scalar_lea.vmem [#allocation7], %s4140
          %4142 = dma.done %s4138, 2048
        $region56: #{tpu_custom_call.1} parent=51 // pred_fallthru
          _
        // Predicated region
        $region57: #{tpu_custom_call.1} parent=51 // pred_check
          %p4143 = pneg %p158
        $region58: #{tpu_custom_call.1} parent=51 // pred_check_branch
          %4145 = sbr.rel (%p4143) target = $region60
        $region59: #{tpu_custom_call.1} parent=51 // pred_region
          %s4146 = sand.u32 %s143, 1
          %s4147 = scalar_lea.sflag [#allocation9], %s4146
          %s4148 = sand.u32 %s143, 1
          %s4149 = smul.addr %s4148, 128
          %s4150 = scalar_lea.vmem [#allocation8], %s4149
          %4151 = dma.done %s4147, 2048
        $region60: #{tpu_custom_call.1} parent=51 // pred_fallthru
          _
      $region52: #{tpu_custom_call.1} parent=5 // pred_fallthru
        _
    $region6: #{tpu_custom_call.1} parent=1 // loop_footer
      %s23 = sadd.s32 1, %s19
    $region7: #{tpu_custom_call.1} parent=1 // loop_footer_branch
      %18 = sbr.rel target = $region3
    $region8: #{tpu_custom_call.1} parent=1 // loop_exit
      _
    %4152 = vsyncpa [#allocation3], 1
    %s4153 = scalar_lea.sflag [#allocation3], 1
    %4154 = vsyncpa %s4153, 1
    %4155 = vsyncpa [#allocation9], 1
    %s4156 = scalar_lea.sflag [#allocation9], 1
    %4157 = vsyncpa %s4156, 1
    %4158 = vsyncpa [#allocation4], 1
    %s4159 = scalar_lea.sflag [#allocation4], 1
    %4160 = vsyncpa %s4159, 1
    %4161 = vsyncpa [#allocation6], 1

</llo_original>
